<compile_context>
chip_gen: v7x
topology: tpu7x:2x2x1
jax: 0.10.0
libtpu: 0.0.40
codegen_flags: <defaults>
</compile_context>

<pallas_src>
import functools

import jax
import jax.numpy as jnp
from jax import lax
from jax.experimental import pallas as pl
from jax.experimental.pallas import tpu as pltpu


# ----------------------------------------------------------------------------
# Helpers
# ----------------------------------------------------------------------------
def _round_up(x, m):
    return (x + m - 1) // m * m


def _pick_tile(mp):
    """Pick an M tile: prefer bigger tiles but keep >=2 grid blocks (megacore)."""
    for cand in (512, 256, 128):
        if mp % cand == 0 and mp // cand >= 2:
            return cand
    return 128 if mp % 128 == 0 else mp


def im2col_nhwc(x, kh, kw, stride, padding):
    """x: (B, H, W, C) -> cols (B*Ho*Wo, kh*kw*C) with (tap-major, channel-minor) cols."""
    B, H, W, C = x.shape
    Ho = (H + 2 * padding - kh) // stride + 1
    Wo = (W + 2 * padding - kw) // stride + 1
    xp = jnp.pad(x, ((0, 0), (padding, padding), (padding, padding), (0, 0)))
    taps = []
    for i in range(kh):
        for j in range(kw):
            taps.append(xp[:, i:i + stride * Ho:stride, j:j + stride * Wo:stride, :])
    cols = jnp.stack(taps, axis=3)                       # (B, Ho, Wo, kh*kw, C)
    return cols.reshape(B * Ho * Wo, kh * kw * C), Ho, Wo


def prep_gate_weight(w, F, Fp):
    """w: (4F, Cin, kh, kw) torch layout -> (Kp, 4*Fp) bf16 matmul weight.

    Rows are (tap*Cin + c) to match im2col_nhwc; each gate's F output columns
    are placed in its own 128-lane-aligned band of width Fp (zeros elsewhere).
    Done once per layer (hoisted out of the time loop).
    """
    Cout, Cin, kh, kw = w.shape
    K = kh * kw * Cin
    w2 = jnp.transpose(w, (2, 3, 1, 0)).reshape(K, 4, F)          # split gates
    w2 = jnp.pad(w2, ((0, 0), (0, 0), (0, Fp - F))).reshape(K, 4 * Fp)
    Kp = _round_up(K, 128)
    w2 = jnp.pad(w2, ((0, Kp - K), (0, 0)))
    return w2.astype(jnp.bfloat16)


# ----------------------------------------------------------------------------
# Pallas kernel 1: tiled matmul (bf16 operands, f32 out) for the sequence-
# batched input->gates projection.
# ----------------------------------------------------------------------------
def _matmul_kernel(a_ref, b_ref, o_ref):
    o_ref[...] = jnp.dot(a_ref[...], b_ref[...], preferred_element_type=jnp.float32)


def pallas_matmul(a, b_pad):
    """a: (M, K) any float dtype; b_pad: (Kp, Np) bf16 already padded/prepped."""
    M, K = a.shape
    Kp, Np = b_pad.shape
    Mp = _round_up(M, 128)
    tm = _pick_tile(Mp)
    a_p = jnp.pad(a.astype(jnp.bfloat16), ((0, Mp - M), (0, Kp - K)))
    out = pl.pallas_call(
        _matmul_kernel,
        out_shape=jax.ShapeDtypeStruct((Mp, Np), jnp.float32),
        grid_spec=pltpu.PrefetchScalarGridSpec(
            num_scalar_prefetch=0,
            grid=(Mp // tm,),
            in_specs=[
                pl.BlockSpec((tm, Kp), lambda i: (i, 0)),
                pl.BlockSpec((Kp, Np), lambda i: (0, 0)),   # weight resident
            ],
            out_specs=pl.BlockSpec((tm, Np), lambda i: (i, 0)),
        ),
        compiler_params=pltpu.CompilerParams(dimension_semantics=("parallel",)),
    )(a_p, b_pad)
    return out[:M]


# ----------------------------------------------------------------------------
# Pallas kernel 2: fused recurrent-gates kernel.
#   gates = cols @ W_r (+ precomputed xproj)  ->  LSTM cell math  ->  hy, cy
# Gate slices are 128-lane aligned (each gate band has width Fp).
# ----------------------------------------------------------------------------
def _gates_kernel(*refs, Fp, has_xproj):
    if has_xproj:
        a_ref, b_ref, xp_ref, c_ref, hy_ref, cy_ref = refs
    else:
        a_ref, b_ref, c_ref, hy_ref, cy_ref = refs
    g = jnp.dot(a_ref[...], b_ref[...], preferred_element_type=jnp.float32)
    if has_xproj:
        g = g + xp_ref[...]
    ingate = jax.nn.sigmoid(g[:, 0:Fp])
    forgetgate = jax.nn.sigmoid(g[:, Fp:2 * Fp])
    cellgate = g[:, 2 * Fp:3 * Fp]                 # NOTE: no tanh (matches reference)
    outgate = jax.nn.sigmoid(g[:, 3 * Fp:4 * Fp])
    cy = forgetgate * c_ref[...] + ingate * cellgate
    hy_ref[...] = outgate * jnp.tanh(cy)
    cy_ref[...] = cy


def pallas_convlstm_gates(cols, w_pad, cx_pad, Fp, xproj=None):
    """cols: (M, K) recurrent im2col rows; w_pad: (Kp, 4*Fp) bf16;
    cx_pad: (M, Fp) f32; xproj: optional (M, 4*Fp) f32.  Returns hy, cy (M, Fp) f32."""
    M, K = cols.shape
    Kp, N4 = w_pad.shape
    Mp = _round_up(M, 128)
    tm = _pick_tile(Mp)

    a_p = jnp.pad(cols.astype(jnp.bfloat16), ((0, Mp - M), (0, Kp - K)))
    c_p = jnp.pad(cx_pad.astype(jnp.float32), ((0, Mp - M), (0, 0)))

    args = [a_p, w_pad]
    in_specs = [
        pl.BlockSpec((tm, Kp), lambda i: (i, 0)),
        pl.BlockSpec((Kp, N4), lambda i: (0, 0)),          # weight resident
    ]
    if xproj is not None:
        xp_p = jnp.pad(xproj.astype(jnp.float32), ((0, Mp - M), (0, 0)))
        args.append(xp_p)
        in_specs.append(pl.BlockSpec((tm, N4), lambda i: (i, 0)))
    args.append(c_p)
    in_specs.append(pl.BlockSpec((tm, Fp), lambda i: (i, 0)))

    hy, cy = pl.pallas_call(
        functools.partial(_gates_kernel, Fp=Fp, has_xproj=xproj is not None),
        out_shape=(jax.ShapeDtypeStruct((Mp, Fp), jnp.float32),
                   jax.ShapeDtypeStruct((Mp, Fp), jnp.float32)),
        grid_spec=pltpu.PrefetchScalarGridSpec(
            num_scalar_prefetch=0,
            grid=(Mp // tm,),
            in_specs=in_specs,
            out_specs=(pl.BlockSpec((tm, Fp), lambda i: (i, 0)),
                       pl.BlockSpec((tm, Fp), lambda i: (i, 0))),
        ),
        compiler_params=pltpu.CompilerParams(dimension_semantics=("parallel",)),
    )(*args)
    return hy[:M], cy[:M]


# ----------------------------------------------------------------------------
# DeepConvLSTM forward (functional)
# ----------------------------------------------------------------------------
def deep_convlstm_forward(params, inputs=None, hx=None, cx=None, seq_len=24):
    """Matches DeepConvLSTM.forward.  inputs: (B, S, C, H, W) NCHW or None.
    hx/cx: lists of (B, F, H, W) or None.  Returns (out (B,S',F,H,W), hx, cx)."""
    F = params["num_features"]
    L = params["num_layers"]
    k = params["kernel_size"]
    pad = params["padding"]
    stride = params["stride"]
    ws = params["cell_weights"]
    Fp = _round_up(F, 128)

    if inputs is not None:
        B, S, C_data, H, W = inputs.shape
        assert seq_len <= S, "seq_len must not exceed the provided sequence length"
    else:
        B, _, H, W = hx[0].shape

    # Hidden state: NHWC; cell state: flat (B*H*W, Fp) lane-padded (fed straight
    # back into the fused kernel each step without repadding).
    if hx is None and cx is None:
        h_list = [jnp.zeros((B, H, W, F), jnp.float32) for _ in range(L)]
        c_list = [jnp.zeros((B * H * W, Fp), jnp.float32) for _ in range(L)]
    else:
        h_list = [jnp.transpose(h, (0, 2, 3, 1)).astype(jnp.float32) for h in hx]
        c_list = [jnp.pad(
            jnp.transpose(c, (0, 2, 3, 1)).reshape(B * H * W, F).astype(jnp.float32),
            ((0, 0), (0, Fp - F))) for c in cx]

    # ---- hoisted weight prep (once per call, not per timestep) ----
    if inputs is not None:
        w0 = ws[0]                                        # (4F, C_data + 2F, k, k)
        wx0 = prep_gate_weight(w0[:, :C_data], F, Fp)     # data-input -> gates
        wr = [prep_gate_weight(w0[:, C_data:], F, Fp)]    # [hx[-1], hx[0]] -> gates
    else:
        wr = [prep_gate_weight(ws[0], F, Fp)]
    for i in range(1, L):
        wr.append(prep_gate_weight(ws[i], F, Fp))

    # ---- sequence-batched input projection (one big matmul) ----
    if inputs is not None:
        x_nhwc = jnp.transpose(inputs, (0, 1, 3, 4, 2)).reshape(B * S, H, W, C_data)
        cols_x, Ho, Wo = im2col_nhwc(x_nhwc, k, k, stride, pad)
        assert Ho == H and Wo == W, "ConvLSTM recurrence requires same-size conv"
        xproj = pallas_matmul(cols_x, wx0)                # (B*S*H*W, 4*Fp) f32
        xproj = xproj.reshape(B, S, H * W, 4 * Fp)
        xproj = jnp.transpose(xproj, (1, 0, 2, 3)).reshape(S, B * H * W, 4 * Fp)
        xs = xproj[:seq_len]
    else:
        xs = None

    # ---- time recurrence as lax.scan ----
    def step(carry, x_t):
        h_l, c_l = list(carry[0]), list(carry[1])
        # layer 0: cell input = cat([inputs[:,t] (via xproj), hx[-1], hx[0]])
        rec = jnp.concatenate([h_l[-1], h_l[0]], axis=-1)
        cols, _, _ = im2col_nhwc(rec, k, k, stride, pad)
        hy, cy = pallas_convlstm_gates(cols, wr[0], c_l[0], Fp, xproj=x_t)
        h_l[0] = hy[:, :F].reshape(B, H, W, F)
        c_l[0] = cy
        # layers 1..L-1: cell input = cat([hx[i-1], hx[i]])
        for i in range(1, L):
            rec = jnp.concatenate([h_l[i - 1], h_l[i]], axis=-1)
            cols, _, _ = im2col_nhwc(rec, k, k, stride, pad)
            hy, cy = pallas_convlstm_gates(cols, wr[i], c_l[i], Fp, xproj=None)
            h_l[i] = hy[:, :F].reshape(B, H, W, F)
            c_l[i] = cy
        return (tuple(h_l), tuple(c_l)), h_l[-1]

    carry0 = (tuple(h_list), tuple(c_list))
    if xs is not None:
        (h_fin, c_fin), out_seq = lax.scan(step, carry0, xs)
    else:
        (h_fin, c_fin), out_seq = lax.scan(step, carry0, None, length=seq_len)

    # out_seq: (S', B, H, W, F) -> (B, S', F, H, W)  (torch stack + permute)
    out = jnp.transpose(out_seq, (1, 0, 4, 2, 3))
    hx_out = [jnp.transpose(h, (0, 3, 1, 2)) for h in h_fin]
    cx_out = [jnp.transpose(c[:, :F].reshape(B, H, W, F), (0, 3, 1, 2)) for c in c_fin]
    return out, hx_out, cx_out


# ----------------------------------------------------------------------------
# Deterministic parameter init (shapes dictated by the PyTorch module)
# ----------------------------------------------------------------------------
def init_params(key, in_channels, num_features, kernel_size=3, padding=1,
                stride=1, num_layers=2):
    keys = jax.random.split(key, num_layers)
    ws = []
    cin0 = in_channels + num_features
    ws.append(jax.random.normal(keys[0], (4 * num_features, cin0, kernel_size, kernel_size),
                                jnp.float32) / jnp.sqrt(cin0 * kernel_size * kernel_size))
    for i in range(1, num_layers):
        cin = 2 * num_features
        ws.append(jax.random.normal(keys[i], (4 * num_features, cin, kernel_size, kernel_size),
                                    jnp.float32) / jnp.sqrt(cin * kernel_size * kernel_size))
    return dict(cell_weights=ws, num_features=num_features, num_layers=num_layers,
                kernel_size=kernel_size, padding=padding, stride=stride)


# ----------------------------------------------------------------------------
if __name__ == "__main__":
    key = jax.random.PRNGKey(0)
    pkey, xkey = jax.random.split(key)

    # Small shapes consistent with the module: layer-0 cell input channels are
    # C_data + num_features (because forward feeds cat([inputs[:,t], hx[-1]])).
    B, S, C, H, W = 2, 8, 4, 16, 16
    F, KSZ, PAD, STRIDE, L = 32, 3, 1, 1, 2
    params = init_params(pkey, in_channels=C + F, num_features=F,
                         kernel_size=KSZ, padding=PAD, stride=STRIDE, num_layers=L)

    x = jax.random.normal(xkey, (B, S, C, H, W), jnp.float32)

    fwd = jax.jit(lambda inp: deep_convlstm_forward(params, inputs=inp, seq_len=S))
    out, hx, cx = fwd(x)
    out = jax.block_until_ready(out)

    assert out.shape == (B, S, F, H, W), out.shape
    assert all(h.shape == (B, F, H, W) for h in hx)
    assert all(c.shape == (B, F, H, W) for c in cx)
    assert bool(jnp.all(jnp.isfinite(out)))
    print("KERNEL_OK")
</pallas_src>

<mosaic_0001>
module attributes {stable_mosaic.version = 11 : i64} {
  func.func @_matmul_kernel(%arg0: i32, %arg1: memref<512x128xbf16, #tpu.memory_space<vmem>>, %arg2: memref<128x512xbf16, #tpu.memory_space<vmem>>, %arg3: memref<512x512xf32, #tpu.memory_space<vmem>>) attributes {dimension_semantics = [#tpu.dimension_semantics<parallel>], iteration_bounds = array<i64: 8>, scalar_prefetch = 0 : i64, scratch_operands = 0 : i64, tpu.core_type = #tpu.core_type<tc>, window_params = [{transform_indices = @transform_0, window_bounds = array<i64: 512, 128>}, {pipeline_mode = #tpu.pipeline_mode<synchronous>, transform_indices = @transform_1, window_bounds = array<i64: 128, 512>}, {transform_indices = @transform_2, window_bounds = array<i64: 512, 512>}]} {
    %c0 = arith.constant 0 : index
    %c0_0 = arith.constant 0 : index
    %0 = vector.load %arg1[%c0, %c0_0] : memref<512x128xbf16, #tpu.memory_space<vmem>>, vector<512x128xbf16>
    %c0_1 = arith.constant 0 : index
    %c0_2 = arith.constant 0 : index
    %1 = vector.load %arg2[%c0_1, %c0_2] : memref<128x512xbf16, #tpu.memory_space<vmem>>, vector<128x512xbf16>
    %cst = arith.constant dense<0.000000e+00> : vector<512x512xf32>
    %2 = tpu.matmul %0, %1, %cst {dimension_numbers = #tpu.dot_dimension_numbers<[1], [0], [0], [1], [0, 0, 1, 1], [], []>} : vector<512x128xbf16>, vector<128x512xbf16>, vector<512x512xf32> -> vector<512x512xf32>
    %c0_3 = arith.constant 0 : index
    %c0_4 = arith.constant 0 : index
    %3 = vector.load %arg3[%c0_3, %c0_4] : memref<512x512xf32, #tpu.memory_space<vmem>>, vector<512x512xf32>
    tpu.vector_store %arg3[%c0_3, %c0_4], %2 {strides = array<i32>} : memref<512x512xf32, #tpu.memory_space<vmem>>, vector<512x512xf32>,
    return
  }
  func.func @transform_0(%arg0: i32) -> (i32, i32) {
    %c0_i32 = arith.constant 0 : i32
    %c0_i32_0 = arith.constant 0 : i32
    return %arg0, %c0_i32 : i32, i32
  }
  func.func @transform_1(%arg0: i32) -> (i32, i32) {
    %c0_i32 = arith.constant 0 : i32
    %c0_i32_0 = arith.constant 0 : i32
    %c0_i32_1 = arith.constant 0 : i32
    return %c0_i32, %c0_i32_0 : i32, i32
  }
  func.func @transform_2(%arg0: i32) -> (i32, i32) {
    %c0_i32 = arith.constant 0 : i32
    %c0_i32_0 = arith.constant 0 : i32
    return %arg0, %c0_i32 : i32, i32
  }
}

module attributes {stable_mosaic.version = 11 : i64} {
  func.func @_gates_kernel(%arg0: i32, %arg1: memref<256x640xbf16, #tpu.memory_space<vmem>>, %arg2: memref<640x512xbf16, #tpu.memory_space<vmem>>, %arg3: memref<256x512xf32, #tpu.memory_space<vmem>>, %arg4: memref<256x128xf32, #tpu.memory_space<vmem>>, %arg5: memref<256x128xf32, #tpu.memory_space<vmem>>, %arg6: memref<256x128xf32, #tpu.memory_space<vmem>>) attributes {dimension_semantics = [#tpu.dimension_semantics<parallel>], iteration_bounds = array<i64: 2>, scalar_prefetch = 0 : i64, scratch_operands = 0 : i64, tpu.core_type = #tpu.core_type<tc>, window_params = [{transform_indices = @transform_0, window_bounds = array<i64: 256, 640>}, {pipeline_mode = #tpu.pipeline_mode<synchronous>, transform_indices = @transform_1, window_bounds = array<i64: 640, 512>}, {transform_indices = @transform_2, window_bounds = array<i64: 256, 512>}, {transform_indices = @transform_3, window_bounds = array<i64: 256, 128>}, {transform_indices = @transform_4, window_bounds = array<i64: 256, 128>}, {transform_indices = @transform_5, window_bounds = array<i64: 256, 128>}]} {
    %c0 = arith.constant 0 : index
    %c0_0 = arith.constant 0 : index
    %0 = vector.load %arg1[%c0, %c0_0] : memref<256x640xbf16, #tpu.memory_space<vmem>>, vector<256x640xbf16>
    %c0_1 = arith.constant 0 : index
    %c0_2 = arith.constant 0 : index
    %1 = vector.load %arg2[%c0_1, %c0_2] : memref<640x512xbf16, #tpu.memory_space<vmem>>, vector<640x512xbf16>
    %cst = arith.constant dense<0.000000e+00> : vector<256x512xf32>
    %2 = tpu.matmul %0, %1, %cst {dimension_numbers = #tpu.dot_dimension_numbers<[1], [0], [0], [1], [0, 0, 1, 1], [], []>} : vector<256x640xbf16>, vector<640x512xbf16>, vector<256x512xf32> -> vector<256x512xf32>
    %c0_3 = arith.constant 0 : index
    %c0_4 = arith.constant 0 : index
    %3 = vector.load %arg3[%c0_3, %c0_4] : memref<256x512xf32, #tpu.memory_space<vmem>>, vector<256x512xf32>
    %4 = arith.addf %2, %3 : vector<256x512xf32>
    %5 = vector.extract_strided_slice %4 {offsets = [0, 0], sizes = [256, 128], strides = [1, 1]} : vector<256x512xf32> to vector<256x128xf32>
    %6 = arith.negf %5 : vector<256x128xf32>
    %7 = math.exp %6 : vector<256x128xf32>
    %cst_5 = arith.constant 1.000000e+00 : f32
    %8 = vector.broadcast %cst_5 : f32 to vector<256x128xf32>
    %9 = arith.addf %8, %7 : vector<256x128xf32>
    %10 = arith.divf %8, %9 : vector<256x128xf32>
    %11 = vector.extract_strided_slice %4 {offsets = [0, 128], sizes = [256, 128], strides = [1, 1]} : vector<256x512xf32> to vector<256x128xf32>
    %12 = arith.negf %11 : vector<256x128xf32>
    %13 = math.exp %12 : vector<256x128xf32>
    %cst_6 = arith.constant 1.000000e+00 : f32
    %14 = vector.broadcast %cst_6 : f32 to vector<256x128xf32>
    %15 = arith.addf %14, %13 : vector<256x128xf32>
    %16 = arith.divf %14, %15 : vector<256x128xf32>
    %17 = vector.extract_strided_slice %4 {offsets = [0, 256], sizes = [256, 128], strides = [1, 1]} : vector<256x512xf32> to vector<256x128xf32>
    %18 = vector.extract_strided_slice %4 {offsets = [0, 384], sizes = [256, 128], strides = [1, 1]} : vector<256x512xf32> to vector<256x128xf32>
    %19 = arith.negf %18 : vector<256x128xf32>
    %20 = math.exp %19 : vector<256x128xf32>
    %cst_7 = arith.constant 1.000000e+00 : f32
    %21 = vector.broadcast %cst_7 : f32 to vector<256x128xf32>
    %22 = arith.addf %21, %20 : vector<256x128xf32>
    %23 = arith.divf %21, %22 : vector<256x128xf32>
    %c0_8 = arith.constant 0 : index
    %c0_9 = arith.constant 0 : index
    %24 = vector.load %arg4[%c0_8, %c0_9] : memref<256x128xf32, #tpu.memory_space<vmem>>, vector<256x128xf32>
    %25 = arith.mulf %16, %24 : vector<256x128xf32>
    %26 = arith.mulf %10, %17 : vector<256x128xf32>
    %27 = arith.addf %25, %26 : vector<256x128xf32>
    %28 = math.tanh %27 : vector<256x128xf32>
    %29 = arith.mulf %23, %28 : vector<256x128xf32>
    %c0_10 = arith.constant 0 : index
    %c0_11 = arith.constant 0 : index
    %30 = vector.load %arg5[%c0_10, %c0_11] : memref<256x128xf32, #tpu.memory_space<vmem>>, vector<256x128xf32>
    tpu.vector_store %arg5[%c0_10, %c0_11], %29 {strides = array<i32>} : memref<256x128xf32, #tpu.memory_space<vmem>>, vector<256x128xf32>,
    %c0_12 = arith.constant 0 : index
    %c0_13 = arith.constant 0 : index
    %31 = vector.load %arg6[%c0_12, %c0_13] : memref<256x128xf32, #tpu.memory_space<vmem>>, vector<256x128xf32>
    tpu.vector_store %arg6[%c0_12, %c0_13], %27 {strides = array<i32>} : memref<256x128xf32, #tpu.memory_space<vmem>>, vector<256x128xf32>,
    return
  }
  func.func @transform_0(%arg0: i32) -> (i32, i32) {
    %c0_i32 = arith.constant 0 : i32
    %c0_i32_0 = arith.constant 0 : i32
    return %arg0, %c0_i32 : i32, i32
  }
  func.func @transform_1(%arg0: i32) -> (i32, i32) {
    %c0_i32 = arith.constant 0 : i32
    %c0_i32_0 = arith.constant 0 : i32
    %c0_i32_1 = arith.constant 0 : i32
    return %c0_i32, %c0_i32_0 : i32, i32
  }
  func.func @transform_2(%arg0: i32) -> (i32, i32) {
    %c0_i32 = arith.constant 0 : i32
    %c0_i32_0 = arith.constant 0 : i32
    return %arg0, %c0_i32 : i32, i32
  }
  func.func @transform_3(%arg0: i32) -> (i32, i32) {
    %c0_i32 = arith.constant 0 : i32
    %c0_i32_0 = arith.constant 0 : i32
    return %arg0, %c0_i32 : i32, i32
  }
  func.func @transform_4(%arg0: i32) -> (i32, i32) {
    %c0_i32 = arith.constant 0 : i32
    %c0_i32_0 = arith.constant 0 : i32
    return %arg0, %c0_i32 : i32, i32
  }
  func.func @transform_5(%arg0: i32) -> (i32, i32) {
    %c0_i32 = arith.constant 0 : i32
    %c0_i32_0 = arith.constant 0 : i32
    return %arg0, %c0_i32 : i32, i32
  }
}

module attributes {stable_mosaic.version = 11 : i64} {
  func.func @_gates_kernel(%arg0: i32, %arg1: memref<256x640xbf16, #tpu.memory_space<vmem>>, %arg2: memref<640x512xbf16, #tpu.memory_space<vmem>>, %arg3: memref<256x128xf32, #tpu.memory_space<vmem>>, %arg4: memref<256x128xf32, #tpu.memory_space<vmem>>, %arg5: memref<256x128xf32, #tpu.memory_space<vmem>>) attributes {dimension_semantics = [#tpu.dimension_semantics<parallel>], iteration_bounds = array<i64: 2>, scalar_prefetch = 0 : i64, scratch_operands = 0 : i64, tpu.core_type = #tpu.core_type<tc>, window_params = [{transform_indices = @transform_0, window_bounds = array<i64: 256, 640>}, {pipeline_mode = #tpu.pipeline_mode<synchronous>, transform_indices = @transform_1, window_bounds = array<i64: 640, 512>}, {transform_indices = @transform_2, window_bounds = array<i64: 256, 128>}, {transform_indices = @transform_3, window_bounds = array<i64: 256, 128>}, {transform_indices = @transform_4, window_bounds = array<i64: 256, 128>}]} {
    %c0 = arith.constant 0 : index
    %c0_0 = arith.constant 0 : index
    %0 = vector.load %arg1[%c0, %c0_0] : memref<256x640xbf16, #tpu.memory_space<vmem>>, vector<256x640xbf16>
    %c0_1 = arith.constant 0 : index
    %c0_2 = arith.constant 0 : index
    %1 = vector.load %arg2[%c0_1, %c0_2] : memref<640x512xbf16, #tpu.memory_space<vmem>>, vector<640x512xbf16>
    %cst = arith.constant dense<0.000000e+00> : vector<256x512xf32>
    %2 = tpu.matmul %0, %1, %cst {dimension_numbers = #tpu.dot_dimension_numbers<[1], [0], [0], [1], [0, 0, 1, 1], [], []>} : vector<256x640xbf16>, vector<640x512xbf16>, vector<256x512xf32> -> vector<256x512xf32>
    %3 = vector.extract_strided_slice %2 {offsets = [0, 0], sizes = [256, 128], strides = [1, 1]} : vector<256x512xf32> to vector<256x128xf32>
    %4 = arith.negf %3 : vector<256x128xf32>
    %5 = math.exp %4 : vector<256x128xf32>
    %cst_3 = arith.constant 1.000000e+00 : f32
    %6 = vector.broadcast %cst_3 : f32 to vector<256x128xf32>
    %7 = arith.addf %6, %5 : vector<256x128xf32>
    %8 = arith.divf %6, %7 : vector<256x128xf32>
    %9 = vector.extract_strided_slice %2 {offsets = [0, 128], sizes = [256, 128], strides = [1, 1]} : vector<256x512xf32> to vector<256x128xf32>
    %10 = arith.negf %9 : vector<256x128xf32>
    %11 = math.exp %10 : vector<256x128xf32>
    %cst_4 = arith.constant 1.000000e+00 : f32
    %12 = vector.broadcast %cst_4 : f32 to vector<256x128xf32>
    %13 = arith.addf %12, %11 : vector<256x128xf32>
    %14 = arith.divf %12, %13 : vector<256x128xf32>
    %15 = vector.extract_strided_slice %2 {offsets = [0, 256], sizes = [256, 128], strides = [1, 1]} : vector<256x512xf32> to vector<256x128xf32>
    %16 = vector.extract_strided_slice %2 {offsets = [0, 384], sizes = [256, 128], strides = [1, 1]} : vector<256x512xf32> to vector<256x128xf32>
    %17 = arith.negf %16 : vector<256x128xf32>
    %18 = math.exp %17 : vector<256x128xf32>
    %cst_5 = arith.constant 1.000000e+00 : f32
    %19 = vector.broadcast %cst_5 : f32 to vector<256x128xf32>
    %20 = arith.addf %19, %18 : vector<256x128xf32>
    %21 = arith.divf %19, %20 : vector<256x128xf32>
    %c0_6 = arith.constant 0 : index
    %c0_7 = arith.constant 0 : index
    %22 = vector.load %arg3[%c0_6, %c0_7] : memref<256x128xf32, #tpu.memory_space<vmem>>, vector<256x128xf32>
    %23 = arith.mulf %14, %22 : vector<256x128xf32>
    %24 = arith.mulf %8, %15 : vector<256x128xf32>
    %25 = arith.addf %23, %24 : vector<256x128xf32>
    %26 = math.tanh %25 : vector<256x128xf32>
    %27 = arith.mulf %21, %26 : vector<256x128xf32>
    %c0_8 = arith.constant 0 : index
    %c0_9 = arith.constant 0 : index
    %28 = vector.load %arg4[%c0_8, %c0_9] : memref<256x128xf32, #tpu.memory_space<vmem>>, vector<256x128xf32>
    tpu.vector_store %arg4[%c0_8, %c0_9], %27 {strides = array<i32>} : memref<256x128xf32, #tpu.memory_space<vmem>>, vector<256x128xf32>,
    %c0_10 = arith.constant 0 : index
    %c0_11 = arith.constant 0 : index
    %29 = vector.load %arg5[%c0_10, %c0_11] : memref<256x128xf32, #tpu.memory_space<vmem>>, vector<256x128xf32>
    tpu.vector_store %arg5[%c0_10, %c0_11], %25 {strides = array<i32>} : memref<256x128xf32, #tpu.memory_space<vmem>>, vector<256x128xf32>,
    return
  }
  func.func @transform_0(%arg0: i32) -> (i32, i32) {
    %c0_i32 = arith.constant 0 : i32
    %c0_i32_0 = arith.constant 0 : i32
    return %arg0, %c0_i32 : i32, i32
  }
  func.func @transform_1(%arg0: i32) -> (i32, i32) {
    %c0_i32 = arith.constant 0 : i32
    %c0_i32_0 = arith.constant 0 : i32
    %c0_i32_1 = arith.constant 0 : i32
    return %c0_i32, %c0_i32_0 : i32, i32
  }
  func.func @transform_2(%arg0: i32) -> (i32, i32) {
    %c0_i32 = arith.constant 0 : i32
    %c0_i32_0 = arith.constant 0 : i32
    return %arg0, %c0_i32 : i32, i32
  }
  func.func @transform_3(%arg0: i32) -> (i32, i32) {
    %c0_i32 = arith.constant 0 : i32
    %c0_i32_0 = arith.constant 0 : i32
    return %arg0, %c0_i32 : i32, i32
  }
  func.func @transform_4(%arg0: i32) -> (i32, i32) {
    %c0_i32 = arith.constant 0 : i32
    %c0_i32_0 = arith.constant 0 : i32
    return %arg0, %c0_i32 : i32, i32
  }
}

</mosaic_0001>

<llo_original>
// kernel: custom-call.3
$region0: #{custom-call.3}
  %s0 = inlined_call_operand.hbm [shape: f32[8,2,16,16,32], index: 0, kind: output, shape index: {}]

// kernel: _lambda_.1
$region0: #{_lambda_.1}
  #allocation0 [shape = 'u32[]', space=smem, size = 0x4, offset = 0x4, fixed_abs, tag = 'smem constant byte address 0x4 - core index']
  #allocation1 [shape = 'u32[144,128]{1,0:T(1,128)}', space=vmem, size = 0x12000, scoped, tag = 'internal scratch']
  %s0 = inlined_call_operand.vmem [shape: bf16[4096,128], index: 0, kind: input, shape index: {}]
  %s1 = inlined_call_operand.vmem [shape: bf16[128,512], index: 1, kind: input, shape index: {}]
  %s2 = inlined_call_operand.vmem [shape: f32[4096,512], index: 2, kind: output, shape index: {}]
  %s3 = sld [smem:[#allocation0]]
  $region41: #{_lambda_.1} parent=0
    _
  %s5 = ssub.s32 1, %s3
  %s6 = scalar_select 0, %s5, %s3
  loop: start=0, step=1, limit=10
  $region2: #{_lambda_.1} parent=0 // loop_pre_header
    _
  $region3: #{_lambda_.1} parent=0 // loop_header
    %s8 = sphi 0, %s12
    %p9 = scmp.ge.s32.totalorder %s8, 10
    %s18 = sphi 0, %s20
    %s21 = sphi 0, %s18
    %s22 = sphi 0, %s21
    %s38 = sphi 0, %s22
    %s42 = sphi 0, %s42
    %s44 = sphi 0, %s42
    %s45 = sphi 0, %s44
    %s59 = sphi 0, %s45
    %s65 = sphi 0, %s67
    %s68 = sphi 0, %s65
    %s69 = sphi 0, %s68
    %s85 = sphi 0, %s69
  $region4: #{_lambda_.1} parent=0 // loop_header_branch
    %11 = sbr.rel (%p9) target = $region8
  $region5: #{_lambda_.1} parent=0 // loop_body
    %s13 = ssub.s32 %s8, 1
    %s14 = ssub.s32 %s8, 2
    %s15 = sadd.s32 %s8, 1
    %s16 = ssub.s32 %s8, %s15
    %p17 = scmp.eq.s32.totalorder %s16, 0
    %s19 = sadd.s32 %s18, 1
    %s20 = scalar_select %p17, %s18, %s19
    %p23 = pneg %p17
    %p24 = scmp.eq.s32.totalorder %s8, 7
    %p25 = por %p23, %p24
    %p26 = scmp.ne.s32.totalorder %s18, %s21
    %p27 = scmp.eq.s32.totalorder %s8, 0
    %p28 = por %p26, %p27
    %p29 = scmp.ne.s32.totalorder %s18, %s21
    %p30 = scmp.eq.s32.totalorder %s13, 7
    %p31 = por %p29, %p30
    %p32 = scmp.ne.s32.totalorder %s21, %s22
    %p33 = scmp.eq.s32.totalorder %s13, 0
    %p34 = por %p32, %p33
    %p35 = scmp.ne.s32.totalorder %s21, %s22
    %p36 = scmp.eq.s32.totalorder %s14, 7
    %p37 = por %p35, %p36
    %p39 = scmp.ne.s32.totalorder %s22, %s38
    %p40 = scmp.eq.s32.totalorder %s14, 0
    %p41 = por %p39, %p40
    %s43 = sadd.s32 %s42, 1
    %p46 = scmp.eq.s32.totalorder %s8, 7
    %p47 = scmp.ne.s32.totalorder %s42, %s44
    %p48 = scmp.eq.s32.totalorder %s8, 0
    %p49 = por %p47, %p48
    %p50 = scmp.ne.s32.totalorder %s42, %s44
    %p51 = scmp.eq.s32.totalorder %s13, 7
    %p52 = por %p50, %p51
    %p53 = scmp.ne.s32.totalorder %s44, %s45
    %p54 = scmp.eq.s32.totalorder %s13, 0
    %p55 = por %p53, %p54
    %p56 = scmp.ne.s32.totalorder %s44, %s45
    %p57 = scmp.eq.s32.totalorder %s14, 7
    %p58 = por %p56, %p57
    %p60 = scmp.ne.s32.totalorder %s45, %s59
    %p61 = scmp.eq.s32.totalorder %s14, 0
    %p62 = por %p60, %p61
    %s63 = ssub.s32 %s8, %s15
    %p64 = scmp.eq.s32.totalorder %s63, 0
    %s66 = sadd.s32 %s65, 1
    %s67 = scalar_select %p64, %s65, %s66
    %p70 = pneg %p64
    %p71 = scmp.eq.s32.totalorder %s8, 7
    %p72 = por %p70, %p71
    %p73 = scmp.ne.s32.totalorder %s65, %s68
    %p74 = scmp.eq.s32.totalorder %s8, 0
    %p75 = por %p73, %p74
    %p76 = scmp.ne.s32.totalorder %s65, %s68
    %p77 = scmp.eq.s32.totalorder %s13, 7
    %p78 = por %p76, %p77
    %p79 = scmp.ne.s32.totalorder %s68, %s69
    %p80 = scmp.eq.s32.totalorder %s13, 0
    %p81 = por %p79, %p80
    %p82 = scmp.ne.s32.totalorder %s68, %s69
    %p83 = scmp.eq.s32.totalorder %s14, 7
    %p84 = por %p82, %p83
    %p86 = scmp.ne.s32.totalorder %s69, %s85
    %p87 = scmp.eq.s32.totalorder %s14, 0
    %p88 = por %p86, %p87
    %p89 = scmp.le.s32.totalorder 1, %s8
    %p90 = scmp.lt.s32.totalorder %s8, 9
    %p91 = pnand %p89, %p90
    %p92 = pneg %p91
    // Predicated region
    $region9: #{_lambda_.1} parent=5 // pred_check
      _
    $region10: #{_lambda_.1} parent=5 // pred_check_branch
      %94 = sbr.rel (%p91) target = $region12
    $region11: #{_lambda_.1} parent=5 // pred_region
      %s95 = ssub.s32 %s8, 1
      // Predicated region
      $region13: #{_lambda_.1} parent=11 // pred_check
        %p96 = pneg %p55
      $region14: #{_lambda_.1} parent=11 // pred_check_branch
        %98 = sbr.rel (%p96) target = $region16
      $region15: #{_lambda_.1} parent=11 // pred_region
        _
      $region16: #{_lambda_.1} parent=11 // pred_fallthru
        _
    $region12: #{_lambda_.1} parent=5 // pred_fallthru
      _
    %p99 = scmp.lt.s32.totalorder %s8, 8
    // Predicated region
    $region17: #{_lambda_.1} parent=5 // pred_check
      %p100 = pneg %p99
    $region18: #{_lambda_.1} parent=5 // pred_check_branch
      %102 = sbr.rel (%p100) target = $region20
    $region19: #{_lambda_.1} parent=5 // pred_region
      // Predicated region
      $region21: #{_lambda_.1} parent=19 // pred_check
        %p103 = pneg %p28
      $region22: #{_lambda_.1} parent=19 // pred_check_branch
        %105 = sbr.rel (%p103) target = $region24
      $region23: #{_lambda_.1} parent=19 // pred_region
        %s106 = smul.u32 64, %s8
        %p107 = scmp.lt.s32.totalorder %s106, 511
        %s108 = scalar_select %p107, %s106, 511
        %s109 = smul.addr %s108, 4
        %s110 = scalar_lea.vmem %s0, %s109
        %s111 = smul.u32 64, %s8
      $region24: #{_lambda_.1} parent=19 // pred_fallthru
        _
    $region20: #{_lambda_.1} parent=5 // pred_fallthru
      _
    %p112 = scmp.le.s32.totalorder 1, %s8
    %p113 = scmp.lt.s32.totalorder %s8, 9
    %p114 = pnand %p112, %p113
    %p115 = pneg %p114
    // Predicated region
    $region25: #{_lambda_.1} parent=5 // pred_check
      _
    $region26: #{_lambda_.1} parent=5 // pred_check_branch
      %117 = sbr.rel (%p114) target = $region28
    $region27: #{_lambda_.1} parent=5 // pred_region
      %s118 = ssub.s32 %s8, 1
      %s119 = smul.u32 64, %s13
      %p120 = scmp.lt.s32.totalorder %s119, 511
      %s121 = scalar_select %p120, %s119, 511
      %s122 = smul.addr %s121, 4
      %s123 = scalar_lea.vmem %s0, %s122
      %p124 = pneg %p34
      %p125 = pneg %p31
      %p126 = pneg %p55
      %p127 = pneg %p52
      %p128 = pneg %p81
      %p129 = pneg %p78
      %s130 = smul.u32 64, %s13
      %p131 = scmp.lt.s32.totalorder %s130, 511
      %s132 = scalar_select %p131, %s130, 511
      %s133 = smul.addr %s132, 4
      %s134 = smul.addr %s133, 8
      %s135 = scalar_lea.vmem %s2, %s134
      %s136 = smul.u32 64, %s13
      %p137 = scmp.lt.s32.totalorder %s136, 511
      %s138 = scalar_select %p137, %s136, 511
      %s139 = smul.addr %s138, 4
      %s140 = scalar_lea.vmem %s0, %s139
      %s141 = smul.u32 64, %s13
      %s142 = smul.u32 64, %s13
      %p143 = scmp.lt.s32.totalorder %s142, 511
      %s144 = scalar_select %p143, %s142, 511
      %s145 = smul.addr %s144, 4
      %s146 = smul.addr %s145, 8
      %s147 = scalar_lea.vmem %s2, %s146
      %s148 = smul.u32 64, %s13
      %v150 = vld [vmem:[%s140] sm:$0xf]
      %v151 = vld [vmem:[%s140 + $0x4] sm:$0xf]
      %v152 = vld [vmem:[%s140 + $0x8] sm:$0xf]
      %v153 = vld [vmem:[%s140 + $0xc] sm:$0xf]
      %v154 = vld [vmem:[%s140 + $0x10] sm:$0xf]
      %v155 = vld [vmem:[%s140 + $0x14] sm:$0xf]
      %v156 = vld [vmem:[%s140 + $0x18] sm:$0xf]
      %v157 = vld [vmem:[%s140 + $0x1c] sm:$0xf]
      %v158 = vld [vmem:[%s140 + $0x20] sm:$0xf]
      %v159 = vld [vmem:[%s140 + $0x24] sm:$0xf]
      %v160 = vld [vmem:[%s140 + $0x28] sm:$0xf]
      %v161 = vld [vmem:[%s140 + $0x2c] sm:$0xf]
      %v162 = vld [vmem:[%s140 + $0x30] sm:$0xf]
      %v163 = vld [vmem:[%s140 + $0x34] sm:$0xf]
      %v164 = vld [vmem:[%s140 + $0x38] sm:$0xf]
      %v165 = vld [vmem:[%s140 + $0x3c] sm:$0xf]
      %v166 = vld [vmem:[%s140 + $0x40] sm:$0xf]
      %v167 = vld [vmem:[%s140 + $0x44] sm:$0xf]
      %v168 = vld [vmem:[%s140 + $0x48] sm:$0xf]
      %v169 = vld [vmem:[%s140 + $0x4c] sm:$0xf]
      %v170 = vld [vmem:[%s140 + $0x50] sm:$0xf]
      %v171 = vld [vmem:[%s140 + $0x54] sm:$0xf]
      %v172 = vld [vmem:[%s140 + $0x58] sm:$0xf]
      %v173 = vld [vmem:[%s140 + $0x5c] sm:$0xf]
      %v174 = vld [vmem:[%s140 + $0x60] sm:$0xf]
      %v175 = vld [vmem:[%s140 + $0x64] sm:$0xf]
      %v176 = vld [vmem:[%s140 + $0x68] sm:$0xf]
      %v177 = vld [vmem:[%s140 + $0x6c] sm:$0xf]
      %v178 = vld [vmem:[%s140 + $0x70] sm:$0xf]
      %v179 = vld [vmem:[%s140 + $0x74] sm:$0xf]
      %v180 = vld [vmem:[%s140 + $0x78] sm:$0xf]
      %v181 = vld [vmem:[%s140 + $0x7c] sm:$0xf]
      %v182 = vld [vmem:[%s140 + $0x80] sm:$0xf]
      %v183 = vld [vmem:[%s140 + $0x84] sm:$0xf]
      %v184 = vld [vmem:[%s140 + $0x88] sm:$0xf]
      %v185 = vld [vmem:[%s140 + $0x8c] sm:$0xf]
      %v186 = vld [vmem:[%s140 + $0x90] sm:$0xf]
      %v187 = vld [vmem:[%s140 + $0x94] sm:$0xf]
      %v188 = vld [vmem:[%s140 + $0x98] sm:$0xf]
      %v189 = vld [vmem:[%s140 + $0x9c] sm:$0xf]
      %v190 = vld [vmem:[%s140 + $0xa0] sm:$0xf]
      %v191 = vld [vmem:[%s140 + $0xa4] sm:$0xf]
      %v192 = vld [vmem:[%s140 + $0xa8] sm:$0xf]
      %v193 = vld [vmem:[%s140 + $0xac] sm:$0xf]
      %v194 = vld [vmem:[%s140 + $0xb0] sm:$0xf]
      %v195 = vld [vmem:[%s140 + $0xb4] sm:$0xf]
      %v196 = vld [vmem:[%s140 + $0xb8] sm:$0xf]
      %v197 = vld [vmem:[%s140 + $0xbc] sm:$0xf]
      %v198 = vld [vmem:[%s140 + $0xc0] sm:$0xf]
      %v199 = vld [vmem:[%s140 + $0xc4] sm:$0xf]
      %v200 = vld [vmem:[%s140 + $0xc8] sm:$0xf]
      %v201 = vld [vmem:[%s140 + $0xcc] sm:$0xf]
      %v202 = vld [vmem:[%s140 + $0xd0] sm:$0xf]
      %v203 = vld [vmem:[%s140 + $0xd4] sm:$0xf]
      %v204 = vld [vmem:[%s140 + $0xd8] sm:$0xf]
      %v205 = vld [vmem:[%s140 + $0xdc] sm:$0xf]
      %v206 = vld [vmem:[%s140 + $0xe0] sm:$0xf]
      %v207 = vld [vmem:[%s140 + $0xe4] sm:$0xf]
      %v208 = vld [vmem:[%s140 + $0xe8] sm:$0xf]
      %v209 = vld [vmem:[%s140 + $0xec] sm:$0xf]
      %v210 = vld [vmem:[%s140 + $0xf0] sm:$0xf]
      %v211 = vld [vmem:[%s140 + $0xf4] sm:$0xf]
      %v212 = vld [vmem:[%s140 + $0xf8] sm:$0xf]
      %v213 = vld [vmem:[%s140 + $0xfc] sm:$0xf]
      %v214 = vld [vmem:[%s1] sm:$0xff]
      %v215 = vld [vmem:[%s1 + $0x8] sm:$0xff]
      %v216 = vld [vmem:[%s1 + $0x10] sm:$0xff]
      %v217 = vld [vmem:[%s1 + $0x18] sm:$0xff]
      %v218 = vld [vmem:[%s1 + $0x20] sm:$0xff]
      %v219 = vld [vmem:[%s1 + $0x28] sm:$0xff]
      %v220 = vld [vmem:[%s1 + $0x30] sm:$0xff]
      %v221 = vld [vmem:[%s1 + $0x38] sm:$0xff]
      %v222 = vld [vmem:[%s1 + $0x40] sm:$0xff]
      %v223 = vld [vmem:[%s1 + $0x48] sm:$0xff]
      %v224 = vld [vmem:[%s1 + $0x50] sm:$0xff]
      %v225 = vld [vmem:[%s1 + $0x58] sm:$0xff]
      %v226 = vld [vmem:[%s1 + $0x60] sm:$0xff]
      %v227 = vld [vmem:[%s1 + $0x68] sm:$0xff]
      %v228 = vld [vmem:[%s1 + $0x70] sm:$0xff]
      %v229 = vld [vmem:[%s1 + $0x78] sm:$0xff]
      %v230 = vld [vmem:[%s1 + $0x80] sm:$0xff]
      %v231 = vld [vmem:[%s1 + $0x88] sm:$0xff]
      %v232 = vld [vmem:[%s1 + $0x90] sm:$0xff]
      %v233 = vld [vmem:[%s1 + $0x98] sm:$0xff]
      %v234 = vld [vmem:[%s1 + $0xa0] sm:$0xff]
      %v235 = vld [vmem:[%s1 + $0xa8] sm:$0xff]
      %v236 = vld [vmem:[%s1 + $0xb0] sm:$0xff]
      %v237 = vld [vmem:[%s1 + $0xb8] sm:$0xff]
      %v238 = vld [vmem:[%s1 + $0xc0] sm:$0xff]
      %v239 = vld [vmem:[%s1 + $0xc8] sm:$0xff]
      %v240 = vld [vmem:[%s1 + $0xd0] sm:$0xff]
      %v241 = vld [vmem:[%s1 + $0xd8] sm:$0xff]
      %v242 = vld [vmem:[%s1 + $0xe0] sm:$0xff]
      %v243 = vld [vmem:[%s1 + $0xe8] sm:$0xff]
      %v244 = vld [vmem:[%s1 + $0xf0] sm:$0xff]
      %v245 = vld [vmem:[%s1 + $0xf8] sm:$0xff]
      %v310 = vunpack.c.l.b16 %v150
      %v311 = vunpack.c.l.b16 %v151
      %v312 = vunpack.c.l.b16 %v152
      %v313 = vunpack.c.l.b16 %v153
      %v314 = vunpack.c.l.b16 %v154
      %v315 = vunpack.c.l.b16 %v155
      %v316 = vunpack.c.l.b16 %v156
      %v317 = vunpack.c.l.b16 %v157
      %v318 = vunpack.c.l.b16 %v158
      %v319 = vunpack.c.l.b16 %v159
      %v320 = vunpack.c.l.b16 %v160
      %v321 = vunpack.c.l.b16 %v161
      %v322 = vunpack.c.l.b16 %v162
      %v323 = vunpack.c.l.b16 %v163
      %v324 = vunpack.c.l.b16 %v164
      %v325 = vunpack.c.l.b16 %v165
      %v326 = vunpack.c.l.b16 %v166
      %v327 = vunpack.c.l.b16 %v167
      %v328 = vunpack.c.l.b16 %v168
      %v329 = vunpack.c.l.b16 %v169
      %v330 = vunpack.c.l.b16 %v170
      %v331 = vunpack.c.l.b16 %v171
      %v332 = vunpack.c.l.b16 %v172
      %v333 = vunpack.c.l.b16 %v173
      %v334 = vunpack.c.l.b16 %v174
      %v335 = vunpack.c.l.b16 %v175
      %v336 = vunpack.c.l.b16 %v176
      %v337 = vunpack.c.l.b16 %v177
      %v338 = vunpack.c.l.b16 %v178
      %v339 = vunpack.c.l.b16 %v179
      %v340 = vunpack.c.l.b16 %v180
      %v341 = vunpack.c.l.b16 %v181
      %v342 = vunpack.c.l.b16 %v182
      %v343 = vunpack.c.l.b16 %v183
      %v344 = vunpack.c.l.b16 %v184
      %v345 = vunpack.c.l.b16 %v185
      %v346 = vunpack.c.l.b16 %v186
      %v347 = vunpack.c.l.b16 %v187
      %v348 = vunpack.c.l.b16 %v188
      %v349 = vunpack.c.l.b16 %v189
      %v350 = vunpack.c.l.b16 %v190
      %v351 = vunpack.c.l.b16 %v191
      %v352 = vunpack.c.l.b16 %v192
      %v353 = vunpack.c.l.b16 %v193
      %v354 = vunpack.c.l.b16 %v194
      %v355 = vunpack.c.l.b16 %v195
      %v356 = vunpack.c.l.b16 %v196
      %v357 = vunpack.c.l.b16 %v197
      %v358 = vunpack.c.l.b16 %v198
      %v359 = vunpack.c.l.b16 %v199
      %v360 = vunpack.c.l.b16 %v200
      %v361 = vunpack.c.l.b16 %v201
      %v362 = vunpack.c.l.b16 %v202
      %v363 = vunpack.c.l.b16 %v203
      %v364 = vunpack.c.l.b16 %v204
      %v365 = vunpack.c.l.b16 %v205
      %v366 = vunpack.c.l.b16 %v206
      %v367 = vunpack.c.l.b16 %v207
      %v368 = vunpack.c.l.b16 %v208
      %v369 = vunpack.c.l.b16 %v209
      %v370 = vunpack.c.l.b16 %v210
      %v371 = vunpack.c.l.b16 %v211
      %v372 = vunpack.c.l.b16 %v212
      %v373 = vunpack.c.l.b16 %v213
      %v374 = vpack.c.b16 %v311, %v310
      %v375 = vpack.c.b16 %v313, %v312
      %v376 = vpack.c.b16 %v315, %v314
      %v377 = vpack.c.b16 %v317, %v316
      %v378 = vpack.c.b16 %v319, %v318
      %v379 = vpack.c.b16 %v321, %v320
      %v380 = vpack.c.b16 %v323, %v322
      %v381 = vpack.c.b16 %v325, %v324
      %v382 = vpack.c.b16 %v327, %v326
      %v383 = vpack.c.b16 %v329, %v328
      %v384 = vpack.c.b16 %v331, %v330
      %v385 = vpack.c.b16 %v333, %v332
      %v386 = vpack.c.b16 %v335, %v334
      %v387 = vpack.c.b16 %v337, %v336
      %v388 = vpack.c.b16 %v339, %v338
      %v389 = vpack.c.b16 %v341, %v340
      %v390 = vpack.c.b16 %v343, %v342
      %v391 = vpack.c.b16 %v345, %v344
      %v392 = vpack.c.b16 %v347, %v346
      %v393 = vpack.c.b16 %v349, %v348
      %v394 = vpack.c.b16 %v351, %v350
      %v395 = vpack.c.b16 %v353, %v352
      %v396 = vpack.c.b16 %v355, %v354
      %v397 = vpack.c.b16 %v357, %v356
      %v398 = vpack.c.b16 %v359, %v358
      %v399 = vpack.c.b16 %v361, %v360
      %v400 = vpack.c.b16 %v363, %v362
      %v401 = vpack.c.b16 %v365, %v364
      %v402 = vpack.c.b16 %v367, %v366
      %v403 = vpack.c.b16 %v369, %v368
      %v404 = vpack.c.b16 %v371, %v370
      %v405 = vpack.c.b16 %v373, %v372
      %v470 = vunpack.c.l.b16 %v214
      %v471 = vunpack.c.h.b16 %v214
      %v472 = vunpack.c.l.b16 %v215
      %v473 = vunpack.c.h.b16 %v215
      %v474 = vunpack.c.l.b16 %v216
      %v475 = vunpack.c.h.b16 %v216
      %v476 = vunpack.c.l.b16 %v217
      %v477 = vunpack.c.h.b16 %v217
      %v478 = vunpack.c.l.b16 %v218
      %v479 = vunpack.c.h.b16 %v218
      %v480 = vunpack.c.l.b16 %v219
      %v481 = vunpack.c.h.b16 %v219
      %v482 = vunpack.c.l.b16 %v220
      %v483 = vunpack.c.h.b16 %v220
      %v484 = vunpack.c.l.b16 %v221
      %v485 = vunpack.c.h.b16 %v221
      %v486 = vunpack.c.l.b16 %v222
      %v487 = vunpack.c.h.b16 %v222
      %v488 = vunpack.c.l.b16 %v223
      %v489 = vunpack.c.h.b16 %v223
      %v490 = vunpack.c.l.b16 %v224
      %v491 = vunpack.c.h.b16 %v224
      %v492 = vunpack.c.l.b16 %v225
      %v493 = vunpack.c.h.b16 %v225
      %v494 = vunpack.c.l.b16 %v226
      %v495 = vunpack.c.h.b16 %v226
      %v496 = vunpack.c.l.b16 %v227
      %v497 = vunpack.c.h.b16 %v227
      %v498 = vunpack.c.l.b16 %v228
      %v499 = vunpack.c.h.b16 %v228
      %v500 = vunpack.c.l.b16 %v229
      %v501 = vunpack.c.h.b16 %v229
      %v502 = vunpack.c.l.b16 %v230
      %v503 = vunpack.c.h.b16 %v230
      %v504 = vunpack.c.l.b16 %v231
      %v505 = vunpack.c.h.b16 %v231
      %v506 = vunpack.c.l.b16 %v232
      %v507 = vunpack.c.h.b16 %v232
      %v508 = vunpack.c.l.b16 %v233
      %v509 = vunpack.c.h.b16 %v233
      %v510 = vunpack.c.l.b16 %v234
      %v511 = vunpack.c.h.b16 %v234
      %v512 = vunpack.c.l.b16 %v235
      %v513 = vunpack.c.h.b16 %v235
      %v514 = vunpack.c.l.b16 %v236
      %v515 = vunpack.c.h.b16 %v236
      %v516 = vunpack.c.l.b16 %v237
      %v517 = vunpack.c.h.b16 %v237
      %v518 = vunpack.c.l.b16 %v238
      %v519 = vunpack.c.h.b16 %v238
      %v520 = vunpack.c.l.b16 %v239
      %v521 = vunpack.c.h.b16 %v239
      %v522 = vunpack.c.l.b16 %v240
      %v523 = vunpack.c.h.b16 %v240
      %v524 = vunpack.c.l.b16 %v241
      %v525 = vunpack.c.h.b16 %v241
      %v526 = vunpack.c.l.b16 %v242
      %v527 = vunpack.c.h.b16 %v242
      %v528 = vunpack.c.l.b16 %v243
      %v529 = vunpack.c.h.b16 %v243
      %v530 = vunpack.c.l.b16 %v244
      %v531 = vunpack.c.h.b16 %v244
      %v532 = vunpack.c.l.b16 %v245
      %v533 = vunpack.c.h.b16 %v245
      %v534 = vpack.c.b16 %v474, %v470
      %v535 = vpack.c.b16 %v475, %v471
      %v536 = vpack.c.b16 %v476, %v472
      %v537 = vpack.c.b16 %v477, %v473
      %v538 = vpack.c.b16 %v482, %v478
      %v539 = vpack.c.b16 %v483, %v479
      %v540 = vpack.c.b16 %v484, %v480
      %v541 = vpack.c.b16 %v485, %v481
      %v542 = vpack.c.b16 %v490, %v486
      %v543 = vpack.c.b16 %v491, %v487
      %v544 = vpack.c.b16 %v492, %v488
      %v545 = vpack.c.b16 %v493, %v489
      %v546 = vpack.c.b16 %v498, %v494
      %v547 = vpack.c.b16 %v499, %v495
      %v548 = vpack.c.b16 %v500, %v496
      %v549 = vpack.c.b16 %v501, %v497
      %v550 = vpack.c.b16 %v506, %v502
      %v551 = vpack.c.b16 %v507, %v503
      %v552 = vpack.c.b16 %v508, %v504
      %v553 = vpack.c.b16 %v509, %v505
      %v554 = vpack.c.b16 %v514, %v510
      %v555 = vpack.c.b16 %v515, %v511
      %v556 = vpack.c.b16 %v516, %v512
      %v557 = vpack.c.b16 %v517, %v513
      %v558 = vpack.c.b16 %v522, %v518
      %v559 = vpack.c.b16 %v523, %v519
      %v560 = vpack.c.b16 %v524, %v520
      %v561 = vpack.c.b16 %v525, %v521
      %v562 = vpack.c.b16 %v530, %v526
      %v563 = vpack.c.b16 %v531, %v527
      %v564 = vpack.c.b16 %v532, %v528
      %v565 = vpack.c.b16 %v533, %v529
      %598 = vmatprep.subr.bf16.mxu0 %v535
      %599 = vmatpush1.bf16.msra.mxu0 %v534
      %600 = vmatprep.subr.bf16.mxu0 %v539
      %601 = vmatpush1.bf16.msra.mxu0 %v538
      %602 = vmatprep.subr.bf16.mxu0 %v543
      %603 = vmatpush1.bf16.msra.mxu0 %v542
      %604 = vmatprep.subr.bf16.mxu0 %v547
      %605 = vmatpush1.bf16.msra.mxu0 %v546
      %606 = vmatprep.subr.bf16.mxu0 %v551
      %607 = vmatpush1.bf16.msra.mxu0 %v550
      %608 = vmatprep.subr.bf16.mxu0 %v555
      %609 = vmatpush1.bf16.msra.mxu0 %v554
      %610 = vmatprep.subr.bf16.mxu0 %v559
      %611 = vmatpush1.bf16.msra.mxu0 %v558
      %612 = vmatprep.subr.bf16.mxu0 %v563
      %613 = vmatpush1.bf16.msra.mxu0 %v562
      %614 = vmatprep.subr.bf16.mxu0 0
      %615 = vmatpush1.bf16.msra.mxu0 0
      %616 = vmatprep.subr.bf16.mxu0 0
      %617 = vmatpush1.bf16.msra.mxu0 0
      %618 = vmatprep.subr.bf16.mxu0 0
      %619 = vmatpush1.bf16.msra.mxu0 0
      %620 = vmatprep.subr.bf16.mxu0 0
      %621 = vmatpush1.bf16.msra.mxu0 0
      %622 = vmatprep.subr.bf16.mxu0 0
      %623 = vmatpush1.bf16.msra.mxu0 0
      %624 = vmatprep.subr.bf16.mxu0 0
      %625 = vmatpush1.bf16.msra.mxu0 0
      %626 = vmatprep.subr.bf16.mxu0 0
      %627 = vmatpush1.bf16.msra.mxu0 0
      %628 = vmatprep.subr.bf16.mxu0 0
      %629 = vmatpush1.bf16.msra.mxu0 0
      %630 = vmatprep.mubr.bf16.mxu0 0
      %631 = vmatmul.mubr.bf16.gmra.mrb[0].mxu0 %v374
      %v632 = vpop.f32.mrb[0].mxu0
      %v633 = vadd.f32 0.0, %v632
      %v634 = vpop.f32.mrb[0].mxu0
      %v635 = vadd.f32 0.0, %v634
      %v636 = vpop.f32.mrb[0].mxu0
      %v637 = vadd.f32 0.0, %v636
      %v638 = vpop.f32.mrb[0].mxu0
      %v639 = vadd.f32 0.0, %v638
      %640 = vmatprep.mubr.bf16.mxu0 0
      %641 = vmatmul.mubr.bf16.gmra.mrb[0].mxu0 %v375
      %v642 = vpop.f32.mrb[0].mxu0
      %v643 = vadd.f32 0.0, %v642
      %v644 = vpop.f32.mrb[0].mxu0
      %v645 = vadd.f32 0.0, %v644
      %v646 = vpop.f32.mrb[0].mxu0
      %v647 = vadd.f32 0.0, %v646
      %v648 = vpop.f32.mrb[0].mxu0
      %v649 = vadd.f32 0.0, %v648
      %650 = vmatprep.mubr.bf16.mxu0 0
      %651 = vmatmul.mubr.bf16.gmra.mrb[0].mxu0 %v376
      %v652 = vpop.f32.mrb[0].mxu0
      %v653 = vadd.f32 0.0, %v652
      %v654 = vpop.f32.mrb[0].mxu0
      %v655 = vadd.f32 0.0, %v654
      %v656 = vpop.f32.mrb[0].mxu0
      %v657 = vadd.f32 0.0, %v656
      %v658 = vpop.f32.mrb[0].mxu0
      %v659 = vadd.f32 0.0, %v658
      %660 = vmatprep.mubr.bf16.mxu0 0
      %661 = vmatmul.mubr.bf16.gmra.mrb[0].mxu0 %v377
      %v662 = vpop.f32.mrb[0].mxu0
      %v663 = vadd.f32 0.0, %v662
      %v664 = vpop.f32.mrb[0].mxu0
      %v665 = vadd.f32 0.0, %v664
      %v666 = vpop.f32.mrb[0].mxu0
      %v667 = vadd.f32 0.0, %v666
      %v668 = vpop.f32.mrb[0].mxu0
      %v669 = vadd.f32 0.0, %v668
      %670 = vmatprep.mubr.bf16.mxu0 0
      %671 = vmatmul.mubr.bf16.gmra.mrb[0].mxu0 %v378
      %v672 = vpop.f32.mrb[0].mxu0
      %v673 = vadd.f32 0.0, %v672
      %v674 = vpop.f32.mrb[0].mxu0
      %v675 = vadd.f32 0.0, %v674
      %v676 = vpop.f32.mrb[0].mxu0
      %v677 = vadd.f32 0.0, %v676
      %v678 = vpop.f32.mrb[0].mxu0
      %v679 = vadd.f32 0.0, %v678
      %680 = vmatprep.mubr.bf16.mxu0 0
      %681 = vmatmul.mubr.bf16.gmra.mrb[0].mxu0 %v379
      %v682 = vpop.f32.mrb[0].mxu0
      %v683 = vadd.f32 0.0, %v682
      %v684 = vpop.f32.mrb[0].mxu0
      %v685 = vadd.f32 0.0, %v684
      %v686 = vpop.f32.mrb[0].mxu0
      %v687 = vadd.f32 0.0, %v686
      %v688 = vpop.f32.mrb[0].mxu0
      %v689 = vadd.f32 0.0, %v688
      %690 = vmatprep.mubr.bf16.mxu0 0
      %691 = vmatmul.mubr.bf16.gmra.mrb[0].mxu0 %v380
      %v692 = vpop.f32.mrb[0].mxu0
      %v693 = vadd.f32 0.0, %v692
      %v694 = vpop.f32.mrb[0].mxu0
      %v695 = vadd.f32 0.0, %v694
      %v696 = vpop.f32.mrb[0].mxu0
      %v697 = vadd.f32 0.0, %v696
      %v698 = vpop.f32.mrb[0].mxu0
      %v699 = vadd.f32 0.0, %v698
      %700 = vmatprep.mubr.bf16.mxu0 0
      %701 = vmatmul.mubr.bf16.gmra.mrb[0].mxu0 %v381
      %v702 = vpop.f32.mrb[0].mxu0
      %v703 = vadd.f32 0.0, %v702
      %v704 = vpop.f32.mrb[0].mxu0
      %v705 = vadd.f32 0.0, %v704
      %v706 = vpop.f32.mrb[0].mxu0
      %v707 = vadd.f32 0.0, %v706
      %v708 = vpop.f32.mrb[0].mxu0
      %v709 = vadd.f32 0.0, %v708
      %710 = vmatprep.mubr.bf16.mxu0 0
      %711 = vmatmul.mubr.bf16.gmra.mrb[0].mxu0 %v382
      %v712 = vpop.f32.mrb[0].mxu0
      %v713 = vadd.f32 0.0, %v712
      %v714 = vpop.f32.mrb[0].mxu0
      %v715 = vadd.f32 0.0, %v714
      %v716 = vpop.f32.mrb[0].mxu0
      %v717 = vadd.f32 0.0, %v716
      %v718 = vpop.f32.mrb[0].mxu0
      %v719 = vadd.f32 0.0, %v718
      %720 = vmatprep.mubr.bf16.mxu0 0
      %721 = vmatmul.mubr.bf16.gmra.mrb[0].mxu0 %v383
      %v722 = vpop.f32.mrb[0].mxu0
      %v723 = vadd.f32 0.0, %v722
      %v724 = vpop.f32.mrb[0].mxu0
      %v725 = vadd.f32 0.0, %v724
      %v726 = vpop.f32.mrb[0].mxu0
      %v727 = vadd.f32 0.0, %v726
      %v728 = vpop.f32.mrb[0].mxu0
      %v729 = vadd.f32 0.0, %v728
      %730 = vmatprep.mubr.bf16.mxu0 0
      %731 = vmatmul.mubr.bf16.gmra.mrb[0].mxu0 %v384
      %v732 = vpop.f32.mrb[0].mxu0
      %v733 = vadd.f32 0.0, %v732
      %v734 = vpop.f32.mrb[0].mxu0
      %v735 = vadd.f32 0.0, %v734
      %v736 = vpop.f32.mrb[0].mxu0
      %v737 = vadd.f32 0.0, %v736
      %v738 = vpop.f32.mrb[0].mxu0
      %v739 = vadd.f32 0.0, %v738
      %740 = vmatprep.mubr.bf16.mxu0 0
      %741 = vmatmul.mubr.bf16.gmra.mrb[0].mxu0 %v385
      %v742 = vpop.f32.mrb[0].mxu0
      %v743 = vadd.f32 0.0, %v742
      %v744 = vpop.f32.mrb[0].mxu0
      %v745 = vadd.f32 0.0, %v744
      %v746 = vpop.f32.mrb[0].mxu0
      %v747 = vadd.f32 0.0, %v746
      %v748 = vpop.f32.mrb[0].mxu0
      %v749 = vadd.f32 0.0, %v748
      %750 = vmatprep.mubr.bf16.mxu0 0
      %751 = vmatmul.mubr.bf16.gmra.mrb[0].mxu0 %v386
      %v752 = vpop.f32.mrb[0].mxu0
      %v753 = vadd.f32 0.0, %v752
      %v754 = vpop.f32.mrb[0].mxu0
      %v755 = vadd.f32 0.0, %v754
      %v756 = vpop.f32.mrb[0].mxu0
      %v757 = vadd.f32 0.0, %v756
      %v758 = vpop.f32.mrb[0].mxu0
      %v759 = vadd.f32 0.0, %v758
      %760 = vmatprep.mubr.bf16.mxu0 0
      %761 = vmatmul.mubr.bf16.gmra.mrb[0].mxu0 %v387
      %v762 = vpop.f32.mrb[0].mxu0
      %v763 = vadd.f32 0.0, %v762
      %v764 = vpop.f32.mrb[0].mxu0
      %v765 = vadd.f32 0.0, %v764
      %v766 = vpop.f32.mrb[0].mxu0
      %v767 = vadd.f32 0.0, %v766
      %v768 = vpop.f32.mrb[0].mxu0
      %v769 = vadd.f32 0.0, %v768
      %770 = vmatprep.mubr.bf16.mxu0 0
      %771 = vmatmul.mubr.bf16.gmra.mrb[0].mxu0 %v388
      %v772 = vpop.f32.mrb[0].mxu0
      %v773 = vadd.f32 0.0, %v772
      %v774 = vpop.f32.mrb[0].mxu0
      %v775 = vadd.f32 0.0, %v774
      %v776 = vpop.f32.mrb[0].mxu0
      %v777 = vadd.f32 0.0, %v776
      %v778 = vpop.f32.mrb[0].mxu0
      %v779 = vadd.f32 0.0, %v778
      %780 = vmatprep.mubr.bf16.mxu0 0
      %781 = vmatmul.mubr.bf16.gmra.mrb[0].mxu0 %v389
      %v782 = vpop.f32.mrb[0].mxu0
      %v783 = vadd.f32 0.0, %v782
      %v784 = vpop.f32.mrb[0].mxu0
      %v785 = vadd.f32 0.0, %v784
      %v786 = vpop.f32.mrb[0].mxu0
      %v787 = vadd.f32 0.0, %v786
      %v788 = vpop.f32.mrb[0].mxu0
      %v789 = vadd.f32 0.0, %v788
      %790 = vmatprep.mubr.bf16.mxu0 0
      %791 = vmatmul.mubr.bf16.gmra.mrb[0].mxu0 %v390
      %v792 = vpop.f32.mrb[0].mxu0
      %v793 = vadd.f32 0.0, %v792
      %v794 = vpop.f32.mrb[0].mxu0
      %v795 = vadd.f32 0.0, %v794
      %v796 = vpop.f32.mrb[0].mxu0
      %v797 = vadd.f32 0.0, %v796
      %v798 = vpop.f32.mrb[0].mxu0
      %v799 = vadd.f32 0.0, %v798
      %800 = vmatprep.mubr.bf16.mxu0 0
      %801 = vmatmul.mubr.bf16.gmra.mrb[0].mxu0 %v391
      %v802 = vpop.f32.mrb[0].mxu0
      %v803 = vadd.f32 0.0, %v802
      %v804 = vpop.f32.mrb[0].mxu0
      %v805 = vadd.f32 0.0, %v804
      %v806 = vpop.f32.mrb[0].mxu0
      %v807 = vadd.f32 0.0, %v806
      %v808 = vpop.f32.mrb[0].mxu0
      %v809 = vadd.f32 0.0, %v808
      %810 = vmatprep.mubr.bf16.mxu0 0
      %811 = vmatmul.mubr.bf16.gmra.mrb[0].mxu0 %v392
      %v812 = vpop.f32.mrb[0].mxu0
      %v813 = vadd.f32 0.0, %v812
      %v814 = vpop.f32.mrb[0].mxu0
      %v815 = vadd.f32 0.0, %v814
      %v816 = vpop.f32.mrb[0].mxu0
      %v817 = vadd.f32 0.0, %v816
      %v818 = vpop.f32.mrb[0].mxu0
      %v819 = vadd.f32 0.0, %v818
      %820 = vmatprep.mubr.bf16.mxu0 0
      %821 = vmatmul.mubr.bf16.gmra.mrb[0].mxu0 %v393
      %v822 = vpop.f32.mrb[0].mxu0
      %v823 = vadd.f32 0.0, %v822
      %v824 = vpop.f32.mrb[0].mxu0
      %v825 = vadd.f32 0.0, %v824
      %v826 = vpop.f32.mrb[0].mxu0
      %v827 = vadd.f32 0.0, %v826
      %v828 = vpop.f32.mrb[0].mxu0
      %v829 = vadd.f32 0.0, %v828
      %830 = vmatprep.mubr.bf16.mxu0 0
      %831 = vmatmul.mubr.bf16.gmra.mrb[0].mxu0 %v394
      %v832 = vpop.f32.mrb[0].mxu0
      %v833 = vadd.f32 0.0, %v832
      %v834 = vpop.f32.mrb[0].mxu0
      %v835 = vadd.f32 0.0, %v834
      %v836 = vpop.f32.mrb[0].mxu0
      %v837 = vadd.f32 0.0, %v836
      %v838 = vpop.f32.mrb[0].mxu0
      %v839 = vadd.f32 0.0, %v838
      %840 = vmatprep.mubr.bf16.mxu0 0
      %841 = vmatmul.mubr.bf16.gmra.mrb[0].mxu0 %v395
      %v842 = vpop.f32.mrb[0].mxu0
      %v843 = vadd.f32 0.0, %v842
      %v844 = vpop.f32.mrb[0].mxu0
      %v845 = vadd.f32 0.0, %v844
      %v846 = vpop.f32.mrb[0].mxu0
      %v847 = vadd.f32 0.0, %v846
      %v848 = vpop.f32.mrb[0].mxu0
      %v849 = vadd.f32 0.0, %v848
      %850 = vmatprep.mubr.bf16.mxu0 0
      %851 = vmatmul.mubr.bf16.gmra.mrb[0].mxu0 %v396
      %v852 = vpop.f32.mrb[0].mxu0
      %v853 = vadd.f32 0.0, %v852
      %v854 = vpop.f32.mrb[0].mxu0
      %v855 = vadd.f32 0.0, %v854
      %v856 = vpop.f32.mrb[0].mxu0
      %v857 = vadd.f32 0.0, %v856
      %v858 = vpop.f32.mrb[0].mxu0
      %v859 = vadd.f32 0.0, %v858
      %860 = vmatprep.mubr.bf16.mxu0 0
      %861 = vmatmul.mubr.bf16.gmra.mrb[0].mxu0 %v397
      %v862 = vpop.f32.mrb[0].mxu0
      %v863 = vadd.f32 0.0, %v862
      %v864 = vpop.f32.mrb[0].mxu0
      %v865 = vadd.f32 0.0, %v864
      %v866 = vpop.f32.mrb[0].mxu0
      %v867 = vadd.f32 0.0, %v866
      %v868 = vpop.f32.mrb[0].mxu0
      %v869 = vadd.f32 0.0, %v868
      %870 = vmatprep.mubr.bf16.mxu0 0
      %871 = vmatmul.mubr.bf16.gmra.mrb[0].mxu0 %v398
      %v872 = vpop.f32.mrb[0].mxu0
      %v873 = vadd.f32 0.0, %v872
      %v874 = vpop.f32.mrb[0].mxu0
      %v875 = vadd.f32 0.0, %v874
      %v876 = vpop.f32.mrb[0].mxu0
      %v877 = vadd.f32 0.0, %v876
      %v878 = vpop.f32.mrb[0].mxu0
      %v879 = vadd.f32 0.0, %v878
      %880 = vmatprep.mubr.bf16.mxu0 0
      %881 = vmatmul.mubr.bf16.gmra.mrb[0].mxu0 %v399
      %v882 = vpop.f32.mrb[0].mxu0
      %v883 = vadd.f32 0.0, %v882
      %v884 = vpop.f32.mrb[0].mxu0
      %v885 = vadd.f32 0.0, %v884
      %v886 = vpop.f32.mrb[0].mxu0
      %v887 = vadd.f32 0.0, %v886
      %v888 = vpop.f32.mrb[0].mxu0
      %v889 = vadd.f32 0.0, %v888
      %890 = vmatprep.mubr.bf16.mxu0 0
      %891 = vmatmul.mubr.bf16.gmra.mrb[0].mxu0 %v400
      %v892 = vpop.f32.mrb[0].mxu0
      %v893 = vadd.f32 0.0, %v892
      %v894 = vpop.f32.mrb[0].mxu0
      %v895 = vadd.f32 0.0, %v894
      %v896 = vpop.f32.mrb[0].mxu0
      %v897 = vadd.f32 0.0, %v896
      %v898 = vpop.f32.mrb[0].mxu0
      %v899 = vadd.f32 0.0, %v898
      %900 = vmatprep.mubr.bf16.mxu0 0
      %901 = vmatmul.mubr.bf16.gmra.mrb[0].mxu0 %v401
      %v902 = vpop.f32.mrb[0].mxu0
      %v903 = vadd.f32 0.0, %v902
      %v904 = vpop.f32.mrb[0].mxu0
      %v905 = vadd.f32 0.0, %v904
      %v906 = vpop.f32.mrb[0].mxu0
      %v907 = vadd.f32 0.0, %v906
      %v908 = vpop.f32.mrb[0].mxu0
      %v909 = vadd.f32 0.0, %v908
      %910 = vmatprep.mubr.bf16.mxu0 0
      %911 = vmatmul.mubr.bf16.gmra.mrb[0].mxu0 %v402
      %v912 = vpop.f32.mrb[0].mxu0
      %v913 = vadd.f32 0.0, %v912
      %v914 = vpop.f32.mrb[0].mxu0
      %v915 = vadd.f32 0.0, %v914
      %v916 = vpop.f32.mrb[0].mxu0
      %v917 = vadd.f32 0.0, %v916
      %v918 = vpop.f32.mrb[0].mxu0
      %v919 = vadd.f32 0.0, %v918
      %920 = vmatprep.mubr.bf16.mxu0 0
      %921 = vmatmul.mubr.bf16.gmra.mrb[0].mxu0 %v403
      %v922 = vpop.f32.mrb[0].mxu0
      %v923 = vadd.f32 0.0, %v922
      %v924 = vpop.f32.mrb[0].mxu0
      %v925 = vadd.f32 0.0, %v924
      %v926 = vpop.f32.mrb[0].mxu0
      %v927 = vadd.f32 0.0, %v926
      %v928 = vpop.f32.mrb[0].mxu0
      %v929 = vadd.f32 0.0, %v928
      %930 = vmatprep.mubr.bf16.mxu0 0
      %931 = vmatmul.mubr.bf16.gmra.mrb[0].mxu0 %v404
      %v932 = vpop.f32.mrb[0].mxu0
      %v933 = vadd.f32 0.0, %v932
      %v934 = vpop.f32.mrb[0].mxu0
      %v935 = vadd.f32 0.0, %v934
      %v936 = vpop.f32.mrb[0].mxu0
      %v937 = vadd.f32 0.0, %v936
      %v938 = vpop.f32.mrb[0].mxu0
      %v939 = vadd.f32 0.0, %v938
      %940 = vmatprep.mubr.bf16.mxu0 0
      %941 = vmatmul.mubr.bf16.gmra.mrb[0].mxu0 %v405
      %v942 = vpop.f32.mrb[0].mxu0
      %v943 = vadd.f32 0.0, %v942
      %v944 = vpop.f32.mrb[0].mxu0
      %v945 = vadd.f32 0.0, %v944
      %v946 = vpop.f32.mrb[0].mxu0
      %v947 = vadd.f32 0.0, %v946
      %v948 = vpop.f32.mrb[0].mxu0
      %v949 = vadd.f32 0.0, %v948
      %950 = vdwg.mxu0
      %951 = vmatprep.subr.bf16.mxu0 %v537
      %952 = vmatpush1.bf16.msra.mxu0 %v536
      %953 = vmatprep.subr.bf16.mxu0 %v541
      %954 = vmatpush1.bf16.msra.mxu0 %v540
      %955 = vmatprep.subr.bf16.mxu0 %v545
      %956 = vmatpush1.bf16.msra.mxu0 %v544
      %957 = vmatprep.subr.bf16.mxu0 %v549
      %958 = vmatpush1.bf16.msra.mxu0 %v548
      %959 = vmatprep.subr.bf16.mxu0 %v553
      %960 = vmatpush1.bf16.msra.mxu0 %v552
      %961 = vmatprep.subr.bf16.mxu0 %v557
      %962 = vmatpush1.bf16.msra.mxu0 %v556
      %963 = vmatprep.subr.bf16.mxu0 %v561
      %964 = vmatpush1.bf16.msra.mxu0 %v560
      %965 = vmatprep.subr.bf16.mxu0 %v565
      %966 = vmatpush1.bf16.msra.mxu0 %v564
      %967 = vmatprep.subr.bf16.mxu0 0
      %968 = vmatpush1.bf16.msra.mxu0 0
      %969 = vmatprep.subr.bf16.mxu0 0
      %970 = vmatpush1.bf16.msra.mxu0 0
      %971 = vmatprep.subr.bf16.mxu0 0
      %972 = vmatpush1.bf16.msra.mxu0 0
      %973 = vmatprep.subr.bf16.mxu0 0
      %974 = vmatpush1.bf16.msra.mxu0 0
      %975 = vmatprep.subr.bf16.mxu0 0
      %976 = vmatpush1.bf16.msra.mxu0 0
      %977 = vmatprep.subr.bf16.mxu0 0
      %978 = vmatpush1.bf16.msra.mxu0 0
      %979 = vmatprep.subr.bf16.mxu0 0
      %980 = vmatpush1.bf16.msra.mxu0 0
      %981 = vmatprep.subr.bf16.mxu0 0
      %982 = vmatpush1.bf16.msra.mxu0 0
      %983 = vmatprep.mubr.bf16.mxu0 0
      %984 = vmatmul.mubr.bf16.gmra.mrb[0].mxu0 %v374
      %v985 = vpop.f32.mrb[0].mxu0
      %v986 = vadd.f32 0.0, %v985
      %v987 = vpop.f32.mrb[0].mxu0
      %v988 = vadd.f32 0.0, %v987
      %v989 = vpop.f32.mrb[0].mxu0
      %v990 = vadd.f32 0.0, %v989
      %v991 = vpop.f32.mrb[0].mxu0
      %v992 = vadd.f32 0.0, %v991
      %993 = vmatprep.mubr.bf16.mxu0 0
      %994 = vmatmul.mubr.bf16.gmra.mrb[0].mxu0 %v375
      %v995 = vpop.f32.mrb[0].mxu0
      %v996 = vadd.f32 0.0, %v995
      %v997 = vpop.f32.mrb[0].mxu0
      %v998 = vadd.f32 0.0, %v997
      %v999 = vpop.f32.mrb[0].mxu0
      %v1000 = vadd.f32 0.0, %v999
      %v1001 = vpop.f32.mrb[0].mxu0
      %v1002 = vadd.f32 0.0, %v1001
      %1003 = vmatprep.mubr.bf16.mxu0 0
      %1004 = vmatmul.mubr.bf16.gmra.mrb[0].mxu0 %v376
      %v1005 = vpop.f32.mrb[0].mxu0
      %v1006 = vadd.f32 0.0, %v1005
      %v1007 = vpop.f32.mrb[0].mxu0
      %v1008 = vadd.f32 0.0, %v1007
      %v1009 = vpop.f32.mrb[0].mxu0
      %v1010 = vadd.f32 0.0, %v1009
      %v1011 = vpop.f32.mrb[0].mxu0
      %v1012 = vadd.f32 0.0, %v1011
      %1013 = vmatprep.mubr.bf16.mxu0 0
      %1014 = vmatmul.mubr.bf16.gmra.mrb[0].mxu0 %v377
      %v1015 = vpop.f32.mrb[0].mxu0
      %v1016 = vadd.f32 0.0, %v1015
      %v1017 = vpop.f32.mrb[0].mxu0
      %v1018 = vadd.f32 0.0, %v1017
      %v1019 = vpop.f32.mrb[0].mxu0
      %v1020 = vadd.f32 0.0, %v1019
      %v1021 = vpop.f32.mrb[0].mxu0
      %v1022 = vadd.f32 0.0, %v1021
      %1023 = vmatprep.mubr.bf16.mxu0 0
      %1024 = vmatmul.mubr.bf16.gmra.mrb[0].mxu0 %v378
      %v1025 = vpop.f32.mrb[0].mxu0
      %v1026 = vadd.f32 0.0, %v1025
      %v1027 = vpop.f32.mrb[0].mxu0
      %v1028 = vadd.f32 0.0, %v1027
      %v1029 = vpop.f32.mrb[0].mxu0
      %v1030 = vadd.f32 0.0, %v1029
      %v1031 = vpop.f32.mrb[0].mxu0
      %v1032 = vadd.f32 0.0, %v1031
      %1033 = vmatprep.mubr.bf16.mxu0 0
      %1034 = vmatmul.mubr.bf16.gmra.mrb[0].mxu0 %v379
      %v1035 = vpop.f32.mrb[0].mxu0
      %v1036 = vadd.f32 0.0, %v1035
      %v1037 = vpop.f32.mrb[0].mxu0
      %v1038 = vadd.f32 0.0, %v1037
      %v1039 = vpop.f32.mrb[0].mxu0
      %v1040 = vadd.f32 0.0, %v1039
      %v1041 = vpop.f32.mrb[0].mxu0
      %v1042 = vadd.f32 0.0, %v1041
      %1043 = vmatprep.mubr.bf16.mxu0 0
      %1044 = vmatmul.mubr.bf16.gmra.mrb[0].mxu0 %v380
      %v1045 = vpop.f32.mrb[0].mxu0
      %v1046 = vadd.f32 0.0, %v1045
      %v1047 = vpop.f32.mrb[0].mxu0
      %v1048 = vadd.f32 0.0, %v1047
      %v1049 = vpop.f32.mrb[0].mxu0
      %v1050 = vadd.f32 0.0, %v1049
      %v1051 = vpop.f32.mrb[0].mxu0
      %v1052 = vadd.f32 0.0, %v1051
      %1053 = vmatprep.mubr.bf16.mxu0 0
      %1054 = vmatmul.mubr.bf16.gmra.mrb[0].mxu0 %v381
      %v1055 = vpop.f32.mrb[0].mxu0
      %v1056 = vadd.f32 0.0, %v1055
      %v1057 = vpop.f32.mrb[0].mxu0
      %v1058 = vadd.f32 0.0, %v1057
      %v1059 = vpop.f32.mrb[0].mxu0
      %v1060 = vadd.f32 0.0, %v1059
      %v1061 = vpop.f32.mrb[0].mxu0
      %v1062 = vadd.f32 0.0, %v1061
      %1063 = vmatprep.mubr.bf16.mxu0 0
      %1064 = vmatmul.mubr.bf16.gmra.mrb[0].mxu0 %v382
      %v1065 = vpop.f32.mrb[0].mxu0
      %v1066 = vadd.f32 0.0, %v1065
      %v1067 = vpop.f32.mrb[0].mxu0
      %v1068 = vadd.f32 0.0, %v1067
      %v1069 = vpop.f32.mrb[0].mxu0
      %v1070 = vadd.f32 0.0, %v1069
      %v1071 = vpop.f32.mrb[0].mxu0
      %v1072 = vadd.f32 0.0, %v1071
      %1073 = vmatprep.mubr.bf16.mxu0 0
      %1074 = vmatmul.mubr.bf16.gmra.mrb[0].mxu0 %v383
      %v1075 = vpop.f32.mrb[0].mxu0
      %v1076 = vadd.f32 0.0, %v1075
      %v1077 = vpop.f32.mrb[0].mxu0
      %v1078 = vadd.f32 0.0, %v1077
      %v1079 = vpop.f32.mrb[0].mxu0
      %v1080 = vadd.f32 0.0, %v1079
      %v1081 = vpop.f32.mrb[0].mxu0
      %v1082 = vadd.f32 0.0, %v1081
      %1083 = vmatprep.mubr.bf16.mxu0 0
      %1084 = vmatmul.mubr.bf16.gmra.mrb[0].mxu0 %v384
      %v1085 = vpop.f32.mrb[0].mxu0
      %v1086 = vadd.f32 0.0, %v1085
      %v1087 = vpop.f32.mrb[0].mxu0
      %v1088 = vadd.f32 0.0, %v1087
      %v1089 = vpop.f32.mrb[0].mxu0
      %v1090 = vadd.f32 0.0, %v1089
      %v1091 = vpop.f32.mrb[0].mxu0
      %v1092 = vadd.f32 0.0, %v1091
      %1093 = vmatprep.mubr.bf16.mxu0 0
      %1094 = vmatmul.mubr.bf16.gmra.mrb[0].mxu0 %v385
      %v1095 = vpop.f32.mrb[0].mxu0
      %v1096 = vadd.f32 0.0, %v1095
      %v1097 = vpop.f32.mrb[0].mxu0
      %v1098 = vadd.f32 0.0, %v1097
      %v1099 = vpop.f32.mrb[0].mxu0
      %v1100 = vadd.f32 0.0, %v1099
      %v1101 = vpop.f32.mrb[0].mxu0
      %v1102 = vadd.f32 0.0, %v1101
      %1103 = vmatprep.mubr.bf16.mxu0 0
      %1104 = vmatmul.mubr.bf16.gmra.mrb[0].mxu0 %v386
      %v1105 = vpop.f32.mrb[0].mxu0
      %v1106 = vadd.f32 0.0, %v1105
      %v1107 = vpop.f32.mrb[0].mxu0
      %v1108 = vadd.f32 0.0, %v1107
      %v1109 = vpop.f32.mrb[0].mxu0
      %v1110 = vadd.f32 0.0, %v1109
      %v1111 = vpop.f32.mrb[0].mxu0
      %v1112 = vadd.f32 0.0, %v1111
      %1113 = vmatprep.mubr.bf16.mxu0 0
      %1114 = vmatmul.mubr.bf16.gmra.mrb[0].mxu0 %v387
      %v1115 = vpop.f32.mrb[0].mxu0
      %v1116 = vadd.f32 0.0, %v1115
      %v1117 = vpop.f32.mrb[0].mxu0
      %v1118 = vadd.f32 0.0, %v1117
      %v1119 = vpop.f32.mrb[0].mxu0
      %v1120 = vadd.f32 0.0, %v1119
      %v1121 = vpop.f32.mrb[0].mxu0
      %v1122 = vadd.f32 0.0, %v1121
      %1123 = vmatprep.mubr.bf16.mxu0 0
      %1124 = vmatmul.mubr.bf16.gmra.mrb[0].mxu0 %v388
      %v1125 = vpop.f32.mrb[0].mxu0
      %v1126 = vadd.f32 0.0, %v1125
      %v1127 = vpop.f32.mrb[0].mxu0
      %v1128 = vadd.f32 0.0, %v1127
      %v1129 = vpop.f32.mrb[0].mxu0
      %v1130 = vadd.f32 0.0, %v1129
      %v1131 = vpop.f32.mrb[0].mxu0
      %v1132 = vadd.f32 0.0, %v1131
      %1133 = vmatprep.mubr.bf16.mxu0 0
      %1134 = vmatmul.mubr.bf16.gmra.mrb[0].mxu0 %v389
      %v1135 = vpop.f32.mrb[0].mxu0
      %v1136 = vadd.f32 0.0, %v1135
      %v1137 = vpop.f32.mrb[0].mxu0
      %v1138 = vadd.f32 0.0, %v1137
      %v1139 = vpop.f32.mrb[0].mxu0
      %v1140 = vadd.f32 0.0, %v1139
      %v1141 = vpop.f32.mrb[0].mxu0
      %v1142 = vadd.f32 0.0, %v1141
      %1143 = vmatprep.mubr.bf16.mxu0 0
      %1144 = vmatmul.mubr.bf16.gmra.mrb[0].mxu0 %v390
      %v1145 = vpop.f32.mrb[0].mxu0
      %v1146 = vadd.f32 0.0, %v1145
      %v1147 = vpop.f32.mrb[0].mxu0
      %v1148 = vadd.f32 0.0, %v1147
      %v1149 = vpop.f32.mrb[0].mxu0
      %v1150 = vadd.f32 0.0, %v1149
      %v1151 = vpop.f32.mrb[0].mxu0
      %v1152 = vadd.f32 0.0, %v1151
      %1153 = vmatprep.mubr.bf16.mxu0 0
      %1154 = vmatmul.mubr.bf16.gmra.mrb[0].mxu0 %v391
      %v1155 = vpop.f32.mrb[0].mxu0
      %v1156 = vadd.f32 0.0, %v1155
      %v1157 = vpop.f32.mrb[0].mxu0
      %v1158 = vadd.f32 0.0, %v1157
      %v1159 = vpop.f32.mrb[0].mxu0
      %v1160 = vadd.f32 0.0, %v1159
      %v1161 = vpop.f32.mrb[0].mxu0
      %v1162 = vadd.f32 0.0, %v1161
      %1163 = vmatprep.mubr.bf16.mxu0 0
      %1164 = vmatmul.mubr.bf16.gmra.mrb[0].mxu0 %v392
      %v1165 = vpop.f32.mrb[0].mxu0
      %v1166 = vadd.f32 0.0, %v1165
      %v1167 = vpop.f32.mrb[0].mxu0
      %v1168 = vadd.f32 0.0, %v1167
      %v1169 = vpop.f32.mrb[0].mxu0
      %v1170 = vadd.f32 0.0, %v1169
      %v1171 = vpop.f32.mrb[0].mxu0
      %v1172 = vadd.f32 0.0, %v1171
      %1173 = vmatprep.mubr.bf16.mxu0 0
      %1174 = vmatmul.mubr.bf16.gmra.mrb[0].mxu0 %v393
      %v1175 = vpop.f32.mrb[0].mxu0
      %v1176 = vadd.f32 0.0, %v1175
      %v1177 = vpop.f32.mrb[0].mxu0
      %v1178 = vadd.f32 0.0, %v1177
      %v1179 = vpop.f32.mrb[0].mxu0
      %v1180 = vadd.f32 0.0, %v1179
      %v1181 = vpop.f32.mrb[0].mxu0
      %v1182 = vadd.f32 0.0, %v1181
      %1183 = vmatprep.mubr.bf16.mxu0 0
      %1184 = vmatmul.mubr.bf16.gmra.mrb[0].mxu0 %v394
      %v1185 = vpop.f32.mrb[0].mxu0
      %v1186 = vadd.f32 0.0, %v1185
      %v1187 = vpop.f32.mrb[0].mxu0
      %v1188 = vadd.f32 0.0, %v1187
      %v1189 = vpop.f32.mrb[0].mxu0
      %v1190 = vadd.f32 0.0, %v1189
      %v1191 = vpop.f32.mrb[0].mxu0
      %v1192 = vadd.f32 0.0, %v1191
      %1193 = vmatprep.mubr.bf16.mxu0 0
      %1194 = vmatmul.mubr.bf16.gmra.mrb[0].mxu0 %v395
      %v1195 = vpop.f32.mrb[0].mxu0
      %v1196 = vadd.f32 0.0, %v1195
      %v1197 = vpop.f32.mrb[0].mxu0
      %v1198 = vadd.f32 0.0, %v1197
      %v1199 = vpop.f32.mrb[0].mxu0
      %v1200 = vadd.f32 0.0, %v1199
      %v1201 = vpop.f32.mrb[0].mxu0
      %v1202 = vadd.f32 0.0, %v1201
      %1203 = vmatprep.mubr.bf16.mxu0 0
      %1204 = vmatmul.mubr.bf16.gmra.mrb[0].mxu0 %v396
      %v1205 = vpop.f32.mrb[0].mxu0
      %v1206 = vadd.f32 0.0, %v1205
      %v1207 = vpop.f32.mrb[0].mxu0
      %v1208 = vadd.f32 0.0, %v1207
      %v1209 = vpop.f32.mrb[0].mxu0
      %v1210 = vadd.f32 0.0, %v1209
      %v1211 = vpop.f32.mrb[0].mxu0
      %v1212 = vadd.f32 0.0, %v1211
      %1213 = vmatprep.mubr.bf16.mxu0 0
      %1214 = vmatmul.mubr.bf16.gmra.mrb[0].mxu0 %v397
      %v1215 = vpop.f32.mrb[0].mxu0
      %v1216 = vadd.f32 0.0, %v1215
      %v1217 = vpop.f32.mrb[0].mxu0
      %v1218 = vadd.f32 0.0, %v1217
      %v1219 = vpop.f32.mrb[0].mxu0
      %v1220 = vadd.f32 0.0, %v1219
      %v1221 = vpop.f32.mrb[0].mxu0
      %v1222 = vadd.f32 0.0, %v1221
      %1223 = vmatprep.mubr.bf16.mxu0 0
      %1224 = vmatmul.mubr.bf16.gmra.mrb[0].mxu0 %v398
      %v1225 = vpop.f32.mrb[0].mxu0
      %v1226 = vadd.f32 0.0, %v1225
      %v1227 = vpop.f32.mrb[0].mxu0
      %v1228 = vadd.f32 0.0, %v1227
      %v1229 = vpop.f32.mrb[0].mxu0
      %v1230 = vadd.f32 0.0, %v1229
      %v1231 = vpop.f32.mrb[0].mxu0
      %v1232 = vadd.f32 0.0, %v1231
      %1233 = vmatprep.mubr.bf16.mxu0 0
      %1234 = vmatmul.mubr.bf16.gmra.mrb[0].mxu0 %v399
      %v1235 = vpop.f32.mrb[0].mxu0
      %v1236 = vadd.f32 0.0, %v1235
      %v1237 = vpop.f32.mrb[0].mxu0
      %v1238 = vadd.f32 0.0, %v1237
      %v1239 = vpop.f32.mrb[0].mxu0
      %v1240 = vadd.f32 0.0, %v1239
      %v1241 = vpop.f32.mrb[0].mxu0
      %v1242 = vadd.f32 0.0, %v1241
      %1243 = vmatprep.mubr.bf16.mxu0 0
      %1244 = vmatmul.mubr.bf16.gmra.mrb[0].mxu0 %v400
      %v1245 = vpop.f32.mrb[0].mxu0
      %v1246 = vadd.f32 0.0, %v1245
      %v1247 = vpop.f32.mrb[0].mxu0
      %v1248 = vadd.f32 0.0, %v1247
      %v1249 = vpop.f32.mrb[0].mxu0
      %v1250 = vadd.f32 0.0, %v1249
      %v1251 = vpop.f32.mrb[0].mxu0
      %v1252 = vadd.f32 0.0, %v1251
      %1253 = vmatprep.mubr.bf16.mxu0 0
      %1254 = vmatmul.mubr.bf16.gmra.mrb[0].mxu0 %v401
      %v1255 = vpop.f32.mrb[0].mxu0
      %v1256 = vadd.f32 0.0, %v1255
      %v1257 = vpop.f32.mrb[0].mxu0
      %v1258 = vadd.f32 0.0, %v1257
      %v1259 = vpop.f32.mrb[0].mxu0
      %v1260 = vadd.f32 0.0, %v1259
      %v1261 = vpop.f32.mrb[0].mxu0
      %v1262 = vadd.f32 0.0, %v1261
      %1263 = vmatprep.mubr.bf16.mxu0 0
      %1264 = vmatmul.mubr.bf16.gmra.mrb[0].mxu0 %v402
      %v1265 = vpop.f32.mrb[0].mxu0
      %v1266 = vadd.f32 0.0, %v1265
      %v1267 = vpop.f32.mrb[0].mxu0
      %v1268 = vadd.f32 0.0, %v1267
      %v1269 = vpop.f32.mrb[0].mxu0
      %v1270 = vadd.f32 0.0, %v1269
      %v1271 = vpop.f32.mrb[0].mxu0
      %v1272 = vadd.f32 0.0, %v1271
      %1273 = vmatprep.mubr.bf16.mxu0 0
      %1274 = vmatmul.mubr.bf16.gmra.mrb[0].mxu0 %v403
      %v1275 = vpop.f32.mrb[0].mxu0
      %v1276 = vadd.f32 0.0, %v1275
      %v1277 = vpop.f32.mrb[0].mxu0
      %v1278 = vadd.f32 0.0, %v1277
      %v1279 = vpop.f32.mrb[0].mxu0
      %v1280 = vadd.f32 0.0, %v1279
      %v1281 = vpop.f32.mrb[0].mxu0
      %v1282 = vadd.f32 0.0, %v1281
      %1283 = vmatprep.mubr.bf16.mxu0 0
      %1284 = vmatmul.mubr.bf16.gmra.mrb[0].mxu0 %v404
      %v1285 = vpop.f32.mrb[0].mxu0
      %v1286 = vadd.f32 0.0, %v1285
      %v1287 = vpop.f32.mrb[0].mxu0
      %v1288 = vadd.f32 0.0, %v1287
      %v1289 = vpop.f32.mrb[0].mxu0
      %v1290 = vadd.f32 0.0, %v1289
      %v1291 = vpop.f32.mrb[0].mxu0
      %v1292 = vadd.f32 0.0, %v1291
      %1293 = vmatprep.mubr.bf16.mxu0 0
      %1294 = vmatmul.mubr.bf16.gmra.mrb[0].mxu0 %v405
      %v1295 = vpop.f32.mrb[0].mxu0
      %v1296 = vadd.f32 0.0, %v1295
      %v1297 = vpop.f32.mrb[0].mxu0
      %v1298 = vadd.f32 0.0, %v1297
      %v1299 = vpop.f32.mrb[0].mxu0
      %v1300 = vadd.f32 0.0, %v1299
      %v1301 = vpop.f32.mrb[0].mxu0
      %v1302 = vadd.f32 0.0, %v1301
      %1303 = vdwg.mxu0
      %1304 = vst [vmem:[%s147] sm:$0xff] %v633
      %1305 = vst [vmem:[%s147 + $0x8] sm:$0xff] %v635
      %1306 = vst [vmem:[%s147 + $0x10] sm:$0xff] %v986
      %1307 = vst [vmem:[%s147 + $0x18] sm:$0xff] %v988
      %1308 = vst [vmem:[%s147 + $0x20] sm:$0xff] %v637
      %1309 = vst [vmem:[%s147 + $0x28] sm:$0xff] %v639
      %1310 = vst [vmem:[%s147 + $0x30] sm:$0xff] %v990
      %1311 = vst [vmem:[%s147 + $0x38] sm:$0xff] %v992
      %1312 = vst [vmem:[%s147 + $0x40] sm:$0xff] %v643
      %1313 = vst [vmem:[%s147 + $0x48] sm:$0xff] %v645
      %1314 = vst [vmem:[%s147 + $0x50] sm:$0xff] %v996
      %1315 = vst [vmem:[%s147 + $0x58] sm:$0xff] %v998
      %1316 = vst [vmem:[%s147 + $0x60] sm:$0xff] %v647
      %1317 = vst [vmem:[%s147 + $0x68] sm:$0xff] %v649
      %1318 = vst [vmem:[%s147 + $0x70] sm:$0xff] %v1000
      %1319 = vst [vmem:[%s147 + $0x78] sm:$0xff] %v1002
      %1320 = vst [vmem:[%s147 + $0x80] sm:$0xff] %v653
      %1321 = vst [vmem:[%s147 + $0x88] sm:$0xff] %v655
      %1322 = vst [vmem:[%s147 + $0x90] sm:$0xff] %v1006
      %1323 = vst [vmem:[%s147 + $0x98] sm:$0xff] %v1008
      %1324 = vst [vmem:[%s147 + $0xa0] sm:$0xff] %v657
      %1325 = vst [vmem:[%s147 + $0xa8] sm:$0xff] %v659
      %1326 = vst [vmem:[%s147 + $0xb0] sm:$0xff] %v1010
      %1327 = vst [vmem:[%s147 + $0xb8] sm:$0xff] %v1012
      %1328 = vst [vmem:[%s147 + $0xc0] sm:$0xff] %v663
      %1329 = vst [vmem:[%s147 + $0xc8] sm:$0xff] %v665
      %1330 = vst [vmem:[%s147 + $0xd0] sm:$0xff] %v1016
      %1331 = vst [vmem:[%s147 + $0xd8] sm:$0xff] %v1018
      %1332 = vst [vmem:[%s147 + $0xe0] sm:$0xff] %v667
      %1333 = vst [vmem:[%s147 + $0xe8] sm:$0xff] %v669
      %1334 = vst [vmem:[%s147 + $0xf0] sm:$0xff] %v1020
      %1335 = vst [vmem:[%s147 + $0xf8] sm:$0xff] %v1022
      %1336 = vst [vmem:[%s147 + $0x100] sm:$0xff] %v673
      %1337 = vst [vmem:[%s147 + $0x108] sm:$0xff] %v675
      %1338 = vst [vmem:[%s147 + $0x110] sm:$0xff] %v1026
      %1339 = vst [vmem:[%s147 + $0x118] sm:$0xff] %v1028
      %1340 = vst [vmem:[%s147 + $0x120] sm:$0xff] %v677
      %1341 = vst [vmem:[%s147 + $0x128] sm:$0xff] %v679
      %1342 = vst [vmem:[%s147 + $0x130] sm:$0xff] %v1030
      %1343 = vst [vmem:[%s147 + $0x138] sm:$0xff] %v1032
      %1344 = vst [vmem:[%s147 + $0x140] sm:$0xff] %v683
      %1345 = vst [vmem:[%s147 + $0x148] sm:$0xff] %v685
      %1346 = vst [vmem:[%s147 + $0x150] sm:$0xff] %v1036
      %1347 = vst [vmem:[%s147 + $0x158] sm:$0xff] %v1038
      %1348 = vst [vmem:[%s147 + $0x160] sm:$0xff] %v687
      %1349 = vst [vmem:[%s147 + $0x168] sm:$0xff] %v689
      %1350 = vst [vmem:[%s147 + $0x170] sm:$0xff] %v1040
      %1351 = vst [vmem:[%s147 + $0x178] sm:$0xff] %v1042
      %1352 = vst [vmem:[%s147 + $0x180] sm:$0xff] %v693
      %1353 = vst [vmem:[%s147 + $0x188] sm:$0xff] %v695
      %1354 = vst [vmem:[%s147 + $0x190] sm:$0xff] %v1046
      %1355 = vst [vmem:[%s147 + $0x198] sm:$0xff] %v1048
      %1356 = vst [vmem:[%s147 + $0x1a0] sm:$0xff] %v697
      %1357 = vst [vmem:[%s147 + $0x1a8] sm:$0xff] %v699
      %1358 = vst [vmem:[%s147 + $0x1b0] sm:$0xff] %v1050
      %1359 = vst [vmem:[%s147 + $0x1b8] sm:$0xff] %v1052
      %1360 = vst [vmem:[%s147 + $0x1c0] sm:$0xff] %v703
      %1361 = vst [vmem:[%s147 + $0x1c8] sm:$0xff] %v705
      %1362 = vst [vmem:[%s147 + $0x1d0] sm:$0xff] %v1056
      %1363 = vst [vmem:[%s147 + $0x1d8] sm:$0xff] %v1058
      %1364 = vst [vmem:[%s147 + $0x1e0] sm:$0xff] %v707
      %1365 = vst [vmem:[%s147 + $0x1e8] sm:$0xff] %v709
      %1366 = vst [vmem:[%s147 + $0x1f0] sm:$0xff] %v1060
      %1367 = vst [vmem:[%s147 + $0x1f8] sm:$0xff] %v1062
      %1368 = vst [vmem:[%s147 + $0x200] sm:$0xff] %v713
      %1369 = vst [vmem:[%s147 + $0x208] sm:$0xff] %v715
      %1370 = vst [vmem:[%s147 + $0x210] sm:$0xff] %v1066
      %1371 = vst [vmem:[%s147 + $0x218] sm:$0xff] %v1068
      %1372 = vst [vmem:[%s147 + $0x220] sm:$0xff] %v717
      %1373 = vst [vmem:[%s147 + $0x228] sm:$0xff] %v719
      %1374 = vst [vmem:[%s147 + $0x230] sm:$0xff] %v1070
      %1375 = vst [vmem:[%s147 + $0x238] sm:$0xff] %v1072
      %1376 = vst [vmem:[%s147 + $0x240] sm:$0xff] %v723
      %1377 = vst [vmem:[%s147 + $0x248] sm:$0xff] %v725
      %1378 = vst [vmem:[%s147 + $0x250] sm:$0xff] %v1076
      %1379 = vst [vmem:[%s147 + $0x258] sm:$0xff] %v1078
      %1380 = vst [vmem:[%s147 + $0x260] sm:$0xff] %v727
      %1381 = vst [vmem:[%s147 + $0x268] sm:$0xff] %v729
      %1382 = vst [vmem:[%s147 + $0x270] sm:$0xff] %v1080
      %1383 = vst [vmem:[%s147 + $0x278] sm:$0xff] %v1082
      %1384 = vst [vmem:[%s147 + $0x280] sm:$0xff] %v733
      %1385 = vst [vmem:[%s147 + $0x288] sm:$0xff] %v735
      %1386 = vst [vmem:[%s147 + $0x290] sm:$0xff] %v1086
      %1387 = vst [vmem:[%s147 + $0x298] sm:$0xff] %v1088
      %1388 = vst [vmem:[%s147 + $0x2a0] sm:$0xff] %v737
      %1389 = vst [vmem:[%s147 + $0x2a8] sm:$0xff] %v739
      %1390 = vst [vmem:[%s147 + $0x2b0] sm:$0xff] %v1090
      %1391 = vst [vmem:[%s147 + $0x2b8] sm:$0xff] %v1092
      %1392 = vst [vmem:[%s147 + $0x2c0] sm:$0xff] %v743
      %1393 = vst [vmem:[%s147 + $0x2c8] sm:$0xff] %v745
      %1394 = vst [vmem:[%s147 + $0x2d0] sm:$0xff] %v1096
      %1395 = vst [vmem:[%s147 + $0x2d8] sm:$0xff] %v1098
      %1396 = vst [vmem:[%s147 + $0x2e0] sm:$0xff] %v747
      %1397 = vst [vmem:[%s147 + $0x2e8] sm:$0xff] %v749
      %1398 = vst [vmem:[%s147 + $0x2f0] sm:$0xff] %v1100
      %1399 = vst [vmem:[%s147 + $0x2f8] sm:$0xff] %v1102
      %1400 = vst [vmem:[%s147 + $0x300] sm:$0xff] %v753
      %1401 = vst [vmem:[%s147 + $0x308] sm:$0xff] %v755
      %1402 = vst [vmem:[%s147 + $0x310] sm:$0xff] %v1106
      %1403 = vst [vmem:[%s147 + $0x318] sm:$0xff] %v1108
      %1404 = vst [vmem:[%s147 + $0x320] sm:$0xff] %v757
      %1405 = vst [vmem:[%s147 + $0x328] sm:$0xff] %v759
      %1406 = vst [vmem:[%s147 + $0x330] sm:$0xff] %v1110
      %1407 = vst [vmem:[%s147 + $0x338] sm:$0xff] %v1112
      %1408 = vst [vmem:[%s147 + $0x340] sm:$0xff] %v763
      %1409 = vst [vmem:[%s147 + $0x348] sm:$0xff] %v765
      %1410 = vst [vmem:[%s147 + $0x350] sm:$0xff] %v1116
      %1411 = vst [vmem:[%s147 + $0x358] sm:$0xff] %v1118
      %1412 = vst [vmem:[%s147 + $0x360] sm:$0xff] %v767
      %1413 = vst [vmem:[%s147 + $0x368] sm:$0xff] %v769
      %1414 = vst [vmem:[%s147 + $0x370] sm:$0xff] %v1120
      %1415 = vst [vmem:[%s147 + $0x378] sm:$0xff] %v1122
      %1416 = vst [vmem:[%s147 + $0x380] sm:$0xff] %v773
      %1417 = vst [vmem:[%s147 + $0x388] sm:$0xff] %v775
      %1418 = vst [vmem:[%s147 + $0x390] sm:$0xff] %v1126
      %1419 = vst [vmem:[%s147 + $0x398] sm:$0xff] %v1128
      %1420 = vst [vmem:[%s147 + $0x3a0] sm:$0xff] %v777
      %1421 = vst [vmem:[%s147 + $0x3a8] sm:$0xff] %v779
      %1422 = vst [vmem:[%s147 + $0x3b0] sm:$0xff] %v1130
      %1423 = vst [vmem:[%s147 + $0x3b8] sm:$0xff] %v1132
      %1424 = vst [vmem:[%s147 + $0x3c0] sm:$0xff] %v783
      %1425 = vst [vmem:[%s147 + $0x3c8] sm:$0xff] %v785
      %1426 = vst [vmem:[%s147 + $0x3d0] sm:$0xff] %v1136
      %1427 = vst [vmem:[%s147 + $0x3d8] sm:$0xff] %v1138
      %1428 = vst [vmem:[%s147 + $0x3e0] sm:$0xff] %v787
      %1429 = vst [vmem:[%s147 + $0x3e8] sm:$0xff] %v789
      %1430 = vst [vmem:[%s147 + $0x3f0] sm:$0xff] %v1140
      %1431 = vst [vmem:[%s147 + $0x3f8] sm:$0xff] %v1142
      %1432 = vst [vmem:[%s147 + $0x400] sm:$0xff] %v793
      %1433 = vst [vmem:[%s147 + $0x408] sm:$0xff] %v795
      %1434 = vst [vmem:[%s147 + $0x410] sm:$0xff] %v1146
      %1435 = vst [vmem:[%s147 + $0x418] sm:$0xff] %v1148
      %1436 = vst [vmem:[%s147 + $0x420] sm:$0xff] %v797
      %1437 = vst [vmem:[%s147 + $0x428] sm:$0xff] %v799
      %1438 = vst [vmem:[%s147 + $0x430] sm:$0xff] %v1150
      %1439 = vst [vmem:[%s147 + $0x438] sm:$0xff] %v1152
      %1440 = vst [vmem:[%s147 + $0x440] sm:$0xff] %v803
      %1441 = vst [vmem:[%s147 + $0x448] sm:$0xff] %v805
      %1442 = vst [vmem:[%s147 + $0x450] sm:$0xff] %v1156
      %1443 = vst [vmem:[%s147 + $0x458] sm:$0xff] %v1158
      %1444 = vst [vmem:[%s147 + $0x460] sm:$0xff] %v807
      %1445 = vst [vmem:[%s147 + $0x468] sm:$0xff] %v809
      %1446 = vst [vmem:[%s147 + $0x470] sm:$0xff] %v1160
      %1447 = vst [vmem:[%s147 + $0x478] sm:$0xff] %v1162
      %1448 = vst [vmem:[%s147 + $0x480] sm:$0xff] %v813
      %1449 = vst [vmem:[%s147 + $0x488] sm:$0xff] %v815
      %1450 = vst [vmem:[%s147 + $0x490] sm:$0xff] %v1166
      %1451 = vst [vmem:[%s147 + $0x498] sm:$0xff] %v1168
      %1452 = vst [vmem:[%s147 + $0x4a0] sm:$0xff] %v817
      %1453 = vst [vmem:[%s147 + $0x4a8] sm:$0xff] %v819
      %1454 = vst [vmem:[%s147 + $0x4b0] sm:$0xff] %v1170
      %1455 = vst [vmem:[%s147 + $0x4b8] sm:$0xff] %v1172
      %1456 = vst [vmem:[%s147 + $0x4c0] sm:$0xff] %v823
      %1457 = vst [vmem:[%s147 + $0x4c8] sm:$0xff] %v825
      %1458 = vst [vmem:[%s147 + $0x4d0] sm:$0xff] %v1176
      %1459 = vst [vmem:[%s147 + $0x4d8] sm:$0xff] %v1178
      %1460 = vst [vmem:[%s147 + $0x4e0] sm:$0xff] %v827
      %1461 = vst [vmem:[%s147 + $0x4e8] sm:$0xff] %v829
      %1462 = vst [vmem:[%s147 + $0x4f0] sm:$0xff] %v1180
      %1463 = vst [vmem:[%s147 + $0x4f8] sm:$0xff] %v1182
      %1464 = vst [vmem:[%s147 + $0x500] sm:$0xff] %v833
      %1465 = vst [vmem:[%s147 + $0x508] sm:$0xff] %v835
      %1466 = vst [vmem:[%s147 + $0x510] sm:$0xff] %v1186
      %1467 = vst [vmem:[%s147 + $0x518] sm:$0xff] %v1188
      %1468 = vst [vmem:[%s147 + $0x520] sm:$0xff] %v837
      %1469 = vst [vmem:[%s147 + $0x528] sm:$0xff] %v839
      %1470 = vst [vmem:[%s147 + $0x530] sm:$0xff] %v1190
      %1471 = vst [vmem:[%s147 + $0x538] sm:$0xff] %v1192
      %1472 = vst [vmem:[%s147 + $0x540] sm:$0xff] %v843
      %1473 = vst [vmem:[%s147 + $0x548] sm:$0xff] %v845
      %1474 = vst [vmem:[%s147 + $0x550] sm:$0xff] %v1196
      %1475 = vst [vmem:[%s147 + $0x558] sm:$0xff] %v1198
      %1476 = vst [vmem:[%s147 + $0x560] sm:$0xff] %v847
      %1477 = vst [vmem:[%s147 + $0x568] sm:$0xff] %v849
      %1478 = vst [vmem:[%s147 + $0x570] sm:$0xff] %v1200
      %1479 = vst [vmem:[%s147 + $0x578] sm:$0xff] %v1202
      %1480 = vst [vmem:[%s147 + $0x580] sm:$0xff] %v853
      %1481 = vst [vmem:[%s147 + $0x588] sm:$0xff] %v855
      %1482 = vst [vmem:[%s147 + $0x590] sm:$0xff] %v1206
      %1483 = vst [vmem:[%s147 + $0x598] sm:$0xff] %v1208
      %1484 = vst [vmem:[%s147 + $0x5a0] sm:$0xff] %v857
      %1485 = vst [vmem:[%s147 + $0x5a8] sm:$0xff] %v859
      %1486 = vst [vmem:[%s147 + $0x5b0] sm:$0xff] %v1210
      %1487 = vst [vmem:[%s147 + $0x5b8] sm:$0xff] %v1212
      %1488 = vst [vmem:[%s147 + $0x5c0] sm:$0xff] %v863
      %1489 = vst [vmem:[%s147 + $0x5c8] sm:$0xff] %v865
      %1490 = vst [vmem:[%s147 + $0x5d0] sm:$0xff] %v1216
      %1491 = vst [vmem:[%s147 + $0x5d8] sm:$0xff] %v1218
      %1492 = vst [vmem:[%s147 + $0x5e0] sm:$0xff] %v867
      %1493 = vst [vmem:[%s147 + $0x5e8] sm:$0xff] %v869
      %1494 = vst [vmem:[%s147 + $0x5f0] sm:$0xff] %v1220
      %1495 = vst [vmem:[%s147 + $0x5f8] sm:$0xff] %v1222
      %1496 = vst [vmem:[%s147 + $0x600] sm:$0xff] %v873
      %1497 = vst [vmem:[%s147 + $0x608] sm:$0xff] %v875
      %1498 = vst [vmem:[%s147 + $0x610] sm:$0xff] %v1226
      %1499 = vst [vmem:[%s147 + $0x618] sm:$0xff] %v1228
      %1500 = vst [vmem:[%s147 + $0x620] sm:$0xff] %v877
      %1501 = vst [vmem:[%s147 + $0x628] sm:$0xff] %v879
      %1502 = vst [vmem:[%s147 + $0x630] sm:$0xff] %v1230
      %1503 = vst [vmem:[%s147 + $0x638] sm:$0xff] %v1232
      %1504 = vst [vmem:[%s147 + $0x640] sm:$0xff] %v883
      %1505 = vst [vmem:[%s147 + $0x648] sm:$0xff] %v885
      %1506 = vst [vmem:[%s147 + $0x650] sm:$0xff] %v1236
      %1507 = vst [vmem:[%s147 + $0x658] sm:$0xff] %v1238
      %1508 = vst [vmem:[%s147 + $0x660] sm:$0xff] %v887
      %1509 = vst [vmem:[%s147 + $0x668] sm:$0xff] %v889
      %1510 = vst [vmem:[%s147 + $0x670] sm:$0xff] %v1240
      %1511 = vst [vmem:[%s147 + $0x678] sm:$0xff] %v1242
      %1512 = vst [vmem:[%s147 + $0x680] sm:$0xff] %v893
      %1513 = vst [vmem:[%s147 + $0x688] sm:$0xff] %v895
      %1514 = vst [vmem:[%s147 + $0x690] sm:$0xff] %v1246
      %1515 = vst [vmem:[%s147 + $0x698] sm:$0xff] %v1248
      %1516 = vst [vmem:[%s147 + $0x6a0] sm:$0xff] %v897
      %1517 = vst [vmem:[%s147 + $0x6a8] sm:$0xff] %v899
      %1518 = vst [vmem:[%s147 + $0x6b0] sm:$0xff] %v1250
      %1519 = vst [vmem:[%s147 + $0x6b8] sm:$0xff] %v1252
      %1520 = vst [vmem:[%s147 + $0x6c0] sm:$0xff] %v903
      %1521 = vst [vmem:[%s147 + $0x6c8] sm:$0xff] %v905
      %1522 = vst [vmem:[%s147 + $0x6d0] sm:$0xff] %v1256
      %1523 = vst [vmem:[%s147 + $0x6d8] sm:$0xff] %v1258
      %1524 = vst [vmem:[%s147 + $0x6e0] sm:$0xff] %v907
      %1525 = vst [vmem:[%s147 + $0x6e8] sm:$0xff] %v909
      %1526 = vst [vmem:[%s147 + $0x6f0] sm:$0xff] %v1260
      %1527 = vst [vmem:[%s147 + $0x6f8] sm:$0xff] %v1262
      %1528 = vst [vmem:[%s147 + $0x700] sm:$0xff] %v913
      %1529 = vst [vmem:[%s147 + $0x708] sm:$0xff] %v915
      %1530 = vst [vmem:[%s147 + $0x710] sm:$0xff] %v1266
      %1531 = vst [vmem:[%s147 + $0x718] sm:$0xff] %v1268
      %1532 = vst [vmem:[%s147 + $0x720] sm:$0xff] %v917
      %1533 = vst [vmem:[%s147 + $0x728] sm:$0xff] %v919
      %1534 = vst [vmem:[%s147 + $0x730] sm:$0xff] %v1270
      %1535 = vst [vmem:[%s147 + $0x738] sm:$0xff] %v1272
      %1536 = vst [vmem:[%s147 + $0x740] sm:$0xff] %v923
      %1537 = vst [vmem:[%s147 + $0x748] sm:$0xff] %v925
      %1538 = vst [vmem:[%s147 + $0x750] sm:$0xff] %v1276
      %1539 = vst [vmem:[%s147 + $0x758] sm:$0xff] %v1278
      %1540 = vst [vmem:[%s147 + $0x760] sm:$0xff] %v927
      %1541 = vst [vmem:[%s147 + $0x768] sm:$0xff] %v929
      %1542 = vst [vmem:[%s147 + $0x770] sm:$0xff] %v1280
      %1543 = vst [vmem:[%s147 + $0x778] sm:$0xff] %v1282
      %1544 = vst [vmem:[%s147 + $0x780] sm:$0xff] %v933
      %1545 = vst [vmem:[%s147 + $0x788] sm:$0xff] %v935
      %1546 = vst [vmem:[%s147 + $0x790] sm:$0xff] %v1286
      %1547 = vst [vmem:[%s147 + $0x798] sm:$0xff] %v1288
      %1548 = vst [vmem:[%s147 + $0x7a0] sm:$0xff] %v937
      %1549 = vst [vmem:[%s147 + $0x7a8] sm:$0xff] %v939
      %1550 = vst [vmem:[%s147 + $0x7b0] sm:$0xff] %v1290
      %1551 = vst [vmem:[%s147 + $0x7b8] sm:$0xff] %v1292
      %1552 = vst [vmem:[%s147 + $0x7c0] sm:$0xff] %v943
      %1553 = vst [vmem:[%s147 + $0x7c8] sm:$0xff] %v945
      %1554 = vst [vmem:[%s147 + $0x7d0] sm:$0xff] %v1296
      %1555 = vst [vmem:[%s147 + $0x7d8] sm:$0xff] %v1298
      %1556 = vst [vmem:[%s147 + $0x7e0] sm:$0xff] %v947
      %1557 = vst [vmem:[%s147 + $0x7e8] sm:$0xff] %v949
      %1558 = vst [vmem:[%s147 + $0x7f0] sm:$0xff] %v1300
      %1559 = vst [vmem:[%s147 + $0x7f8] sm:$0xff] %v1302
      %s1560 = smul.u32 64, %s13
      %p1561 = scmp.lt.s32.totalorder %s1560, 511
      %s1562 = scalar_select %p1561, %s1560, 511
      %s1563 = smul.addr %s1562, 4
      %s1564 = smul.addr %s1563, 8
      %s1565 = scalar_lea.vmem %s2, %s1564
      // Predicated region
      $region29: #{_lambda_.1} parent=27 // pred_check
        %p1566 = pneg %p78
      $region30: #{_lambda_.1} parent=27 // pred_check_branch
        %1568 = sbr.rel (%p1566) target = $region32
      $region31: #{_lambda_.1} parent=27 // pred_region
        %s1569 = smul.u32 64, %s13
      $region32: #{_lambda_.1} parent=27 // pred_fallthru
        _
    $region28: #{_lambda_.1} parent=5 // pred_fallthru
      _
    %p1570 = scmp.le.s32.totalorder 2, %s8
    // Predicated region
    $region33: #{_lambda_.1} parent=5 // pred_check
      %p1571 = pneg %p1570
    $region34: #{_lambda_.1} parent=5 // pred_check_branch
      %1573 = sbr.rel (%p1571) target = $region36
    $region35: #{_lambda_.1} parent=5 // pred_region
      %s1574 = ssub.s32 %s8, 2
      // Predicated region
      $region37: #{_lambda_.1} parent=35 // pred_check
        %p1575 = pneg %p84
      $region38: #{_lambda_.1} parent=35 // pred_check_branch
        %1577 = sbr.rel (%p1575) target = $region40
      $region39: #{_lambda_.1} parent=35 // pred_region
        %s1578 = smul.u32 64, %s14
        %p1579 = scmp.lt.s32.totalorder %s1578, 511
        %s1580 = scalar_select %p1579, %s1578, 511
        %s1581 = smul.addr %s1580, 4
        %s1582 = smul.addr %s1581, 8
        %s1583 = scalar_lea.vmem %s2, %s1582
      $region40: #{_lambda_.1} parent=35 // pred_fallthru
        _
    $region36: #{_lambda_.1} parent=5 // pred_fallthru
      _
  $region6: #{_lambda_.1} parent=0 // loop_footer
    %s12 = sadd.s32 1, %s8
  $region7: #{_lambda_.1} parent=0 // loop_footer_branch
    %7 = sbr.rel target = $region3
  $region8: #{_lambda_.1} parent=0 // loop_exit
    _

// kernel: closed_call.20
$region0: #{closed_call.20}
  #allocation0 [shape = 'u32[]', space=smem, size = 0x4, offset = 0x4, fixed_abs, tag = 'smem constant byte address 0x4 - core index']
  #allocation1 [shape = 'u32[144,128]{1,0:T(1,128)}', space=vmem, size = 0x12000, scoped, tag = 'internal scratch']
  %s0 = inlined_call_operand.vmem [shape: bf16[512,640], index: 0, kind: input, shape index: {}]
  %s1 = inlined_call_operand.vmem [shape: bf16[640,512], index: 1, kind: input, shape index: {}]
  %s2 = inlined_call_operand.vmem [shape: f32[512,512], index: 2, kind: input, shape index: {}]
  %s3 = inlined_call_operand.vmem [shape: f32[512,128], index: 3, kind: input, shape index: {}]
  %s4 = inlined_call_operand.vmem [shape: f32[512,128], index: 4, kind: output, shape index: {0}]
  %s5 = inlined_call_operand.vmem [shape: f32[512,128], index: 5, kind: output, shape index: {1}]
  %6 = xla_tuple %s4, %s5
  %s7 = sld [smem:[#allocation0]]
  $region57: #{closed_call.20} parent=0
    _
  %s9 = ssub.s32 1, %s7
  %s10 = scalar_select 0, %s9, %s7
  loop: start=0, step=1, limit=4
  $region2: #{closed_call.20} parent=0 // loop_pre_header
    _
  $region3: #{closed_call.20} parent=0 // loop_header
    %s12 = sphi 0, %s16
    %p13 = scmp.ge.s32.totalorder %s12, 4
    %s22 = sphi 0, %s24
    %s25 = sphi 0, %s22
    %s26 = sphi 0, %s25
    %s42 = sphi 0, %s26
    %s46 = sphi 0, %s46
    %s48 = sphi 0, %s46
    %s49 = sphi 0, %s48
    %s63 = sphi 0, %s49
    %s69 = sphi 0, %s71
    %s72 = sphi 0, %s69
    %s73 = sphi 0, %s72
    %s89 = sphi 0, %s73
    %s95 = sphi 0, %s97
    %s98 = sphi 0, %s95
    %s99 = sphi 0, %s98
    %s115 = sphi 0, %s99
    %s121 = sphi 0, %s123
    %s124 = sphi 0, %s121
    %s125 = sphi 0, %s124
    %s141 = sphi 0, %s125
    %s147 = sphi 0, %s149
    %s150 = sphi 0, %s147
    %s151 = sphi 0, %s150
    %s167 = sphi 0, %s151
  $region4: #{closed_call.20} parent=0 // loop_header_branch
    %15 = sbr.rel (%p13) target = $region8
  $region5: #{closed_call.20} parent=0 // loop_body
    %s17 = ssub.s32 %s12, 1
    %s18 = ssub.s32 %s12, 2
    %s19 = sadd.s32 %s12, 1
    %s20 = ssub.s32 %s12, %s19
    %p21 = scmp.eq.s32.totalorder %s20, 0
    %s23 = sadd.s32 %s22, 1
    %s24 = scalar_select %p21, %s22, %s23
    %p27 = pneg %p21
    %p28 = scmp.eq.s32.totalorder %s12, 1
    %p29 = por %p27, %p28
    %p30 = scmp.ne.s32.totalorder %s22, %s25
    %p31 = scmp.eq.s32.totalorder %s12, 0
    %p32 = por %p30, %p31
    %p33 = scmp.ne.s32.totalorder %s22, %s25
    %p34 = scmp.eq.s32.totalorder %s17, 1
    %p35 = por %p33, %p34
    %p36 = scmp.ne.s32.totalorder %s25, %s26
    %p37 = scmp.eq.s32.totalorder %s17, 0
    %p38 = por %p36, %p37
    %p39 = scmp.ne.s32.totalorder %s25, %s26
    %p40 = scmp.eq.s32.totalorder %s18, 1
    %p41 = por %p39, %p40
    %p43 = scmp.ne.s32.totalorder %s26, %s42
    %p44 = scmp.eq.s32.totalorder %s18, 0
    %p45 = por %p43, %p44
    %s47 = sadd.s32 %s46, 1
    %p50 = scmp.eq.s32.totalorder %s12, 1
    %p51 = scmp.ne.s32.totalorder %s46, %s48
    %p52 = scmp.eq.s32.totalorder %s12, 0
    %p53 = por %p51, %p52
    %p54 = scmp.ne.s32.totalorder %s46, %s48
    %p55 = scmp.eq.s32.totalorder %s17, 1
    %p56 = por %p54, %p55
    %p57 = scmp.ne.s32.totalorder %s48, %s49
    %p58 = scmp.eq.s32.totalorder %s17, 0
    %p59 = por %p57, %p58
    %p60 = scmp.ne.s32.totalorder %s48, %s49
    %p61 = scmp.eq.s32.totalorder %s18, 1
    %p62 = por %p60, %p61
    %p64 = scmp.ne.s32.totalorder %s49, %s63
    %p65 = scmp.eq.s32.totalorder %s18, 0
    %p66 = por %p64, %p65
    %s67 = ssub.s32 %s12, %s19
    %p68 = scmp.eq.s32.totalorder %s67, 0
    %s70 = sadd.s32 %s69, 1
    %s71 = scalar_select %p68, %s69, %s70
    %p74 = pneg %p68
    %p75 = scmp.eq.s32.totalorder %s12, 1
    %p76 = por %p74, %p75
    %p77 = scmp.ne.s32.totalorder %s69, %s72
    %p78 = scmp.eq.s32.totalorder %s12, 0
    %p79 = por %p77, %p78
    %p80 = scmp.ne.s32.totalorder %s69, %s72
    %p81 = scmp.eq.s32.totalorder %s17, 1
    %p82 = por %p80, %p81
    %p83 = scmp.ne.s32.totalorder %s72, %s73
    %p84 = scmp.eq.s32.totalorder %s17, 0
    %p85 = por %p83, %p84
    %p86 = scmp.ne.s32.totalorder %s72, %s73
    %p87 = scmp.eq.s32.totalorder %s18, 1
    %p88 = por %p86, %p87
    %p90 = scmp.ne.s32.totalorder %s73, %s89
    %p91 = scmp.eq.s32.totalorder %s18, 0
    %p92 = por %p90, %p91
    %s93 = ssub.s32 %s12, %s19
    %p94 = scmp.eq.s32.totalorder %s93, 0
    %s96 = sadd.s32 %s95, 1
    %s97 = scalar_select %p94, %s95, %s96
    %p100 = pneg %p94
    %p101 = scmp.eq.s32.totalorder %s12, 1
    %p102 = por %p100, %p101
    %p103 = scmp.ne.s32.totalorder %s95, %s98
    %p104 = scmp.eq.s32.totalorder %s12, 0
    %p105 = por %p103, %p104
    %p106 = scmp.ne.s32.totalorder %s95, %s98
    %p107 = scmp.eq.s32.totalorder %s17, 1
    %p108 = por %p106, %p107
    %p109 = scmp.ne.s32.totalorder %s98, %s99
    %p110 = scmp.eq.s32.totalorder %s17, 0
    %p111 = por %p109, %p110
    %p112 = scmp.ne.s32.totalorder %s98, %s99
    %p113 = scmp.eq.s32.totalorder %s18, 1
    %p114 = por %p112, %p113
    %p116 = scmp.ne.s32.totalorder %s99, %s115
    %p117 = scmp.eq.s32.totalorder %s18, 0
    %p118 = por %p116, %p117
    %s119 = ssub.s32 %s12, %s19
    %p120 = scmp.eq.s32.totalorder %s119, 0
    %s122 = sadd.s32 %s121, 1
    %s123 = scalar_select %p120, %s121, %s122
    %p126 = pneg %p120
    %p127 = scmp.eq.s32.totalorder %s12, 1
    %p128 = por %p126, %p127
    %p129 = scmp.ne.s32.totalorder %s121, %s124
    %p130 = scmp.eq.s32.totalorder %s12, 0
    %p131 = por %p129, %p130
    %p132 = scmp.ne.s32.totalorder %s121, %s124
    %p133 = scmp.eq.s32.totalorder %s17, 1
    %p134 = por %p132, %p133
    %p135 = scmp.ne.s32.totalorder %s124, %s125
    %p136 = scmp.eq.s32.totalorder %s17, 0
    %p137 = por %p135, %p136
    %p138 = scmp.ne.s32.totalorder %s124, %s125
    %p139 = scmp.eq.s32.totalorder %s18, 1
    %p140 = por %p138, %p139
    %p142 = scmp.ne.s32.totalorder %s125, %s141
    %p143 = scmp.eq.s32.totalorder %s18, 0
    %p144 = por %p142, %p143
    %s145 = ssub.s32 %s12, %s19
    %p146 = scmp.eq.s32.totalorder %s145, 0
    %s148 = sadd.s32 %s147, 1
    %s149 = scalar_select %p146, %s147, %s148
    %p152 = pneg %p146
    %p153 = scmp.eq.s32.totalorder %s12, 1
    %p154 = por %p152, %p153
    %p155 = scmp.ne.s32.totalorder %s147, %s150
    %p156 = scmp.eq.s32.totalorder %s12, 0
    %p157 = por %p155, %p156
    %p158 = scmp.ne.s32.totalorder %s147, %s150
    %p159 = scmp.eq.s32.totalorder %s17, 1
    %p160 = por %p158, %p159
    %p161 = scmp.ne.s32.totalorder %s150, %s151
    %p162 = scmp.eq.s32.totalorder %s17, 0
    %p163 = por %p161, %p162
    %p164 = scmp.ne.s32.totalorder %s150, %s151
    %p165 = scmp.eq.s32.totalorder %s18, 1
    %p166 = por %p164, %p165
    %p168 = scmp.ne.s32.totalorder %s151, %s167
    %p169 = scmp.eq.s32.totalorder %s18, 0
    %p170 = por %p168, %p169
    %p171 = scmp.le.s32.totalorder 1, %s12
    %p172 = scmp.lt.s32.totalorder %s12, 3
    %p173 = pnand %p171, %p172
    %p174 = pneg %p173
    // Predicated region
    $region9: #{closed_call.20} parent=5 // pred_check
      _
    $region10: #{closed_call.20} parent=5 // pred_check_branch
      %176 = sbr.rel (%p173) target = $region12
    $region11: #{closed_call.20} parent=5 // pred_region
      %s177 = ssub.s32 %s12, 1
      // Predicated region
      $region13: #{closed_call.20} parent=11 // pred_check
        %p178 = pneg %p59
      $region14: #{closed_call.20} parent=11 // pred_check_branch
        %180 = sbr.rel (%p178) target = $region16
      $region15: #{closed_call.20} parent=11 // pred_region
        _
      $region16: #{closed_call.20} parent=11 // pred_fallthru
        _
    $region12: #{closed_call.20} parent=5 // pred_fallthru
      _
    %p181 = scmp.lt.s32.totalorder %s12, 2
    // Predicated region
    $region17: #{closed_call.20} parent=5 // pred_check
      %p182 = pneg %p181
    $region18: #{closed_call.20} parent=5 // pred_check_branch
      %184 = sbr.rel (%p182) target = $region20
    $region19: #{closed_call.20} parent=5 // pred_region
      // Predicated region
      $region21: #{closed_call.20} parent=19 // pred_check
        %p185 = pneg %p32
      $region22: #{closed_call.20} parent=19 // pred_check_branch
        %187 = sbr.rel (%p185) target = $region24
      $region23: #{closed_call.20} parent=19 // pred_region
        %s188 = smul.u32 32, %s12
        %p189 = scmp.lt.s32.totalorder %s188, 63
        %s190 = scalar_select %p189, %s188, 63
        %s191 = smul.addr %s190, 5
        %s192 = smul.addr %s191, 4
        %s193 = scalar_lea.vmem %s0, %s192
        %s194 = smul.u32 32, %s12
      $region24: #{closed_call.20} parent=19 // pred_fallthru
        _
      // Predicated region
      $region25: #{closed_call.20} parent=19 // pred_check
        %p195 = pneg %p79
      $region26: #{closed_call.20} parent=19 // pred_check_branch
        %197 = sbr.rel (%p195) target = $region28
      $region27: #{closed_call.20} parent=19 // pred_region
        %s198 = smul.u32 32, %s12
        %p199 = scmp.lt.s32.totalorder %s198, 63
        %s200 = scalar_select %p199, %s198, 63
        %s201 = smul.addr %s200, 4
        %s202 = smul.addr %s201, 8
        %s203 = scalar_lea.vmem %s2, %s202
        %s204 = smul.u32 32, %s12
      $region28: #{closed_call.20} parent=19 // pred_fallthru
        _
      // Predicated region
      $region29: #{closed_call.20} parent=19 // pred_check
        %p205 = pneg %p105
      $region30: #{closed_call.20} parent=19 // pred_check_branch
        %207 = sbr.rel (%p205) target = $region32
      $region31: #{closed_call.20} parent=19 // pred_region
        %s208 = smul.u32 32, %s12
        %p209 = scmp.lt.s32.totalorder %s208, 63
        %s210 = scalar_select %p209, %s208, 63
        %s211 = smul.addr %s210, 8
        %s212 = scalar_lea.vmem %s3, %s211
        %s213 = smul.u32 32, %s12
      $region32: #{closed_call.20} parent=19 // pred_fallthru
        _
    $region20: #{closed_call.20} parent=5 // pred_fallthru
      _
    %p214 = scmp.le.s32.totalorder 1, %s12
    %p215 = scmp.lt.s32.totalorder %s12, 3
    %p216 = pnand %p214, %p215
    %p217 = pneg %p216
    // Predicated region
    $region33: #{closed_call.20} parent=5 // pred_check
      _
    $region34: #{closed_call.20} parent=5 // pred_check_branch
      %219 = sbr.rel (%p216) target = $region36
    $region35: #{closed_call.20} parent=5 // pred_region
      %s220 = ssub.s32 %s12, 1
      %s221 = smul.u32 32, %s17
      %p222 = scmp.lt.s32.totalorder %s221, 63
      %s223 = scalar_select %p222, %s221, 63
      %s224 = smul.addr %s223, 5
      %s225 = smul.addr %s224, 4
      %s226 = scalar_lea.vmem %s0, %s225
      %p227 = pneg %p38
      %p228 = pneg %p35
      %p229 = pneg %p59
      %p230 = pneg %p56
      %s231 = smul.u32 32, %s17
      %p232 = scmp.lt.s32.totalorder %s231, 63
      %s233 = scalar_select %p232, %s231, 63
      %s234 = smul.addr %s233, 4
      %s235 = smul.addr %s234, 8
      %s236 = scalar_lea.vmem %s2, %s235
      %p237 = pneg %p85
      %p238 = pneg %p82
      %s239 = smul.u32 32, %s17
      %p240 = scmp.lt.s32.totalorder %s239, 63
      %s241 = scalar_select %p240, %s239, 63
      %s242 = smul.addr %s241, 8
      %s243 = scalar_lea.vmem %s3, %s242
      %p244 = pneg %p111
      %p245 = pneg %p108
      %p246 = pneg %p137
      %p247 = pneg %p134
      %s248 = smul.u32 32, %s17
      %p249 = scmp.lt.s32.totalorder %s248, 63
      %s250 = scalar_select %p249, %s248, 63
      %s251 = smul.addr %s250, 8
      %s252 = scalar_lea.vmem %s4, %s251
      %p253 = pneg %p163
      %p254 = pneg %p160
      %s255 = smul.u32 32, %s17
      %p256 = scmp.lt.s32.totalorder %s255, 63
      %s257 = scalar_select %p256, %s255, 63
      %s258 = smul.addr %s257, 8
      %s259 = scalar_lea.vmem %s5, %s258
      %s260 = smul.u32 32, %s17
      %p261 = scmp.lt.s32.totalorder %s260, 63
      %s262 = scalar_select %p261, %s260, 63
      %s263 = smul.addr %s262, 5
      %s264 = smul.addr %s263, 4
      %s265 = scalar_lea.vmem %s0, %s264
      %s266 = smul.u32 32, %s17
      %s267 = smul.u32 32, %s17
      %p268 = scmp.lt.s32.totalorder %s267, 63
      %s269 = scalar_select %p268, %s267, 63
      %s270 = smul.addr %s269, 4
      %s271 = smul.addr %s270, 8
      %s272 = scalar_lea.vmem %s2, %s271
      %s273 = smul.u32 32, %s17
      %s274 = smul.u32 32, %s17
      %p275 = scmp.lt.s32.totalorder %s274, 63
      %s276 = scalar_select %p275, %s274, 63
      %s277 = smul.addr %s276, 8
      %s278 = scalar_lea.vmem %s3, %s277
      %s279 = smul.u32 32, %s17
      %s280 = smul.u32 32, %s17
      %p281 = scmp.lt.s32.totalorder %s280, 63
      %s282 = scalar_select %p281, %s280, 63
      %s283 = smul.addr %s282, 8
      %s284 = scalar_lea.vmem %s4, %s283
      %s285 = smul.u32 32, %s17
      %s286 = smul.u32 32, %s17
      %p287 = scmp.lt.s32.totalorder %s286, 63
      %s288 = scalar_select %p287, %s286, 63
      %s289 = smul.addr %s288, 8
      %s290 = scalar_lea.vmem %s5, %s289
      %s291 = smul.u32 32, %s17
      %v293 = vld [vmem:[%s265] sm:$0xff]
      %v294 = vld [vmem:[%s265 + $0x8] sm:$0xff]
      %v295 = vld [vmem:[%s265 + $0x10] sm:$0xf]
      %v296 = vld [vmem:[%s265 + $0x14] sm:$0xff]
      %v297 = vld [vmem:[%s265 + $0x1c] sm:$0xff]
      %v298 = vld [vmem:[%s265 + $0x24] sm:$0xf]
      %v299 = vld [vmem:[%s265 + $0x28] sm:$0xff]
      %v300 = vld [vmem:[%s265 + $0x30] sm:$0xff]
      %v301 = vld [vmem:[%s265 + $0x38] sm:$0xf]
      %v302 = vld [vmem:[%s265 + $0x3c] sm:$0xff]
      %v303 = vld [vmem:[%s265 + $0x44] sm:$0xff]
      %v304 = vld [vmem:[%s265 + $0x4c] sm:$0xf]
      %v305 = vld [vmem:[%s265 + $0x50] sm:$0xff]
      %v306 = vld [vmem:[%s265 + $0x58] sm:$0xff]
      %v307 = vld [vmem:[%s265 + $0x60] sm:$0xf]
      %v308 = vld [vmem:[%s265 + $0x64] sm:$0xff]
      %v309 = vld [vmem:[%s265 + $0x6c] sm:$0xff]
      %v310 = vld [vmem:[%s265 + $0x74] sm:$0xf]
      %v311 = vld [vmem:[%s265 + $0x78] sm:$0xff]
      %v312 = vld [vmem:[%s265 + $0x80] sm:$0xff]
      %v313 = vld [vmem:[%s265 + $0x88] sm:$0xf]
      %v314 = vld [vmem:[%s265 + $0x8c] sm:$0xff]
      %v315 = vld [vmem:[%s265 + $0x94] sm:$0xff]
      %v316 = vld [vmem:[%s265 + $0x9c] sm:$0xf]
      %v317 = vld [vmem:[%s265 + $0xa0] sm:$0xff]
      %v318 = vld [vmem:[%s265 + $0xa8] sm:$0xff]
      %v319 = vld [vmem:[%s265 + $0xb0] sm:$0xf]
      %v320 = vld [vmem:[%s265 + $0xb4] sm:$0xff]
      %v321 = vld [vmem:[%s265 + $0xbc] sm:$0xff]
      %v322 = vld [vmem:[%s265 + $0xc4] sm:$0xf]
      %v323 = vld [vmem:[%s265 + $0xc8] sm:$0xff]
      %v324 = vld [vmem:[%s265 + $0xd0] sm:$0xff]
      %v325 = vld [vmem:[%s265 + $0xd8] sm:$0xf]
      %v326 = vld [vmem:[%s265 + $0xdc] sm:$0xff]
      %v327 = vld [vmem:[%s265 + $0xe4] sm:$0xff]
      %v328 = vld [vmem:[%s265 + $0xec] sm:$0xf]
      %v329 = vld [vmem:[%s265 + $0xf0] sm:$0xff]
      %v330 = vld [vmem:[%s265 + $0xf8] sm:$0xff]
      %v331 = vld [vmem:[%s265 + $0x100] sm:$0xf]
      %v332 = vld [vmem:[%s265 + $0x104] sm:$0xff]
      %v333 = vld [vmem:[%s265 + $0x10c] sm:$0xff]
      %v334 = vld [vmem:[%s265 + $0x114] sm:$0xf]
      %v335 = vld [vmem:[%s265 + $0x118] sm:$0xff]
      %v336 = vld [vmem:[%s265 + $0x120] sm:$0xff]
      %v337 = vld [vmem:[%s265 + $0x128] sm:$0xf]
      %v338 = vld [vmem:[%s265 + $0x12c] sm:$0xff]
      %v339 = vld [vmem:[%s265 + $0x134] sm:$0xff]
      %v340 = vld [vmem:[%s265 + $0x13c] sm:$0xf]
      %v341 = vld [vmem:[%s265 + $0x140] sm:$0xff]
      %v342 = vld [vmem:[%s265 + $0x148] sm:$0xff]
      %v343 = vld [vmem:[%s265 + $0x150] sm:$0xf]
      %v344 = vld [vmem:[%s265 + $0x154] sm:$0xff]
      %v345 = vld [vmem:[%s265 + $0x15c] sm:$0xff]
      %v346 = vld [vmem:[%s265 + $0x164] sm:$0xf]
      %v347 = vld [vmem:[%s265 + $0x168] sm:$0xff]
      %v348 = vld [vmem:[%s265 + $0x170] sm:$0xff]
      %v349 = vld [vmem:[%s265 + $0x178] sm:$0xf]
      %v350 = vld [vmem:[%s265 + $0x17c] sm:$0xff]
      %v351 = vld [vmem:[%s265 + $0x184] sm:$0xff]
      %v352 = vld [vmem:[%s265 + $0x18c] sm:$0xf]
      %v353 = vld [vmem:[%s265 + $0x190] sm:$0xff]
      %v354 = vld [vmem:[%s265 + $0x198] sm:$0xff]
      %v355 = vld [vmem:[%s265 + $0x1a0] sm:$0xf]
      %v356 = vld [vmem:[%s265 + $0x1a4] sm:$0xff]
      %v357 = vld [vmem:[%s265 + $0x1ac] sm:$0xff]
      %v358 = vld [vmem:[%s265 + $0x1b4] sm:$0xf]
      %v359 = vld [vmem:[%s265 + $0x1b8] sm:$0xff]
      %v360 = vld [vmem:[%s265 + $0x1c0] sm:$0xff]
      %v361 = vld [vmem:[%s265 + $0x1c8] sm:$0xf]
      %v362 = vld [vmem:[%s265 + $0x1cc] sm:$0xff]
      %v363 = vld [vmem:[%s265 + $0x1d4] sm:$0xff]
      %v364 = vld [vmem:[%s265 + $0x1dc] sm:$0xf]
      %v365 = vld [vmem:[%s265 + $0x1e0] sm:$0xff]
      %v366 = vld [vmem:[%s265 + $0x1e8] sm:$0xff]
      %v367 = vld [vmem:[%s265 + $0x1f0] sm:$0xf]
      %v368 = vld [vmem:[%s265 + $0x1f4] sm:$0xff]
      %v369 = vld [vmem:[%s265 + $0x1fc] sm:$0xff]
      %v370 = vld [vmem:[%s265 + $0x204] sm:$0xf]
      %v371 = vld [vmem:[%s265 + $0x208] sm:$0xff]
      %v372 = vld [vmem:[%s265 + $0x210] sm:$0xff]
      %v373 = vld [vmem:[%s265 + $0x218] sm:$0xf]
      %v374 = vld [vmem:[%s265 + $0x21c] sm:$0xff]
      %v375 = vld [vmem:[%s265 + $0x224] sm:$0xff]
      %v376 = vld [vmem:[%s265 + $0x22c] sm:$0xf]
      %v377 = vld [vmem:[%s265 + $0x230] sm:$0xff]
      %v378 = vld [vmem:[%s265 + $0x238] sm:$0xff]
      %v379 = vld [vmem:[%s265 + $0x240] sm:$0xf]
      %v380 = vld [vmem:[%s265 + $0x244] sm:$0xff]
      %v381 = vld [vmem:[%s265 + $0x24c] sm:$0xff]
      %v382 = vld [vmem:[%s265 + $0x254] sm:$0xf]
      %v383 = vld [vmem:[%s265 + $0x258] sm:$0xff]
      %v384 = vld [vmem:[%s265 + $0x260] sm:$0xff]
      %v385 = vld [vmem:[%s265 + $0x268] sm:$0xf]
      %v386 = vld [vmem:[%s265 + $0x26c] sm:$0xff]
      %v387 = vld [vmem:[%s265 + $0x274] sm:$0xff]
      %v388 = vld [vmem:[%s265 + $0x27c] sm:$0xf]
      %v389 = vld [vmem:[%s1] sm:$0xff]
      %v390 = vld [vmem:[%s1 + $0x8] sm:$0xff]
      %v391 = vld [vmem:[%s1 + $0x10] sm:$0xff]
      %v392 = vld [vmem:[%s1 + $0x18] sm:$0xff]
      %v393 = vld [vmem:[%s1 + $0x20] sm:$0xff]
      %v394 = vld [vmem:[%s1 + $0x28] sm:$0xff]
      %v395 = vld [vmem:[%s1 + $0x30] sm:$0xff]
      %v396 = vld [vmem:[%s1 + $0x38] sm:$0xff]
      %v397 = vld [vmem:[%s1 + $0x40] sm:$0xff]
      %v398 = vld [vmem:[%s1 + $0x48] sm:$0xff]
      %v399 = vld [vmem:[%s1 + $0x50] sm:$0xff]
      %v400 = vld [vmem:[%s1 + $0x58] sm:$0xff]
      %v401 = vld [vmem:[%s1 + $0x60] sm:$0xff]
      %v402 = vld [vmem:[%s1 + $0x68] sm:$0xff]
      %v403 = vld [vmem:[%s1 + $0x70] sm:$0xff]
      %v404 = vld [vmem:[%s1 + $0x78] sm:$0xff]
      %v405 = vld [vmem:[%s1 + $0x80] sm:$0xff]
      %v406 = vld [vmem:[%s1 + $0x88] sm:$0xff]
      %v407 = vld [vmem:[%s1 + $0x90] sm:$0xff]
      %v408 = vld [vmem:[%s1 + $0x98] sm:$0xff]
      %v409 = vld [vmem:[%s1 + $0xa0] sm:$0xff]
      %v410 = vld [vmem:[%s1 + $0xa8] sm:$0xff]
      %v411 = vld [vmem:[%s1 + $0xb0] sm:$0xff]
      %v412 = vld [vmem:[%s1 + $0xb8] sm:$0xff]
      %v413 = vld [vmem:[%s1 + $0xc0] sm:$0xff]
      %v414 = vld [vmem:[%s1 + $0xc8] sm:$0xff]
      %v415 = vld [vmem:[%s1 + $0xd0] sm:$0xff]
      %v416 = vld [vmem:[%s1 + $0xd8] sm:$0xff]
      %v417 = vld [vmem:[%s1 + $0xe0] sm:$0xff]
      %v418 = vld [vmem:[%s1 + $0xe8] sm:$0xff]
      %v419 = vld [vmem:[%s1 + $0xf0] sm:$0xff]
      %v420 = vld [vmem:[%s1 + $0xf8] sm:$0xff]
      %v421 = vld [vmem:[%s1 + $0x100] sm:$0xff]
      %v422 = vld [vmem:[%s1 + $0x108] sm:$0xff]
      %v423 = vld [vmem:[%s1 + $0x110] sm:$0xff]
      %v424 = vld [vmem:[%s1 + $0x118] sm:$0xff]
      %v425 = vld [vmem:[%s1 + $0x120] sm:$0xff]
      %v426 = vld [vmem:[%s1 + $0x128] sm:$0xff]
      %v427 = vld [vmem:[%s1 + $0x130] sm:$0xff]
      %v428 = vld [vmem:[%s1 + $0x138] sm:$0xff]
      %v429 = vld [vmem:[%s1 + $0x140] sm:$0xff]
      %v430 = vld [vmem:[%s1 + $0x148] sm:$0xff]
      %v431 = vld [vmem:[%s1 + $0x150] sm:$0xff]
      %v432 = vld [vmem:[%s1 + $0x158] sm:$0xff]
      %v433 = vld [vmem:[%s1 + $0x160] sm:$0xff]
      %v434 = vld [vmem:[%s1 + $0x168] sm:$0xff]
      %v435 = vld [vmem:[%s1 + $0x170] sm:$0xff]
      %v436 = vld [vmem:[%s1 + $0x178] sm:$0xff]
      %v437 = vld [vmem:[%s1 + $0x180] sm:$0xff]
      %v438 = vld [vmem:[%s1 + $0x188] sm:$0xff]
      %v439 = vld [vmem:[%s1 + $0x190] sm:$0xff]
      %v440 = vld [vmem:[%s1 + $0x198] sm:$0xff]
      %v441 = vld [vmem:[%s1 + $0x1a0] sm:$0xff]
      %v442 = vld [vmem:[%s1 + $0x1a8] sm:$0xff]
      %v443 = vld [vmem:[%s1 + $0x1b0] sm:$0xff]
      %v444 = vld [vmem:[%s1 + $0x1b8] sm:$0xff]
      %v445 = vld [vmem:[%s1 + $0x1c0] sm:$0xff]
      %v446 = vld [vmem:[%s1 + $0x1c8] sm:$0xff]
      %v447 = vld [vmem:[%s1 + $0x1d0] sm:$0xff]
      %v448 = vld [vmem:[%s1 + $0x1d8] sm:$0xff]
      %v449 = vld [vmem:[%s1 + $0x1e0] sm:$0xff]
      %v450 = vld [vmem:[%s1 + $0x1e8] sm:$0xff]
      %v451 = vld [vmem:[%s1 + $0x1f0] sm:$0xff]
      %v452 = vld [vmem:[%s1 + $0x1f8] sm:$0xff]
      %v453 = vld [vmem:[%s1 + $0x200] sm:$0xff]
      %v454 = vld [vmem:[%s1 + $0x208] sm:$0xff]
      %v455 = vld [vmem:[%s1 + $0x210] sm:$0xff]
      %v456 = vld [vmem:[%s1 + $0x218] sm:$0xff]
      %v457 = vld [vmem:[%s1 + $0x220] sm:$0xff]
      %v458 = vld [vmem:[%s1 + $0x228] sm:$0xff]
      %v459 = vld [vmem:[%s1 + $0x230] sm:$0xff]
      %v460 = vld [vmem:[%s1 + $0x238] sm:$0xff]
      %v461 = vld [vmem:[%s1 + $0x240] sm:$0xff]
      %v462 = vld [vmem:[%s1 + $0x248] sm:$0xff]
      %v463 = vld [vmem:[%s1 + $0x250] sm:$0xff]
      %v464 = vld [vmem:[%s1 + $0x258] sm:$0xff]
      %v465 = vld [vmem:[%s1 + $0x260] sm:$0xff]
      %v466 = vld [vmem:[%s1 + $0x268] sm:$0xff]
      %v467 = vld [vmem:[%s1 + $0x270] sm:$0xff]
      %v468 = vld [vmem:[%s1 + $0x278] sm:$0xff]
      %v469 = vld [vmem:[%s1 + $0x280] sm:$0xff]
      %v470 = vld [vmem:[%s1 + $0x288] sm:$0xff]
      %v471 = vld [vmem:[%s1 + $0x290] sm:$0xff]
      %v472 = vld [vmem:[%s1 + $0x298] sm:$0xff]
      %v473 = vld [vmem:[%s1 + $0x2a0] sm:$0xff]
      %v474 = vld [vmem:[%s1 + $0x2a8] sm:$0xff]
      %v475 = vld [vmem:[%s1 + $0x2b0] sm:$0xff]
      %v476 = vld [vmem:[%s1 + $0x2b8] sm:$0xff]
      %v477 = vld [vmem:[%s1 + $0x2c0] sm:$0xff]
      %v478 = vld [vmem:[%s1 + $0x2c8] sm:$0xff]
      %v479 = vld [vmem:[%s1 + $0x2d0] sm:$0xff]
      %v480 = vld [vmem:[%s1 + $0x2d8] sm:$0xff]
      %v481 = vld [vmem:[%s1 + $0x2e0] sm:$0xff]
      %v482 = vld [vmem:[%s1 + $0x2e8] sm:$0xff]
      %v483 = vld [vmem:[%s1 + $0x2f0] sm:$0xff]
      %v484 = vld [vmem:[%s1 + $0x2f8] sm:$0xff]
      %v485 = vld [vmem:[%s1 + $0x300] sm:$0xff]
      %v486 = vld [vmem:[%s1 + $0x308] sm:$0xff]
      %v487 = vld [vmem:[%s1 + $0x310] sm:$0xff]
      %v488 = vld [vmem:[%s1 + $0x318] sm:$0xff]
      %v489 = vld [vmem:[%s1 + $0x320] sm:$0xff]
      %v490 = vld [vmem:[%s1 + $0x328] sm:$0xff]
      %v491 = vld [vmem:[%s1 + $0x330] sm:$0xff]
      %v492 = vld [vmem:[%s1 + $0x338] sm:$0xff]
      %v493 = vld [vmem:[%s1 + $0x340] sm:$0xff]
      %v494 = vld [vmem:[%s1 + $0x348] sm:$0xff]
      %v495 = vld [vmem:[%s1 + $0x350] sm:$0xff]
      %v496 = vld [vmem:[%s1 + $0x358] sm:$0xff]
      %v497 = vld [vmem:[%s1 + $0x360] sm:$0xff]
      %v498 = vld [vmem:[%s1 + $0x368] sm:$0xff]
      %v499 = vld [vmem:[%s1 + $0x370] sm:$0xff]
      %v500 = vld [vmem:[%s1 + $0x378] sm:$0xff]
      %v501 = vld [vmem:[%s1 + $0x380] sm:$0xff]
      %v502 = vld [vmem:[%s1 + $0x388] sm:$0xff]
      %v503 = vld [vmem:[%s1 + $0x390] sm:$0xff]
      %v504 = vld [vmem:[%s1 + $0x398] sm:$0xff]
      %v505 = vld [vmem:[%s1 + $0x3a0] sm:$0xff]
      %v506 = vld [vmem:[%s1 + $0x3a8] sm:$0xff]
      %v507 = vld [vmem:[%s1 + $0x3b0] sm:$0xff]
      %v508 = vld [vmem:[%s1 + $0x3b8] sm:$0xff]
      %v509 = vld [vmem:[%s1 + $0x3c0] sm:$0xff]
      %v510 = vld [vmem:[%s1 + $0x3c8] sm:$0xff]
      %v511 = vld [vmem:[%s1 + $0x3d0] sm:$0xff]
      %v512 = vld [vmem:[%s1 + $0x3d8] sm:$0xff]
      %v513 = vld [vmem:[%s1 + $0x3e0] sm:$0xff]
      %v514 = vld [vmem:[%s1 + $0x3e8] sm:$0xff]
      %v515 = vld [vmem:[%s1 + $0x3f0] sm:$0xff]
      %v516 = vld [vmem:[%s1 + $0x3f8] sm:$0xff]
      %v517 = vld [vmem:[%s1 + $0x400] sm:$0xff]
      %v518 = vld [vmem:[%s1 + $0x408] sm:$0xff]
      %v519 = vld [vmem:[%s1 + $0x410] sm:$0xff]
      %v520 = vld [vmem:[%s1 + $0x418] sm:$0xff]
      %v521 = vld [vmem:[%s1 + $0x420] sm:$0xff]
      %v522 = vld [vmem:[%s1 + $0x428] sm:$0xff]
      %v523 = vld [vmem:[%s1 + $0x430] sm:$0xff]
      %v524 = vld [vmem:[%s1 + $0x438] sm:$0xff]
      %v525 = vld [vmem:[%s1 + $0x440] sm:$0xff]
      %v526 = vld [vmem:[%s1 + $0x448] sm:$0xff]
      %v527 = vld [vmem:[%s1 + $0x450] sm:$0xff]
      %v528 = vld [vmem:[%s1 + $0x458] sm:$0xff]
      %v529 = vld [vmem:[%s1 + $0x460] sm:$0xff]
      %v530 = vld [vmem:[%s1 + $0x468] sm:$0xff]
      %v531 = vld [vmem:[%s1 + $0x470] sm:$0xff]
      %v532 = vld [vmem:[%s1 + $0x478] sm:$0xff]
      %v533 = vld [vmem:[%s1 + $0x480] sm:$0xff]
      %v534 = vld [vmem:[%s1 + $0x488] sm:$0xff]
      %v535 = vld [vmem:[%s1 + $0x490] sm:$0xff]
      %v536 = vld [vmem:[%s1 + $0x498] sm:$0xff]
      %v537 = vld [vmem:[%s1 + $0x4a0] sm:$0xff]
      %v538 = vld [vmem:[%s1 + $0x4a8] sm:$0xff]
      %v539 = vld [vmem:[%s1 + $0x4b0] sm:$0xff]
      %v540 = vld [vmem:[%s1 + $0x4b8] sm:$0xff]
      %v541 = vld [vmem:[%s1 + $0x4c0] sm:$0xff]
      %v542 = vld [vmem:[%s1 + $0x4c8] sm:$0xff]
      %v543 = vld [vmem:[%s1 + $0x4d0] sm:$0xff]
      %v544 = vld [vmem:[%s1 + $0x4d8] sm:$0xff]
      %v545 = vld [vmem:[%s1 + $0x4e0] sm:$0xff]
      %v546 = vld [vmem:[%s1 + $0x4e8] sm:$0xff]
      %v547 = vld [vmem:[%s1 + $0x4f0] sm:$0xff]
      %v548 = vld [vmem:[%s1 + $0x4f8] sm:$0xff]
      %v549 = vld [vmem:[%s272] sm:$0xff]
      %v550 = vld [vmem:[%s272 + $0x8] sm:$0xff]
      %v551 = vld [vmem:[%s272 + $0x10] sm:$0xff]
      %v552 = vld [vmem:[%s272 + $0x18] sm:$0xff]
      %v553 = vld [vmem:[%s272 + $0x20] sm:$0xff]
      %v554 = vld [vmem:[%s272 + $0x28] sm:$0xff]
      %v555 = vld [vmem:[%s272 + $0x30] sm:$0xff]
      %v556 = vld [vmem:[%s272 + $0x38] sm:$0xff]
      %v557 = vld [vmem:[%s272 + $0x40] sm:$0xff]
      %v558 = vld [vmem:[%s272 + $0x48] sm:$0xff]
      %v559 = vld [vmem:[%s272 + $0x50] sm:$0xff]
      %v560 = vld [vmem:[%s272 + $0x58] sm:$0xff]
      %v561 = vld [vmem:[%s272 + $0x60] sm:$0xff]
      %v562 = vld [vmem:[%s272 + $0x68] sm:$0xff]
      %v563 = vld [vmem:[%s272 + $0x70] sm:$0xff]
      %v564 = vld [vmem:[%s272 + $0x78] sm:$0xff]
      %v565 = vld [vmem:[%s272 + $0x80] sm:$0xff]
      %v566 = vld [vmem:[%s272 + $0x88] sm:$0xff]
      %v567 = vld [vmem:[%s272 + $0x90] sm:$0xff]
      %v568 = vld [vmem:[%s272 + $0x98] sm:$0xff]
      %v569 = vld [vmem:[%s272 + $0xa0] sm:$0xff]
      %v570 = vld [vmem:[%s272 + $0xa8] sm:$0xff]
      %v571 = vld [vmem:[%s272 + $0xb0] sm:$0xff]
      %v572 = vld [vmem:[%s272 + $0xb8] sm:$0xff]
      %v573 = vld [vmem:[%s272 + $0xc0] sm:$0xff]
      %v574 = vld [vmem:[%s272 + $0xc8] sm:$0xff]
      %v575 = vld [vmem:[%s272 + $0xd0] sm:$0xff]
      %v576 = vld [vmem:[%s272 + $0xd8] sm:$0xff]
      %v577 = vld [vmem:[%s272 + $0xe0] sm:$0xff]
      %v578 = vld [vmem:[%s272 + $0xe8] sm:$0xff]
      %v579 = vld [vmem:[%s272 + $0xf0] sm:$0xff]
      %v580 = vld [vmem:[%s272 + $0xf8] sm:$0xff]
      %v581 = vld [vmem:[%s272 + $0x100] sm:$0xff]
      %v582 = vld [vmem:[%s272 + $0x108] sm:$0xff]
      %v583 = vld [vmem:[%s272 + $0x110] sm:$0xff]
      %v584 = vld [vmem:[%s272 + $0x118] sm:$0xff]
      %v585 = vld [vmem:[%s272 + $0x120] sm:$0xff]
      %v586 = vld [vmem:[%s272 + $0x128] sm:$0xff]
      %v587 = vld [vmem:[%s272 + $0x130] sm:$0xff]
      %v588 = vld [vmem:[%s272 + $0x138] sm:$0xff]
      %v589 = vld [vmem:[%s272 + $0x140] sm:$0xff]
      %v590 = vld [vmem:[%s272 + $0x148] sm:$0xff]
      %v591 = vld [vmem:[%s272 + $0x150] sm:$0xff]
      %v592 = vld [vmem:[%s272 + $0x158] sm:$0xff]
      %v593 = vld [vmem:[%s272 + $0x160] sm:$0xff]
      %v594 = vld [vmem:[%s272 + $0x168] sm:$0xff]
      %v595 = vld [vmem:[%s272 + $0x170] sm:$0xff]
      %v596 = vld [vmem:[%s272 + $0x178] sm:$0xff]
      %v597 = vld [vmem:[%s272 + $0x180] sm:$0xff]
      %v598 = vld [vmem:[%s272 + $0x188] sm:$0xff]
      %v599 = vld [vmem:[%s272 + $0x190] sm:$0xff]
      %v600 = vld [vmem:[%s272 + $0x198] sm:$0xff]
      %v601 = vld [vmem:[%s272 + $0x1a0] sm:$0xff]
      %v602 = vld [vmem:[%s272 + $0x1a8] sm:$0xff]
      %v603 = vld [vmem:[%s272 + $0x1b0] sm:$0xff]
      %v604 = vld [vmem:[%s272 + $0x1b8] sm:$0xff]
      %v605 = vld [vmem:[%s272 + $0x1c0] sm:$0xff]
      %v606 = vld [vmem:[%s272 + $0x1c8] sm:$0xff]
      %v607 = vld [vmem:[%s272 + $0x1d0] sm:$0xff]
      %v608 = vld [vmem:[%s272 + $0x1d8] sm:$0xff]
      %v609 = vld [vmem:[%s272 + $0x1e0] sm:$0xff]
      %v610 = vld [vmem:[%s272 + $0x1e8] sm:$0xff]
      %v611 = vld [vmem:[%s272 + $0x1f0] sm:$0xff]
      %v612 = vld [vmem:[%s272 + $0x1f8] sm:$0xff]
      %v613 = vld [vmem:[%s272 + $0x200] sm:$0xff]
      %v614 = vld [vmem:[%s272 + $0x208] sm:$0xff]
      %v615 = vld [vmem:[%s272 + $0x210] sm:$0xff]
      %v616 = vld [vmem:[%s272 + $0x218] sm:$0xff]
      %v617 = vld [vmem:[%s272 + $0x220] sm:$0xff]
      %v618 = vld [vmem:[%s272 + $0x228] sm:$0xff]
      %v619 = vld [vmem:[%s272 + $0x230] sm:$0xff]
      %v620 = vld [vmem:[%s272 + $0x238] sm:$0xff]
      %v621 = vld [vmem:[%s272 + $0x240] sm:$0xff]
      %v622 = vld [vmem:[%s272 + $0x248] sm:$0xff]
      %v623 = vld [vmem:[%s272 + $0x250] sm:$0xff]
      %v624 = vld [vmem:[%s272 + $0x258] sm:$0xff]
      %v625 = vld [vmem:[%s272 + $0x260] sm:$0xff]
      %v626 = vld [vmem:[%s272 + $0x268] sm:$0xff]
      %v627 = vld [vmem:[%s272 + $0x270] sm:$0xff]
      %v628 = vld [vmem:[%s272 + $0x278] sm:$0xff]
      %v629 = vld [vmem:[%s272 + $0x280] sm:$0xff]
      %v630 = vld [vmem:[%s272 + $0x288] sm:$0xff]
      %v631 = vld [vmem:[%s272 + $0x290] sm:$0xff]
      %v632 = vld [vmem:[%s272 + $0x298] sm:$0xff]
      %v633 = vld [vmem:[%s272 + $0x2a0] sm:$0xff]
      %v634 = vld [vmem:[%s272 + $0x2a8] sm:$0xff]
      %v635 = vld [vmem:[%s272 + $0x2b0] sm:$0xff]
      %v636 = vld [vmem:[%s272 + $0x2b8] sm:$0xff]
      %v637 = vld [vmem:[%s272 + $0x2c0] sm:$0xff]
      %v638 = vld [vmem:[%s272 + $0x2c8] sm:$0xff]
      %v639 = vld [vmem:[%s272 + $0x2d0] sm:$0xff]
      %v640 = vld [vmem:[%s272 + $0x2d8] sm:$0xff]
      %v641 = vld [vmem:[%s272 + $0x2e0] sm:$0xff]
      %v642 = vld [vmem:[%s272 + $0x2e8] sm:$0xff]
      %v643 = vld [vmem:[%s272 + $0x2f0] sm:$0xff]
      %v644 = vld [vmem:[%s272 + $0x2f8] sm:$0xff]
      %v645 = vld [vmem:[%s272 + $0x300] sm:$0xff]
      %v646 = vld [vmem:[%s272 + $0x308] sm:$0xff]
      %v647 = vld [vmem:[%s272 + $0x310] sm:$0xff]
      %v648 = vld [vmem:[%s272 + $0x318] sm:$0xff]
      %v649 = vld [vmem:[%s272 + $0x320] sm:$0xff]
      %v650 = vld [vmem:[%s272 + $0x328] sm:$0xff]
      %v651 = vld [vmem:[%s272 + $0x330] sm:$0xff]
      %v652 = vld [vmem:[%s272 + $0x338] sm:$0xff]
      %v653 = vld [vmem:[%s272 + $0x340] sm:$0xff]
      %v654 = vld [vmem:[%s272 + $0x348] sm:$0xff]
      %v655 = vld [vmem:[%s272 + $0x350] sm:$0xff]
      %v656 = vld [vmem:[%s272 + $0x358] sm:$0xff]
      %v657 = vld [vmem:[%s272 + $0x360] sm:$0xff]
      %v658 = vld [vmem:[%s272 + $0x368] sm:$0xff]
      %v659 = vld [vmem:[%s272 + $0x370] sm:$0xff]
      %v660 = vld [vmem:[%s272 + $0x378] sm:$0xff]
      %v661 = vld [vmem:[%s272 + $0x380] sm:$0xff]
      %v662 = vld [vmem:[%s272 + $0x388] sm:$0xff]
      %v663 = vld [vmem:[%s272 + $0x390] sm:$0xff]
      %v664 = vld [vmem:[%s272 + $0x398] sm:$0xff]
      %v665 = vld [vmem:[%s272 + $0x3a0] sm:$0xff]
      %v666 = vld [vmem:[%s272 + $0x3a8] sm:$0xff]
      %v667 = vld [vmem:[%s272 + $0x3b0] sm:$0xff]
      %v668 = vld [vmem:[%s272 + $0x3b8] sm:$0xff]
      %v669 = vld [vmem:[%s272 + $0x3c0] sm:$0xff]
      %v670 = vld [vmem:[%s272 + $0x3c8] sm:$0xff]
      %v671 = vld [vmem:[%s272 + $0x3d0] sm:$0xff]
      %v672 = vld [vmem:[%s272 + $0x3d8] sm:$0xff]
      %v673 = vld [vmem:[%s272 + $0x3e0] sm:$0xff]
      %v674 = vld [vmem:[%s272 + $0x3e8] sm:$0xff]
      %v675 = vld [vmem:[%s272 + $0x3f0] sm:$0xff]
      %v676 = vld [vmem:[%s272 + $0x3f8] sm:$0xff]
      %v773 = vunpack.c.l.b16 %v293
      %v774 = vunpack.c.h.b16 %v293
      %v775 = vunpack.c.l.b16 %v294
      %v776 = vunpack.c.h.b16 %v294
      %v777 = vunpack.c.l.b16 %v295
      %v778 = vunpack.c.l.b16 %v296
      %v779 = vunpack.c.h.b16 %v296
      %v780 = vunpack.c.l.b16 %v297
      %v781 = vunpack.c.h.b16 %v297
      %v782 = vunpack.c.l.b16 %v298
      %v783 = vunpack.c.l.b16 %v299
      %v784 = vunpack.c.h.b16 %v299
      %v785 = vunpack.c.l.b16 %v300
      %v786 = vunpack.c.h.b16 %v300
      %v787 = vunpack.c.l.b16 %v301
      %v788 = vunpack.c.l.b16 %v302
      %v789 = vunpack.c.h.b16 %v302
      %v790 = vunpack.c.l.b16 %v303
      %v791 = vunpack.c.h.b16 %v303
      %v792 = vunpack.c.l.b16 %v304
      %v793 = vunpack.c.l.b16 %v305
      %v794 = vunpack.c.h.b16 %v305
      %v795 = vunpack.c.l.b16 %v306
      %v796 = vunpack.c.h.b16 %v306
      %v797 = vunpack.c.l.b16 %v307
      %v798 = vunpack.c.l.b16 %v308
      %v799 = vunpack.c.h.b16 %v308
      %v800 = vunpack.c.l.b16 %v309
      %v801 = vunpack.c.h.b16 %v309
      %v802 = vunpack.c.l.b16 %v310
      %v803 = vunpack.c.l.b16 %v311
      %v804 = vunpack.c.h.b16 %v311
      %v805 = vunpack.c.l.b16 %v312
      %v806 = vunpack.c.h.b16 %v312
      %v807 = vunpack.c.l.b16 %v313
      %v808 = vunpack.c.l.b16 %v314
      %v809 = vunpack.c.h.b16 %v314
      %v810 = vunpack.c.l.b16 %v315
      %v811 = vunpack.c.h.b16 %v315
      %v812 = vunpack.c.l.b16 %v316
      %v813 = vunpack.c.l.b16 %v317
      %v814 = vunpack.c.h.b16 %v317
      %v815 = vunpack.c.l.b16 %v318
      %v816 = vunpack.c.h.b16 %v318
      %v817 = vunpack.c.l.b16 %v319
      %v818 = vunpack.c.l.b16 %v320
      %v819 = vunpack.c.h.b16 %v320
      %v820 = vunpack.c.l.b16 %v321
      %v821 = vunpack.c.h.b16 %v321
      %v822 = vunpack.c.l.b16 %v322
      %v823 = vunpack.c.l.b16 %v323
      %v824 = vunpack.c.h.b16 %v323
      %v825 = vunpack.c.l.b16 %v324
      %v826 = vunpack.c.h.b16 %v324
      %v827 = vunpack.c.l.b16 %v325
      %v828 = vunpack.c.l.b16 %v326
      %v829 = vunpack.c.h.b16 %v326
      %v830 = vunpack.c.l.b16 %v327
      %v831 = vunpack.c.h.b16 %v327
      %v832 = vunpack.c.l.b16 %v328
      %v833 = vunpack.c.l.b16 %v329
      %v834 = vunpack.c.h.b16 %v329
      %v835 = vunpack.c.l.b16 %v330
      %v836 = vunpack.c.h.b16 %v330
      %v837 = vunpack.c.l.b16 %v331
      %v838 = vunpack.c.l.b16 %v332
      %v839 = vunpack.c.h.b16 %v332
      %v840 = vunpack.c.l.b16 %v333
      %v841 = vunpack.c.h.b16 %v333
      %v842 = vunpack.c.l.b16 %v334
      %v843 = vunpack.c.l.b16 %v335
      %v844 = vunpack.c.h.b16 %v335
      %v845 = vunpack.c.l.b16 %v336
      %v846 = vunpack.c.h.b16 %v336
      %v847 = vunpack.c.l.b16 %v337
      %v848 = vunpack.c.l.b16 %v338
      %v849 = vunpack.c.h.b16 %v338
      %v850 = vunpack.c.l.b16 %v339
      %v851 = vunpack.c.h.b16 %v339
      %v852 = vunpack.c.l.b16 %v340
      %v853 = vunpack.c.l.b16 %v341
      %v854 = vunpack.c.h.b16 %v341
      %v855 = vunpack.c.l.b16 %v342
      %v856 = vunpack.c.h.b16 %v342
      %v857 = vunpack.c.l.b16 %v343
      %v858 = vunpack.c.l.b16 %v344
      %v859 = vunpack.c.h.b16 %v344
      %v860 = vunpack.c.l.b16 %v345
      %v861 = vunpack.c.h.b16 %v345
      %v862 = vunpack.c.l.b16 %v346
      %v863 = vunpack.c.l.b16 %v347
      %v864 = vunpack.c.h.b16 %v347
      %v865 = vunpack.c.l.b16 %v348
      %v866 = vunpack.c.h.b16 %v348
      %v867 = vunpack.c.l.b16 %v349
      %v868 = vunpack.c.l.b16 %v350
      %v869 = vunpack.c.h.b16 %v350
      %v870 = vunpack.c.l.b16 %v351
      %v871 = vunpack.c.h.b16 %v351
      %v872 = vunpack.c.l.b16 %v352
      %v873 = vunpack.c.l.b16 %v353
      %v874 = vunpack.c.h.b16 %v353
      %v875 = vunpack.c.l.b16 %v354
      %v876 = vunpack.c.h.b16 %v354
      %v877 = vunpack.c.l.b16 %v355
      %v878 = vunpack.c.l.b16 %v356
      %v879 = vunpack.c.h.b16 %v356
      %v880 = vunpack.c.l.b16 %v357
      %v881 = vunpack.c.h.b16 %v357
      %v882 = vunpack.c.l.b16 %v358
      %v883 = vunpack.c.l.b16 %v359
      %v884 = vunpack.c.h.b16 %v359
      %v885 = vunpack.c.l.b16 %v360
      %v886 = vunpack.c.h.b16 %v360
      %v887 = vunpack.c.l.b16 %v361
      %v888 = vunpack.c.l.b16 %v362
      %v889 = vunpack.c.h.b16 %v362
      %v890 = vunpack.c.l.b16 %v363
      %v891 = vunpack.c.h.b16 %v363
      %v892 = vunpack.c.l.b16 %v364
      %v893 = vunpack.c.l.b16 %v365
      %v894 = vunpack.c.h.b16 %v365
      %v895 = vunpack.c.l.b16 %v366
      %v896 = vunpack.c.h.b16 %v366
      %v897 = vunpack.c.l.b16 %v367
      %v898 = vunpack.c.l.b16 %v368
      %v899 = vunpack.c.h.b16 %v368
      %v900 = vunpack.c.l.b16 %v369
      %v901 = vunpack.c.h.b16 %v369
      %v902 = vunpack.c.l.b16 %v370
      %v903 = vunpack.c.l.b16 %v371
      %v904 = vunpack.c.h.b16 %v371
      %v905 = vunpack.c.l.b16 %v372
      %v906 = vunpack.c.h.b16 %v372
      %v907 = vunpack.c.l.b16 %v373
      %v908 = vunpack.c.l.b16 %v374
      %v909 = vunpack.c.h.b16 %v374
      %v910 = vunpack.c.l.b16 %v375
      %v911 = vunpack.c.h.b16 %v375
      %v912 = vunpack.c.l.b16 %v376
      %v913 = vunpack.c.l.b16 %v377
      %v914 = vunpack.c.h.b16 %v377
      %v915 = vunpack.c.l.b16 %v378
      %v916 = vunpack.c.h.b16 %v378
      %v917 = vunpack.c.l.b16 %v379
      %v918 = vunpack.c.l.b16 %v380
      %v919 = vunpack.c.h.b16 %v380
      %v920 = vunpack.c.l.b16 %v381
      %v921 = vunpack.c.h.b16 %v381
      %v922 = vunpack.c.l.b16 %v382
      %v923 = vunpack.c.l.b16 %v383
      %v924 = vunpack.c.h.b16 %v383
      %v925 = vunpack.c.l.b16 %v384
      %v926 = vunpack.c.h.b16 %v384
      %v927 = vunpack.c.l.b16 %v385
      %v928 = vunpack.c.l.b16 %v386
      %v929 = vunpack.c.h.b16 %v386
      %v930 = vunpack.c.l.b16 %v387
      %v931 = vunpack.c.h.b16 %v387
      %v932 = vunpack.c.l.b16 %v388
      %v933 = vpack.c.b16 %v778, %v773
      %v934 = vpack.c.b16 %v779, %v774
      %v935 = vpack.c.b16 %v780, %v775
      %v936 = vpack.c.b16 %v781, %v776
      %v937 = vpack.c.b16 %v782, %v777
      %v938 = vpack.c.b16 %v788, %v783
      %v939 = vpack.c.b16 %v789, %v784
      %v940 = vpack.c.b16 %v790, %v785
      %v941 = vpack.c.b16 %v791, %v786
      %v942 = vpack.c.b16 %v792, %v787
      %v943 = vpack.c.b16 %v798, %v793
      %v944 = vpack.c.b16 %v799, %v794
      %v945 = vpack.c.b16 %v800, %v795
      %v946 = vpack.c.b16 %v801, %v796
      %v947 = vpack.c.b16 %v802, %v797
      %v948 = vpack.c.b16 %v808, %v803
      %v949 = vpack.c.b16 %v809, %v804
      %v950 = vpack.c.b16 %v810, %v805
      %v951 = vpack.c.b16 %v811, %v806
      %v952 = vpack.c.b16 %v812, %v807
      %v953 = vpack.c.b16 %v818, %v813
      %v954 = vpack.c.b16 %v819, %v814
      %v955 = vpack.c.b16 %v820, %v815
      %v956 = vpack.c.b16 %v821, %v816
      %v957 = vpack.c.b16 %v822, %v817
      %v958 = vpack.c.b16 %v828, %v823
      %v959 = vpack.c.b16 %v829, %v824
      %v960 = vpack.c.b16 %v830, %v825
      %v961 = vpack.c.b16 %v831, %v826
      %v962 = vpack.c.b16 %v832, %v827
      %v963 = vpack.c.b16 %v838, %v833
      %v964 = vpack.c.b16 %v839, %v834
      %v965 = vpack.c.b16 %v840, %v835
      %v966 = vpack.c.b16 %v841, %v836
      %v967 = vpack.c.b16 %v842, %v837
      %v968 = vpack.c.b16 %v848, %v843
      %v969 = vpack.c.b16 %v849, %v844
      %v970 = vpack.c.b16 %v850, %v845
      %v971 = vpack.c.b16 %v851, %v846
      %v972 = vpack.c.b16 %v852, %v847
      %v973 = vpack.c.b16 %v858, %v853
      %v974 = vpack.c.b16 %v859, %v854
      %v975 = vpack.c.b16 %v860, %v855
      %v976 = vpack.c.b16 %v861, %v856
      %v977 = vpack.c.b16 %v862, %v857
      %v978 = vpack.c.b16 %v868, %v863
      %v979 = vpack.c.b16 %v869, %v864
      %v980 = vpack.c.b16 %v870, %v865
      %v981 = vpack.c.b16 %v871, %v866
      %v982 = vpack.c.b16 %v872, %v867
      %v983 = vpack.c.b16 %v878, %v873
      %v984 = vpack.c.b16 %v879, %v874
      %v985 = vpack.c.b16 %v880, %v875
      %v986 = vpack.c.b16 %v881, %v876
      %v987 = vpack.c.b16 %v882, %v877
      %v988 = vpack.c.b16 %v888, %v883
      %v989 = vpack.c.b16 %v889, %v884
      %v990 = vpack.c.b16 %v890, %v885
      %v991 = vpack.c.b16 %v891, %v886
      %v992 = vpack.c.b16 %v892, %v887
      %v993 = vpack.c.b16 %v898, %v893
      %v994 = vpack.c.b16 %v899, %v894
      %v995 = vpack.c.b16 %v900, %v895
      %v996 = vpack.c.b16 %v901, %v896
      %v997 = vpack.c.b16 %v902, %v897
      %v998 = vpack.c.b16 %v908, %v903
      %v999 = vpack.c.b16 %v909, %v904
      %v1000 = vpack.c.b16 %v910, %v905
      %v1001 = vpack.c.b16 %v911, %v906
      %v1002 = vpack.c.b16 %v912, %v907
      %v1003 = vpack.c.b16 %v918, %v913
      %v1004 = vpack.c.b16 %v919, %v914
      %v1005 = vpack.c.b16 %v920, %v915
      %v1006 = vpack.c.b16 %v921, %v916
      %v1007 = vpack.c.b16 %v922, %v917
      %v1008 = vpack.c.b16 %v928, %v923
      %v1009 = vpack.c.b16 %v929, %v924
      %v1010 = vpack.c.b16 %v930, %v925
      %v1011 = vpack.c.b16 %v931, %v926
      %v1012 = vpack.c.b16 %v932, %v927
      %v1253 = vunpack.c.l.b16 %v389
      %v1254 = vunpack.c.h.b16 %v389
      %v1255 = vunpack.c.l.b16 %v390
      %v1256 = vunpack.c.h.b16 %v390
      %v1257 = vunpack.c.l.b16 %v391
      %v1258 = vunpack.c.h.b16 %v391
      %v1259 = vunpack.c.l.b16 %v392
      %v1260 = vunpack.c.h.b16 %v392
      %v1261 = vunpack.c.l.b16 %v393
      %v1262 = vunpack.c.h.b16 %v393
      %v1263 = vunpack.c.l.b16 %v394
      %v1264 = vunpack.c.h.b16 %v394
      %v1265 = vunpack.c.l.b16 %v395
      %v1266 = vunpack.c.h.b16 %v395
      %v1267 = vunpack.c.l.b16 %v396
      %v1268 = vunpack.c.h.b16 %v396
      %v1269 = vunpack.c.l.b16 %v397
      %v1270 = vunpack.c.h.b16 %v397
      %v1271 = vunpack.c.l.b16 %v398
      %v1272 = vunpack.c.h.b16 %v398
      %v1273 = vunpack.c.l.b16 %v399
      %v1274 = vunpack.c.h.b16 %v399
      %v1275 = vunpack.c.l.b16 %v400
      %v1276 = vunpack.c.h.b16 %v400
      %v1277 = vunpack.c.l.b16 %v401
      %v1278 = vunpack.c.h.b16 %v401
      %v1279 = vunpack.c.l.b16 %v402
      %v1280 = vunpack.c.h.b16 %v402
      %v1281 = vunpack.c.l.b16 %v403
      %v1282 = vunpack.c.h.b16 %v403
      %v1283 = vunpack.c.l.b16 %v404
      %v1284 = vunpack.c.h.b16 %v404
      %v1285 = vunpack.c.l.b16 %v405
      %v1286 = vunpack.c.h.b16 %v405
      %v1287 = vunpack.c.l.b16 %v406
      %v1288 = vunpack.c.h.b16 %v406
      %v1289 = vunpack.c.l.b16 %v407
      %v1290 = vunpack.c.h.b16 %v407
      %v1291 = vunpack.c.l.b16 %v408
      %v1292 = vunpack.c.h.b16 %v408
      %v1293 = vunpack.c.l.b16 %v409
      %v1294 = vunpack.c.h.b16 %v409
      %v1295 = vunpack.c.l.b16 %v410
      %v1296 = vunpack.c.h.b16 %v410
      %v1297 = vunpack.c.l.b16 %v411
      %v1298 = vunpack.c.h.b16 %v411
      %v1299 = vunpack.c.l.b16 %v412
      %v1300 = vunpack.c.h.b16 %v412
      %v1301 = vunpack.c.l.b16 %v413
      %v1302 = vunpack.c.h.b16 %v413
      %v1303 = vunpack.c.l.b16 %v414
      %v1304 = vunpack.c.h.b16 %v414
      %v1305 = vunpack.c.l.b16 %v415
      %v1306 = vunpack.c.h.b16 %v415
      %v1307 = vunpack.c.l.b16 %v416
      %v1308 = vunpack.c.h.b16 %v416
      %v1309 = vunpack.c.l.b16 %v417
      %v1310 = vunpack.c.h.b16 %v417
      %v1311 = vunpack.c.l.b16 %v418
      %v1312 = vunpack.c.h.b16 %v418
      %v1313 = vunpack.c.l.b16 %v419
      %v1314 = vunpack.c.h.b16 %v419
      %v1315 = vunpack.c.l.b16 %v420
      %v1316 = vunpack.c.h.b16 %v420
      %v1317 = vunpack.c.l.b16 %v421
      %v1318 = vunpack.c.h.b16 %v421
      %v1319 = vunpack.c.l.b16 %v422
      %v1320 = vunpack.c.h.b16 %v422
      %v1321 = vunpack.c.l.b16 %v423
      %v1322 = vunpack.c.h.b16 %v423
      %v1323 = vunpack.c.l.b16 %v424
      %v1324 = vunpack.c.h.b16 %v424
      %v1325 = vunpack.c.l.b16 %v425
      %v1326 = vunpack.c.h.b16 %v425
      %v1327 = vunpack.c.l.b16 %v426
      %v1328 = vunpack.c.h.b16 %v426
      %v1329 = vunpack.c.l.b16 %v427
      %v1330 = vunpack.c.h.b16 %v427
      %v1331 = vunpack.c.l.b16 %v428
      %v1332 = vunpack.c.h.b16 %v428
      %v1333 = vunpack.c.l.b16 %v429
      %v1334 = vunpack.c.h.b16 %v429
      %v1335 = vunpack.c.l.b16 %v430
      %v1336 = vunpack.c.h.b16 %v430
      %v1337 = vunpack.c.l.b16 %v431
      %v1338 = vunpack.c.h.b16 %v431
      %v1339 = vunpack.c.l.b16 %v432
      %v1340 = vunpack.c.h.b16 %v432
      %v1341 = vunpack.c.l.b16 %v433
      %v1342 = vunpack.c.h.b16 %v433
      %v1343 = vunpack.c.l.b16 %v434
      %v1344 = vunpack.c.h.b16 %v434
      %v1345 = vunpack.c.l.b16 %v435
      %v1346 = vunpack.c.h.b16 %v435
      %v1347 = vunpack.c.l.b16 %v436
      %v1348 = vunpack.c.h.b16 %v436
      %v1349 = vunpack.c.l.b16 %v437
      %v1350 = vunpack.c.h.b16 %v437
      %v1351 = vunpack.c.l.b16 %v438
      %v1352 = vunpack.c.h.b16 %v438
      %v1353 = vunpack.c.l.b16 %v439
      %v1354 = vunpack.c.h.b16 %v439
      %v1355 = vunpack.c.l.b16 %v440
      %v1356 = vunpack.c.h.b16 %v440
      %v1357 = vunpack.c.l.b16 %v441
      %v1358 = vunpack.c.h.b16 %v441
      %v1359 = vunpack.c.l.b16 %v442
      %v1360 = vunpack.c.h.b16 %v442
      %v1361 = vunpack.c.l.b16 %v443
      %v1362 = vunpack.c.h.b16 %v443
      %v1363 = vunpack.c.l.b16 %v444
      %v1364 = vunpack.c.h.b16 %v444
      %v1365 = vunpack.c.l.b16 %v445
      %v1366 = vunpack.c.h.b16 %v445
      %v1367 = vunpack.c.l.b16 %v446
      %v1368 = vunpack.c.h.b16 %v446
      %v1369 = vunpack.c.l.b16 %v447
      %v1370 = vunpack.c.h.b16 %v447
      %v1371 = vunpack.c.l.b16 %v448
      %v1372 = vunpack.c.h.b16 %v448
      %v1373 = vunpack.c.l.b16 %v449
      %v1374 = vunpack.c.h.b16 %v449
      %v1375 = vunpack.c.l.b16 %v450
      %v1376 = vunpack.c.h.b16 %v450
      %v1377 = vunpack.c.l.b16 %v451
      %v1378 = vunpack.c.h.b16 %v451
      %v1379 = vunpack.c.l.b16 %v452
      %v1380 = vunpack.c.h.b16 %v452
      %v1381 = vunpack.c.l.b16 %v453
      %v1382 = vunpack.c.h.b16 %v453
      %v1383 = vunpack.c.l.b16 %v454
      %v1384 = vunpack.c.h.b16 %v454
      %v1385 = vunpack.c.l.b16 %v455
      %v1386 = vunpack.c.h.b16 %v455
      %v1387 = vunpack.c.l.b16 %v456
      %v1388 = vunpack.c.h.b16 %v456
      %v1389 = vunpack.c.l.b16 %v457
      %v1390 = vunpack.c.h.b16 %v457
      %v1391 = vunpack.c.l.b16 %v458
      %v1392 = vunpack.c.h.b16 %v458
      %v1393 = vunpack.c.l.b16 %v459
      %v1394 = vunpack.c.h.b16 %v459
      %v1395 = vunpack.c.l.b16 %v460
      %v1396 = vunpack.c.h.b16 %v460
      %v1397 = vunpack.c.l.b16 %v461
      %v1398 = vunpack.c.h.b16 %v461
      %v1399 = vunpack.c.l.b16 %v462
      %v1400 = vunpack.c.h.b16 %v462
      %v1401 = vunpack.c.l.b16 %v463
      %v1402 = vunpack.c.h.b16 %v463
      %v1403 = vunpack.c.l.b16 %v464
      %v1404 = vunpack.c.h.b16 %v464
      %v1405 = vunpack.c.l.b16 %v465
      %v1406 = vunpack.c.h.b16 %v465
      %v1407 = vunpack.c.l.b16 %v466
      %v1408 = vunpack.c.h.b16 %v466
      %v1409 = vunpack.c.l.b16 %v467
      %v1410 = vunpack.c.h.b16 %v467
      %v1411 = vunpack.c.l.b16 %v468
      %v1412 = vunpack.c.h.b16 %v468
      %v1413 = vunpack.c.l.b16 %v469
      %v1414 = vunpack.c.h.b16 %v469
      %v1415 = vunpack.c.l.b16 %v470
      %v1416 = vunpack.c.h.b16 %v470
      %v1417 = vunpack.c.l.b16 %v471
      %v1418 = vunpack.c.h.b16 %v471
      %v1419 = vunpack.c.l.b16 %v472
      %v1420 = vunpack.c.h.b16 %v472
      %v1421 = vunpack.c.l.b16 %v473
      %v1422 = vunpack.c.h.b16 %v473
      %v1423 = vunpack.c.l.b16 %v474
      %v1424 = vunpack.c.h.b16 %v474
      %v1425 = vunpack.c.l.b16 %v475
      %v1426 = vunpack.c.h.b16 %v475
      %v1427 = vunpack.c.l.b16 %v476
      %v1428 = vunpack.c.h.b16 %v476
      %v1429 = vunpack.c.l.b16 %v477
      %v1430 = vunpack.c.h.b16 %v477
      %v1431 = vunpack.c.l.b16 %v478
      %v1432 = vunpack.c.h.b16 %v478
      %v1433 = vunpack.c.l.b16 %v479
      %v1434 = vunpack.c.h.b16 %v479
      %v1435 = vunpack.c.l.b16 %v480
      %v1436 = vunpack.c.h.b16 %v480
      %v1437 = vunpack.c.l.b16 %v481
      %v1438 = vunpack.c.h.b16 %v481
      %v1439 = vunpack.c.l.b16 %v482
      %v1440 = vunpack.c.h.b16 %v482
      %v1441 = vunpack.c.l.b16 %v483
      %v1442 = vunpack.c.h.b16 %v483
      %v1443 = vunpack.c.l.b16 %v484
      %v1444 = vunpack.c.h.b16 %v484
      %v1445 = vunpack.c.l.b16 %v485
      %v1446 = vunpack.c.h.b16 %v485
      %v1447 = vunpack.c.l.b16 %v486
      %v1448 = vunpack.c.h.b16 %v486
      %v1449 = vunpack.c.l.b16 %v487
      %v1450 = vunpack.c.h.b16 %v487
      %v1451 = vunpack.c.l.b16 %v488
      %v1452 = vunpack.c.h.b16 %v488
      %v1453 = vunpack.c.l.b16 %v489
      %v1454 = vunpack.c.h.b16 %v489
      %v1455 = vunpack.c.l.b16 %v490
      %v1456 = vunpack.c.h.b16 %v490
      %v1457 = vunpack.c.l.b16 %v491
      %v1458 = vunpack.c.h.b16 %v491
      %v1459 = vunpack.c.l.b16 %v492
      %v1460 = vunpack.c.h.b16 %v492
      %v1461 = vunpack.c.l.b16 %v493
      %v1462 = vunpack.c.h.b16 %v493
      %v1463 = vunpack.c.l.b16 %v494
      %v1464 = vunpack.c.h.b16 %v494
      %v1465 = vunpack.c.l.b16 %v495
      %v1466 = vunpack.c.h.b16 %v495
      %v1467 = vunpack.c.l.b16 %v496
      %v1468 = vunpack.c.h.b16 %v496
      %v1469 = vunpack.c.l.b16 %v497
      %v1470 = vunpack.c.h.b16 %v497
      %v1471 = vunpack.c.l.b16 %v498
      %v1472 = vunpack.c.h.b16 %v498
      %v1473 = vunpack.c.l.b16 %v499
      %v1474 = vunpack.c.h.b16 %v499
      %v1475 = vunpack.c.l.b16 %v500
      %v1476 = vunpack.c.h.b16 %v500
      %v1477 = vunpack.c.l.b16 %v501
      %v1478 = vunpack.c.h.b16 %v501
      %v1479 = vunpack.c.l.b16 %v502
      %v1480 = vunpack.c.h.b16 %v502
      %v1481 = vunpack.c.l.b16 %v503
      %v1482 = vunpack.c.h.b16 %v503
      %v1483 = vunpack.c.l.b16 %v504
      %v1484 = vunpack.c.h.b16 %v504
      %v1485 = vunpack.c.l.b16 %v505
      %v1486 = vunpack.c.h.b16 %v505
      %v1487 = vunpack.c.l.b16 %v506
      %v1488 = vunpack.c.h.b16 %v506
      %v1489 = vunpack.c.l.b16 %v507
      %v1490 = vunpack.c.h.b16 %v507
      %v1491 = vunpack.c.l.b16 %v508
      %v1492 = vunpack.c.h.b16 %v508
      %v1493 = vunpack.c.l.b16 %v509
      %v1494 = vunpack.c.h.b16 %v509
      %v1495 = vunpack.c.l.b16 %v510
      %v1496 = vunpack.c.h.b16 %v510
      %v1497 = vunpack.c.l.b16 %v511
      %v1498 = vunpack.c.h.b16 %v511
      %v1499 = vunpack.c.l.b16 %v512
      %v1500 = vunpack.c.h.b16 %v512
      %v1501 = vunpack.c.l.b16 %v513
      %v1502 = vunpack.c.h.b16 %v513
      %v1503 = vunpack.c.l.b16 %v514
      %v1504 = vunpack.c.h.b16 %v514
      %v1505 = vunpack.c.l.b16 %v515
      %v1506 = vunpack.c.h.b16 %v515
      %v1507 = vunpack.c.l.b16 %v516
      %v1508 = vunpack.c.h.b16 %v516
      %v1509 = vunpack.c.l.b16 %v517
      %v1510 = vunpack.c.h.b16 %v517
      %v1511 = vunpack.c.l.b16 %v518
      %v1512 = vunpack.c.h.b16 %v518
      %v1513 = vunpack.c.l.b16 %v519
      %v1514 = vunpack.c.h.b16 %v519
      %v1515 = vunpack.c.l.b16 %v520
      %v1516 = vunpack.c.h.b16 %v520
      %v1517 = vunpack.c.l.b16 %v521
      %v1518 = vunpack.c.h.b16 %v521
      %v1519 = vunpack.c.l.b16 %v522
      %v1520 = vunpack.c.h.b16 %v522
      %v1521 = vunpack.c.l.b16 %v523
      %v1522 = vunpack.c.h.b16 %v523
      %v1523 = vunpack.c.l.b16 %v524
      %v1524 = vunpack.c.h.b16 %v524
      %v1525 = vunpack.c.l.b16 %v525
      %v1526 = vunpack.c.h.b16 %v525
      %v1527 = vunpack.c.l.b16 %v526
      %v1528 = vunpack.c.h.b16 %v526
      %v1529 = vunpack.c.l.b16 %v527
      %v1530 = vunpack.c.h.b16 %v527
      %v1531 = vunpack.c.l.b16 %v528
      %v1532 = vunpack.c.h.b16 %v528
      %v1533 = vunpack.c.l.b16 %v529
      %v1534 = vunpack.c.h.b16 %v529
      %v1535 = vunpack.c.l.b16 %v530
      %v1536 = vunpack.c.h.b16 %v530
      %v1537 = vunpack.c.l.b16 %v531
      %v1538 = vunpack.c.h.b16 %v531
      %v1539 = vunpack.c.l.b16 %v532
      %v1540 = vunpack.c.h.b16 %v532
      %v1541 = vunpack.c.l.b16 %v533
      %v1542 = vunpack.c.h.b16 %v533
      %v1543 = vunpack.c.l.b16 %v534
      %v1544 = vunpack.c.h.b16 %v534
      %v1545 = vunpack.c.l.b16 %v535
      %v1546 = vunpack.c.h.b16 %v535
      %v1547 = vunpack.c.l.b16 %v536
      %v1548 = vunpack.c.h.b16 %v536
      %v1549 = vunpack.c.l.b16 %v537
      %v1550 = vunpack.c.h.b16 %v537
      %v1551 = vunpack.c.l.b16 %v538
      %v1552 = vunpack.c.h.b16 %v538
      %v1553 = vunpack.c.l.b16 %v539
      %v1554 = vunpack.c.h.b16 %v539
      %v1555 = vunpack.c.l.b16 %v540
      %v1556 = vunpack.c.h.b16 %v540
      %v1557 = vunpack.c.l.b16 %v541
      %v1558 = vunpack.c.h.b16 %v541
      %v1559 = vunpack.c.l.b16 %v542
      %v1560 = vunpack.c.h.b16 %v542
      %v1561 = vunpack.c.l.b16 %v543
      %v1562 = vunpack.c.h.b16 %v543
      %v1563 = vunpack.c.l.b16 %v544
      %v1564 = vunpack.c.h.b16 %v544
      %v1565 = vunpack.c.l.b16 %v545
      %v1566 = vunpack.c.h.b16 %v545
      %v1567 = vunpack.c.l.b16 %v546
      %v1568 = vunpack.c.h.b16 %v546
      %v1569 = vunpack.c.l.b16 %v547
      %v1570 = vunpack.c.h.b16 %v547
      %v1571 = vunpack.c.l.b16 %v548
      %v1572 = vunpack.c.h.b16 %v548
      %v1573 = vpack.c.b16 %v1257, %v1253
      %v1574 = vpack.c.b16 %v1258, %v1254
      %v1575 = vpack.c.b16 %v1259, %v1255
      %v1576 = vpack.c.b16 %v1260, %v1256
      %v1577 = vpack.c.b16 %v1265, %v1261
      %v1578 = vpack.c.b16 %v1266, %v1262
      %v1579 = vpack.c.b16 %v1267, %v1263
      %v1580 = vpack.c.b16 %v1268, %v1264
      %v1581 = vpack.c.b16 %v1273, %v1269
      %v1582 = vpack.c.b16 %v1274, %v1270
      %v1583 = vpack.c.b16 %v1275, %v1271
      %v1584 = vpack.c.b16 %v1276, %v1272
      %v1585 = vpack.c.b16 %v1281, %v1277
      %v1586 = vpack.c.b16 %v1282, %v1278
      %v1587 = vpack.c.b16 %v1283, %v1279
      %v1588 = vpack.c.b16 %v1284, %v1280
      %v1589 = vpack.c.b16 %v1289, %v1285
      %v1590 = vpack.c.b16 %v1290, %v1286
      %v1591 = vpack.c.b16 %v1291, %v1287
      %v1592 = vpack.c.b16 %v1292, %v1288
      %v1593 = vpack.c.b16 %v1297, %v1293
      %v1594 = vpack.c.b16 %v1298, %v1294
      %v1595 = vpack.c.b16 %v1299, %v1295
      %v1596 = vpack.c.b16 %v1300, %v1296
      %v1597 = vpack.c.b16 %v1305, %v1301
      %v1598 = vpack.c.b16 %v1306, %v1302
      %v1599 = vpack.c.b16 %v1307, %v1303
      %v1600 = vpack.c.b16 %v1308, %v1304
      %v1601 = vpack.c.b16 %v1313, %v1309
      %v1602 = vpack.c.b16 %v1314, %v1310
      %v1603 = vpack.c.b16 %v1315, %v1311
      %v1604 = vpack.c.b16 %v1316, %v1312
      %v1605 = vpack.c.b16 %v1321, %v1317
      %v1606 = vpack.c.b16 %v1322, %v1318
      %v1607 = vpack.c.b16 %v1323, %v1319
      %v1608 = vpack.c.b16 %v1324, %v1320
      %v1609 = vpack.c.b16 %v1329, %v1325
      %v1610 = vpack.c.b16 %v1330, %v1326
      %v1611 = vpack.c.b16 %v1331, %v1327
      %v1612 = vpack.c.b16 %v1332, %v1328
      %v1613 = vpack.c.b16 %v1337, %v1333
      %v1614 = vpack.c.b16 %v1338, %v1334
      %v1615 = vpack.c.b16 %v1339, %v1335
      %v1616 = vpack.c.b16 %v1340, %v1336
      %v1617 = vpack.c.b16 %v1345, %v1341
      %v1618 = vpack.c.b16 %v1346, %v1342
      %v1619 = vpack.c.b16 %v1347, %v1343
      %v1620 = vpack.c.b16 %v1348, %v1344
      %v1621 = vpack.c.b16 %v1353, %v1349
      %v1622 = vpack.c.b16 %v1354, %v1350
      %v1623 = vpack.c.b16 %v1355, %v1351
      %v1624 = vpack.c.b16 %v1356, %v1352
      %v1625 = vpack.c.b16 %v1361, %v1357
      %v1626 = vpack.c.b16 %v1362, %v1358
      %v1627 = vpack.c.b16 %v1363, %v1359
      %v1628 = vpack.c.b16 %v1364, %v1360
      %v1629 = vpack.c.b16 %v1369, %v1365
      %v1630 = vpack.c.b16 %v1370, %v1366
      %v1631 = vpack.c.b16 %v1371, %v1367
      %v1632 = vpack.c.b16 %v1372, %v1368
      %v1633 = vpack.c.b16 %v1377, %v1373
      %v1634 = vpack.c.b16 %v1378, %v1374
      %v1635 = vpack.c.b16 %v1379, %v1375
      %v1636 = vpack.c.b16 %v1380, %v1376
      %v1637 = vpack.c.b16 %v1385, %v1381
      %v1638 = vpack.c.b16 %v1386, %v1382
      %v1639 = vpack.c.b16 %v1387, %v1383
      %v1640 = vpack.c.b16 %v1388, %v1384
      %v1641 = vpack.c.b16 %v1393, %v1389
      %v1642 = vpack.c.b16 %v1394, %v1390
      %v1643 = vpack.c.b16 %v1395, %v1391
      %v1644 = vpack.c.b16 %v1396, %v1392
      %v1645 = vpack.c.b16 %v1401, %v1397
      %v1646 = vpack.c.b16 %v1402, %v1398
      %v1647 = vpack.c.b16 %v1403, %v1399
      %v1648 = vpack.c.b16 %v1404, %v1400
      %v1649 = vpack.c.b16 %v1409, %v1405
      %v1650 = vpack.c.b16 %v1410, %v1406
      %v1651 = vpack.c.b16 %v1411, %v1407
      %v1652 = vpack.c.b16 %v1412, %v1408
      %v1653 = vpack.c.b16 %v1417, %v1413
      %v1654 = vpack.c.b16 %v1418, %v1414
      %v1655 = vpack.c.b16 %v1419, %v1415
      %v1656 = vpack.c.b16 %v1420, %v1416
      %v1657 = vpack.c.b16 %v1425, %v1421
      %v1658 = vpack.c.b16 %v1426, %v1422
      %v1659 = vpack.c.b16 %v1427, %v1423
      %v1660 = vpack.c.b16 %v1428, %v1424
      %v1661 = vpack.c.b16 %v1433, %v1429
      %v1662 = vpack.c.b16 %v1434, %v1430
      %v1663 = vpack.c.b16 %v1435, %v1431
      %v1664 = vpack.c.b16 %v1436, %v1432
      %v1665 = vpack.c.b16 %v1441, %v1437
      %v1666 = vpack.c.b16 %v1442, %v1438
      %v1667 = vpack.c.b16 %v1443, %v1439
      %v1668 = vpack.c.b16 %v1444, %v1440
      %v1669 = vpack.c.b16 %v1449, %v1445
      %v1670 = vpack.c.b16 %v1450, %v1446
      %v1671 = vpack.c.b16 %v1451, %v1447
      %v1672 = vpack.c.b16 %v1452, %v1448
      %v1673 = vpack.c.b16 %v1457, %v1453
      %v1674 = vpack.c.b16 %v1458, %v1454
      %v1675 = vpack.c.b16 %v1459, %v1455
      %v1676 = vpack.c.b16 %v1460, %v1456
      %v1677 = vpack.c.b16 %v1465, %v1461
      %v1678 = vpack.c.b16 %v1466, %v1462
      %v1679 = vpack.c.b16 %v1467, %v1463
      %v1680 = vpack.c.b16 %v1468, %v1464
      %v1681 = vpack.c.b16 %v1473, %v1469
      %v1682 = vpack.c.b16 %v1474, %v1470
      %v1683 = vpack.c.b16 %v1475, %v1471
      %v1684 = vpack.c.b16 %v1476, %v1472
      %v1685 = vpack.c.b16 %v1481, %v1477
      %v1686 = vpack.c.b16 %v1482, %v1478
      %v1687 = vpack.c.b16 %v1483, %v1479
      %v1688 = vpack.c.b16 %v1484, %v1480
      %v1689 = vpack.c.b16 %v1489, %v1485
      %v1690 = vpack.c.b16 %v1490, %v1486
      %v1691 = vpack.c.b16 %v1491, %v1487
      %v1692 = vpack.c.b16 %v1492, %v1488
      %v1693 = vpack.c.b16 %v1497, %v1493
      %v1694 = vpack.c.b16 %v1498, %v1494
      %v1695 = vpack.c.b16 %v1499, %v1495
      %v1696 = vpack.c.b16 %v1500, %v1496
      %v1697 = vpack.c.b16 %v1505, %v1501
      %v1698 = vpack.c.b16 %v1506, %v1502
      %v1699 = vpack.c.b16 %v1507, %v1503
      %v1700 = vpack.c.b16 %v1508, %v1504
      %v1701 = vpack.c.b16 %v1513, %v1509
      %v1702 = vpack.c.b16 %v1514, %v1510
      %v1703 = vpack.c.b16 %v1515, %v1511
      %v1704 = vpack.c.b16 %v1516, %v1512
      %v1705 = vpack.c.b16 %v1521, %v1517
      %v1706 = vpack.c.b16 %v1522, %v1518
      %v1707 = vpack.c.b16 %v1523, %v1519
      %v1708 = vpack.c.b16 %v1524, %v1520
      %v1709 = vpack.c.b16 %v1529, %v1525
      %v1710 = vpack.c.b16 %v1530, %v1526
      %v1711 = vpack.c.b16 %v1531, %v1527
      %v1712 = vpack.c.b16 %v1532, %v1528
      %v1713 = vpack.c.b16 %v1537, %v1533
      %v1714 = vpack.c.b16 %v1538, %v1534
      %v1715 = vpack.c.b16 %v1539, %v1535
      %v1716 = vpack.c.b16 %v1540, %v1536
      %v1717 = vpack.c.b16 %v1545, %v1541
      %v1718 = vpack.c.b16 %v1546, %v1542
      %v1719 = vpack.c.b16 %v1547, %v1543
      %v1720 = vpack.c.b16 %v1548, %v1544
      %v1721 = vpack.c.b16 %v1553, %v1549
      %v1722 = vpack.c.b16 %v1554, %v1550
      %v1723 = vpack.c.b16 %v1555, %v1551
      %v1724 = vpack.c.b16 %v1556, %v1552
      %v1725 = vpack.c.b16 %v1561, %v1557
      %v1726 = vpack.c.b16 %v1562, %v1558
      %v1727 = vpack.c.b16 %v1563, %v1559
      %v1728 = vpack.c.b16 %v1564, %v1560
      %v1729 = vpack.c.b16 %v1569, %v1565
      %v1730 = vpack.c.b16 %v1570, %v1566
      %v1731 = vpack.c.b16 %v1571, %v1567
      %v1732 = vpack.c.b16 %v1572, %v1568
      %1893 = vmatprep.subr.bf16.mxu0 %v1574
      %1894 = vmatpush1.bf16.msra.mxu0 %v1573
      %1895 = vmatprep.subr.bf16.mxu0 %v1578
      %1896 = vmatpush1.bf16.msra.mxu0 %v1577
      %1897 = vmatprep.subr.bf16.mxu0 %v1582
      %1898 = vmatpush1.bf16.msra.mxu0 %v1581
      %1899 = vmatprep.subr.bf16.mxu0 %v1586
      %1900 = vmatpush1.bf16.msra.mxu0 %v1585
      %1901 = vmatprep.subr.bf16.mxu0 %v1590
      %1902 = vmatpush1.bf16.msra.mxu0 %v1589
      %1903 = vmatprep.subr.bf16.mxu0 %v1594
      %1904 = vmatpush1.bf16.msra.mxu0 %v1593
      %1905 = vmatprep.subr.bf16.mxu0 %v1598
      %1906 = vmatpush1.bf16.msra.mxu0 %v1597
      %1907 = vmatprep.subr.bf16.mxu0 %v1602
      %1908 = vmatpush1.bf16.msra.mxu0 %v1601
      %1909 = vmatprep.subr.bf16.mxu0 %v1606
      %1910 = vmatpush1.bf16.msra.mxu0 %v1605
      %1911 = vmatprep.subr.bf16.mxu0 %v1610
      %1912 = vmatpush1.bf16.msra.mxu0 %v1609
      %1913 = vmatprep.subr.bf16.mxu0 %v1614
      %1914 = vmatpush1.bf16.msra.mxu0 %v1613
      %1915 = vmatprep.subr.bf16.mxu0 %v1618
      %1916 = vmatpush1.bf16.msra.mxu0 %v1617
      %1917 = vmatprep.subr.bf16.mxu0 %v1622
      %1918 = vmatpush1.bf16.msra.mxu0 %v1621
      %1919 = vmatprep.subr.bf16.mxu0 %v1626
      %1920 = vmatpush1.bf16.msra.mxu0 %v1625
      %1921 = vmatprep.subr.bf16.mxu0 %v1630
      %1922 = vmatpush1.bf16.msra.mxu0 %v1629
      %1923 = vmatprep.subr.bf16.mxu0 %v1634
      %1924 = vmatpush1.bf16.msra.mxu0 %v1633
      %1925 = vmatprep.mubr.bf16.mxu0 %v934
      %1926 = vmatmul.mubr.bf16.gmra.mrb[0].mxu0 %v933
      %v1927 = vpop.f32.mrb[0].mxu0
      %v1928 = vadd.f32 %v549, %v1927
      %v1929 = vpop.f32.mrb[0].mxu0
      %v1930 = vadd.f32 %v550, %v1929
      %v1931 = vpop.f32.mrb[0].mxu0
      %v1932 = vadd.f32 %v553, %v1931
      %v1933 = vpop.f32.mrb[0].mxu0
      %v1934 = vadd.f32 %v554, %v1933
      %1935 = vmatprep.mubr.bf16.mxu0 %v939
      %1936 = vmatmul.mubr.bf16.gmra.mrb[0].mxu0 %v938
      %v1937 = vpop.f32.mrb[0].mxu0
      %v1938 = vadd.f32 %v557, %v1937
      %v1939 = vpop.f32.mrb[0].mxu0
      %v1940 = vadd.f32 %v558, %v1939
      %v1941 = vpop.f32.mrb[0].mxu0
      %v1942 = vadd.f32 %v561, %v1941
      %v1943 = vpop.f32.mrb[0].mxu0
      %v1944 = vadd.f32 %v562, %v1943
      %1945 = vmatprep.mubr.bf16.mxu0 %v944
      %1946 = vmatmul.mubr.bf16.gmra.mrb[0].mxu0 %v943
      %v1947 = vpop.f32.mrb[0].mxu0
      %v1948 = vadd.f32 %v565, %v1947
      %v1949 = vpop.f32.mrb[0].mxu0
      %v1950 = vadd.f32 %v566, %v1949
      %v1951 = vpop.f32.mrb[0].mxu0
      %v1952 = vadd.f32 %v569, %v1951
      %v1953 = vpop.f32.mrb[0].mxu0
      %v1954 = vadd.f32 %v570, %v1953
      %1955 = vmatprep.mubr.bf16.mxu0 %v949
      %1956 = vmatmul.mubr.bf16.gmra.mrb[0].mxu0 %v948
      %v1957 = vpop.f32.mrb[0].mxu0
      %v1958 = vadd.f32 %v573, %v1957
      %v1959 = vpop.f32.mrb[0].mxu0
      %v1960 = vadd.f32 %v574, %v1959
      %v1961 = vpop.f32.mrb[0].mxu0
      %v1962 = vadd.f32 %v577, %v1961
      %v1963 = vpop.f32.mrb[0].mxu0
      %v1964 = vadd.f32 %v578, %v1963
      %1965 = vmatprep.mubr.bf16.mxu0 %v954
      %1966 = vmatmul.mubr.bf16.gmra.mrb[0].mxu0 %v953
      %v1967 = vpop.f32.mrb[0].mxu0
      %v1968 = vadd.f32 %v581, %v1967
      %v1969 = vpop.f32.mrb[0].mxu0
      %v1970 = vadd.f32 %v582, %v1969
      %v1971 = vpop.f32.mrb[0].mxu0
      %v1972 = vadd.f32 %v585, %v1971
      %v1973 = vpop.f32.mrb[0].mxu0
      %v1974 = vadd.f32 %v586, %v1973
      %1975 = vmatprep.mubr.bf16.mxu0 %v959
      %1976 = vmatmul.mubr.bf16.gmra.mrb[0].mxu0 %v958
      %v1977 = vpop.f32.mrb[0].mxu0
      %v1978 = vadd.f32 %v589, %v1977
      %v1979 = vpop.f32.mrb[0].mxu0
      %v1980 = vadd.f32 %v590, %v1979
      %v1981 = vpop.f32.mrb[0].mxu0
      %v1982 = vadd.f32 %v593, %v1981
      %v1983 = vpop.f32.mrb[0].mxu0
      %v1984 = vadd.f32 %v594, %v1983
      %1985 = vmatprep.mubr.bf16.mxu0 %v964
      %1986 = vmatmul.mubr.bf16.gmra.mrb[0].mxu0 %v963
      %v1987 = vpop.f32.mrb[0].mxu0
      %v1988 = vadd.f32 %v597, %v1987
      %v1989 = vpop.f32.mrb[0].mxu0
      %v1990 = vadd.f32 %v598, %v1989
      %v1991 = vpop.f32.mrb[0].mxu0
      %v1992 = vadd.f32 %v601, %v1991
      %v1993 = vpop.f32.mrb[0].mxu0
      %v1994 = vadd.f32 %v602, %v1993
      %1995 = vmatprep.mubr.bf16.mxu0 %v969
      %1996 = vmatmul.mubr.bf16.gmra.mrb[0].mxu0 %v968
      %v1997 = vpop.f32.mrb[0].mxu0
      %v1998 = vadd.f32 %v605, %v1997
      %v1999 = vpop.f32.mrb[0].mxu0
      %v2000 = vadd.f32 %v606, %v1999
      %v2001 = vpop.f32.mrb[0].mxu0
      %v2002 = vadd.f32 %v609, %v2001
      %v2003 = vpop.f32.mrb[0].mxu0
      %v2004 = vadd.f32 %v610, %v2003
      %2005 = vmatprep.mubr.bf16.mxu0 %v974
      %2006 = vmatmul.mubr.bf16.gmra.mrb[0].mxu0 %v973
      %v2007 = vpop.f32.mrb[0].mxu0
      %v2008 = vadd.f32 %v613, %v2007
      %v2009 = vpop.f32.mrb[0].mxu0
      %v2010 = vadd.f32 %v614, %v2009
      %v2011 = vpop.f32.mrb[0].mxu0
      %v2012 = vadd.f32 %v617, %v2011
      %v2013 = vpop.f32.mrb[0].mxu0
      %v2014 = vadd.f32 %v618, %v2013
      %2015 = vmatprep.mubr.bf16.mxu0 %v979
      %2016 = vmatmul.mubr.bf16.gmra.mrb[0].mxu0 %v978
      %v2017 = vpop.f32.mrb[0].mxu0
      %v2018 = vadd.f32 %v621, %v2017
      %v2019 = vpop.f32.mrb[0].mxu0
      %v2020 = vadd.f32 %v622, %v2019
      %v2021 = vpop.f32.mrb[0].mxu0
      %v2022 = vadd.f32 %v625, %v2021
      %v2023 = vpop.f32.mrb[0].mxu0
      %v2024 = vadd.f32 %v626, %v2023
      %2025 = vmatprep.mubr.bf16.mxu0 %v984
      %2026 = vmatmul.mubr.bf16.gmra.mrb[0].mxu0 %v983
      %v2027 = vpop.f32.mrb[0].mxu0
      %v2028 = vadd.f32 %v629, %v2027
      %v2029 = vpop.f32.mrb[0].mxu0
      %v2030 = vadd.f32 %v630, %v2029
      %v2031 = vpop.f32.mrb[0].mxu0
      %v2032 = vadd.f32 %v633, %v2031
      %v2033 = vpop.f32.mrb[0].mxu0
      %v2034 = vadd.f32 %v634, %v2033
      %2035 = vmatprep.mubr.bf16.mxu0 %v989
      %2036 = vmatmul.mubr.bf16.gmra.mrb[0].mxu0 %v988
      %v2037 = vpop.f32.mrb[0].mxu0
      %v2038 = vadd.f32 %v637, %v2037
      %v2039 = vpop.f32.mrb[0].mxu0
      %v2040 = vadd.f32 %v638, %v2039
      %v2041 = vpop.f32.mrb[0].mxu0
      %v2042 = vadd.f32 %v641, %v2041
      %v2043 = vpop.f32.mrb[0].mxu0
      %v2044 = vadd.f32 %v642, %v2043
      %2045 = vmatprep.mubr.bf16.mxu0 %v994
      %2046 = vmatmul.mubr.bf16.gmra.mrb[0].mxu0 %v993
      %v2047 = vpop.f32.mrb[0].mxu0
      %v2048 = vadd.f32 %v645, %v2047
      %v2049 = vpop.f32.mrb[0].mxu0
      %v2050 = vadd.f32 %v646, %v2049
      %v2051 = vpop.f32.mrb[0].mxu0
      %v2052 = vadd.f32 %v649, %v2051
      %v2053 = vpop.f32.mrb[0].mxu0
      %v2054 = vadd.f32 %v650, %v2053
      %2055 = vmatprep.mubr.bf16.mxu0 %v999
      %2056 = vmatmul.mubr.bf16.gmra.mrb[0].mxu0 %v998
      %v2057 = vpop.f32.mrb[0].mxu0
      %v2058 = vadd.f32 %v653, %v2057
      %v2059 = vpop.f32.mrb[0].mxu0
      %v2060 = vadd.f32 %v654, %v2059
      %v2061 = vpop.f32.mrb[0].mxu0
      %v2062 = vadd.f32 %v657, %v2061
      %v2063 = vpop.f32.mrb[0].mxu0
      %v2064 = vadd.f32 %v658, %v2063
      %2065 = vmatprep.mubr.bf16.mxu0 %v1004
      %2066 = vmatmul.mubr.bf16.gmra.mrb[0].mxu0 %v1003
      %v2067 = vpop.f32.mrb[0].mxu0
      %v2068 = vadd.f32 %v661, %v2067
      %v2069 = vpop.f32.mrb[0].mxu0
      %v2070 = vadd.f32 %v662, %v2069
      %v2071 = vpop.f32.mrb[0].mxu0
      %v2072 = vadd.f32 %v665, %v2071
      %v2073 = vpop.f32.mrb[0].mxu0
      %v2074 = vadd.f32 %v666, %v2073
      %2075 = vmatprep.mubr.bf16.mxu0 %v1009
      %2076 = vmatmul.mubr.bf16.gmra.mrb[0].mxu0 %v1008
      %v2077 = vpop.f32.mrb[0].mxu0
      %v2078 = vadd.f32 %v669, %v2077
      %v2079 = vpop.f32.mrb[0].mxu0
      %v2080 = vadd.f32 %v670, %v2079
      %v2081 = vpop.f32.mrb[0].mxu0
      %v2082 = vadd.f32 %v673, %v2081
      %v2083 = vpop.f32.mrb[0].mxu0
      %v2084 = vadd.f32 %v674, %v2083
      %2085 = vdwg.mxu0
      %2086 = vmatprep.subr.bf16.mxu0 %v1638
      %2087 = vmatpush1.bf16.msra.mxu0 %v1637
      %2088 = vmatprep.subr.bf16.mxu0 %v1642
      %2089 = vmatpush1.bf16.msra.mxu0 %v1641
      %2090 = vmatprep.subr.bf16.mxu0 %v1646
      %2091 = vmatpush1.bf16.msra.mxu0 %v1645
      %2092 = vmatprep.subr.bf16.mxu0 %v1650
      %2093 = vmatpush1.bf16.msra.mxu0 %v1649
      %2094 = vmatprep.subr.bf16.mxu0 %v1654
      %2095 = vmatpush1.bf16.msra.mxu0 %v1653
      %2096 = vmatprep.subr.bf16.mxu0 %v1658
      %2097 = vmatpush1.bf16.msra.mxu0 %v1657
      %2098 = vmatprep.subr.bf16.mxu0 %v1662
      %2099 = vmatpush1.bf16.msra.mxu0 %v1661
      %2100 = vmatprep.subr.bf16.mxu0 %v1666
      %2101 = vmatpush1.bf16.msra.mxu0 %v1665
      %2102 = vmatprep.subr.bf16.mxu0 %v1670
      %2103 = vmatpush1.bf16.msra.mxu0 %v1669
      %2104 = vmatprep.subr.bf16.mxu0 %v1674
      %2105 = vmatpush1.bf16.msra.mxu0 %v1673
      %2106 = vmatprep.subr.bf16.mxu0 %v1678
      %2107 = vmatpush1.bf16.msra.mxu0 %v1677
      %2108 = vmatprep.subr.bf16.mxu0 %v1682
      %2109 = vmatpush1.bf16.msra.mxu0 %v1681
      %2110 = vmatprep.subr.bf16.mxu0 %v1686
      %2111 = vmatpush1.bf16.msra.mxu0 %v1685
      %2112 = vmatprep.subr.bf16.mxu0 %v1690
      %2113 = vmatpush1.bf16.msra.mxu0 %v1689
      %2114 = vmatprep.subr.bf16.mxu0 %v1694
      %2115 = vmatpush1.bf16.msra.mxu0 %v1693
      %2116 = vmatprep.subr.bf16.mxu0 %v1698
      %2117 = vmatpush1.bf16.msra.mxu0 %v1697
      %2118 = vmatprep.mubr.bf16.mxu0 %v936
      %2119 = vmatmul.mubr.bf16.gmra.mrb[0].mxu0 %v935
      %v2120 = vpop.f32.mrb[0].mxu0
      %v2121 = vadd.f32 %v1928, %v2120
      %v2122 = vpop.f32.mrb[0].mxu0
      %v2123 = vadd.f32 %v1930, %v2122
      %v2124 = vpop.f32.mrb[0].mxu0
      %v2125 = vadd.f32 %v1932, %v2124
      %v2126 = vpop.f32.mrb[0].mxu0
      %v2127 = vadd.f32 %v1934, %v2126
      %2128 = vmatprep.mubr.bf16.mxu0 %v941
      %2129 = vmatmul.mubr.bf16.gmra.mrb[0].mxu0 %v940
      %v2130 = vpop.f32.mrb[0].mxu0
      %v2131 = vadd.f32 %v1938, %v2130
      %v2132 = vpop.f32.mrb[0].mxu0
      %v2133 = vadd.f32 %v1940, %v2132
      %v2134 = vpop.f32.mrb[0].mxu0
      %v2135 = vadd.f32 %v1942, %v2134
      %v2136 = vpop.f32.mrb[0].mxu0
      %v2137 = vadd.f32 %v1944, %v2136
      %2138 = vmatprep.mubr.bf16.mxu0 %v946
      %2139 = vmatmul.mubr.bf16.gmra.mrb[0].mxu0 %v945
      %v2140 = vpop.f32.mrb[0].mxu0
      %v2141 = vadd.f32 %v1948, %v2140
      %v2142 = vpop.f32.mrb[0].mxu0
      %v2143 = vadd.f32 %v1950, %v2142
      %v2144 = vpop.f32.mrb[0].mxu0
      %v2145 = vadd.f32 %v1952, %v2144
      %v2146 = vpop.f32.mrb[0].mxu0
      %v2147 = vadd.f32 %v1954, %v2146
      %2148 = vmatprep.mubr.bf16.mxu0 %v951
      %2149 = vmatmul.mubr.bf16.gmra.mrb[0].mxu0 %v950
      %v2150 = vpop.f32.mrb[0].mxu0
      %v2151 = vadd.f32 %v1958, %v2150
      %v2152 = vpop.f32.mrb[0].mxu0
      %v2153 = vadd.f32 %v1960, %v2152
      %v2154 = vpop.f32.mrb[0].mxu0
      %v2155 = vadd.f32 %v1962, %v2154
      %v2156 = vpop.f32.mrb[0].mxu0
      %v2157 = vadd.f32 %v1964, %v2156
      %2158 = vmatprep.mubr.bf16.mxu0 %v956
      %2159 = vmatmul.mubr.bf16.gmra.mrb[0].mxu0 %v955
      %v2160 = vpop.f32.mrb[0].mxu0
      %v2161 = vadd.f32 %v1968, %v2160
      %v2162 = vpop.f32.mrb[0].mxu0
      %v2163 = vadd.f32 %v1970, %v2162
      %v2164 = vpop.f32.mrb[0].mxu0
      %v2165 = vadd.f32 %v1972, %v2164
      %v2166 = vpop.f32.mrb[0].mxu0
      %v2167 = vadd.f32 %v1974, %v2166
      %2168 = vmatprep.mubr.bf16.mxu0 %v961
      %2169 = vmatmul.mubr.bf16.gmra.mrb[0].mxu0 %v960
      %v2170 = vpop.f32.mrb[0].mxu0
      %v2171 = vadd.f32 %v1978, %v2170
      %v2172 = vpop.f32.mrb[0].mxu0
      %v2173 = vadd.f32 %v1980, %v2172
      %v2174 = vpop.f32.mrb[0].mxu0
      %v2175 = vadd.f32 %v1982, %v2174
      %v2176 = vpop.f32.mrb[0].mxu0
      %v2177 = vadd.f32 %v1984, %v2176
      %2178 = vmatprep.mubr.bf16.mxu0 %v966
      %2179 = vmatmul.mubr.bf16.gmra.mrb[0].mxu0 %v965
      %v2180 = vpop.f32.mrb[0].mxu0
      %v2181 = vadd.f32 %v1988, %v2180
      %v2182 = vpop.f32.mrb[0].mxu0
      %v2183 = vadd.f32 %v1990, %v2182
      %v2184 = vpop.f32.mrb[0].mxu0
      %v2185 = vadd.f32 %v1992, %v2184
      %v2186 = vpop.f32.mrb[0].mxu0
      %v2187 = vadd.f32 %v1994, %v2186
      %2188 = vmatprep.mubr.bf16.mxu0 %v971
      %2189 = vmatmul.mubr.bf16.gmra.mrb[0].mxu0 %v970
      %v2190 = vpop.f32.mrb[0].mxu0
      %v2191 = vadd.f32 %v1998, %v2190
      %v2192 = vpop.f32.mrb[0].mxu0
      %v2193 = vadd.f32 %v2000, %v2192
      %v2194 = vpop.f32.mrb[0].mxu0
      %v2195 = vadd.f32 %v2002, %v2194
      %v2196 = vpop.f32.mrb[0].mxu0
      %v2197 = vadd.f32 %v2004, %v2196
      %2198 = vmatprep.mubr.bf16.mxu0 %v976
      %2199 = vmatmul.mubr.bf16.gmra.mrb[0].mxu0 %v975
      %v2200 = vpop.f32.mrb[0].mxu0
      %v2201 = vadd.f32 %v2008, %v2200
      %v2202 = vpop.f32.mrb[0].mxu0
      %v2203 = vadd.f32 %v2010, %v2202
      %v2204 = vpop.f32.mrb[0].mxu0
      %v2205 = vadd.f32 %v2012, %v2204
      %v2206 = vpop.f32.mrb[0].mxu0
      %v2207 = vadd.f32 %v2014, %v2206
      %2208 = vmatprep.mubr.bf16.mxu0 %v981
      %2209 = vmatmul.mubr.bf16.gmra.mrb[0].mxu0 %v980
      %v2210 = vpop.f32.mrb[0].mxu0
      %v2211 = vadd.f32 %v2018, %v2210
      %v2212 = vpop.f32.mrb[0].mxu0
      %v2213 = vadd.f32 %v2020, %v2212
      %v2214 = vpop.f32.mrb[0].mxu0
      %v2215 = vadd.f32 %v2022, %v2214
      %v2216 = vpop.f32.mrb[0].mxu0
      %v2217 = vadd.f32 %v2024, %v2216
      %2218 = vmatprep.mubr.bf16.mxu0 %v986
      %2219 = vmatmul.mubr.bf16.gmra.mrb[0].mxu0 %v985
      %v2220 = vpop.f32.mrb[0].mxu0
      %v2221 = vadd.f32 %v2028, %v2220
      %v2222 = vpop.f32.mrb[0].mxu0
      %v2223 = vadd.f32 %v2030, %v2222
      %v2224 = vpop.f32.mrb[0].mxu0
      %v2225 = vadd.f32 %v2032, %v2224
      %v2226 = vpop.f32.mrb[0].mxu0
      %v2227 = vadd.f32 %v2034, %v2226
      %2228 = vmatprep.mubr.bf16.mxu0 %v991
      %2229 = vmatmul.mubr.bf16.gmra.mrb[0].mxu0 %v990
      %v2230 = vpop.f32.mrb[0].mxu0
      %v2231 = vadd.f32 %v2038, %v2230
      %v2232 = vpop.f32.mrb[0].mxu0
      %v2233 = vadd.f32 %v2040, %v2232
      %v2234 = vpop.f32.mrb[0].mxu0
      %v2235 = vadd.f32 %v2042, %v2234
      %v2236 = vpop.f32.mrb[0].mxu0
      %v2237 = vadd.f32 %v2044, %v2236
      %2238 = vmatprep.mubr.bf16.mxu0 %v996
      %2239 = vmatmul.mubr.bf16.gmra.mrb[0].mxu0 %v995
      %v2240 = vpop.f32.mrb[0].mxu0
      %v2241 = vadd.f32 %v2048, %v2240
      %v2242 = vpop.f32.mrb[0].mxu0
      %v2243 = vadd.f32 %v2050, %v2242
      %v2244 = vpop.f32.mrb[0].mxu0
      %v2245 = vadd.f32 %v2052, %v2244
      %v2246 = vpop.f32.mrb[0].mxu0
      %v2247 = vadd.f32 %v2054, %v2246
      %2248 = vmatprep.mubr.bf16.mxu0 %v1001
      %2249 = vmatmul.mubr.bf16.gmra.mrb[0].mxu0 %v1000
      %v2250 = vpop.f32.mrb[0].mxu0
      %v2251 = vadd.f32 %v2058, %v2250
      %v2252 = vpop.f32.mrb[0].mxu0
      %v2253 = vadd.f32 %v2060, %v2252
      %v2254 = vpop.f32.mrb[0].mxu0
      %v2255 = vadd.f32 %v2062, %v2254
      %v2256 = vpop.f32.mrb[0].mxu0
      %v2257 = vadd.f32 %v2064, %v2256
      %2258 = vmatprep.mubr.bf16.mxu0 %v1006
      %2259 = vmatmul.mubr.bf16.gmra.mrb[0].mxu0 %v1005
      %v2260 = vpop.f32.mrb[0].mxu0
      %v2261 = vadd.f32 %v2068, %v2260
      %v2262 = vpop.f32.mrb[0].mxu0
      %v2263 = vadd.f32 %v2070, %v2262
      %v2264 = vpop.f32.mrb[0].mxu0
      %v2265 = vadd.f32 %v2072, %v2264
      %v2266 = vpop.f32.mrb[0].mxu0
      %v2267 = vadd.f32 %v2074, %v2266
      %2268 = vmatprep.mubr.bf16.mxu0 %v1011
      %2269 = vmatmul.mubr.bf16.gmra.mrb[0].mxu0 %v1010
      %v2270 = vpop.f32.mrb[0].mxu0
      %v2271 = vadd.f32 %v2078, %v2270
      %v2272 = vpop.f32.mrb[0].mxu0
      %v2273 = vadd.f32 %v2080, %v2272
      %v2274 = vpop.f32.mrb[0].mxu0
      %v2275 = vadd.f32 %v2082, %v2274
      %v2276 = vpop.f32.mrb[0].mxu0
      %v2277 = vadd.f32 %v2084, %v2276
      %2278 = vdwg.mxu0
      %2279 = vmatprep.subr.bf16.mxu0 %v1702
      %2280 = vmatpush1.bf16.msra.mxu0 %v1701
      %2281 = vmatprep.subr.bf16.mxu0 %v1706
      %2282 = vmatpush1.bf16.msra.mxu0 %v1705
      %2283 = vmatprep.subr.bf16.mxu0 %v1710
      %2284 = vmatpush1.bf16.msra.mxu0 %v1709
      %2285 = vmatprep.subr.bf16.mxu0 %v1714
      %2286 = vmatpush1.bf16.msra.mxu0 %v1713
      %2287 = vmatprep.subr.bf16.mxu0 %v1718
      %2288 = vmatpush1.bf16.msra.mxu0 %v1717
      %2289 = vmatprep.subr.bf16.mxu0 %v1722
      %2290 = vmatpush1.bf16.msra.mxu0 %v1721
      %2291 = vmatprep.subr.bf16.mxu0 %v1726
      %2292 = vmatpush1.bf16.msra.mxu0 %v1725
      %2293 = vmatprep.subr.bf16.mxu0 %v1730
      %2294 = vmatpush1.bf16.msra.mxu0 %v1729
      %2295 = vmatprep.subr.bf16.mxu0 0
      %2296 = vmatpush1.bf16.msra.mxu0 0
      %2297 = vmatprep.subr.bf16.mxu0 0
      %2298 = vmatpush1.bf16.msra.mxu0 0
      %2299 = vmatprep.subr.bf16.mxu0 0
      %2300 = vmatpush1.bf16.msra.mxu0 0
      %2301 = vmatprep.subr.bf16.mxu0 0
      %2302 = vmatpush1.bf16.msra.mxu0 0
      %2303 = vmatprep.subr.bf16.mxu0 0
      %2304 = vmatpush1.bf16.msra.mxu0 0
      %2305 = vmatprep.subr.bf16.mxu0 0
      %2306 = vmatpush1.bf16.msra.mxu0 0
      %2307 = vmatprep.subr.bf16.mxu0 0
      %2308 = vmatpush1.bf16.msra.mxu0 0
      %2309 = vmatprep.subr.bf16.mxu0 0
      %2310 = vmatpush1.bf16.msra.mxu0 0
      %2311 = vmatprep.mubr.bf16.mxu0 0
      %2312 = vmatmul.mubr.bf16.gmra.mrb[0].mxu0 %v937
      %v2313 = vpop.f32.mrb[0].mxu0
      %v2314 = vadd.f32 %v2121, %v2313
      %v2315 = vpop.f32.mrb[0].mxu0
      %v2316 = vadd.f32 %v2123, %v2315
      %v2317 = vpop.f32.mrb[0].mxu0
      %v2318 = vadd.f32 %v2125, %v2317
      %v2319 = vpop.f32.mrb[0].mxu0
      %v2320 = vadd.f32 %v2127, %v2319
      %2321 = vmatprep.mubr.bf16.mxu0 0
      %2322 = vmatmul.mubr.bf16.gmra.mrb[0].mxu0 %v942
      %v2323 = vpop.f32.mrb[0].mxu0
      %v2324 = vadd.f32 %v2131, %v2323
      %v2325 = vpop.f32.mrb[0].mxu0
      %v2326 = vadd.f32 %v2133, %v2325
      %v2327 = vpop.f32.mrb[0].mxu0
      %v2328 = vadd.f32 %v2135, %v2327
      %v2329 = vpop.f32.mrb[0].mxu0
      %v2330 = vadd.f32 %v2137, %v2329
      %2331 = vmatprep.mubr.bf16.mxu0 0
      %2332 = vmatmul.mubr.bf16.gmra.mrb[0].mxu0 %v947
      %v2333 = vpop.f32.mrb[0].mxu0
      %v2334 = vadd.f32 %v2141, %v2333
      %v2335 = vpop.f32.mrb[0].mxu0
      %v2336 = vadd.f32 %v2143, %v2335
      %v2337 = vpop.f32.mrb[0].mxu0
      %v2338 = vadd.f32 %v2145, %v2337
      %v2339 = vpop.f32.mrb[0].mxu0
      %v2340 = vadd.f32 %v2147, %v2339
      %2341 = vmatprep.mubr.bf16.mxu0 0
      %2342 = vmatmul.mubr.bf16.gmra.mrb[0].mxu0 %v952
      %v2343 = vpop.f32.mrb[0].mxu0
      %v2344 = vadd.f32 %v2151, %v2343
      %v2345 = vpop.f32.mrb[0].mxu0
      %v2346 = vadd.f32 %v2153, %v2345
      %v2347 = vpop.f32.mrb[0].mxu0
      %v2348 = vadd.f32 %v2155, %v2347
      %v2349 = vpop.f32.mrb[0].mxu0
      %v2350 = vadd.f32 %v2157, %v2349
      %2351 = vmatprep.mubr.bf16.mxu0 0
      %2352 = vmatmul.mubr.bf16.gmra.mrb[0].mxu0 %v957
      %v2353 = vpop.f32.mrb[0].mxu0
      %v2354 = vadd.f32 %v2161, %v2353
      %v2355 = vpop.f32.mrb[0].mxu0
      %v2356 = vadd.f32 %v2163, %v2355
      %v2357 = vpop.f32.mrb[0].mxu0
      %v2358 = vadd.f32 %v2165, %v2357
      %v2359 = vpop.f32.mrb[0].mxu0
      %v2360 = vadd.f32 %v2167, %v2359
      %2361 = vmatprep.mubr.bf16.mxu0 0
      %2362 = vmatmul.mubr.bf16.gmra.mrb[0].mxu0 %v962
      %v2363 = vpop.f32.mrb[0].mxu0
      %v2364 = vadd.f32 %v2171, %v2363
      %v2365 = vpop.f32.mrb[0].mxu0
      %v2366 = vadd.f32 %v2173, %v2365
      %v2367 = vpop.f32.mrb[0].mxu0
      %v2368 = vadd.f32 %v2175, %v2367
      %v2369 = vpop.f32.mrb[0].mxu0
      %v2370 = vadd.f32 %v2177, %v2369
      %2371 = vmatprep.mubr.bf16.mxu0 0
      %2372 = vmatmul.mubr.bf16.gmra.mrb[0].mxu0 %v967
      %v2373 = vpop.f32.mrb[0].mxu0
      %v2374 = vadd.f32 %v2181, %v2373
      %v2375 = vpop.f32.mrb[0].mxu0
      %v2376 = vadd.f32 %v2183, %v2375
      %v2377 = vpop.f32.mrb[0].mxu0
      %v2378 = vadd.f32 %v2185, %v2377
      %v2379 = vpop.f32.mrb[0].mxu0
      %v2380 = vadd.f32 %v2187, %v2379
      %2381 = vmatprep.mubr.bf16.mxu0 0
      %2382 = vmatmul.mubr.bf16.gmra.mrb[0].mxu0 %v972
      %v2383 = vpop.f32.mrb[0].mxu0
      %v2384 = vadd.f32 %v2191, %v2383
      %v2385 = vpop.f32.mrb[0].mxu0
      %v2386 = vadd.f32 %v2193, %v2385
      %v2387 = vpop.f32.mrb[0].mxu0
      %v2388 = vadd.f32 %v2195, %v2387
      %v2389 = vpop.f32.mrb[0].mxu0
      %v2390 = vadd.f32 %v2197, %v2389
      %2391 = vmatprep.mubr.bf16.mxu0 0
      %2392 = vmatmul.mubr.bf16.gmra.mrb[0].mxu0 %v977
      %v2393 = vpop.f32.mrb[0].mxu0
      %v2394 = vadd.f32 %v2201, %v2393
      %v2395 = vpop.f32.mrb[0].mxu0
      %v2396 = vadd.f32 %v2203, %v2395
      %v2397 = vpop.f32.mrb[0].mxu0
      %v2398 = vadd.f32 %v2205, %v2397
      %v2399 = vpop.f32.mrb[0].mxu0
      %v2400 = vadd.f32 %v2207, %v2399
      %2401 = vmatprep.mubr.bf16.mxu0 0
      %2402 = vmatmul.mubr.bf16.gmra.mrb[0].mxu0 %v982
      %v2403 = vpop.f32.mrb[0].mxu0
      %v2404 = vadd.f32 %v2211, %v2403
      %v2405 = vpop.f32.mrb[0].mxu0
      %v2406 = vadd.f32 %v2213, %v2405
      %v2407 = vpop.f32.mrb[0].mxu0
      %v2408 = vadd.f32 %v2215, %v2407
      %v2409 = vpop.f32.mrb[0].mxu0
      %v2410 = vadd.f32 %v2217, %v2409
      %2411 = vmatprep.mubr.bf16.mxu0 0
      %2412 = vmatmul.mubr.bf16.gmra.mrb[0].mxu0 %v987
      %v2413 = vpop.f32.mrb[0].mxu0
      %v2414 = vadd.f32 %v2221, %v2413
      %v2415 = vpop.f32.mrb[0].mxu0
      %v2416 = vadd.f32 %v2223, %v2415
      %v2417 = vpop.f32.mrb[0].mxu0
      %v2418 = vadd.f32 %v2225, %v2417
      %v2419 = vpop.f32.mrb[0].mxu0
      %v2420 = vadd.f32 %v2227, %v2419
      %2421 = vmatprep.mubr.bf16.mxu0 0
      %2422 = vmatmul.mubr.bf16.gmra.mrb[0].mxu0 %v992
      %v2423 = vpop.f32.mrb[0].mxu0
      %v2424 = vadd.f32 %v2231, %v2423
      %v2425 = vpop.f32.mrb[0].mxu0
      %v2426 = vadd.f32 %v2233, %v2425
      %v2427 = vpop.f32.mrb[0].mxu0
      %v2428 = vadd.f32 %v2235, %v2427
      %v2429 = vpop.f32.mrb[0].mxu0
      %v2430 = vadd.f32 %v2237, %v2429
      %2431 = vmatprep.mubr.bf16.mxu0 0
      %2432 = vmatmul.mubr.bf16.gmra.mrb[0].mxu0 %v997
      %v2433 = vpop.f32.mrb[0].mxu0
      %v2434 = vadd.f32 %v2241, %v2433
      %v2435 = vpop.f32.mrb[0].mxu0
      %v2436 = vadd.f32 %v2243, %v2435
      %v2437 = vpop.f32.mrb[0].mxu0
      %v2438 = vadd.f32 %v2245, %v2437
      %v2439 = vpop.f32.mrb[0].mxu0
      %v2440 = vadd.f32 %v2247, %v2439
      %2441 = vmatprep.mubr.bf16.mxu0 0
      %2442 = vmatmul.mubr.bf16.gmra.mrb[0].mxu0 %v1002
      %v2443 = vpop.f32.mrb[0].mxu0
      %v2444 = vadd.f32 %v2251, %v2443
      %v2445 = vpop.f32.mrb[0].mxu0
      %v2446 = vadd.f32 %v2253, %v2445
      %v2447 = vpop.f32.mrb[0].mxu0
      %v2448 = vadd.f32 %v2255, %v2447
      %v2449 = vpop.f32.mrb[0].mxu0
      %v2450 = vadd.f32 %v2257, %v2449
      %2451 = vmatprep.mubr.bf16.mxu0 0
      %2452 = vmatmul.mubr.bf16.gmra.mrb[0].mxu0 %v1007
      %v2453 = vpop.f32.mrb[0].mxu0
      %v2454 = vadd.f32 %v2261, %v2453
      %v2455 = vpop.f32.mrb[0].mxu0
      %v2456 = vadd.f32 %v2263, %v2455
      %v2457 = vpop.f32.mrb[0].mxu0
      %v2458 = vadd.f32 %v2265, %v2457
      %v2459 = vpop.f32.mrb[0].mxu0
      %v2460 = vadd.f32 %v2267, %v2459
      %2461 = vmatprep.mubr.bf16.mxu0 0
      %2462 = vmatmul.mubr.bf16.gmra.mrb[0].mxu0 %v1012
      %v2463 = vpop.f32.mrb[0].mxu0
      %v2464 = vadd.f32 %v2271, %v2463
      %v2465 = vpop.f32.mrb[0].mxu0
      %v2466 = vadd.f32 %v2273, %v2465
      %v2467 = vpop.f32.mrb[0].mxu0
      %v2468 = vadd.f32 %v2275, %v2467
      %v2469 = vpop.f32.mrb[0].mxu0
      %v2470 = vadd.f32 %v2277, %v2469
      %2471 = vdwg.mxu0
      %2472 = vmatprep.subr.bf16.mxu0 %v1576
      %2473 = vmatpush1.bf16.msra.mxu0 %v1575
      %2474 = vmatprep.subr.bf16.mxu0 %v1580
      %2475 = vmatpush1.bf16.msra.mxu0 %v1579
      %2476 = vmatprep.subr.bf16.mxu0 %v1584
      %2477 = vmatpush1.bf16.msra.mxu0 %v1583
      %2478 = vmatprep.subr.bf16.mxu0 %v1588
      %2479 = vmatpush1.bf16.msra.mxu0 %v1587
      %2480 = vmatprep.subr.bf16.mxu0 %v1592
      %2481 = vmatpush1.bf16.msra.mxu0 %v1591
      %2482 = vmatprep.subr.bf16.mxu0 %v1596
      %2483 = vmatpush1.bf16.msra.mxu0 %v1595
      %2484 = vmatprep.subr.bf16.mxu0 %v1600
      %2485 = vmatpush1.bf16.msra.mxu0 %v1599
      %2486 = vmatprep.subr.bf16.mxu0 %v1604
      %2487 = vmatpush1.bf16.msra.mxu0 %v1603
      %2488 = vmatprep.subr.bf16.mxu0 %v1608
      %2489 = vmatpush1.bf16.msra.mxu0 %v1607
      %2490 = vmatprep.subr.bf16.mxu0 %v1612
      %2491 = vmatpush1.bf16.msra.mxu0 %v1611
      %2492 = vmatprep.subr.bf16.mxu0 %v1616
      %2493 = vmatpush1.bf16.msra.mxu0 %v1615
      %2494 = vmatprep.subr.bf16.mxu0 %v1620
      %2495 = vmatpush1.bf16.msra.mxu0 %v1619
      %2496 = vmatprep.subr.bf16.mxu0 %v1624
      %2497 = vmatpush1.bf16.msra.mxu0 %v1623
      %2498 = vmatprep.subr.bf16.mxu0 %v1628
      %2499 = vmatpush1.bf16.msra.mxu0 %v1627
      %2500 = vmatprep.subr.bf16.mxu0 %v1632
      %2501 = vmatpush1.bf16.msra.mxu0 %v1631
      %2502 = vmatprep.subr.bf16.mxu0 %v1636
      %2503 = vmatpush1.bf16.msra.mxu0 %v1635
      %2504 = vmatprep.mubr.bf16.mxu0 %v934
      %2505 = vmatmul.mubr.bf16.gmra.mrb[0].mxu0 %v933
      %v2506 = vpop.f32.mrb[0].mxu0
      %v2507 = vadd.f32 %v551, %v2506
      %v2508 = vpop.f32.mrb[0].mxu0
      %v2509 = vadd.f32 %v552, %v2508
      %v2510 = vpop.f32.mrb[0].mxu0
      %v2511 = vadd.f32 %v555, %v2510
      %v2512 = vpop.f32.mrb[0].mxu0
      %v2513 = vadd.f32 %v556, %v2512
      %2514 = vmatprep.mubr.bf16.mxu0 %v939
      %2515 = vmatmul.mubr.bf16.gmra.mrb[0].mxu0 %v938
      %v2516 = vpop.f32.mrb[0].mxu0
      %v2517 = vadd.f32 %v559, %v2516
      %v2518 = vpop.f32.mrb[0].mxu0
      %v2519 = vadd.f32 %v560, %v2518
      %v2520 = vpop.f32.mrb[0].mxu0
      %v2521 = vadd.f32 %v563, %v2520
      %v2522 = vpop.f32.mrb[0].mxu0
      %v2523 = vadd.f32 %v564, %v2522
      %2524 = vmatprep.mubr.bf16.mxu0 %v944
      %2525 = vmatmul.mubr.bf16.gmra.mrb[0].mxu0 %v943
      %v2526 = vpop.f32.mrb[0].mxu0
      %v2527 = vadd.f32 %v567, %v2526
      %v2528 = vpop.f32.mrb[0].mxu0
      %v2529 = vadd.f32 %v568, %v2528
      %v2530 = vpop.f32.mrb[0].mxu0
      %v2531 = vadd.f32 %v571, %v2530
      %v2532 = vpop.f32.mrb[0].mxu0
      %v2533 = vadd.f32 %v572, %v2532
      %2534 = vmatprep.mubr.bf16.mxu0 %v949
      %2535 = vmatmul.mubr.bf16.gmra.mrb[0].mxu0 %v948
      %v2536 = vpop.f32.mrb[0].mxu0
      %v2537 = vadd.f32 %v575, %v2536
      %v2538 = vpop.f32.mrb[0].mxu0
      %v2539 = vadd.f32 %v576, %v2538
      %v2540 = vpop.f32.mrb[0].mxu0
      %v2541 = vadd.f32 %v579, %v2540
      %v2542 = vpop.f32.mrb[0].mxu0
      %v2543 = vadd.f32 %v580, %v2542
      %2544 = vmatprep.mubr.bf16.mxu0 %v954
      %2545 = vmatmul.mubr.bf16.gmra.mrb[0].mxu0 %v953
      %v2546 = vpop.f32.mrb[0].mxu0
      %v2547 = vadd.f32 %v583, %v2546
      %v2548 = vpop.f32.mrb[0].mxu0
      %v2549 = vadd.f32 %v584, %v2548
      %v2550 = vpop.f32.mrb[0].mxu0
      %v2551 = vadd.f32 %v587, %v2550
      %v2552 = vpop.f32.mrb[0].mxu0
      %v2553 = vadd.f32 %v588, %v2552
      %2554 = vmatprep.mubr.bf16.mxu0 %v959
      %2555 = vmatmul.mubr.bf16.gmra.mrb[0].mxu0 %v958
      %v2556 = vpop.f32.mrb[0].mxu0
      %v2557 = vadd.f32 %v591, %v2556
      %v2558 = vpop.f32.mrb[0].mxu0
      %v2559 = vadd.f32 %v592, %v2558
      %v2560 = vpop.f32.mrb[0].mxu0
      %v2561 = vadd.f32 %v595, %v2560
      %v2562 = vpop.f32.mrb[0].mxu0
      %v2563 = vadd.f32 %v596, %v2562
      %2564 = vmatprep.mubr.bf16.mxu0 %v964
      %2565 = vmatmul.mubr.bf16.gmra.mrb[0].mxu0 %v963
      %v2566 = vpop.f32.mrb[0].mxu0
      %v2567 = vadd.f32 %v599, %v2566
      %v2568 = vpop.f32.mrb[0].mxu0
      %v2569 = vadd.f32 %v600, %v2568
      %v2570 = vpop.f32.mrb[0].mxu0
      %v2571 = vadd.f32 %v603, %v2570
      %v2572 = vpop.f32.mrb[0].mxu0
      %v2573 = vadd.f32 %v604, %v2572
      %2574 = vmatprep.mubr.bf16.mxu0 %v969
      %2575 = vmatmul.mubr.bf16.gmra.mrb[0].mxu0 %v968
      %v2576 = vpop.f32.mrb[0].mxu0
      %v2577 = vadd.f32 %v607, %v2576
      %v2578 = vpop.f32.mrb[0].mxu0
      %v2579 = vadd.f32 %v608, %v2578
      %v2580 = vpop.f32.mrb[0].mxu0
      %v2581 = vadd.f32 %v611, %v2580
      %v2582 = vpop.f32.mrb[0].mxu0
      %v2583 = vadd.f32 %v612, %v2582
      %2584 = vmatprep.mubr.bf16.mxu0 %v974
      %2585 = vmatmul.mubr.bf16.gmra.mrb[0].mxu0 %v973
      %v2586 = vpop.f32.mrb[0].mxu0
      %v2587 = vadd.f32 %v615, %v2586
      %v2588 = vpop.f32.mrb[0].mxu0
      %v2589 = vadd.f32 %v616, %v2588
      %v2590 = vpop.f32.mrb[0].mxu0
      %v2591 = vadd.f32 %v619, %v2590
      %v2592 = vpop.f32.mrb[0].mxu0
      %v2593 = vadd.f32 %v620, %v2592
      %2594 = vmatprep.mubr.bf16.mxu0 %v979
      %2595 = vmatmul.mubr.bf16.gmra.mrb[0].mxu0 %v978
      %v2596 = vpop.f32.mrb[0].mxu0
      %v2597 = vadd.f32 %v623, %v2596
      %v2598 = vpop.f32.mrb[0].mxu0
      %v2599 = vadd.f32 %v624, %v2598
      %v2600 = vpop.f32.mrb[0].mxu0
      %v2601 = vadd.f32 %v627, %v2600
      %v2602 = vpop.f32.mrb[0].mxu0
      %v2603 = vadd.f32 %v628, %v2602
      %2604 = vmatprep.mubr.bf16.mxu0 %v984
      %2605 = vmatmul.mubr.bf16.gmra.mrb[0].mxu0 %v983
      %v2606 = vpop.f32.mrb[0].mxu0
      %v2607 = vadd.f32 %v631, %v2606
      %v2608 = vpop.f32.mrb[0].mxu0
      %v2609 = vadd.f32 %v632, %v2608
      %v2610 = vpop.f32.mrb[0].mxu0
      %v2611 = vadd.f32 %v635, %v2610
      %v2612 = vpop.f32.mrb[0].mxu0
      %v2613 = vadd.f32 %v636, %v2612
      %2614 = vmatprep.mubr.bf16.mxu0 %v989
      %2615 = vmatmul.mubr.bf16.gmra.mrb[0].mxu0 %v988
      %v2616 = vpop.f32.mrb[0].mxu0
      %v2617 = vadd.f32 %v639, %v2616
      %v2618 = vpop.f32.mrb[0].mxu0
      %v2619 = vadd.f32 %v640, %v2618
      %v2620 = vpop.f32.mrb[0].mxu0
      %v2621 = vadd.f32 %v643, %v2620
      %v2622 = vpop.f32.mrb[0].mxu0
      %v2623 = vadd.f32 %v644, %v2622
      %2624 = vmatprep.mubr.bf16.mxu0 %v994
      %2625 = vmatmul.mubr.bf16.gmra.mrb[0].mxu0 %v993
      %v2626 = vpop.f32.mrb[0].mxu0
      %v2627 = vadd.f32 %v647, %v2626
      %v2628 = vpop.f32.mrb[0].mxu0
      %v2629 = vadd.f32 %v648, %v2628
      %v2630 = vpop.f32.mrb[0].mxu0
      %v2631 = vadd.f32 %v651, %v2630
      %v2632 = vpop.f32.mrb[0].mxu0
      %v2633 = vadd.f32 %v652, %v2632
      %2634 = vmatprep.mubr.bf16.mxu0 %v999
      %2635 = vmatmul.mubr.bf16.gmra.mrb[0].mxu0 %v998
      %v2636 = vpop.f32.mrb[0].mxu0
      %v2637 = vadd.f32 %v655, %v2636
      %v2638 = vpop.f32.mrb[0].mxu0
      %v2639 = vadd.f32 %v656, %v2638
      %v2640 = vpop.f32.mrb[0].mxu0
      %v2641 = vadd.f32 %v659, %v2640
      %v2642 = vpop.f32.mrb[0].mxu0
      %v2643 = vadd.f32 %v660, %v2642
      %2644 = vmatprep.mubr.bf16.mxu0 %v1004
      %2645 = vmatmul.mubr.bf16.gmra.mrb[0].mxu0 %v1003
      %v2646 = vpop.f32.mrb[0].mxu0
      %v2647 = vadd.f32 %v663, %v2646
      %v2648 = vpop.f32.mrb[0].mxu0
      %v2649 = vadd.f32 %v664, %v2648
      %v2650 = vpop.f32.mrb[0].mxu0
      %v2651 = vadd.f32 %v667, %v2650
      %v2652 = vpop.f32.mrb[0].mxu0
      %v2653 = vadd.f32 %v668, %v2652
      %2654 = vmatprep.mubr.bf16.mxu0 %v1009
      %2655 = vmatmul.mubr.bf16.gmra.mrb[0].mxu0 %v1008
      %v2656 = vpop.f32.mrb[0].mxu0
      %v2657 = vadd.f32 %v671, %v2656
      %v2658 = vpop.f32.mrb[0].mxu0
      %v2659 = vadd.f32 %v672, %v2658
      %v2660 = vpop.f32.mrb[0].mxu0
      %v2661 = vadd.f32 %v675, %v2660
      %v2662 = vpop.f32.mrb[0].mxu0
      %v2663 = vadd.f32 %v676, %v2662
      %2664 = vdwg.mxu0
      %2665 = vmatprep.subr.bf16.mxu0 %v1640
      %2666 = vmatpush1.bf16.msra.mxu0 %v1639
      %2667 = vmatprep.subr.bf16.mxu0 %v1644
      %2668 = vmatpush1.bf16.msra.mxu0 %v1643
      %2669 = vmatprep.subr.bf16.mxu0 %v1648
      %2670 = vmatpush1.bf16.msra.mxu0 %v1647
      %2671 = vmatprep.subr.bf16.mxu0 %v1652
      %2672 = vmatpush1.bf16.msra.mxu0 %v1651
      %2673 = vmatprep.subr.bf16.mxu0 %v1656
      %2674 = vmatpush1.bf16.msra.mxu0 %v1655
      %2675 = vmatprep.subr.bf16.mxu0 %v1660
      %2676 = vmatpush1.bf16.msra.mxu0 %v1659
      %2677 = vmatprep.subr.bf16.mxu0 %v1664
      %2678 = vmatpush1.bf16.msra.mxu0 %v1663
      %2679 = vmatprep.subr.bf16.mxu0 %v1668
      %2680 = vmatpush1.bf16.msra.mxu0 %v1667
      %2681 = vmatprep.subr.bf16.mxu0 %v1672
      %2682 = vmatpush1.bf16.msra.mxu0 %v1671
      %2683 = vmatprep.subr.bf16.mxu0 %v1676
      %2684 = vmatpush1.bf16.msra.mxu0 %v1675
      %2685 = vmatprep.subr.bf16.mxu0 %v1680
      %2686 = vmatpush1.bf16.msra.mxu0 %v1679
      %2687 = vmatprep.subr.bf16.mxu0 %v1684
      %2688 = vmatpush1.bf16.msra.mxu0 %v1683
      %2689 = vmatprep.subr.bf16.mxu0 %v1688
      %2690 = vmatpush1.bf16.msra.mxu0 %v1687
      %2691 = vmatprep.subr.bf16.mxu0 %v1692
      %2692 = vmatpush1.bf16.msra.mxu0 %v1691
      %2693 = vmatprep.subr.bf16.mxu0 %v1696
      %2694 = vmatpush1.bf16.msra.mxu0 %v1695
      %2695 = vmatprep.subr.bf16.mxu0 %v1700
      %2696 = vmatpush1.bf16.msra.mxu0 %v1699
      %2697 = vmatprep.mubr.bf16.mxu0 %v936
      %2698 = vmatmul.mubr.bf16.gmra.mrb[0].mxu0 %v935
      %v2699 = vpop.f32.mrb[0].mxu0
      %v2700 = vadd.f32 %v2507, %v2699
      %v2701 = vpop.f32.mrb[0].mxu0
      %v2702 = vadd.f32 %v2509, %v2701
      %v2703 = vpop.f32.mrb[0].mxu0
      %v2704 = vadd.f32 %v2511, %v2703
      %v2705 = vpop.f32.mrb[0].mxu0
      %v2706 = vadd.f32 %v2513, %v2705
      %2707 = vmatprep.mubr.bf16.mxu0 %v941
      %2708 = vmatmul.mubr.bf16.gmra.mrb[0].mxu0 %v940
      %v2709 = vpop.f32.mrb[0].mxu0
      %v2710 = vadd.f32 %v2517, %v2709
      %v2711 = vpop.f32.mrb[0].mxu0
      %v2712 = vadd.f32 %v2519, %v2711
      %v2713 = vpop.f32.mrb[0].mxu0
      %v2714 = vadd.f32 %v2521, %v2713
      %v2715 = vpop.f32.mrb[0].mxu0
      %v2716 = vadd.f32 %v2523, %v2715
      %2717 = vmatprep.mubr.bf16.mxu0 %v946
      %2718 = vmatmul.mubr.bf16.gmra.mrb[0].mxu0 %v945
      %v2719 = vpop.f32.mrb[0].mxu0
      %v2720 = vadd.f32 %v2527, %v2719
      %v2721 = vpop.f32.mrb[0].mxu0
      %v2722 = vadd.f32 %v2529, %v2721
      %v2723 = vpop.f32.mrb[0].mxu0
      %v2724 = vadd.f32 %v2531, %v2723
      %v2725 = vpop.f32.mrb[0].mxu0
      %v2726 = vadd.f32 %v2533, %v2725
      %2727 = vmatprep.mubr.bf16.mxu0 %v951
      %2728 = vmatmul.mubr.bf16.gmra.mrb[0].mxu0 %v950
      %v2729 = vpop.f32.mrb[0].mxu0
      %v2730 = vadd.f32 %v2537, %v2729
      %v2731 = vpop.f32.mrb[0].mxu0
      %v2732 = vadd.f32 %v2539, %v2731
      %v2733 = vpop.f32.mrb[0].mxu0
      %v2734 = vadd.f32 %v2541, %v2733
      %v2735 = vpop.f32.mrb[0].mxu0
      %v2736 = vadd.f32 %v2543, %v2735
      %2737 = vmatprep.mubr.bf16.mxu0 %v956
      %2738 = vmatmul.mubr.bf16.gmra.mrb[0].mxu0 %v955
      %v2739 = vpop.f32.mrb[0].mxu0
      %v2740 = vadd.f32 %v2547, %v2739
      %v2741 = vpop.f32.mrb[0].mxu0
      %v2742 = vadd.f32 %v2549, %v2741
      %v2743 = vpop.f32.mrb[0].mxu0
      %v2744 = vadd.f32 %v2551, %v2743
      %v2745 = vpop.f32.mrb[0].mxu0
      %v2746 = vadd.f32 %v2553, %v2745
      %2747 = vmatprep.mubr.bf16.mxu0 %v961
      %2748 = vmatmul.mubr.bf16.gmra.mrb[0].mxu0 %v960
      %v2749 = vpop.f32.mrb[0].mxu0
      %v2750 = vadd.f32 %v2557, %v2749
      %v2751 = vpop.f32.mrb[0].mxu0
      %v2752 = vadd.f32 %v2559, %v2751
      %v2753 = vpop.f32.mrb[0].mxu0
      %v2754 = vadd.f32 %v2561, %v2753
      %v2755 = vpop.f32.mrb[0].mxu0
      %v2756 = vadd.f32 %v2563, %v2755
      %2757 = vmatprep.mubr.bf16.mxu0 %v966
      %2758 = vmatmul.mubr.bf16.gmra.mrb[0].mxu0 %v965
      %v2759 = vpop.f32.mrb[0].mxu0
      %v2760 = vadd.f32 %v2567, %v2759
      %v2761 = vpop.f32.mrb[0].mxu0
      %v2762 = vadd.f32 %v2569, %v2761
      %v2763 = vpop.f32.mrb[0].mxu0
      %v2764 = vadd.f32 %v2571, %v2763
      %v2765 = vpop.f32.mrb[0].mxu0
      %v2766 = vadd.f32 %v2573, %v2765
      %2767 = vmatprep.mubr.bf16.mxu0 %v971
      %2768 = vmatmul.mubr.bf16.gmra.mrb[0].mxu0 %v970
      %v2769 = vpop.f32.mrb[0].mxu0
      %v2770 = vadd.f32 %v2577, %v2769
      %v2771 = vpop.f32.mrb[0].mxu0
      %v2772 = vadd.f32 %v2579, %v2771
      %v2773 = vpop.f32.mrb[0].mxu0
      %v2774 = vadd.f32 %v2581, %v2773
      %v2775 = vpop.f32.mrb[0].mxu0
      %v2776 = vadd.f32 %v2583, %v2775
      %2777 = vmatprep.mubr.bf16.mxu0 %v976
      %2778 = vmatmul.mubr.bf16.gmra.mrb[0].mxu0 %v975
      %v2779 = vpop.f32.mrb[0].mxu0
      %v2780 = vadd.f32 %v2587, %v2779
      %v2781 = vpop.f32.mrb[0].mxu0
      %v2782 = vadd.f32 %v2589, %v2781
      %v2783 = vpop.f32.mrb[0].mxu0
      %v2784 = vadd.f32 %v2591, %v2783
      %v2785 = vpop.f32.mrb[0].mxu0
      %v2786 = vadd.f32 %v2593, %v2785
      %2787 = vmatprep.mubr.bf16.mxu0 %v981
      %2788 = vmatmul.mubr.bf16.gmra.mrb[0].mxu0 %v980
      %v2789 = vpop.f32.mrb[0].mxu0
      %v2790 = vadd.f32 %v2597, %v2789
      %v2791 = vpop.f32.mrb[0].mxu0
      %v2792 = vadd.f32 %v2599, %v2791
      %v2793 = vpop.f32.mrb[0].mxu0
      %v2794 = vadd.f32 %v2601, %v2793
      %v2795 = vpop.f32.mrb[0].mxu0
      %v2796 = vadd.f32 %v2603, %v2795
      %2797 = vmatprep.mubr.bf16.mxu0 %v986
      %2798 = vmatmul.mubr.bf16.gmra.mrb[0].mxu0 %v985
      %v2799 = vpop.f32.mrb[0].mxu0
      %v2800 = vadd.f32 %v2607, %v2799
      %v2801 = vpop.f32.mrb[0].mxu0
      %v2802 = vadd.f32 %v2609, %v2801
      %v2803 = vpop.f32.mrb[0].mxu0
      %v2804 = vadd.f32 %v2611, %v2803
      %v2805 = vpop.f32.mrb[0].mxu0
      %v2806 = vadd.f32 %v2613, %v2805
      %2807 = vmatprep.mubr.bf16.mxu0 %v991
      %2808 = vmatmul.mubr.bf16.gmra.mrb[0].mxu0 %v990
      %v2809 = vpop.f32.mrb[0].mxu0
      %v2810 = vadd.f32 %v2617, %v2809
      %v2811 = vpop.f32.mrb[0].mxu0
      %v2812 = vadd.f32 %v2619, %v2811
      %v2813 = vpop.f32.mrb[0].mxu0
      %v2814 = vadd.f32 %v2621, %v2813
      %v2815 = vpop.f32.mrb[0].mxu0
      %v2816 = vadd.f32 %v2623, %v2815
      %2817 = vmatprep.mubr.bf16.mxu0 %v996
      %2818 = vmatmul.mubr.bf16.gmra.mrb[0].mxu0 %v995
      %v2819 = vpop.f32.mrb[0].mxu0
      %v2820 = vadd.f32 %v2627, %v2819
      %v2821 = vpop.f32.mrb[0].mxu0
      %v2822 = vadd.f32 %v2629, %v2821
      %v2823 = vpop.f32.mrb[0].mxu0
      %v2824 = vadd.f32 %v2631, %v2823
      %v2825 = vpop.f32.mrb[0].mxu0
      %v2826 = vadd.f32 %v2633, %v2825
      %2827 = vmatprep.mubr.bf16.mxu0 %v1001
      %2828 = vmatmul.mubr.bf16.gmra.mrb[0].mxu0 %v1000
      %v2829 = vpop.f32.mrb[0].mxu0
      %v2830 = vadd.f32 %v2637, %v2829
      %v2831 = vpop.f32.mrb[0].mxu0
      %v2832 = vadd.f32 %v2639, %v2831
      %v2833 = vpop.f32.mrb[0].mxu0
      %v2834 = vadd.f32 %v2641, %v2833
      %v2835 = vpop.f32.mrb[0].mxu0
      %v2836 = vadd.f32 %v2643, %v2835
      %2837 = vmatprep.mubr.bf16.mxu0 %v1006
      %2838 = vmatmul.mubr.bf16.gmra.mrb[0].mxu0 %v1005
      %v2839 = vpop.f32.mrb[0].mxu0
      %v2840 = vadd.f32 %v2647, %v2839
      %v2841 = vpop.f32.mrb[0].mxu0
      %v2842 = vadd.f32 %v2649, %v2841
      %v2843 = vpop.f32.mrb[0].mxu0
      %v2844 = vadd.f32 %v2651, %v2843
      %v2845 = vpop.f32.mrb[0].mxu0
      %v2846 = vadd.f32 %v2653, %v2845
      %2847 = vmatprep.mubr.bf16.mxu0 %v1011
      %2848 = vmatmul.mubr.bf16.gmra.mrb[0].mxu0 %v1010
      %v2849 = vpop.f32.mrb[0].mxu0
      %v2850 = vadd.f32 %v2657, %v2849
      %v2851 = vpop.f32.mrb[0].mxu0
      %v2852 = vadd.f32 %v2659, %v2851
      %v2853 = vpop.f32.mrb[0].mxu0
      %v2854 = vadd.f32 %v2661, %v2853
      %v2855 = vpop.f32.mrb[0].mxu0
      %v2856 = vadd.f32 %v2663, %v2855
      %2857 = vdwg.mxu0
      %2858 = vmatprep.subr.bf16.mxu0 %v1704
      %2859 = vmatpush1.bf16.msra.mxu0 %v1703
      %2860 = vmatprep.subr.bf16.mxu0 %v1708
      %2861 = vmatpush1.bf16.msra.mxu0 %v1707
      %2862 = vmatprep.subr.bf16.mxu0 %v1712
      %2863 = vmatpush1.bf16.msra.mxu0 %v1711
      %2864 = vmatprep.subr.bf16.mxu0 %v1716
      %2865 = vmatpush1.bf16.msra.mxu0 %v1715
      %2866 = vmatprep.subr.bf16.mxu0 %v1720
      %2867 = vmatpush1.bf16.msra.mxu0 %v1719
      %2868 = vmatprep.subr.bf16.mxu0 %v1724
      %2869 = vmatpush1.bf16.msra.mxu0 %v1723
      %2870 = vmatprep.subr.bf16.mxu0 %v1728
      %2871 = vmatpush1.bf16.msra.mxu0 %v1727
      %2872 = vmatprep.subr.bf16.mxu0 %v1732
      %2873 = vmatpush1.bf16.msra.mxu0 %v1731
      %2874 = vmatprep.subr.bf16.mxu0 0
      %2875 = vmatpush1.bf16.msra.mxu0 0
      %2876 = vmatprep.subr.bf16.mxu0 0
      %2877 = vmatpush1.bf16.msra.mxu0 0
      %2878 = vmatprep.subr.bf16.mxu0 0
      %2879 = vmatpush1.bf16.msra.mxu0 0
      %2880 = vmatprep.subr.bf16.mxu0 0
      %2881 = vmatpush1.bf16.msra.mxu0 0
      %2882 = vmatprep.subr.bf16.mxu0 0
      %2883 = vmatpush1.bf16.msra.mxu0 0
      %2884 = vmatprep.subr.bf16.mxu0 0
      %2885 = vmatpush1.bf16.msra.mxu0 0
      %2886 = vmatprep.subr.bf16.mxu0 0
      %2887 = vmatpush1.bf16.msra.mxu0 0
      %2888 = vmatprep.subr.bf16.mxu0 0
      %2889 = vmatpush1.bf16.msra.mxu0 0
      %2890 = vmatprep.mubr.bf16.mxu0 0
      %2891 = vmatmul.mubr.bf16.gmra.mrb[0].mxu0 %v937
      %v2892 = vpop.f32.mrb[0].mxu0
      %v2893 = vadd.f32 %v2700, %v2892
      %v2894 = vpop.f32.mrb[0].mxu0
      %v2895 = vadd.f32 %v2702, %v2894
      %v2896 = vpop.f32.mrb[0].mxu0
      %v2897 = vadd.f32 %v2704, %v2896
      %v2898 = vpop.f32.mrb[0].mxu0
      %v2899 = vadd.f32 %v2706, %v2898
      %2900 = vmatprep.mubr.bf16.mxu0 0
      %2901 = vmatmul.mubr.bf16.gmra.mrb[0].mxu0 %v942
      %v2902 = vpop.f32.mrb[0].mxu0
      %v2903 = vadd.f32 %v2710, %v2902
      %v2904 = vpop.f32.mrb[0].mxu0
      %v2905 = vadd.f32 %v2712, %v2904
      %v2906 = vpop.f32.mrb[0].mxu0
      %v2907 = vadd.f32 %v2714, %v2906
      %v2908 = vpop.f32.mrb[0].mxu0
      %v2909 = vadd.f32 %v2716, %v2908
      %2910 = vmatprep.mubr.bf16.mxu0 0
      %2911 = vmatmul.mubr.bf16.gmra.mrb[0].mxu0 %v947
      %v2912 = vpop.f32.mrb[0].mxu0
      %v2913 = vadd.f32 %v2720, %v2912
      %v2914 = vpop.f32.mrb[0].mxu0
      %v2915 = vadd.f32 %v2722, %v2914
      %v2916 = vpop.f32.mrb[0].mxu0
      %v2917 = vadd.f32 %v2724, %v2916
      %v2918 = vpop.f32.mrb[0].mxu0
      %v2919 = vadd.f32 %v2726, %v2918
      %2920 = vmatprep.mubr.bf16.mxu0 0
      %2921 = vmatmul.mubr.bf16.gmra.mrb[0].mxu0 %v952
      %v2922 = vpop.f32.mrb[0].mxu0
      %v2923 = vadd.f32 %v2730, %v2922
      %v2924 = vpop.f32.mrb[0].mxu0
      %v2925 = vadd.f32 %v2732, %v2924
      %v2926 = vpop.f32.mrb[0].mxu0
      %v2927 = vadd.f32 %v2734, %v2926
      %v2928 = vpop.f32.mrb[0].mxu0
      %v2929 = vadd.f32 %v2736, %v2928
      %2930 = vmatprep.mubr.bf16.mxu0 0
      %2931 = vmatmul.mubr.bf16.gmra.mrb[0].mxu0 %v957
      %v2932 = vpop.f32.mrb[0].mxu0
      %v2933 = vadd.f32 %v2740, %v2932
      %v2934 = vpop.f32.mrb[0].mxu0
      %v2935 = vadd.f32 %v2742, %v2934
      %v2936 = vpop.f32.mrb[0].mxu0
      %v2937 = vadd.f32 %v2744, %v2936
      %v2938 = vpop.f32.mrb[0].mxu0
      %v2939 = vadd.f32 %v2746, %v2938
      %2940 = vmatprep.mubr.bf16.mxu0 0
      %2941 = vmatmul.mubr.bf16.gmra.mrb[0].mxu0 %v962
      %v2942 = vpop.f32.mrb[0].mxu0
      %v2943 = vadd.f32 %v2750, %v2942
      %v2944 = vpop.f32.mrb[0].mxu0
      %v2945 = vadd.f32 %v2752, %v2944
      %v2946 = vpop.f32.mrb[0].mxu0
      %v2947 = vadd.f32 %v2754, %v2946
      %v2948 = vpop.f32.mrb[0].mxu0
      %v2949 = vadd.f32 %v2756, %v2948
      %2950 = vmatprep.mubr.bf16.mxu0 0
      %2951 = vmatmul.mubr.bf16.gmra.mrb[0].mxu0 %v967
      %v2952 = vpop.f32.mrb[0].mxu0
      %v2953 = vadd.f32 %v2760, %v2952
      %v2954 = vpop.f32.mrb[0].mxu0
      %v2955 = vadd.f32 %v2762, %v2954
      %v2956 = vpop.f32.mrb[0].mxu0
      %v2957 = vadd.f32 %v2764, %v2956
      %v2958 = vpop.f32.mrb[0].mxu0
      %v2959 = vadd.f32 %v2766, %v2958
      %2960 = vmatprep.mubr.bf16.mxu0 0
      %2961 = vmatmul.mubr.bf16.gmra.mrb[0].mxu0 %v972
      %v2962 = vpop.f32.mrb[0].mxu0
      %v2963 = vadd.f32 %v2770, %v2962
      %v2964 = vpop.f32.mrb[0].mxu0
      %v2965 = vadd.f32 %v2772, %v2964
      %v2966 = vpop.f32.mrb[0].mxu0
      %v2967 = vadd.f32 %v2774, %v2966
      %v2968 = vpop.f32.mrb[0].mxu0
      %v2969 = vadd.f32 %v2776, %v2968
      %2970 = vmatprep.mubr.bf16.mxu0 0
      %2971 = vmatmul.mubr.bf16.gmra.mrb[0].mxu0 %v977
      %v2972 = vpop.f32.mrb[0].mxu0
      %v2973 = vadd.f32 %v2780, %v2972
      %v2974 = vpop.f32.mrb[0].mxu0
      %v2975 = vadd.f32 %v2782, %v2974
      %v2976 = vpop.f32.mrb[0].mxu0
      %v2977 = vadd.f32 %v2784, %v2976
      %v2978 = vpop.f32.mrb[0].mxu0
      %v2979 = vadd.f32 %v2786, %v2978
      %2980 = vmatprep.mubr.bf16.mxu0 0
      %2981 = vmatmul.mubr.bf16.gmra.mrb[0].mxu0 %v982
      %v2982 = vpop.f32.mrb[0].mxu0
      %v2983 = vadd.f32 %v2790, %v2982
      %v2984 = vpop.f32.mrb[0].mxu0
      %v2985 = vadd.f32 %v2792, %v2984
      %v2986 = vpop.f32.mrb[0].mxu0
      %v2987 = vadd.f32 %v2794, %v2986
      %v2988 = vpop.f32.mrb[0].mxu0
      %v2989 = vadd.f32 %v2796, %v2988
      %2990 = vmatprep.mubr.bf16.mxu0 0
      %2991 = vmatmul.mubr.bf16.gmra.mrb[0].mxu0 %v987
      %v2992 = vpop.f32.mrb[0].mxu0
      %v2993 = vadd.f32 %v2800, %v2992
      %v2994 = vpop.f32.mrb[0].mxu0
      %v2995 = vadd.f32 %v2802, %v2994
      %v2996 = vpop.f32.mrb[0].mxu0
      %v2997 = vadd.f32 %v2804, %v2996
      %v2998 = vpop.f32.mrb[0].mxu0
      %v2999 = vadd.f32 %v2806, %v2998
      %3000 = vmatprep.mubr.bf16.mxu0 0
      %3001 = vmatmul.mubr.bf16.gmra.mrb[0].mxu0 %v992
      %v3002 = vpop.f32.mrb[0].mxu0
      %v3003 = vadd.f32 %v2810, %v3002
      %v3004 = vpop.f32.mrb[0].mxu0
      %v3005 = vadd.f32 %v2812, %v3004
      %v3006 = vpop.f32.mrb[0].mxu0
      %v3007 = vadd.f32 %v2814, %v3006
      %v3008 = vpop.f32.mrb[0].mxu0
      %v3009 = vadd.f32 %v2816, %v3008
      %3010 = vmatprep.mubr.bf16.mxu0 0
      %3011 = vmatmul.mubr.bf16.gmra.mrb[0].mxu0 %v997
      %v3012 = vpop.f32.mrb[0].mxu0
      %v3013 = vadd.f32 %v2820, %v3012
      %v3014 = vpop.f32.mrb[0].mxu0
      %v3015 = vadd.f32 %v2822, %v3014
      %v3016 = vpop.f32.mrb[0].mxu0
      %v3017 = vadd.f32 %v2824, %v3016
      %v3018 = vpop.f32.mrb[0].mxu0
      %v3019 = vadd.f32 %v2826, %v3018
      %3020 = vmatprep.mubr.bf16.mxu0 0
      %3021 = vmatmul.mubr.bf16.gmra.mrb[0].mxu0 %v1002
      %v3022 = vpop.f32.mrb[0].mxu0
      %v3023 = vadd.f32 %v2830, %v3022
      %v3024 = vpop.f32.mrb[0].mxu0
      %v3025 = vadd.f32 %v2832, %v3024
      %v3026 = vpop.f32.mrb[0].mxu0
      %v3027 = vadd.f32 %v2834, %v3026
      %v3028 = vpop.f32.mrb[0].mxu0
      %v3029 = vadd.f32 %v2836, %v3028
      %3030 = vmatprep.mubr.bf16.mxu0 0
      %3031 = vmatmul.mubr.bf16.gmra.mrb[0].mxu0 %v1007
      %v3032 = vpop.f32.mrb[0].mxu0
      %v3033 = vadd.f32 %v2840, %v3032
      %v3034 = vpop.f32.mrb[0].mxu0
      %v3035 = vadd.f32 %v2842, %v3034
      %v3036 = vpop.f32.mrb[0].mxu0
      %v3037 = vadd.f32 %v2844, %v3036
      %v3038 = vpop.f32.mrb[0].mxu0
      %v3039 = vadd.f32 %v2846, %v3038
      %3040 = vmatprep.mubr.bf16.mxu0 0
      %3041 = vmatmul.mubr.bf16.gmra.mrb[0].mxu0 %v1012
      %v3042 = vpop.f32.mrb[0].mxu0
      %v3043 = vadd.f32 %v2850, %v3042
      %v3044 = vpop.f32.mrb[0].mxu0
      %v3045 = vadd.f32 %v2852, %v3044
      %v3046 = vpop.f32.mrb[0].mxu0
      %v3047 = vadd.f32 %v2854, %v3046
      %v3048 = vpop.f32.mrb[0].mxu0
      %v3049 = vadd.f32 %v2856, %v3048
      %3050 = vdwg.mxu0
      %v3051 = vxor.u32 %v2314, 2147483648
      %v3052 = vxor.u32 %v2318, 2147483648
      %v3053 = vxor.u32 %v2324, 2147483648
      %v3054 = vxor.u32 %v2328, 2147483648
      %v3055 = vxor.u32 %v2334, 2147483648
      %v3056 = vxor.u32 %v2338, 2147483648
      %v3057 = vxor.u32 %v2344, 2147483648
      %v3058 = vxor.u32 %v2348, 2147483648
      %v3059 = vxor.u32 %v2354, 2147483648
      %v3060 = vxor.u32 %v2358, 2147483648
      %v3061 = vxor.u32 %v2364, 2147483648
      %v3062 = vxor.u32 %v2368, 2147483648
      %v3063 = vxor.u32 %v2374, 2147483648
      %v3064 = vxor.u32 %v2378, 2147483648
      %v3065 = vxor.u32 %v2384, 2147483648
      %v3066 = vxor.u32 %v2388, 2147483648
      %v3067 = vxor.u32 %v2394, 2147483648
      %v3068 = vxor.u32 %v2398, 2147483648
      %v3069 = vxor.u32 %v2404, 2147483648
      %v3070 = vxor.u32 %v2408, 2147483648
      %v3071 = vxor.u32 %v2414, 2147483648
      %v3072 = vxor.u32 %v2418, 2147483648
      %v3073 = vxor.u32 %v2424, 2147483648
      %v3074 = vxor.u32 %v2428, 2147483648
      %v3075 = vxor.u32 %v2434, 2147483648
      %v3076 = vxor.u32 %v2438, 2147483648
      %v3077 = vxor.u32 %v2444, 2147483648
      %v3078 = vxor.u32 %v2448, 2147483648
      %v3079 = vxor.u32 %v2454, 2147483648
      %v3080 = vxor.u32 %v2458, 2147483648
      %v3081 = vxor.u32 %v2464, 2147483648
      %v3082 = vxor.u32 %v2468, 2147483648
      %v3083 = vmul.f32 %v3051, 1.442695
      %v3084 = vpow.pop %v3083
      %v3085 = vmul.f32 %v3052, 1.442695
      %v3086 = vpow.pop %v3085
      %v3087 = vmul.f32 %v3053, 1.442695
      %v3088 = vpow.pop %v3087
      %v3089 = vmul.f32 %v3054, 1.442695
      %v3090 = vpow.pop %v3089
      %v3091 = vmul.f32 %v3055, 1.442695
      %v3092 = vpow.pop %v3091
      %v3093 = vmul.f32 %v3056, 1.442695
      %v3094 = vpow.pop %v3093
      %v3095 = vmul.f32 %v3057, 1.442695
      %v3096 = vpow.pop %v3095
      %v3097 = vmul.f32 %v3058, 1.442695
      %v3098 = vpow.pop %v3097
      %v3099 = vmul.f32 %v3059, 1.442695
      %v3100 = vpow.pop %v3099
      %v3101 = vmul.f32 %v3060, 1.442695
      %v3102 = vpow.pop %v3101
      %v3103 = vmul.f32 %v3061, 1.442695
      %v3104 = vpow.pop %v3103
      %v3105 = vmul.f32 %v3062, 1.442695
      %v3106 = vpow.pop %v3105
      %v3107 = vmul.f32 %v3063, 1.442695
      %v3108 = vpow.pop %v3107
      %v3109 = vmul.f32 %v3064, 1.442695
      %v3110 = vpow.pop %v3109
      %v3111 = vmul.f32 %v3065, 1.442695
      %v3112 = vpow.pop %v3111
      %v3113 = vmul.f32 %v3066, 1.442695
      %v3114 = vpow.pop %v3113
      %v3115 = vmul.f32 %v3067, 1.442695
      %v3116 = vpow.pop %v3115
      %v3117 = vmul.f32 %v3068, 1.442695
      %v3118 = vpow.pop %v3117
      %v3119 = vmul.f32 %v3069, 1.442695
      %v3120 = vpow.pop %v3119
      %v3121 = vmul.f32 %v3070, 1.442695
      %v3122 = vpow.pop %v3121
      %v3123 = vmul.f32 %v3071, 1.442695
      %v3124 = vpow.pop %v3123
      %v3125 = vmul.f32 %v3072, 1.442695
      %v3126 = vpow.pop %v3125
      %v3127 = vmul.f32 %v3073, 1.442695
      %v3128 = vpow.pop %v3127
      %v3129 = vmul.f32 %v3074, 1.442695
      %v3130 = vpow.pop %v3129
      %v3131 = vmul.f32 %v3075, 1.442695
      %v3132 = vpow.pop %v3131
      %v3133 = vmul.f32 %v3076, 1.442695
      %v3134 = vpow.pop %v3133
      %v3135 = vmul.f32 %v3077, 1.442695
      %v3136 = vpow.pop %v3135
      %v3137 = vmul.f32 %v3078, 1.442695
      %v3138 = vpow.pop %v3137
      %v3139 = vmul.f32 %v3079, 1.442695
      %v3140 = vpow.pop %v3139
      %v3141 = vmul.f32 %v3080, 1.442695
      %v3142 = vpow.pop %v3141
      %v3143 = vmul.f32 %v3081, 1.442695
      %v3144 = vpow.pop %v3143
      %v3145 = vmul.f32 %v3082, 1.442695
      %v3146 = vpow.pop %v3145
      %v3147 = vadd.f32 %v3084, 1.0
      %v3148 = vadd.f32 %v3086, 1.0
      %v3149 = vadd.f32 %v3088, 1.0
      %v3150 = vadd.f32 %v3090, 1.0
      %v3151 = vadd.f32 %v3092, 1.0
      %v3152 = vadd.f32 %v3094, 1.0
      %v3153 = vadd.f32 %v3096, 1.0
      %v3154 = vadd.f32 %v3098, 1.0
      %v3155 = vadd.f32 %v3100, 1.0
      %v3156 = vadd.f32 %v3102, 1.0
      %v3157 = vadd.f32 %v3104, 1.0
      %v3158 = vadd.f32 %v3106, 1.0
      %v3159 = vadd.f32 %v3108, 1.0
      %v3160 = vadd.f32 %v3110, 1.0
      %v3161 = vadd.f32 %v3112, 1.0
      %v3162 = vadd.f32 %v3114, 1.0
      %v3163 = vadd.f32 %v3116, 1.0
      %v3164 = vadd.f32 %v3118, 1.0
      %v3165 = vadd.f32 %v3120, 1.0
      %v3166 = vadd.f32 %v3122, 1.0
      %v3167 = vadd.f32 %v3124, 1.0
      %v3168 = vadd.f32 %v3126, 1.0
      %v3169 = vadd.f32 %v3128, 1.0
      %v3170 = vadd.f32 %v3130, 1.0
      %v3171 = vadd.f32 %v3132, 1.0
      %v3172 = vadd.f32 %v3134, 1.0
      %v3173 = vadd.f32 %v3136, 1.0
      %v3174 = vadd.f32 %v3138, 1.0
      %v3175 = vadd.f32 %v3140, 1.0
      %v3176 = vadd.f32 %v3142, 1.0
      %v3177 = vadd.f32 %v3144, 1.0
      %v3178 = vadd.f32 %v3146, 1.0
      %v3179 = vrcp.pop %v3147
      %v3180 = vmul.f32 1.0, %v3179
      %v3181 = vrcp.pop %v3148
      %v3182 = vmul.f32 1.0, %v3181
      %v3183 = vrcp.pop %v3149
      %v3184 = vmul.f32 1.0, %v3183
      %v3185 = vrcp.pop %v3150
      %v3186 = vmul.f32 1.0, %v3185
      %v3187 = vrcp.pop %v3151
      %v3188 = vmul.f32 1.0, %v3187
      %v3189 = vrcp.pop %v3152
      %v3190 = vmul.f32 1.0, %v3189
      %v3191 = vrcp.pop %v3153
      %v3192 = vmul.f32 1.0, %v3191
      %v3193 = vrcp.pop %v3154
      %v3194 = vmul.f32 1.0, %v3193
      %v3195 = vrcp.pop %v3155
      %v3196 = vmul.f32 1.0, %v3195
      %v3197 = vrcp.pop %v3156
      %v3198 = vmul.f32 1.0, %v3197
      %v3199 = vrcp.pop %v3157
      %v3200 = vmul.f32 1.0, %v3199
      %v3201 = vrcp.pop %v3158
      %v3202 = vmul.f32 1.0, %v3201
      %v3203 = vrcp.pop %v3159
      %v3204 = vmul.f32 1.0, %v3203
      %v3205 = vrcp.pop %v3160
      %v3206 = vmul.f32 1.0, %v3205
      %v3207 = vrcp.pop %v3161
      %v3208 = vmul.f32 1.0, %v3207
      %v3209 = vrcp.pop %v3162
      %v3210 = vmul.f32 1.0, %v3209
      %v3211 = vrcp.pop %v3163
      %v3212 = vmul.f32 1.0, %v3211
      %v3213 = vrcp.pop %v3164
      %v3214 = vmul.f32 1.0, %v3213
      %v3215 = vrcp.pop %v3165
      %v3216 = vmul.f32 1.0, %v3215
      %v3217 = vrcp.pop %v3166
      %v3218 = vmul.f32 1.0, %v3217
      %v3219 = vrcp.pop %v3167
      %v3220 = vmul.f32 1.0, %v3219
      %v3221 = vrcp.pop %v3168
      %v3222 = vmul.f32 1.0, %v3221
      %v3223 = vrcp.pop %v3169
      %v3224 = vmul.f32 1.0, %v3223
      %v3225 = vrcp.pop %v3170
      %v3226 = vmul.f32 1.0, %v3225
      %v3227 = vrcp.pop %v3171
      %v3228 = vmul.f32 1.0, %v3227
      %v3229 = vrcp.pop %v3172
      %v3230 = vmul.f32 1.0, %v3229
      %v3231 = vrcp.pop %v3173
      %v3232 = vmul.f32 1.0, %v3231
      %v3233 = vrcp.pop %v3174
      %v3234 = vmul.f32 1.0, %v3233
      %v3235 = vrcp.pop %v3175
      %v3236 = vmul.f32 1.0, %v3235
      %v3237 = vrcp.pop %v3176
      %v3238 = vmul.f32 1.0, %v3237
      %v3239 = vrcp.pop %v3177
      %v3240 = vmul.f32 1.0, %v3239
      %v3241 = vrcp.pop %v3178
      %v3242 = vmul.f32 1.0, %v3241
      %v3243 = vxor.u32 %v2316, 2147483648
      %v3244 = vxor.u32 %v2320, 2147483648
      %v3245 = vxor.u32 %v2326, 2147483648
      %v3246 = vxor.u32 %v2330, 2147483648
      %v3247 = vxor.u32 %v2336, 2147483648
      %v3248 = vxor.u32 %v2340, 2147483648
      %v3249 = vxor.u32 %v2346, 2147483648
      %v3250 = vxor.u32 %v2350, 2147483648
      %v3251 = vxor.u32 %v2356, 2147483648
      %v3252 = vxor.u32 %v2360, 2147483648
      %v3253 = vxor.u32 %v2366, 2147483648
      %v3254 = vxor.u32 %v2370, 2147483648
      %v3255 = vxor.u32 %v2376, 2147483648
      %v3256 = vxor.u32 %v2380, 2147483648
      %v3257 = vxor.u32 %v2386, 2147483648
      %v3258 = vxor.u32 %v2390, 2147483648
      %v3259 = vxor.u32 %v2396, 2147483648
      %v3260 = vxor.u32 %v2400, 2147483648
      %v3261 = vxor.u32 %v2406, 2147483648
      %v3262 = vxor.u32 %v2410, 2147483648
      %v3263 = vxor.u32 %v2416, 2147483648
      %v3264 = vxor.u32 %v2420, 2147483648
      %v3265 = vxor.u32 %v2426, 2147483648
      %v3266 = vxor.u32 %v2430, 2147483648
      %v3267 = vxor.u32 %v2436, 2147483648
      %v3268 = vxor.u32 %v2440, 2147483648
      %v3269 = vxor.u32 %v2446, 2147483648
      %v3270 = vxor.u32 %v2450, 2147483648
      %v3271 = vxor.u32 %v2456, 2147483648
      %v3272 = vxor.u32 %v2460, 2147483648
      %v3273 = vxor.u32 %v2466, 2147483648
      %v3274 = vxor.u32 %v2470, 2147483648
      %v3275 = vmul.f32 %v3243, 1.442695
      %v3276 = vpow.pop %v3275
      %v3277 = vmul.f32 %v3244, 1.442695
      %v3278 = vpow.pop %v3277
      %v3279 = vmul.f32 %v3245, 1.442695
      %v3280 = vpow.pop %v3279
      %v3281 = vmul.f32 %v3246, 1.442695
      %v3282 = vpow.pop %v3281
      %v3283 = vmul.f32 %v3247, 1.442695
      %v3284 = vpow.pop %v3283
      %v3285 = vmul.f32 %v3248, 1.442695
      %v3286 = vpow.pop %v3285
      %v3287 = vmul.f32 %v3249, 1.442695
      %v3288 = vpow.pop %v3287
      %v3289 = vmul.f32 %v3250, 1.442695
      %v3290 = vpow.pop %v3289
      %v3291 = vmul.f32 %v3251, 1.442695
      %v3292 = vpow.pop %v3291
      %v3293 = vmul.f32 %v3252, 1.442695
      %v3294 = vpow.pop %v3293
      %v3295 = vmul.f32 %v3253, 1.442695
      %v3296 = vpow.pop %v3295
      %v3297 = vmul.f32 %v3254, 1.442695
      %v3298 = vpow.pop %v3297
      %v3299 = vmul.f32 %v3255, 1.442695
      %v3300 = vpow.pop %v3299
      %v3301 = vmul.f32 %v3256, 1.442695
      %v3302 = vpow.pop %v3301
      %v3303 = vmul.f32 %v3257, 1.442695
      %v3304 = vpow.pop %v3303
      %v3305 = vmul.f32 %v3258, 1.442695
      %v3306 = vpow.pop %v3305
      %v3307 = vmul.f32 %v3259, 1.442695
      %v3308 = vpow.pop %v3307
      %v3309 = vmul.f32 %v3260, 1.442695
      %v3310 = vpow.pop %v3309
      %v3311 = vmul.f32 %v3261, 1.442695
      %v3312 = vpow.pop %v3311
      %v3313 = vmul.f32 %v3262, 1.442695
      %v3314 = vpow.pop %v3313
      %v3315 = vmul.f32 %v3263, 1.442695
      %v3316 = vpow.pop %v3315
      %v3317 = vmul.f32 %v3264, 1.442695
      %v3318 = vpow.pop %v3317
      %v3319 = vmul.f32 %v3265, 1.442695
      %v3320 = vpow.pop %v3319
      %v3321 = vmul.f32 %v3266, 1.442695
      %v3322 = vpow.pop %v3321
      %v3323 = vmul.f32 %v3267, 1.442695
      %v3324 = vpow.pop %v3323
      %v3325 = vmul.f32 %v3268, 1.442695
      %v3326 = vpow.pop %v3325
      %v3327 = vmul.f32 %v3269, 1.442695
      %v3328 = vpow.pop %v3327
      %v3329 = vmul.f32 %v3270, 1.442695
      %v3330 = vpow.pop %v3329
      %v3331 = vmul.f32 %v3271, 1.442695
      %v3332 = vpow.pop %v3331
      %v3333 = vmul.f32 %v3272, 1.442695
      %v3334 = vpow.pop %v3333
      %v3335 = vmul.f32 %v3273, 1.442695
      %v3336 = vpow.pop %v3335
      %v3337 = vmul.f32 %v3274, 1.442695
      %v3338 = vpow.pop %v3337
      %v3339 = vadd.f32 %v3276, 1.0
      %v3340 = vadd.f32 %v3278, 1.0
      %v3341 = vadd.f32 %v3280, 1.0
      %v3342 = vadd.f32 %v3282, 1.0
      %v3343 = vadd.f32 %v3284, 1.0
      %v3344 = vadd.f32 %v3286, 1.0
      %v3345 = vadd.f32 %v3288, 1.0
      %v3346 = vadd.f32 %v3290, 1.0
      %v3347 = vadd.f32 %v3292, 1.0
      %v3348 = vadd.f32 %v3294, 1.0
      %v3349 = vadd.f32 %v3296, 1.0
      %v3350 = vadd.f32 %v3298, 1.0
      %v3351 = vadd.f32 %v3300, 1.0
      %v3352 = vadd.f32 %v3302, 1.0
      %v3353 = vadd.f32 %v3304, 1.0
      %v3354 = vadd.f32 %v3306, 1.0
      %v3355 = vadd.f32 %v3308, 1.0
      %v3356 = vadd.f32 %v3310, 1.0
      %v3357 = vadd.f32 %v3312, 1.0
      %v3358 = vadd.f32 %v3314, 1.0
      %v3359 = vadd.f32 %v3316, 1.0
      %v3360 = vadd.f32 %v3318, 1.0
      %v3361 = vadd.f32 %v3320, 1.0
      %v3362 = vadd.f32 %v3322, 1.0
      %v3363 = vadd.f32 %v3324, 1.0
      %v3364 = vadd.f32 %v3326, 1.0
      %v3365 = vadd.f32 %v3328, 1.0
      %v3366 = vadd.f32 %v3330, 1.0
      %v3367 = vadd.f32 %v3332, 1.0
      %v3368 = vadd.f32 %v3334, 1.0
      %v3369 = vadd.f32 %v3336, 1.0
      %v3370 = vadd.f32 %v3338, 1.0
      %v3371 = vrcp.pop %v3339
      %v3372 = vmul.f32 1.0, %v3371
      %v3373 = vrcp.pop %v3340
      %v3374 = vmul.f32 1.0, %v3373
      %v3375 = vrcp.pop %v3341
      %v3376 = vmul.f32 1.0, %v3375
      %v3377 = vrcp.pop %v3342
      %v3378 = vmul.f32 1.0, %v3377
      %v3379 = vrcp.pop %v3343
      %v3380 = vmul.f32 1.0, %v3379
      %v3381 = vrcp.pop %v3344
      %v3382 = vmul.f32 1.0, %v3381
      %v3383 = vrcp.pop %v3345
      %v3384 = vmul.f32 1.0, %v3383
      %v3385 = vrcp.pop %v3346
      %v3386 = vmul.f32 1.0, %v3385
      %v3387 = vrcp.pop %v3347
      %v3388 = vmul.f32 1.0, %v3387
      %v3389 = vrcp.pop %v3348
      %v3390 = vmul.f32 1.0, %v3389
      %v3391 = vrcp.pop %v3349
      %v3392 = vmul.f32 1.0, %v3391
      %v3393 = vrcp.pop %v3350
      %v3394 = vmul.f32 1.0, %v3393
      %v3395 = vrcp.pop %v3351
      %v3396 = vmul.f32 1.0, %v3395
      %v3397 = vrcp.pop %v3352
      %v3398 = vmul.f32 1.0, %v3397
      %v3399 = vrcp.pop %v3353
      %v3400 = vmul.f32 1.0, %v3399
      %v3401 = vrcp.pop %v3354
      %v3402 = vmul.f32 1.0, %v3401
      %v3403 = vrcp.pop %v3355
      %v3404 = vmul.f32 1.0, %v3403
      %v3405 = vrcp.pop %v3356
      %v3406 = vmul.f32 1.0, %v3405
      %v3407 = vrcp.pop %v3357
      %v3408 = vmul.f32 1.0, %v3407
      %v3409 = vrcp.pop %v3358
      %v3410 = vmul.f32 1.0, %v3409
      %v3411 = vrcp.pop %v3359
      %v3412 = vmul.f32 1.0, %v3411
      %v3413 = vrcp.pop %v3360
      %v3414 = vmul.f32 1.0, %v3413
      %v3415 = vrcp.pop %v3361
      %v3416 = vmul.f32 1.0, %v3415
      %v3417 = vrcp.pop %v3362
      %v3418 = vmul.f32 1.0, %v3417
      %v3419 = vrcp.pop %v3363
      %v3420 = vmul.f32 1.0, %v3419
      %v3421 = vrcp.pop %v3364
      %v3422 = vmul.f32 1.0, %v3421
      %v3423 = vrcp.pop %v3365
      %v3424 = vmul.f32 1.0, %v3423
      %v3425 = vrcp.pop %v3366
      %v3426 = vmul.f32 1.0, %v3425
      %v3427 = vrcp.pop %v3367
      %v3428 = vmul.f32 1.0, %v3427
      %v3429 = vrcp.pop %v3368
      %v3430 = vmul.f32 1.0, %v3429
      %v3431 = vrcp.pop %v3369
      %v3432 = vmul.f32 1.0, %v3431
      %v3433 = vrcp.pop %v3370
      %v3434 = vmul.f32 1.0, %v3433
      %v3435 = vxor.u32 %v2895, 2147483648
      %v3436 = vxor.u32 %v2899, 2147483648
      %v3437 = vxor.u32 %v2905, 2147483648
      %v3438 = vxor.u32 %v2909, 2147483648
      %v3439 = vxor.u32 %v2915, 2147483648
      %v3440 = vxor.u32 %v2919, 2147483648
      %v3441 = vxor.u32 %v2925, 2147483648
      %v3442 = vxor.u32 %v2929, 2147483648
      %v3443 = vxor.u32 %v2935, 2147483648
      %v3444 = vxor.u32 %v2939, 2147483648
      %v3445 = vxor.u32 %v2945, 2147483648
      %v3446 = vxor.u32 %v2949, 2147483648
      %v3447 = vxor.u32 %v2955, 2147483648
      %v3448 = vxor.u32 %v2959, 2147483648
      %v3449 = vxor.u32 %v2965, 2147483648
      %v3450 = vxor.u32 %v2969, 2147483648
      %v3451 = vxor.u32 %v2975, 2147483648
      %v3452 = vxor.u32 %v2979, 2147483648
      %v3453 = vxor.u32 %v2985, 2147483648
      %v3454 = vxor.u32 %v2989, 2147483648
      %v3455 = vxor.u32 %v2995, 2147483648
      %v3456 = vxor.u32 %v2999, 2147483648
      %v3457 = vxor.u32 %v3005, 2147483648
      %v3458 = vxor.u32 %v3009, 2147483648
      %v3459 = vxor.u32 %v3015, 2147483648
      %v3460 = vxor.u32 %v3019, 2147483648
      %v3461 = vxor.u32 %v3025, 2147483648
      %v3462 = vxor.u32 %v3029, 2147483648
      %v3463 = vxor.u32 %v3035, 2147483648
      %v3464 = vxor.u32 %v3039, 2147483648
      %v3465 = vxor.u32 %v3045, 2147483648
      %v3466 = vxor.u32 %v3049, 2147483648
      %v3467 = vmul.f32 %v3435, 1.442695
      %v3468 = vpow.pop %v3467
      %v3469 = vmul.f32 %v3436, 1.442695
      %v3470 = vpow.pop %v3469
      %v3471 = vmul.f32 %v3437, 1.442695
      %v3472 = vpow.pop %v3471
      %v3473 = vmul.f32 %v3438, 1.442695
      %v3474 = vpow.pop %v3473
      %v3475 = vmul.f32 %v3439, 1.442695
      %v3476 = vpow.pop %v3475
      %v3477 = vmul.f32 %v3440, 1.442695
      %v3478 = vpow.pop %v3477
      %v3479 = vmul.f32 %v3441, 1.442695
      %v3480 = vpow.pop %v3479
      %v3481 = vmul.f32 %v3442, 1.442695
      %v3482 = vpow.pop %v3481
      %v3483 = vmul.f32 %v3443, 1.442695
      %v3484 = vpow.pop %v3483
      %v3485 = vmul.f32 %v3444, 1.442695
      %v3486 = vpow.pop %v3485
      %v3487 = vmul.f32 %v3445, 1.442695
      %v3488 = vpow.pop %v3487
      %v3489 = vmul.f32 %v3446, 1.442695
      %v3490 = vpow.pop %v3489
      %v3491 = vmul.f32 %v3447, 1.442695
      %v3492 = vpow.pop %v3491
      %v3493 = vmul.f32 %v3448, 1.442695
      %v3494 = vpow.pop %v3493
      %v3495 = vmul.f32 %v3449, 1.442695
      %v3496 = vpow.pop %v3495
      %v3497 = vmul.f32 %v3450, 1.442695
      %v3498 = vpow.pop %v3497
      %v3499 = vmul.f32 %v3451, 1.442695
      %v3500 = vpow.pop %v3499
      %v3501 = vmul.f32 %v3452, 1.442695
      %v3502 = vpow.pop %v3501
      %v3503 = vmul.f32 %v3453, 1.442695
      %v3504 = vpow.pop %v3503
      %v3505 = vmul.f32 %v3454, 1.442695
      %v3506 = vpow.pop %v3505
      %v3507 = vmul.f32 %v3455, 1.442695
      %v3508 = vpow.pop %v3507
      %v3509 = vmul.f32 %v3456, 1.442695
      %v3510 = vpow.pop %v3509
      %v3511 = vmul.f32 %v3457, 1.442695
      %v3512 = vpow.pop %v3511
      %v3513 = vmul.f32 %v3458, 1.442695
      %v3514 = vpow.pop %v3513
      %v3515 = vmul.f32 %v3459, 1.442695
      %v3516 = vpow.pop %v3515
      %v3517 = vmul.f32 %v3460, 1.442695
      %v3518 = vpow.pop %v3517
      %v3519 = vmul.f32 %v3461, 1.442695
      %v3520 = vpow.pop %v3519
      %v3521 = vmul.f32 %v3462, 1.442695
      %v3522 = vpow.pop %v3521
      %v3523 = vmul.f32 %v3463, 1.442695
      %v3524 = vpow.pop %v3523
      %v3525 = vmul.f32 %v3464, 1.442695
      %v3526 = vpow.pop %v3525
      %v3527 = vmul.f32 %v3465, 1.442695
      %v3528 = vpow.pop %v3527
      %v3529 = vmul.f32 %v3466, 1.442695
      %v3530 = vpow.pop %v3529
      %v3531 = vadd.f32 %v3468, 1.0
      %v3532 = vadd.f32 %v3470, 1.0
      %v3533 = vadd.f32 %v3472, 1.0
      %v3534 = vadd.f32 %v3474, 1.0
      %v3535 = vadd.f32 %v3476, 1.0
      %v3536 = vadd.f32 %v3478, 1.0
      %v3537 = vadd.f32 %v3480, 1.0
      %v3538 = vadd.f32 %v3482, 1.0
      %v3539 = vadd.f32 %v3484, 1.0
      %v3540 = vadd.f32 %v3486, 1.0
      %v3541 = vadd.f32 %v3488, 1.0
      %v3542 = vadd.f32 %v3490, 1.0
      %v3543 = vadd.f32 %v3492, 1.0
      %v3544 = vadd.f32 %v3494, 1.0
      %v3545 = vadd.f32 %v3496, 1.0
      %v3546 = vadd.f32 %v3498, 1.0
      %v3547 = vadd.f32 %v3500, 1.0
      %v3548 = vadd.f32 %v3502, 1.0
      %v3549 = vadd.f32 %v3504, 1.0
      %v3550 = vadd.f32 %v3506, 1.0
      %v3551 = vadd.f32 %v3508, 1.0
      %v3552 = vadd.f32 %v3510, 1.0
      %v3553 = vadd.f32 %v3512, 1.0
      %v3554 = vadd.f32 %v3514, 1.0
      %v3555 = vadd.f32 %v3516, 1.0
      %v3556 = vadd.f32 %v3518, 1.0
      %v3557 = vadd.f32 %v3520, 1.0
      %v3558 = vadd.f32 %v3522, 1.0
      %v3559 = vadd.f32 %v3524, 1.0
      %v3560 = vadd.f32 %v3526, 1.0
      %v3561 = vadd.f32 %v3528, 1.0
      %v3562 = vadd.f32 %v3530, 1.0
      %v3563 = vrcp.pop %v3531
      %v3564 = vmul.f32 1.0, %v3563
      %v3565 = vrcp.pop %v3532
      %v3566 = vmul.f32 1.0, %v3565
      %v3567 = vrcp.pop %v3533
      %v3568 = vmul.f32 1.0, %v3567
      %v3569 = vrcp.pop %v3534
      %v3570 = vmul.f32 1.0, %v3569
      %v3571 = vrcp.pop %v3535
      %v3572 = vmul.f32 1.0, %v3571
      %v3573 = vrcp.pop %v3536
      %v3574 = vmul.f32 1.0, %v3573
      %v3575 = vrcp.pop %v3537
      %v3576 = vmul.f32 1.0, %v3575
      %v3577 = vrcp.pop %v3538
      %v3578 = vmul.f32 1.0, %v3577
      %v3579 = vrcp.pop %v3539
      %v3580 = vmul.f32 1.0, %v3579
      %v3581 = vrcp.pop %v3540
      %v3582 = vmul.f32 1.0, %v3581
      %v3583 = vrcp.pop %v3541
      %v3584 = vmul.f32 1.0, %v3583
      %v3585 = vrcp.pop %v3542
      %v3586 = vmul.f32 1.0, %v3585
      %v3587 = vrcp.pop %v3543
      %v3588 = vmul.f32 1.0, %v3587
      %v3589 = vrcp.pop %v3544
      %v3590 = vmul.f32 1.0, %v3589
      %v3591 = vrcp.pop %v3545
      %v3592 = vmul.f32 1.0, %v3591
      %v3593 = vrcp.pop %v3546
      %v3594 = vmul.f32 1.0, %v3593
      %v3595 = vrcp.pop %v3547
      %v3596 = vmul.f32 1.0, %v3595
      %v3597 = vrcp.pop %v3548
      %v3598 = vmul.f32 1.0, %v3597
      %v3599 = vrcp.pop %v3549
      %v3600 = vmul.f32 1.0, %v3599
      %v3601 = vrcp.pop %v3550
      %v3602 = vmul.f32 1.0, %v3601
      %v3603 = vrcp.pop %v3551
      %v3604 = vmul.f32 1.0, %v3603
      %v3605 = vrcp.pop %v3552
      %v3606 = vmul.f32 1.0, %v3605
      %v3607 = vrcp.pop %v3553
      %v3608 = vmul.f32 1.0, %v3607
      %v3609 = vrcp.pop %v3554
      %v3610 = vmul.f32 1.0, %v3609
      %v3611 = vrcp.pop %v3555
      %v3612 = vmul.f32 1.0, %v3611
      %v3613 = vrcp.pop %v3556
      %v3614 = vmul.f32 1.0, %v3613
      %v3615 = vrcp.pop %v3557
      %v3616 = vmul.f32 1.0, %v3615
      %v3617 = vrcp.pop %v3558
      %v3618 = vmul.f32 1.0, %v3617
      %v3619 = vrcp.pop %v3559
      %v3620 = vmul.f32 1.0, %v3619
      %v3621 = vrcp.pop %v3560
      %v3622 = vmul.f32 1.0, %v3621
      %v3623 = vrcp.pop %v3561
      %v3624 = vmul.f32 1.0, %v3623
      %v3625 = vrcp.pop %v3562
      %v3626 = vmul.f32 1.0, %v3625
      %v3627 = vld [vmem:[%s278] sm:$0xff]
      %v3628 = vld [vmem:[%s278 + $0x8] sm:$0xff]
      %v3629 = vld [vmem:[%s278 + $0x10] sm:$0xff]
      %v3630 = vld [vmem:[%s278 + $0x18] sm:$0xff]
      %v3631 = vld [vmem:[%s278 + $0x20] sm:$0xff]
      %v3632 = vld [vmem:[%s278 + $0x28] sm:$0xff]
      %v3633 = vld [vmem:[%s278 + $0x30] sm:$0xff]
      %v3634 = vld [vmem:[%s278 + $0x38] sm:$0xff]
      %v3635 = vld [vmem:[%s278 + $0x40] sm:$0xff]
      %v3636 = vld [vmem:[%s278 + $0x48] sm:$0xff]
      %v3637 = vld [vmem:[%s278 + $0x50] sm:$0xff]
      %v3638 = vld [vmem:[%s278 + $0x58] sm:$0xff]
      %v3639 = vld [vmem:[%s278 + $0x60] sm:$0xff]
      %v3640 = vld [vmem:[%s278 + $0x68] sm:$0xff]
      %v3641 = vld [vmem:[%s278 + $0x70] sm:$0xff]
      %v3642 = vld [vmem:[%s278 + $0x78] sm:$0xff]
      %v3643 = vld [vmem:[%s278 + $0x80] sm:$0xff]
      %v3644 = vld [vmem:[%s278 + $0x88] sm:$0xff]
      %v3645 = vld [vmem:[%s278 + $0x90] sm:$0xff]
      %v3646 = vld [vmem:[%s278 + $0x98] sm:$0xff]
      %v3647 = vld [vmem:[%s278 + $0xa0] sm:$0xff]
      %v3648 = vld [vmem:[%s278 + $0xa8] sm:$0xff]
      %v3649 = vld [vmem:[%s278 + $0xb0] sm:$0xff]
      %v3650 = vld [vmem:[%s278 + $0xb8] sm:$0xff]
      %v3651 = vld [vmem:[%s278 + $0xc0] sm:$0xff]
      %v3652 = vld [vmem:[%s278 + $0xc8] sm:$0xff]
      %v3653 = vld [vmem:[%s278 + $0xd0] sm:$0xff]
      %v3654 = vld [vmem:[%s278 + $0xd8] sm:$0xff]
      %v3655 = vld [vmem:[%s278 + $0xe0] sm:$0xff]
      %v3656 = vld [vmem:[%s278 + $0xe8] sm:$0xff]
      %v3657 = vld [vmem:[%s278 + $0xf0] sm:$0xff]
      %v3658 = vld [vmem:[%s278 + $0xf8] sm:$0xff]
      %v3659 = vmul.f32 %v3372, %v3627
      %v3660 = vmul.f32 %v3374, %v3628
      %v3661 = vmul.f32 %v3376, %v3629
      %v3662 = vmul.f32 %v3378, %v3630
      %v3663 = vmul.f32 %v3380, %v3631
      %v3664 = vmul.f32 %v3382, %v3632
      %v3665 = vmul.f32 %v3384, %v3633
      %v3666 = vmul.f32 %v3386, %v3634
      %v3667 = vmul.f32 %v3388, %v3635
      %v3668 = vmul.f32 %v3390, %v3636
      %v3669 = vmul.f32 %v3392, %v3637
      %v3670 = vmul.f32 %v3394, %v3638
      %v3671 = vmul.f32 %v3396, %v3639
      %v3672 = vmul.f32 %v3398, %v3640
      %v3673 = vmul.f32 %v3400, %v3641
      %v3674 = vmul.f32 %v3402, %v3642
      %v3675 = vmul.f32 %v3404, %v3643
      %v3676 = vmul.f32 %v3406, %v3644
      %v3677 = vmul.f32 %v3408, %v3645
      %v3678 = vmul.f32 %v3410, %v3646
      %v3679 = vmul.f32 %v3412, %v3647
      %v3680 = vmul.f32 %v3414, %v3648
      %v3681 = vmul.f32 %v3416, %v3649
      %v3682 = vmul.f32 %v3418, %v3650
      %v3683 = vmul.f32 %v3420, %v3651
      %v3684 = vmul.f32 %v3422, %v3652
      %v3685 = vmul.f32 %v3424, %v3653
      %v3686 = vmul.f32 %v3426, %v3654
      %v3687 = vmul.f32 %v3428, %v3655
      %v3688 = vmul.f32 %v3430, %v3656
      %v3689 = vmul.f32 %v3432, %v3657
      %v3690 = vmul.f32 %v3434, %v3658
      %v3691 = vmul.f32 %v3180, %v2893
      %v3692 = vmul.f32 %v3182, %v2897
      %v3693 = vmul.f32 %v3184, %v2903
      %v3694 = vmul.f32 %v3186, %v2907
      %v3695 = vmul.f32 %v3188, %v2913
      %v3696 = vmul.f32 %v3190, %v2917
      %v3697 = vmul.f32 %v3192, %v2923
      %v3698 = vmul.f32 %v3194, %v2927
      %v3699 = vmul.f32 %v3196, %v2933
      %v3700 = vmul.f32 %v3198, %v2937
      %v3701 = vmul.f32 %v3200, %v2943
      %v3702 = vmul.f32 %v3202, %v2947
      %v3703 = vmul.f32 %v3204, %v2953
      %v3704 = vmul.f32 %v3206, %v2957
      %v3705 = vmul.f32 %v3208, %v2963
      %v3706 = vmul.f32 %v3210, %v2967
      %v3707 = vmul.f32 %v3212, %v2973
      %v3708 = vmul.f32 %v3214, %v2977
      %v3709 = vmul.f32 %v3216, %v2983
      %v3710 = vmul.f32 %v3218, %v2987
      %v3711 = vmul.f32 %v3220, %v2993
      %v3712 = vmul.f32 %v3222, %v2997
      %v3713 = vmul.f32 %v3224, %v3003
      %v3714 = vmul.f32 %v3226, %v3007
      %v3715 = vmul.f32 %v3228, %v3013
      %v3716 = vmul.f32 %v3230, %v3017
      %v3717 = vmul.f32 %v3232, %v3023
      %v3718 = vmul.f32 %v3234, %v3027
      %v3719 = vmul.f32 %v3236, %v3033
      %v3720 = vmul.f32 %v3238, %v3037
      %v3721 = vmul.f32 %v3240, %v3043
      %v3722 = vmul.f32 %v3242, %v3047
      %v3723 = vadd.f32 %v3659, %v3691
      %v3724 = vadd.f32 %v3660, %v3692
      %v3725 = vadd.f32 %v3661, %v3693
      %v3726 = vadd.f32 %v3662, %v3694
      %v3727 = vadd.f32 %v3663, %v3695
      %v3728 = vadd.f32 %v3664, %v3696
      %v3729 = vadd.f32 %v3665, %v3697
      %v3730 = vadd.f32 %v3666, %v3698
      %v3731 = vadd.f32 %v3667, %v3699
      %v3732 = vadd.f32 %v3668, %v3700
      %v3733 = vadd.f32 %v3669, %v3701
      %v3734 = vadd.f32 %v3670, %v3702
      %v3735 = vadd.f32 %v3671, %v3703
      %v3736 = vadd.f32 %v3672, %v3704
      %v3737 = vadd.f32 %v3673, %v3705
      %v3738 = vadd.f32 %v3674, %v3706
      %v3739 = vadd.f32 %v3675, %v3707
      %v3740 = vadd.f32 %v3676, %v3708
      %v3741 = vadd.f32 %v3677, %v3709
      %v3742 = vadd.f32 %v3678, %v3710
      %v3743 = vadd.f32 %v3679, %v3711
      %v3744 = vadd.f32 %v3680, %v3712
      %v3745 = vadd.f32 %v3681, %v3713
      %v3746 = vadd.f32 %v3682, %v3714
      %v3747 = vadd.f32 %v3683, %v3715
      %v3748 = vadd.f32 %v3684, %v3716
      %v3749 = vadd.f32 %v3685, %v3717
      %v3750 = vadd.f32 %v3686, %v3718
      %v3751 = vadd.f32 %v3687, %v3719
      %v3752 = vadd.f32 %v3688, %v3720
      %v3753 = vadd.f32 %v3689, %v3721
      %v3754 = vadd.f32 %v3690, %v3722
      %v3755 = vtanh.pop %v3723
      %v3756 = vtanh.pop %v3724
      %v3757 = vtanh.pop %v3725
      %v3758 = vtanh.pop %v3726
      %v3759 = vtanh.pop %v3727
      %v3760 = vtanh.pop %v3728
      %v3761 = vtanh.pop %v3729
      %v3762 = vtanh.pop %v3730
      %v3763 = vtanh.pop %v3731
      %v3764 = vtanh.pop %v3732
      %v3765 = vtanh.pop %v3733
      %v3766 = vtanh.pop %v3734
      %v3767 = vtanh.pop %v3735
      %v3768 = vtanh.pop %v3736
      %v3769 = vtanh.pop %v3737
      %v3770 = vtanh.pop %v3738
      %v3771 = vtanh.pop %v3739
      %v3772 = vtanh.pop %v3740
      %v3773 = vtanh.pop %v3741
      %v3774 = vtanh.pop %v3742
      %v3775 = vtanh.pop %v3743
      %v3776 = vtanh.pop %v3744
      %v3777 = vtanh.pop %v3745
      %v3778 = vtanh.pop %v3746
      %v3779 = vtanh.pop %v3747
      %v3780 = vtanh.pop %v3748
      %v3781 = vtanh.pop %v3749
      %v3782 = vtanh.pop %v3750
      %v3783 = vtanh.pop %v3751
      %v3784 = vtanh.pop %v3752
      %v3785 = vtanh.pop %v3753
      %v3786 = vtanh.pop %v3754
      %v3787 = vmul.f32 %v3564, %v3755
      %v3788 = vmul.f32 %v3566, %v3756
      %v3789 = vmul.f32 %v3568, %v3757
      %v3790 = vmul.f32 %v3570, %v3758
      %v3791 = vmul.f32 %v3572, %v3759
      %v3792 = vmul.f32 %v3574, %v3760
      %v3793 = vmul.f32 %v3576, %v3761
      %v3794 = vmul.f32 %v3578, %v3762
      %v3795 = vmul.f32 %v3580, %v3763
      %v3796 = vmul.f32 %v3582, %v3764
      %v3797 = vmul.f32 %v3584, %v3765
      %v3798 = vmul.f32 %v3586, %v3766
      %v3799 = vmul.f32 %v3588, %v3767
      %v3800 = vmul.f32 %v3590, %v3768
      %v3801 = vmul.f32 %v3592, %v3769
      %v3802 = vmul.f32 %v3594, %v3770
      %v3803 = vmul.f32 %v3596, %v3771
      %v3804 = vmul.f32 %v3598, %v3772
      %v3805 = vmul.f32 %v3600, %v3773
      %v3806 = vmul.f32 %v3602, %v3774
      %v3807 = vmul.f32 %v3604, %v3775
      %v3808 = vmul.f32 %v3606, %v3776
      %v3809 = vmul.f32 %v3608, %v3777
      %v3810 = vmul.f32 %v3610, %v3778
      %v3811 = vmul.f32 %v3612, %v3779
      %v3812 = vmul.f32 %v3614, %v3780
      %v3813 = vmul.f32 %v3616, %v3781
      %v3814 = vmul.f32 %v3618, %v3782
      %v3815 = vmul.f32 %v3620, %v3783
      %v3816 = vmul.f32 %v3622, %v3784
      %v3817 = vmul.f32 %v3624, %v3785
      %v3818 = vmul.f32 %v3626, %v3786
      %3819 = vst [vmem:[%s284] sm:$0xff] %v3787
      %3820 = vst [vmem:[%s284 + $0x8] sm:$0xff] %v3788
      %3821 = vst [vmem:[%s284 + $0x10] sm:$0xff] %v3789
      %3822 = vst [vmem:[%s284 + $0x18] sm:$0xff] %v3790
      %3823 = vst [vmem:[%s284 + $0x20] sm:$0xff] %v3791
      %3824 = vst [vmem:[%s284 + $0x28] sm:$0xff] %v3792
      %3825 = vst [vmem:[%s284 + $0x30] sm:$0xff] %v3793
      %3826 = vst [vmem:[%s284 + $0x38] sm:$0xff] %v3794
      %3827 = vst [vmem:[%s284 + $0x40] sm:$0xff] %v3795
      %3828 = vst [vmem:[%s284 + $0x48] sm:$0xff] %v3796
      %3829 = vst [vmem:[%s284 + $0x50] sm:$0xff] %v3797
      %3830 = vst [vmem:[%s284 + $0x58] sm:$0xff] %v3798
      %3831 = vst [vmem:[%s284 + $0x60] sm:$0xff] %v3799
      %3832 = vst [vmem:[%s284 + $0x68] sm:$0xff] %v3800
      %3833 = vst [vmem:[%s284 + $0x70] sm:$0xff] %v3801
      %3834 = vst [vmem:[%s284 + $0x78] sm:$0xff] %v3802
      %3835 = vst [vmem:[%s284 + $0x80] sm:$0xff] %v3803
      %3836 = vst [vmem:[%s284 + $0x88] sm:$0xff] %v3804
      %3837 = vst [vmem:[%s284 + $0x90] sm:$0xff] %v3805
      %3838 = vst [vmem:[%s284 + $0x98] sm:$0xff] %v3806
      %3839 = vst [vmem:[%s284 + $0xa0] sm:$0xff] %v3807
      %3840 = vst [vmem:[%s284 + $0xa8] sm:$0xff] %v3808
      %3841 = vst [vmem:[%s284 + $0xb0] sm:$0xff] %v3809
      %3842 = vst [vmem:[%s284 + $0xb8] sm:$0xff] %v3810
      %3843 = vst [vmem:[%s284 + $0xc0] sm:$0xff] %v3811
      %3844 = vst [vmem:[%s284 + $0xc8] sm:$0xff] %v3812
      %3845 = vst [vmem:[%s284 + $0xd0] sm:$0xff] %v3813
      %3846 = vst [vmem:[%s284 + $0xd8] sm:$0xff] %v3814
      %3847 = vst [vmem:[%s284 + $0xe0] sm:$0xff] %v3815
      %3848 = vst [vmem:[%s284 + $0xe8] sm:$0xff] %v3816
      %3849 = vst [vmem:[%s284 + $0xf0] sm:$0xff] %v3817
      %3850 = vst [vmem:[%s284 + $0xf8] sm:$0xff] %v3818
      %3851 = vst [vmem:[%s290] sm:$0xff] %v3723
      %3852 = vst [vmem:[%s290 + $0x8] sm:$0xff] %v3724
      %3853 = vst [vmem:[%s290 + $0x10] sm:$0xff] %v3725
      %3854 = vst [vmem:[%s290 + $0x18] sm:$0xff] %v3726
      %3855 = vst [vmem:[%s290 + $0x20] sm:$0xff] %v3727
      %3856 = vst [vmem:[%s290 + $0x28] sm:$0xff] %v3728
      %3857 = vst [vmem:[%s290 + $0x30] sm:$0xff] %v3729
      %3858 = vst [vmem:[%s290 + $0x38] sm:$0xff] %v3730
      %3859 = vst [vmem:[%s290 + $0x40] sm:$0xff] %v3731
      %3860 = vst [vmem:[%s290 + $0x48] sm:$0xff] %v3732
      %3861 = vst [vmem:[%s290 + $0x50] sm:$0xff] %v3733
      %3862 = vst [vmem:[%s290 + $0x58] sm:$0xff] %v3734
      %3863 = vst [vmem:[%s290 + $0x60] sm:$0xff] %v3735
      %3864 = vst [vmem:[%s290 + $0x68] sm:$0xff] %v3736
      %3865 = vst [vmem:[%s290 + $0x70] sm:$0xff] %v3737
      %3866 = vst [vmem:[%s290 + $0x78] sm:$0xff] %v3738
      %3867 = vst [vmem:[%s290 + $0x80] sm:$0xff] %v3739
      %3868 = vst [vmem:[%s290 + $0x88] sm:$0xff] %v3740
      %3869 = vst [vmem:[%s290 + $0x90] sm:$0xff] %v3741
      %3870 = vst [vmem:[%s290 + $0x98] sm:$0xff] %v3742
      %3871 = vst [vmem:[%s290 + $0xa0] sm:$0xff] %v3743
      %3872 = vst [vmem:[%s290 + $0xa8] sm:$0xff] %v3744
      %3873 = vst [vmem:[%s290 + $0xb0] sm:$0xff] %v3745
      %3874 = vst [vmem:[%s290 + $0xb8] sm:$0xff] %v3746
      %3875 = vst [vmem:[%s290 + $0xc0] sm:$0xff] %v3747
      %3876 = vst [vmem:[%s290 + $0xc8] sm:$0xff] %v3748
      %3877 = vst [vmem:[%s290 + $0xd0] sm:$0xff] %v3749
      %3878 = vst [vmem:[%s290 + $0xd8] sm:$0xff] %v3750
      %3879 = vst [vmem:[%s290 + $0xe0] sm:$0xff] %v3751
      %3880 = vst [vmem:[%s290 + $0xe8] sm:$0xff] %v3752
      %3881 = vst [vmem:[%s290 + $0xf0] sm:$0xff] %v3753
      %3882 = vst [vmem:[%s290 + $0xf8] sm:$0xff] %v3754
      %s3883 = smul.u32 32, %s17
      %p3884 = scmp.lt.s32.totalorder %s3883, 63
      %s3885 = scalar_select %p3884, %s3883, 63
      %s3886 = smul.addr %s3885, 8
      %s3887 = scalar_lea.vmem %s4, %s3886
      %s3888 = smul.u32 32, %s17
      %p3889 = scmp.lt.s32.totalorder %s3888, 63
      %s3890 = scalar_select %p3889, %s3888, 63
      %s3891 = smul.addr %s3890, 8
      %s3892 = scalar_lea.vmem %s5, %s3891
      // Predicated region
      $region37: #{closed_call.20} parent=35 // pred_check
        %p3893 = pneg %p134
      $region38: #{closed_call.20} parent=35 // pred_check_branch
        %3895 = sbr.rel (%p3893) target = $region40
      $region39: #{closed_call.20} parent=35 // pred_region
        %s3896 = smul.u32 32, %s17
      $region40: #{closed_call.20} parent=35 // pred_fallthru
        _
      // Predicated region
      $region41: #{closed_call.20} parent=35 // pred_check
        %p3897 = pneg %p160
      $region42: #{closed_call.20} parent=35 // pred_check_branch
        %3899 = sbr.rel (%p3897) target = $region44
      $region43: #{closed_call.20} parent=35 // pred_region
        %s3900 = smul.u32 32, %s17
      $region44: #{closed_call.20} parent=35 // pred_fallthru
        _
    $region36: #{closed_call.20} parent=5 // pred_fallthru
      _
    %p3901 = scmp.le.s32.totalorder 2, %s12
    // Predicated region
    $region45: #{closed_call.20} parent=5 // pred_check
      %p3902 = pneg %p3901
    $region46: #{closed_call.20} parent=5 // pred_check_branch
      %3904 = sbr.rel (%p3902) target = $region48
    $region47: #{closed_call.20} parent=5 // pred_region
      %s3905 = ssub.s32 %s12, 2
      // Predicated region
      $region49: #{closed_call.20} parent=47 // pred_check
        %p3906 = pneg %p140
      $region50: #{closed_call.20} parent=47 // pred_check_branch
        %3908 = sbr.rel (%p3906) target = $region52
      $region51: #{closed_call.20} parent=47 // pred_region
        %s3909 = smul.u32 32, %s18
        %p3910 = scmp.lt.s32.totalorder %s3909, 63
        %s3911 = scalar_select %p3910, %s3909, 63
        %s3912 = smul.addr %s3911, 8
        %s3913 = scalar_lea.vmem %s4, %s3912
      $region52: #{closed_call.20} parent=47 // pred_fallthru
        _
      // Predicated region
      $region53: #{closed_call.20} parent=47 // pred_check
        %p3914 = pneg %p166
      $region54: #{closed_call.20} parent=47 // pred_check_branch
        %3916 = sbr.rel (%p3914) target = $region56
      $region55: #{closed_call.20} parent=47 // pred_region
        %s3917 = smul.u32 32, %s18
        %p3918 = scmp.lt.s32.totalorder %s3917, 63
        %s3919 = scalar_select %p3918, %s3917, 63
        %s3920 = smul.addr %s3919, 8
        %s3921 = scalar_lea.vmem %s5, %s3920
      $region56: #{closed_call.20} parent=47 // pred_fallthru
        _
    $region48: #{closed_call.20} parent=5 // pred_fallthru
      _
  $region6: #{closed_call.20} parent=0 // loop_footer
    %s16 = sadd.s32 1, %s12
  $region7: #{closed_call.20} parent=0 // loop_footer_branch
    %11 = sbr.rel target = $region3
  $region8: #{closed_call.20} parent=0 // loop_exit
    _

// kernel: closed_call.21
$region0: #{closed_call.21}
  #allocation0 [shape = 'u32[]', space=smem, size = 0x4, offset = 0x4, fixed_abs, tag = 'smem constant byte address 0x4 - core index']
  #allocation1 [shape = 'u32[144,128]{1,0:T(1,128)}', space=vmem, size = 0x12000, scoped, tag = 'internal scratch']
  %s0 = inlined_call_operand.vmem [shape: bf16[512,640], index: 0, kind: input, shape index: {}]
  %s1 = inlined_call_operand.vmem [shape: bf16[640,512], index: 1, kind: input, shape index: {}]
  %s2 = inlined_call_operand.vmem [shape: f32[512,128], index: 2, kind: input, shape index: {}]
  %s3 = inlined_call_operand.vmem [shape: f32[512,128], index: 3, kind: output, shape index: {0}]
  %s4 = inlined_call_operand.vmem [shape: f32[512,128], index: 4, kind: output, shape index: {1}]
  %5 = xla_tuple %s3, %s4
  %s6 = sld [smem:[#allocation0]]
  $region53: #{closed_call.21} parent=0
    _
  %s8 = ssub.s32 1, %s6
  %s9 = scalar_select 0, %s8, %s6
  loop: start=0, step=1, limit=4
  $region2: #{closed_call.21} parent=0 // loop_pre_header
    _
  $region3: #{closed_call.21} parent=0 // loop_header
    %s11 = sphi 0, %s15
    %p12 = scmp.ge.s32.totalorder %s11, 4
    %s21 = sphi 0, %s23
    %s24 = sphi 0, %s21
    %s25 = sphi 0, %s24
    %s41 = sphi 0, %s25
    %s45 = sphi 0, %s45
    %s47 = sphi 0, %s45
    %s48 = sphi 0, %s47
    %s62 = sphi 0, %s48
    %s68 = sphi 0, %s70
    %s71 = sphi 0, %s68
    %s72 = sphi 0, %s71
    %s88 = sphi 0, %s72
    %s94 = sphi 0, %s96
    %s97 = sphi 0, %s94
    %s98 = sphi 0, %s97
    %s114 = sphi 0, %s98
    %s120 = sphi 0, %s122
    %s123 = sphi 0, %s120
    %s124 = sphi 0, %s123
    %s140 = sphi 0, %s124
  $region4: #{closed_call.21} parent=0 // loop_header_branch
    %14 = sbr.rel (%p12) target = $region8
  $region5: #{closed_call.21} parent=0 // loop_body
    %s16 = ssub.s32 %s11, 1
    %s17 = ssub.s32 %s11, 2
    %s18 = sadd.s32 %s11, 1
    %s19 = ssub.s32 %s11, %s18
    %p20 = scmp.eq.s32.totalorder %s19, 0
    %s22 = sadd.s32 %s21, 1
    %s23 = scalar_select %p20, %s21, %s22
    %p26 = pneg %p20
    %p27 = scmp.eq.s32.totalorder %s11, 1
    %p28 = por %p26, %p27
    %p29 = scmp.ne.s32.totalorder %s21, %s24
    %p30 = scmp.eq.s32.totalorder %s11, 0
    %p31 = por %p29, %p30
    %p32 = scmp.ne.s32.totalorder %s21, %s24
    %p33 = scmp.eq.s32.totalorder %s16, 1
    %p34 = por %p32, %p33
    %p35 = scmp.ne.s32.totalorder %s24, %s25
    %p36 = scmp.eq.s32.totalorder %s16, 0
    %p37 = por %p35, %p36
    %p38 = scmp.ne.s32.totalorder %s24, %s25
    %p39 = scmp.eq.s32.totalorder %s17, 1
    %p40 = por %p38, %p39
    %p42 = scmp.ne.s32.totalorder %s25, %s41
    %p43 = scmp.eq.s32.totalorder %s17, 0
    %p44 = por %p42, %p43
    %s46 = sadd.s32 %s45, 1
    %p49 = scmp.eq.s32.totalorder %s11, 1
    %p50 = scmp.ne.s32.totalorder %s45, %s47
    %p51 = scmp.eq.s32.totalorder %s11, 0
    %p52 = por %p50, %p51
    %p53 = scmp.ne.s32.totalorder %s45, %s47
    %p54 = scmp.eq.s32.totalorder %s16, 1
    %p55 = por %p53, %p54
    %p56 = scmp.ne.s32.totalorder %s47, %s48
    %p57 = scmp.eq.s32.totalorder %s16, 0
    %p58 = por %p56, %p57
    %p59 = scmp.ne.s32.totalorder %s47, %s48
    %p60 = scmp.eq.s32.totalorder %s17, 1
    %p61 = por %p59, %p60
    %p63 = scmp.ne.s32.totalorder %s48, %s62
    %p64 = scmp.eq.s32.totalorder %s17, 0
    %p65 = por %p63, %p64
    %s66 = ssub.s32 %s11, %s18
    %p67 = scmp.eq.s32.totalorder %s66, 0
    %s69 = sadd.s32 %s68, 1
    %s70 = scalar_select %p67, %s68, %s69
    %p73 = pneg %p67
    %p74 = scmp.eq.s32.totalorder %s11, 1
    %p75 = por %p73, %p74
    %p76 = scmp.ne.s32.totalorder %s68, %s71
    %p77 = scmp.eq.s32.totalorder %s11, 0
    %p78 = por %p76, %p77
    %p79 = scmp.ne.s32.totalorder %s68, %s71
    %p80 = scmp.eq.s32.totalorder %s16, 1
    %p81 = por %p79, %p80
    %p82 = scmp.ne.s32.totalorder %s71, %s72
    %p83 = scmp.eq.s32.totalorder %s16, 0
    %p84 = por %p82, %p83
    %p85 = scmp.ne.s32.totalorder %s71, %s72
    %p86 = scmp.eq.s32.totalorder %s17, 1
    %p87 = por %p85, %p86
    %p89 = scmp.ne.s32.totalorder %s72, %s88
    %p90 = scmp.eq.s32.totalorder %s17, 0
    %p91 = por %p89, %p90
    %s92 = ssub.s32 %s11, %s18
    %p93 = scmp.eq.s32.totalorder %s92, 0
    %s95 = sadd.s32 %s94, 1
    %s96 = scalar_select %p93, %s94, %s95
    %p99 = pneg %p93
    %p100 = scmp.eq.s32.totalorder %s11, 1
    %p101 = por %p99, %p100
    %p102 = scmp.ne.s32.totalorder %s94, %s97
    %p103 = scmp.eq.s32.totalorder %s11, 0
    %p104 = por %p102, %p103
    %p105 = scmp.ne.s32.totalorder %s94, %s97
    %p106 = scmp.eq.s32.totalorder %s16, 1
    %p107 = por %p105, %p106
    %p108 = scmp.ne.s32.totalorder %s97, %s98
    %p109 = scmp.eq.s32.totalorder %s16, 0
    %p110 = por %p108, %p109
    %p111 = scmp.ne.s32.totalorder %s97, %s98
    %p112 = scmp.eq.s32.totalorder %s17, 1
    %p113 = por %p111, %p112
    %p115 = scmp.ne.s32.totalorder %s98, %s114
    %p116 = scmp.eq.s32.totalorder %s17, 0
    %p117 = por %p115, %p116
    %s118 = ssub.s32 %s11, %s18
    %p119 = scmp.eq.s32.totalorder %s118, 0
    %s121 = sadd.s32 %s120, 1
    %s122 = scalar_select %p119, %s120, %s121
    %p125 = pneg %p119
    %p126 = scmp.eq.s32.totalorder %s11, 1
    %p127 = por %p125, %p126
    %p128 = scmp.ne.s32.totalorder %s120, %s123
    %p129 = scmp.eq.s32.totalorder %s11, 0
    %p130 = por %p128, %p129
    %p131 = scmp.ne.s32.totalorder %s120, %s123
    %p132 = scmp.eq.s32.totalorder %s16, 1
    %p133 = por %p131, %p132
    %p134 = scmp.ne.s32.totalorder %s123, %s124
    %p135 = scmp.eq.s32.totalorder %s16, 0
    %p136 = por %p134, %p135
    %p137 = scmp.ne.s32.totalorder %s123, %s124
    %p138 = scmp.eq.s32.totalorder %s17, 1
    %p139 = por %p137, %p138
    %p141 = scmp.ne.s32.totalorder %s124, %s140
    %p142 = scmp.eq.s32.totalorder %s17, 0
    %p143 = por %p141, %p142
    %p144 = scmp.le.s32.totalorder 1, %s11
    %p145 = scmp.lt.s32.totalorder %s11, 3
    %p146 = pnand %p144, %p145
    %p147 = pneg %p146
    // Predicated region
    $region9: #{closed_call.21} parent=5 // pred_check
      _
    $region10: #{closed_call.21} parent=5 // pred_check_branch
      %149 = sbr.rel (%p146) target = $region12
    $region11: #{closed_call.21} parent=5 // pred_region
      %s150 = ssub.s32 %s11, 1
      // Predicated region
      $region13: #{closed_call.21} parent=11 // pred_check
        %p151 = pneg %p58
      $region14: #{closed_call.21} parent=11 // pred_check_branch
        %153 = sbr.rel (%p151) target = $region16
      $region15: #{closed_call.21} parent=11 // pred_region
        _
      $region16: #{closed_call.21} parent=11 // pred_fallthru
        _
    $region12: #{closed_call.21} parent=5 // pred_fallthru
      _
    %p154 = scmp.lt.s32.totalorder %s11, 2
    // Predicated region
    $region17: #{closed_call.21} parent=5 // pred_check
      %p155 = pneg %p154
    $region18: #{closed_call.21} parent=5 // pred_check_branch
      %157 = sbr.rel (%p155) target = $region20
    $region19: #{closed_call.21} parent=5 // pred_region
      // Predicated region
      $region21: #{closed_call.21} parent=19 // pred_check
        %p158 = pneg %p31
      $region22: #{closed_call.21} parent=19 // pred_check_branch
        %160 = sbr.rel (%p158) target = $region24
      $region23: #{closed_call.21} parent=19 // pred_region
        %s161 = smul.u32 32, %s11
        %p162 = scmp.lt.s32.totalorder %s161, 63
        %s163 = scalar_select %p162, %s161, 63
        %s164 = smul.addr %s163, 5
        %s165 = smul.addr %s164, 4
        %s166 = scalar_lea.vmem %s0, %s165
        %s167 = smul.u32 32, %s11
      $region24: #{closed_call.21} parent=19 // pred_fallthru
        _
      // Predicated region
      $region25: #{closed_call.21} parent=19 // pred_check
        %p168 = pneg %p78
      $region26: #{closed_call.21} parent=19 // pred_check_branch
        %170 = sbr.rel (%p168) target = $region28
      $region27: #{closed_call.21} parent=19 // pred_region
        %s171 = smul.u32 32, %s11
        %p172 = scmp.lt.s32.totalorder %s171, 63
        %s173 = scalar_select %p172, %s171, 63
        %s174 = smul.addr %s173, 8
        %s175 = scalar_lea.vmem %s2, %s174
        %s176 = smul.u32 32, %s11
      $region28: #{closed_call.21} parent=19 // pred_fallthru
        _
    $region20: #{closed_call.21} parent=5 // pred_fallthru
      _
    %p177 = scmp.le.s32.totalorder 1, %s11
    %p178 = scmp.lt.s32.totalorder %s11, 3
    %p179 = pnand %p177, %p178
    %p180 = pneg %p179
    // Predicated region
    $region29: #{closed_call.21} parent=5 // pred_check
      _
    $region30: #{closed_call.21} parent=5 // pred_check_branch
      %182 = sbr.rel (%p179) target = $region32
    $region31: #{closed_call.21} parent=5 // pred_region
      %s183 = ssub.s32 %s11, 1
      %s184 = smul.u32 32, %s16
      %p185 = scmp.lt.s32.totalorder %s184, 63
      %s186 = scalar_select %p185, %s184, 63
      %s187 = smul.addr %s186, 5
      %s188 = smul.addr %s187, 4
      %s189 = scalar_lea.vmem %s0, %s188
      %p190 = pneg %p37
      %p191 = pneg %p34
      %p192 = pneg %p58
      %p193 = pneg %p55
      %s194 = smul.u32 32, %s16
      %p195 = scmp.lt.s32.totalorder %s194, 63
      %s196 = scalar_select %p195, %s194, 63
      %s197 = smul.addr %s196, 8
      %s198 = scalar_lea.vmem %s2, %s197
      %p199 = pneg %p84
      %p200 = pneg %p81
      %p201 = pneg %p110
      %p202 = pneg %p107
      %s203 = smul.u32 32, %s16
      %p204 = scmp.lt.s32.totalorder %s203, 63
      %s205 = scalar_select %p204, %s203, 63
      %s206 = smul.addr %s205, 8
      %s207 = scalar_lea.vmem %s3, %s206
      %p208 = pneg %p136
      %p209 = pneg %p133
      %s210 = smul.u32 32, %s16
      %p211 = scmp.lt.s32.totalorder %s210, 63
      %s212 = scalar_select %p211, %s210, 63
      %s213 = smul.addr %s212, 8
      %s214 = scalar_lea.vmem %s4, %s213
      %s215 = smul.u32 32, %s16
      %p216 = scmp.lt.s32.totalorder %s215, 63
      %s217 = scalar_select %p216, %s215, 63
      %s218 = smul.addr %s217, 5
      %s219 = smul.addr %s218, 4
      %s220 = scalar_lea.vmem %s0, %s219
      %s221 = smul.u32 32, %s16
      %s222 = smul.u32 32, %s16
      %p223 = scmp.lt.s32.totalorder %s222, 63
      %s224 = scalar_select %p223, %s222, 63
      %s225 = smul.addr %s224, 8
      %s226 = scalar_lea.vmem %s2, %s225
      %s227 = smul.u32 32, %s16
      %s228 = smul.u32 32, %s16
      %p229 = scmp.lt.s32.totalorder %s228, 63
      %s230 = scalar_select %p229, %s228, 63
      %s231 = smul.addr %s230, 8
      %s232 = scalar_lea.vmem %s3, %s231
      %s233 = smul.u32 32, %s16
      %s234 = smul.u32 32, %s16
      %p235 = scmp.lt.s32.totalorder %s234, 63
      %s236 = scalar_select %p235, %s234, 63
      %s237 = smul.addr %s236, 8
      %s238 = scalar_lea.vmem %s4, %s237
      %s239 = smul.u32 32, %s16
      %v241 = vld [vmem:[%s220] sm:$0xff]
      %v242 = vld [vmem:[%s220 + $0x8] sm:$0xff]
      %v243 = vld [vmem:[%s220 + $0x10] sm:$0xf]
      %v244 = vld [vmem:[%s220 + $0x14] sm:$0xff]
      %v245 = vld [vmem:[%s220 + $0x1c] sm:$0xff]
      %v246 = vld [vmem:[%s220 + $0x24] sm:$0xf]
      %v247 = vld [vmem:[%s220 + $0x28] sm:$0xff]
      %v248 = vld [vmem:[%s220 + $0x30] sm:$0xff]
      %v249 = vld [vmem:[%s220 + $0x38] sm:$0xf]
      %v250 = vld [vmem:[%s220 + $0x3c] sm:$0xff]
      %v251 = vld [vmem:[%s220 + $0x44] sm:$0xff]
      %v252 = vld [vmem:[%s220 + $0x4c] sm:$0xf]
      %v253 = vld [vmem:[%s220 + $0x50] sm:$0xff]
      %v254 = vld [vmem:[%s220 + $0x58] sm:$0xff]
      %v255 = vld [vmem:[%s220 + $0x60] sm:$0xf]
      %v256 = vld [vmem:[%s220 + $0x64] sm:$0xff]
      %v257 = vld [vmem:[%s220 + $0x6c] sm:$0xff]
      %v258 = vld [vmem:[%s220 + $0x74] sm:$0xf]
      %v259 = vld [vmem:[%s220 + $0x78] sm:$0xff]
      %v260 = vld [vmem:[%s220 + $0x80] sm:$0xff]
      %v261 = vld [vmem:[%s220 + $0x88] sm:$0xf]
      %v262 = vld [vmem:[%s220 + $0x8c] sm:$0xff]
      %v263 = vld [vmem:[%s220 + $0x94] sm:$0xff]
      %v264 = vld [vmem:[%s220 + $0x9c] sm:$0xf]
      %v265 = vld [vmem:[%s220 + $0xa0] sm:$0xff]
      %v266 = vld [vmem:[%s220 + $0xa8] sm:$0xff]
      %v267 = vld [vmem:[%s220 + $0xb0] sm:$0xf]
      %v268 = vld [vmem:[%s220 + $0xb4] sm:$0xff]
      %v269 = vld [vmem:[%s220 + $0xbc] sm:$0xff]
      %v270 = vld [vmem:[%s220 + $0xc4] sm:$0xf]
      %v271 = vld [vmem:[%s220 + $0xc8] sm:$0xff]
      %v272 = vld [vmem:[%s220 + $0xd0] sm:$0xff]
      %v273 = vld [vmem:[%s220 + $0xd8] sm:$0xf]
      %v274 = vld [vmem:[%s220 + $0xdc] sm:$0xff]
      %v275 = vld [vmem:[%s220 + $0xe4] sm:$0xff]
      %v276 = vld [vmem:[%s220 + $0xec] sm:$0xf]
      %v277 = vld [vmem:[%s220 + $0xf0] sm:$0xff]
      %v278 = vld [vmem:[%s220 + $0xf8] sm:$0xff]
      %v279 = vld [vmem:[%s220 + $0x100] sm:$0xf]
      %v280 = vld [vmem:[%s220 + $0x104] sm:$0xff]
      %v281 = vld [vmem:[%s220 + $0x10c] sm:$0xff]
      %v282 = vld [vmem:[%s220 + $0x114] sm:$0xf]
      %v283 = vld [vmem:[%s220 + $0x118] sm:$0xff]
      %v284 = vld [vmem:[%s220 + $0x120] sm:$0xff]
      %v285 = vld [vmem:[%s220 + $0x128] sm:$0xf]
      %v286 = vld [vmem:[%s220 + $0x12c] sm:$0xff]
      %v287 = vld [vmem:[%s220 + $0x134] sm:$0xff]
      %v288 = vld [vmem:[%s220 + $0x13c] sm:$0xf]
      %v289 = vld [vmem:[%s220 + $0x140] sm:$0xff]
      %v290 = vld [vmem:[%s220 + $0x148] sm:$0xff]
      %v291 = vld [vmem:[%s220 + $0x150] sm:$0xf]
      %v292 = vld [vmem:[%s220 + $0x154] sm:$0xff]
      %v293 = vld [vmem:[%s220 + $0x15c] sm:$0xff]
      %v294 = vld [vmem:[%s220 + $0x164] sm:$0xf]
      %v295 = vld [vmem:[%s220 + $0x168] sm:$0xff]
      %v296 = vld [vmem:[%s220 + $0x170] sm:$0xff]
      %v297 = vld [vmem:[%s220 + $0x178] sm:$0xf]
      %v298 = vld [vmem:[%s220 + $0x17c] sm:$0xff]
      %v299 = vld [vmem:[%s220 + $0x184] sm:$0xff]
      %v300 = vld [vmem:[%s220 + $0x18c] sm:$0xf]
      %v301 = vld [vmem:[%s220 + $0x190] sm:$0xff]
      %v302 = vld [vmem:[%s220 + $0x198] sm:$0xff]
      %v303 = vld [vmem:[%s220 + $0x1a0] sm:$0xf]
      %v304 = vld [vmem:[%s220 + $0x1a4] sm:$0xff]
      %v305 = vld [vmem:[%s220 + $0x1ac] sm:$0xff]
      %v306 = vld [vmem:[%s220 + $0x1b4] sm:$0xf]
      %v307 = vld [vmem:[%s220 + $0x1b8] sm:$0xff]
      %v308 = vld [vmem:[%s220 + $0x1c0] sm:$0xff]
      %v309 = vld [vmem:[%s220 + $0x1c8] sm:$0xf]
      %v310 = vld [vmem:[%s220 + $0x1cc] sm:$0xff]
      %v311 = vld [vmem:[%s220 + $0x1d4] sm:$0xff]
      %v312 = vld [vmem:[%s220 + $0x1dc] sm:$0xf]
      %v313 = vld [vmem:[%s220 + $0x1e0] sm:$0xff]
      %v314 = vld [vmem:[%s220 + $0x1e8] sm:$0xff]
      %v315 = vld [vmem:[%s220 + $0x1f0] sm:$0xf]
      %v316 = vld [vmem:[%s220 + $0x1f4] sm:$0xff]
      %v317 = vld [vmem:[%s220 + $0x1fc] sm:$0xff]
      %v318 = vld [vmem:[%s220 + $0x204] sm:$0xf]
      %v319 = vld [vmem:[%s220 + $0x208] sm:$0xff]
      %v320 = vld [vmem:[%s220 + $0x210] sm:$0xff]
      %v321 = vld [vmem:[%s220 + $0x218] sm:$0xf]
      %v322 = vld [vmem:[%s220 + $0x21c] sm:$0xff]
      %v323 = vld [vmem:[%s220 + $0x224] sm:$0xff]
      %v324 = vld [vmem:[%s220 + $0x22c] sm:$0xf]
      %v325 = vld [vmem:[%s220 + $0x230] sm:$0xff]
      %v326 = vld [vmem:[%s220 + $0x238] sm:$0xff]
      %v327 = vld [vmem:[%s220 + $0x240] sm:$0xf]
      %v328 = vld [vmem:[%s220 + $0x244] sm:$0xff]
      %v329 = vld [vmem:[%s220 + $0x24c] sm:$0xff]
      %v330 = vld [vmem:[%s220 + $0x254] sm:$0xf]
      %v331 = vld [vmem:[%s220 + $0x258] sm:$0xff]
      %v332 = vld [vmem:[%s220 + $0x260] sm:$0xff]
      %v333 = vld [vmem:[%s220 + $0x268] sm:$0xf]
      %v334 = vld [vmem:[%s220 + $0x26c] sm:$0xff]
      %v335 = vld [vmem:[%s220 + $0x274] sm:$0xff]
      %v336 = vld [vmem:[%s220 + $0x27c] sm:$0xf]
      %v337 = vld [vmem:[%s1] sm:$0xff]
      %v338 = vld [vmem:[%s1 + $0x8] sm:$0xff]
      %v339 = vld [vmem:[%s1 + $0x10] sm:$0xff]
      %v340 = vld [vmem:[%s1 + $0x18] sm:$0xff]
      %v341 = vld [vmem:[%s1 + $0x20] sm:$0xff]
      %v342 = vld [vmem:[%s1 + $0x28] sm:$0xff]
      %v343 = vld [vmem:[%s1 + $0x30] sm:$0xff]
      %v344 = vld [vmem:[%s1 + $0x38] sm:$0xff]
      %v345 = vld [vmem:[%s1 + $0x40] sm:$0xff]
      %v346 = vld [vmem:[%s1 + $0x48] sm:$0xff]
      %v347 = vld [vmem:[%s1 + $0x50] sm:$0xff]
      %v348 = vld [vmem:[%s1 + $0x58] sm:$0xff]
      %v349 = vld [vmem:[%s1 + $0x60] sm:$0xff]
      %v350 = vld [vmem:[%s1 + $0x68] sm:$0xff]
      %v351 = vld [vmem:[%s1 + $0x70] sm:$0xff]
      %v352 = vld [vmem:[%s1 + $0x78] sm:$0xff]
      %v353 = vld [vmem:[%s1 + $0x80] sm:$0xff]
      %v354 = vld [vmem:[%s1 + $0x88] sm:$0xff]
      %v355 = vld [vmem:[%s1 + $0x90] sm:$0xff]
      %v356 = vld [vmem:[%s1 + $0x98] sm:$0xff]
      %v357 = vld [vmem:[%s1 + $0xa0] sm:$0xff]
      %v358 = vld [vmem:[%s1 + $0xa8] sm:$0xff]
      %v359 = vld [vmem:[%s1 + $0xb0] sm:$0xff]
      %v360 = vld [vmem:[%s1 + $0xb8] sm:$0xff]
      %v361 = vld [vmem:[%s1 + $0xc0] sm:$0xff]
      %v362 = vld [vmem:[%s1 + $0xc8] sm:$0xff]
      %v363 = vld [vmem:[%s1 + $0xd0] sm:$0xff]
      %v364 = vld [vmem:[%s1 + $0xd8] sm:$0xff]
      %v365 = vld [vmem:[%s1 + $0xe0] sm:$0xff]
      %v366 = vld [vmem:[%s1 + $0xe8] sm:$0xff]
      %v367 = vld [vmem:[%s1 + $0xf0] sm:$0xff]
      %v368 = vld [vmem:[%s1 + $0xf8] sm:$0xff]
      %v369 = vld [vmem:[%s1 + $0x100] sm:$0xff]
      %v370 = vld [vmem:[%s1 + $0x108] sm:$0xff]
      %v371 = vld [vmem:[%s1 + $0x110] sm:$0xff]
      %v372 = vld [vmem:[%s1 + $0x118] sm:$0xff]
      %v373 = vld [vmem:[%s1 + $0x120] sm:$0xff]
      %v374 = vld [vmem:[%s1 + $0x128] sm:$0xff]
      %v375 = vld [vmem:[%s1 + $0x130] sm:$0xff]
      %v376 = vld [vmem:[%s1 + $0x138] sm:$0xff]
      %v377 = vld [vmem:[%s1 + $0x140] sm:$0xff]
      %v378 = vld [vmem:[%s1 + $0x148] sm:$0xff]
      %v379 = vld [vmem:[%s1 + $0x150] sm:$0xff]
      %v380 = vld [vmem:[%s1 + $0x158] sm:$0xff]
      %v381 = vld [vmem:[%s1 + $0x160] sm:$0xff]
      %v382 = vld [vmem:[%s1 + $0x168] sm:$0xff]
      %v383 = vld [vmem:[%s1 + $0x170] sm:$0xff]
      %v384 = vld [vmem:[%s1 + $0x178] sm:$0xff]
      %v385 = vld [vmem:[%s1 + $0x180] sm:$0xff]
      %v386 = vld [vmem:[%s1 + $0x188] sm:$0xff]
      %v387 = vld [vmem:[%s1 + $0x190] sm:$0xff]
      %v388 = vld [vmem:[%s1 + $0x198] sm:$0xff]
      %v389 = vld [vmem:[%s1 + $0x1a0] sm:$0xff]
      %v390 = vld [vmem:[%s1 + $0x1a8] sm:$0xff]
      %v391 = vld [vmem:[%s1 + $0x1b0] sm:$0xff]
      %v392 = vld [vmem:[%s1 + $0x1b8] sm:$0xff]
      %v393 = vld [vmem:[%s1 + $0x1c0] sm:$0xff]
      %v394 = vld [vmem:[%s1 + $0x1c8] sm:$0xff]
      %v395 = vld [vmem:[%s1 + $0x1d0] sm:$0xff]
      %v396 = vld [vmem:[%s1 + $0x1d8] sm:$0xff]
      %v397 = vld [vmem:[%s1 + $0x1e0] sm:$0xff]
      %v398 = vld [vmem:[%s1 + $0x1e8] sm:$0xff]
      %v399 = vld [vmem:[%s1 + $0x1f0] sm:$0xff]
      %v400 = vld [vmem:[%s1 + $0x1f8] sm:$0xff]
      %v401 = vld [vmem:[%s1 + $0x200] sm:$0xff]
      %v402 = vld [vmem:[%s1 + $0x208] sm:$0xff]
      %v403 = vld [vmem:[%s1 + $0x210] sm:$0xff]
      %v404 = vld [vmem:[%s1 + $0x218] sm:$0xff]
      %v405 = vld [vmem:[%s1 + $0x220] sm:$0xff]
      %v406 = vld [vmem:[%s1 + $0x228] sm:$0xff]
      %v407 = vld [vmem:[%s1 + $0x230] sm:$0xff]
      %v408 = vld [vmem:[%s1 + $0x238] sm:$0xff]
      %v409 = vld [vmem:[%s1 + $0x240] sm:$0xff]
      %v410 = vld [vmem:[%s1 + $0x248] sm:$0xff]
      %v411 = vld [vmem:[%s1 + $0x250] sm:$0xff]
      %v412 = vld [vmem:[%s1 + $0x258] sm:$0xff]
      %v413 = vld [vmem:[%s1 + $0x260] sm:$0xff]
      %v414 = vld [vmem:[%s1 + $0x268] sm:$0xff]
      %v415 = vld [vmem:[%s1 + $0x270] sm:$0xff]
      %v416 = vld [vmem:[%s1 + $0x278] sm:$0xff]
      %v417 = vld [vmem:[%s1 + $0x280] sm:$0xff]
      %v418 = vld [vmem:[%s1 + $0x288] sm:$0xff]
      %v419 = vld [vmem:[%s1 + $0x290] sm:$0xff]
      %v420 = vld [vmem:[%s1 + $0x298] sm:$0xff]
      %v421 = vld [vmem:[%s1 + $0x2a0] sm:$0xff]
      %v422 = vld [vmem:[%s1 + $0x2a8] sm:$0xff]
      %v423 = vld [vmem:[%s1 + $0x2b0] sm:$0xff]
      %v424 = vld [vmem:[%s1 + $0x2b8] sm:$0xff]
      %v425 = vld [vmem:[%s1 + $0x2c0] sm:$0xff]
      %v426 = vld [vmem:[%s1 + $0x2c8] sm:$0xff]
      %v427 = vld [vmem:[%s1 + $0x2d0] sm:$0xff]
      %v428 = vld [vmem:[%s1 + $0x2d8] sm:$0xff]
      %v429 = vld [vmem:[%s1 + $0x2e0] sm:$0xff]
      %v430 = vld [vmem:[%s1 + $0x2e8] sm:$0xff]
      %v431 = vld [vmem:[%s1 + $0x2f0] sm:$0xff]
      %v432 = vld [vmem:[%s1 + $0x2f8] sm:$0xff]
      %v433 = vld [vmem:[%s1 + $0x300] sm:$0xff]
      %v434 = vld [vmem:[%s1 + $0x308] sm:$0xff]
      %v435 = vld [vmem:[%s1 + $0x310] sm:$0xff]
      %v436 = vld [vmem:[%s1 + $0x318] sm:$0xff]
      %v437 = vld [vmem:[%s1 + $0x320] sm:$0xff]
      %v438 = vld [vmem:[%s1 + $0x328] sm:$0xff]
      %v439 = vld [vmem:[%s1 + $0x330] sm:$0xff]
      %v440 = vld [vmem:[%s1 + $0x338] sm:$0xff]
      %v441 = vld [vmem:[%s1 + $0x340] sm:$0xff]
      %v442 = vld [vmem:[%s1 + $0x348] sm:$0xff]
      %v443 = vld [vmem:[%s1 + $0x350] sm:$0xff]
      %v444 = vld [vmem:[%s1 + $0x358] sm:$0xff]
      %v445 = vld [vmem:[%s1 + $0x360] sm:$0xff]
      %v446 = vld [vmem:[%s1 + $0x368] sm:$0xff]
      %v447 = vld [vmem:[%s1 + $0x370] sm:$0xff]
      %v448 = vld [vmem:[%s1 + $0x378] sm:$0xff]
      %v449 = vld [vmem:[%s1 + $0x380] sm:$0xff]
      %v450 = vld [vmem:[%s1 + $0x388] sm:$0xff]
      %v451 = vld [vmem:[%s1 + $0x390] sm:$0xff]
      %v452 = vld [vmem:[%s1 + $0x398] sm:$0xff]
      %v453 = vld [vmem:[%s1 + $0x3a0] sm:$0xff]
      %v454 = vld [vmem:[%s1 + $0x3a8] sm:$0xff]
      %v455 = vld [vmem:[%s1 + $0x3b0] sm:$0xff]
      %v456 = vld [vmem:[%s1 + $0x3b8] sm:$0xff]
      %v457 = vld [vmem:[%s1 + $0x3c0] sm:$0xff]
      %v458 = vld [vmem:[%s1 + $0x3c8] sm:$0xff]
      %v459 = vld [vmem:[%s1 + $0x3d0] sm:$0xff]
      %v460 = vld [vmem:[%s1 + $0x3d8] sm:$0xff]
      %v461 = vld [vmem:[%s1 + $0x3e0] sm:$0xff]
      %v462 = vld [vmem:[%s1 + $0x3e8] sm:$0xff]
      %v463 = vld [vmem:[%s1 + $0x3f0] sm:$0xff]
      %v464 = vld [vmem:[%s1 + $0x3f8] sm:$0xff]
      %v465 = vld [vmem:[%s1 + $0x400] sm:$0xff]
      %v466 = vld [vmem:[%s1 + $0x408] sm:$0xff]
      %v467 = vld [vmem:[%s1 + $0x410] sm:$0xff]
      %v468 = vld [vmem:[%s1 + $0x418] sm:$0xff]
      %v469 = vld [vmem:[%s1 + $0x420] sm:$0xff]
      %v470 = vld [vmem:[%s1 + $0x428] sm:$0xff]
      %v471 = vld [vmem:[%s1 + $0x430] sm:$0xff]
      %v472 = vld [vmem:[%s1 + $0x438] sm:$0xff]
      %v473 = vld [vmem:[%s1 + $0x440] sm:$0xff]
      %v474 = vld [vmem:[%s1 + $0x448] sm:$0xff]
      %v475 = vld [vmem:[%s1 + $0x450] sm:$0xff]
      %v476 = vld [vmem:[%s1 + $0x458] sm:$0xff]
      %v477 = vld [vmem:[%s1 + $0x460] sm:$0xff]
      %v478 = vld [vmem:[%s1 + $0x468] sm:$0xff]
      %v479 = vld [vmem:[%s1 + $0x470] sm:$0xff]
      %v480 = vld [vmem:[%s1 + $0x478] sm:$0xff]
      %v481 = vld [vmem:[%s1 + $0x480] sm:$0xff]
      %v482 = vld [vmem:[%s1 + $0x488] sm:$0xff]
      %v483 = vld [vmem:[%s1 + $0x490] sm:$0xff]
      %v484 = vld [vmem:[%s1 + $0x498] sm:$0xff]
      %v485 = vld [vmem:[%s1 + $0x4a0] sm:$0xff]
      %v486 = vld [vmem:[%s1 + $0x4a8] sm:$0xff]
      %v487 = vld [vmem:[%s1 + $0x4b0] sm:$0xff]
      %v488 = vld [vmem:[%s1 + $0x4b8] sm:$0xff]
      %v489 = vld [vmem:[%s1 + $0x4c0] sm:$0xff]
      %v490 = vld [vmem:[%s1 + $0x4c8] sm:$0xff]
      %v491 = vld [vmem:[%s1 + $0x4d0] sm:$0xff]
      %v492 = vld [vmem:[%s1 + $0x4d8] sm:$0xff]
      %v493 = vld [vmem:[%s1 + $0x4e0] sm:$0xff]
      %v494 = vld [vmem:[%s1 + $0x4e8] sm:$0xff]
      %v495 = vld [vmem:[%s1 + $0x4f0] sm:$0xff]
      %v496 = vld [vmem:[%s1 + $0x4f8] sm:$0xff]
      %v593 = vunpack.c.l.b16 %v241
      %v594 = vunpack.c.h.b16 %v241
      %v595 = vunpack.c.l.b16 %v242
      %v596 = vunpack.c.h.b16 %v242
      %v597 = vunpack.c.l.b16 %v243
      %v598 = vunpack.c.l.b16 %v244
      %v599 = vunpack.c.h.b16 %v244
      %v600 = vunpack.c.l.b16 %v245
      %v601 = vunpack.c.h.b16 %v245
      %v602 = vunpack.c.l.b16 %v246
      %v603 = vunpack.c.l.b16 %v247
      %v604 = vunpack.c.h.b16 %v247
      %v605 = vunpack.c.l.b16 %v248
      %v606 = vunpack.c.h.b16 %v248
      %v607 = vunpack.c.l.b16 %v249
      %v608 = vunpack.c.l.b16 %v250
      %v609 = vunpack.c.h.b16 %v250
      %v610 = vunpack.c.l.b16 %v251
      %v611 = vunpack.c.h.b16 %v251
      %v612 = vunpack.c.l.b16 %v252
      %v613 = vunpack.c.l.b16 %v253
      %v614 = vunpack.c.h.b16 %v253
      %v615 = vunpack.c.l.b16 %v254
      %v616 = vunpack.c.h.b16 %v254
      %v617 = vunpack.c.l.b16 %v255
      %v618 = vunpack.c.l.b16 %v256
      %v619 = vunpack.c.h.b16 %v256
      %v620 = vunpack.c.l.b16 %v257
      %v621 = vunpack.c.h.b16 %v257
      %v622 = vunpack.c.l.b16 %v258
      %v623 = vunpack.c.l.b16 %v259
      %v624 = vunpack.c.h.b16 %v259
      %v625 = vunpack.c.l.b16 %v260
      %v626 = vunpack.c.h.b16 %v260
      %v627 = vunpack.c.l.b16 %v261
      %v628 = vunpack.c.l.b16 %v262
      %v629 = vunpack.c.h.b16 %v262
      %v630 = vunpack.c.l.b16 %v263
      %v631 = vunpack.c.h.b16 %v263
      %v632 = vunpack.c.l.b16 %v264
      %v633 = vunpack.c.l.b16 %v265
      %v634 = vunpack.c.h.b16 %v265
      %v635 = vunpack.c.l.b16 %v266
      %v636 = vunpack.c.h.b16 %v266
      %v637 = vunpack.c.l.b16 %v267
      %v638 = vunpack.c.l.b16 %v268
      %v639 = vunpack.c.h.b16 %v268
      %v640 = vunpack.c.l.b16 %v269
      %v641 = vunpack.c.h.b16 %v269
      %v642 = vunpack.c.l.b16 %v270
      %v643 = vunpack.c.l.b16 %v271
      %v644 = vunpack.c.h.b16 %v271
      %v645 = vunpack.c.l.b16 %v272
      %v646 = vunpack.c.h.b16 %v272
      %v647 = vunpack.c.l.b16 %v273
      %v648 = vunpack.c.l.b16 %v274
      %v649 = vunpack.c.h.b16 %v274
      %v650 = vunpack.c.l.b16 %v275
      %v651 = vunpack.c.h.b16 %v275
      %v652 = vunpack.c.l.b16 %v276
      %v653 = vunpack.c.l.b16 %v277
      %v654 = vunpack.c.h.b16 %v277
      %v655 = vunpack.c.l.b16 %v278
      %v656 = vunpack.c.h.b16 %v278
      %v657 = vunpack.c.l.b16 %v279
      %v658 = vunpack.c.l.b16 %v280
      %v659 = vunpack.c.h.b16 %v280
      %v660 = vunpack.c.l.b16 %v281
      %v661 = vunpack.c.h.b16 %v281
      %v662 = vunpack.c.l.b16 %v282
      %v663 = vunpack.c.l.b16 %v283
      %v664 = vunpack.c.h.b16 %v283
      %v665 = vunpack.c.l.b16 %v284
      %v666 = vunpack.c.h.b16 %v284
      %v667 = vunpack.c.l.b16 %v285
      %v668 = vunpack.c.l.b16 %v286
      %v669 = vunpack.c.h.b16 %v286
      %v670 = vunpack.c.l.b16 %v287
      %v671 = vunpack.c.h.b16 %v287
      %v672 = vunpack.c.l.b16 %v288
      %v673 = vunpack.c.l.b16 %v289
      %v674 = vunpack.c.h.b16 %v289
      %v675 = vunpack.c.l.b16 %v290
      %v676 = vunpack.c.h.b16 %v290
      %v677 = vunpack.c.l.b16 %v291
      %v678 = vunpack.c.l.b16 %v292
      %v679 = vunpack.c.h.b16 %v292
      %v680 = vunpack.c.l.b16 %v293
      %v681 = vunpack.c.h.b16 %v293
      %v682 = vunpack.c.l.b16 %v294
      %v683 = vunpack.c.l.b16 %v295
      %v684 = vunpack.c.h.b16 %v295
      %v685 = vunpack.c.l.b16 %v296
      %v686 = vunpack.c.h.b16 %v296
      %v687 = vunpack.c.l.b16 %v297
      %v688 = vunpack.c.l.b16 %v298
      %v689 = vunpack.c.h.b16 %v298
      %v690 = vunpack.c.l.b16 %v299
      %v691 = vunpack.c.h.b16 %v299
      %v692 = vunpack.c.l.b16 %v300
      %v693 = vunpack.c.l.b16 %v301
      %v694 = vunpack.c.h.b16 %v301
      %v695 = vunpack.c.l.b16 %v302
      %v696 = vunpack.c.h.b16 %v302
      %v697 = vunpack.c.l.b16 %v303
      %v698 = vunpack.c.l.b16 %v304
      %v699 = vunpack.c.h.b16 %v304
      %v700 = vunpack.c.l.b16 %v305
      %v701 = vunpack.c.h.b16 %v305
      %v702 = vunpack.c.l.b16 %v306
      %v703 = vunpack.c.l.b16 %v307
      %v704 = vunpack.c.h.b16 %v307
      %v705 = vunpack.c.l.b16 %v308
      %v706 = vunpack.c.h.b16 %v308
      %v707 = vunpack.c.l.b16 %v309
      %v708 = vunpack.c.l.b16 %v310
      %v709 = vunpack.c.h.b16 %v310
      %v710 = vunpack.c.l.b16 %v311
      %v711 = vunpack.c.h.b16 %v311
      %v712 = vunpack.c.l.b16 %v312
      %v713 = vunpack.c.l.b16 %v313
      %v714 = vunpack.c.h.b16 %v313
      %v715 = vunpack.c.l.b16 %v314
      %v716 = vunpack.c.h.b16 %v314
      %v717 = vunpack.c.l.b16 %v315
      %v718 = vunpack.c.l.b16 %v316
      %v719 = vunpack.c.h.b16 %v316
      %v720 = vunpack.c.l.b16 %v317
      %v721 = vunpack.c.h.b16 %v317
      %v722 = vunpack.c.l.b16 %v318
      %v723 = vunpack.c.l.b16 %v319
      %v724 = vunpack.c.h.b16 %v319
      %v725 = vunpack.c.l.b16 %v320
      %v726 = vunpack.c.h.b16 %v320
      %v727 = vunpack.c.l.b16 %v321
      %v728 = vunpack.c.l.b16 %v322
      %v729 = vunpack.c.h.b16 %v322
      %v730 = vunpack.c.l.b16 %v323
      %v731 = vunpack.c.h.b16 %v323
      %v732 = vunpack.c.l.b16 %v324
      %v733 = vunpack.c.l.b16 %v325
      %v734 = vunpack.c.h.b16 %v325
      %v735 = vunpack.c.l.b16 %v326
      %v736 = vunpack.c.h.b16 %v326
      %v737 = vunpack.c.l.b16 %v327
      %v738 = vunpack.c.l.b16 %v328
      %v739 = vunpack.c.h.b16 %v328
      %v740 = vunpack.c.l.b16 %v329
      %v741 = vunpack.c.h.b16 %v329
      %v742 = vunpack.c.l.b16 %v330
      %v743 = vunpack.c.l.b16 %v331
      %v744 = vunpack.c.h.b16 %v331
      %v745 = vunpack.c.l.b16 %v332
      %v746 = vunpack.c.h.b16 %v332
      %v747 = vunpack.c.l.b16 %v333
      %v748 = vunpack.c.l.b16 %v334
      %v749 = vunpack.c.h.b16 %v334
      %v750 = vunpack.c.l.b16 %v335
      %v751 = vunpack.c.h.b16 %v335
      %v752 = vunpack.c.l.b16 %v336
      %v753 = vpack.c.b16 %v598, %v593
      %v754 = vpack.c.b16 %v599, %v594
      %v755 = vpack.c.b16 %v600, %v595
      %v756 = vpack.c.b16 %v601, %v596
      %v757 = vpack.c.b16 %v602, %v597
      %v758 = vpack.c.b16 %v608, %v603
      %v759 = vpack.c.b16 %v609, %v604
      %v760 = vpack.c.b16 %v610, %v605
      %v761 = vpack.c.b16 %v611, %v606
      %v762 = vpack.c.b16 %v612, %v607
      %v763 = vpack.c.b16 %v618, %v613
      %v764 = vpack.c.b16 %v619, %v614
      %v765 = vpack.c.b16 %v620, %v615
      %v766 = vpack.c.b16 %v621, %v616
      %v767 = vpack.c.b16 %v622, %v617
      %v768 = vpack.c.b16 %v628, %v623
      %v769 = vpack.c.b16 %v629, %v624
      %v770 = vpack.c.b16 %v630, %v625
      %v771 = vpack.c.b16 %v631, %v626
      %v772 = vpack.c.b16 %v632, %v627
      %v773 = vpack.c.b16 %v638, %v633
      %v774 = vpack.c.b16 %v639, %v634
      %v775 = vpack.c.b16 %v640, %v635
      %v776 = vpack.c.b16 %v641, %v636
      %v777 = vpack.c.b16 %v642, %v637
      %v778 = vpack.c.b16 %v648, %v643
      %v779 = vpack.c.b16 %v649, %v644
      %v780 = vpack.c.b16 %v650, %v645
      %v781 = vpack.c.b16 %v651, %v646
      %v782 = vpack.c.b16 %v652, %v647
      %v783 = vpack.c.b16 %v658, %v653
      %v784 = vpack.c.b16 %v659, %v654
      %v785 = vpack.c.b16 %v660, %v655
      %v786 = vpack.c.b16 %v661, %v656
      %v787 = vpack.c.b16 %v662, %v657
      %v788 = vpack.c.b16 %v668, %v663
      %v789 = vpack.c.b16 %v669, %v664
      %v790 = vpack.c.b16 %v670, %v665
      %v791 = vpack.c.b16 %v671, %v666
      %v792 = vpack.c.b16 %v672, %v667
      %v793 = vpack.c.b16 %v678, %v673
      %v794 = vpack.c.b16 %v679, %v674
      %v795 = vpack.c.b16 %v680, %v675
      %v796 = vpack.c.b16 %v681, %v676
      %v797 = vpack.c.b16 %v682, %v677
      %v798 = vpack.c.b16 %v688, %v683
      %v799 = vpack.c.b16 %v689, %v684
      %v800 = vpack.c.b16 %v690, %v685
      %v801 = vpack.c.b16 %v691, %v686
      %v802 = vpack.c.b16 %v692, %v687
      %v803 = vpack.c.b16 %v698, %v693
      %v804 = vpack.c.b16 %v699, %v694
      %v805 = vpack.c.b16 %v700, %v695
      %v806 = vpack.c.b16 %v701, %v696
      %v807 = vpack.c.b16 %v702, %v697
      %v808 = vpack.c.b16 %v708, %v703
      %v809 = vpack.c.b16 %v709, %v704
      %v810 = vpack.c.b16 %v710, %v705
      %v811 = vpack.c.b16 %v711, %v706
      %v812 = vpack.c.b16 %v712, %v707
      %v813 = vpack.c.b16 %v718, %v713
      %v814 = vpack.c.b16 %v719, %v714
      %v815 = vpack.c.b16 %v720, %v715
      %v816 = vpack.c.b16 %v721, %v716
      %v817 = vpack.c.b16 %v722, %v717
      %v818 = vpack.c.b16 %v728, %v723
      %v819 = vpack.c.b16 %v729, %v724
      %v820 = vpack.c.b16 %v730, %v725
      %v821 = vpack.c.b16 %v731, %v726
      %v822 = vpack.c.b16 %v732, %v727
      %v823 = vpack.c.b16 %v738, %v733
      %v824 = vpack.c.b16 %v739, %v734
      %v825 = vpack.c.b16 %v740, %v735
      %v826 = vpack.c.b16 %v741, %v736
      %v827 = vpack.c.b16 %v742, %v737
      %v828 = vpack.c.b16 %v748, %v743
      %v829 = vpack.c.b16 %v749, %v744
      %v830 = vpack.c.b16 %v750, %v745
      %v831 = vpack.c.b16 %v751, %v746
      %v832 = vpack.c.b16 %v752, %v747
      %v1073 = vunpack.c.l.b16 %v337
      %v1074 = vunpack.c.h.b16 %v337
      %v1075 = vunpack.c.l.b16 %v338
      %v1076 = vunpack.c.h.b16 %v338
      %v1077 = vunpack.c.l.b16 %v339
      %v1078 = vunpack.c.h.b16 %v339
      %v1079 = vunpack.c.l.b16 %v340
      %v1080 = vunpack.c.h.b16 %v340
      %v1081 = vunpack.c.l.b16 %v341
      %v1082 = vunpack.c.h.b16 %v341
      %v1083 = vunpack.c.l.b16 %v342
      %v1084 = vunpack.c.h.b16 %v342
      %v1085 = vunpack.c.l.b16 %v343
      %v1086 = vunpack.c.h.b16 %v343
      %v1087 = vunpack.c.l.b16 %v344
      %v1088 = vunpack.c.h.b16 %v344
      %v1089 = vunpack.c.l.b16 %v345
      %v1090 = vunpack.c.h.b16 %v345
      %v1091 = vunpack.c.l.b16 %v346
      %v1092 = vunpack.c.h.b16 %v346
      %v1093 = vunpack.c.l.b16 %v347
      %v1094 = vunpack.c.h.b16 %v347
      %v1095 = vunpack.c.l.b16 %v348
      %v1096 = vunpack.c.h.b16 %v348
      %v1097 = vunpack.c.l.b16 %v349
      %v1098 = vunpack.c.h.b16 %v349
      %v1099 = vunpack.c.l.b16 %v350
      %v1100 = vunpack.c.h.b16 %v350
      %v1101 = vunpack.c.l.b16 %v351
      %v1102 = vunpack.c.h.b16 %v351
      %v1103 = vunpack.c.l.b16 %v352
      %v1104 = vunpack.c.h.b16 %v352
      %v1105 = vunpack.c.l.b16 %v353
      %v1106 = vunpack.c.h.b16 %v353
      %v1107 = vunpack.c.l.b16 %v354
      %v1108 = vunpack.c.h.b16 %v354
      %v1109 = vunpack.c.l.b16 %v355
      %v1110 = vunpack.c.h.b16 %v355
      %v1111 = vunpack.c.l.b16 %v356
      %v1112 = vunpack.c.h.b16 %v356
      %v1113 = vunpack.c.l.b16 %v357
      %v1114 = vunpack.c.h.b16 %v357
      %v1115 = vunpack.c.l.b16 %v358
      %v1116 = vunpack.c.h.b16 %v358
      %v1117 = vunpack.c.l.b16 %v359
      %v1118 = vunpack.c.h.b16 %v359
      %v1119 = vunpack.c.l.b16 %v360
      %v1120 = vunpack.c.h.b16 %v360
      %v1121 = vunpack.c.l.b16 %v361
      %v1122 = vunpack.c.h.b16 %v361
      %v1123 = vunpack.c.l.b16 %v362
      %v1124 = vunpack.c.h.b16 %v362
      %v1125 = vunpack.c.l.b16 %v363
      %v1126 = vunpack.c.h.b16 %v363
      %v1127 = vunpack.c.l.b16 %v364
      %v1128 = vunpack.c.h.b16 %v364
      %v1129 = vunpack.c.l.b16 %v365
      %v1130 = vunpack.c.h.b16 %v365
      %v1131 = vunpack.c.l.b16 %v366
      %v1132 = vunpack.c.h.b16 %v366
      %v1133 = vunpack.c.l.b16 %v367
      %v1134 = vunpack.c.h.b16 %v367
      %v1135 = vunpack.c.l.b16 %v368
      %v1136 = vunpack.c.h.b16 %v368
      %v1137 = vunpack.c.l.b16 %v369
      %v1138 = vunpack.c.h.b16 %v369
      %v1139 = vunpack.c.l.b16 %v370
      %v1140 = vunpack.c.h.b16 %v370
      %v1141 = vunpack.c.l.b16 %v371
      %v1142 = vunpack.c.h.b16 %v371
      %v1143 = vunpack.c.l.b16 %v372
      %v1144 = vunpack.c.h.b16 %v372
      %v1145 = vunpack.c.l.b16 %v373
      %v1146 = vunpack.c.h.b16 %v373
      %v1147 = vunpack.c.l.b16 %v374
      %v1148 = vunpack.c.h.b16 %v374
      %v1149 = vunpack.c.l.b16 %v375
      %v1150 = vunpack.c.h.b16 %v375
      %v1151 = vunpack.c.l.b16 %v376
      %v1152 = vunpack.c.h.b16 %v376
      %v1153 = vunpack.c.l.b16 %v377
      %v1154 = vunpack.c.h.b16 %v377
      %v1155 = vunpack.c.l.b16 %v378
      %v1156 = vunpack.c.h.b16 %v378
      %v1157 = vunpack.c.l.b16 %v379
      %v1158 = vunpack.c.h.b16 %v379
      %v1159 = vunpack.c.l.b16 %v380
      %v1160 = vunpack.c.h.b16 %v380
      %v1161 = vunpack.c.l.b16 %v381
      %v1162 = vunpack.c.h.b16 %v381
      %v1163 = vunpack.c.l.b16 %v382
      %v1164 = vunpack.c.h.b16 %v382
      %v1165 = vunpack.c.l.b16 %v383
      %v1166 = vunpack.c.h.b16 %v383
      %v1167 = vunpack.c.l.b16 %v384
      %v1168 = vunpack.c.h.b16 %v384
      %v1169 = vunpack.c.l.b16 %v385
      %v1170 = vunpack.c.h.b16 %v385
      %v1171 = vunpack.c.l.b16 %v386
      %v1172 = vunpack.c.h.b16 %v386
      %v1173 = vunpack.c.l.b16 %v387
      %v1174 = vunpack.c.h.b16 %v387
      %v1175 = vunpack.c.l.b16 %v388
      %v1176 = vunpack.c.h.b16 %v388
      %v1177 = vunpack.c.l.b16 %v389
      %v1178 = vunpack.c.h.b16 %v389
      %v1179 = vunpack.c.l.b16 %v390
      %v1180 = vunpack.c.h.b16 %v390
      %v1181 = vunpack.c.l.b16 %v391
      %v1182 = vunpack.c.h.b16 %v391
      %v1183 = vunpack.c.l.b16 %v392
      %v1184 = vunpack.c.h.b16 %v392
      %v1185 = vunpack.c.l.b16 %v393
      %v1186 = vunpack.c.h.b16 %v393
      %v1187 = vunpack.c.l.b16 %v394
      %v1188 = vunpack.c.h.b16 %v394
      %v1189 = vunpack.c.l.b16 %v395
      %v1190 = vunpack.c.h.b16 %v395
      %v1191 = vunpack.c.l.b16 %v396
      %v1192 = vunpack.c.h.b16 %v396
      %v1193 = vunpack.c.l.b16 %v397
      %v1194 = vunpack.c.h.b16 %v397
      %v1195 = vunpack.c.l.b16 %v398
      %v1196 = vunpack.c.h.b16 %v398
      %v1197 = vunpack.c.l.b16 %v399
      %v1198 = vunpack.c.h.b16 %v399
      %v1199 = vunpack.c.l.b16 %v400
      %v1200 = vunpack.c.h.b16 %v400
      %v1201 = vunpack.c.l.b16 %v401
      %v1202 = vunpack.c.h.b16 %v401
      %v1203 = vunpack.c.l.b16 %v402
      %v1204 = vunpack.c.h.b16 %v402
      %v1205 = vunpack.c.l.b16 %v403
      %v1206 = vunpack.c.h.b16 %v403
      %v1207 = vunpack.c.l.b16 %v404
      %v1208 = vunpack.c.h.b16 %v404
      %v1209 = vunpack.c.l.b16 %v405
      %v1210 = vunpack.c.h.b16 %v405
      %v1211 = vunpack.c.l.b16 %v406
      %v1212 = vunpack.c.h.b16 %v406
      %v1213 = vunpack.c.l.b16 %v407
      %v1214 = vunpack.c.h.b16 %v407
      %v1215 = vunpack.c.l.b16 %v408
      %v1216 = vunpack.c.h.b16 %v408
      %v1217 = vunpack.c.l.b16 %v409
      %v1218 = vunpack.c.h.b16 %v409
      %v1219 = vunpack.c.l.b16 %v410
      %v1220 = vunpack.c.h.b16 %v410
      %v1221 = vunpack.c.l.b16 %v411
      %v1222 = vunpack.c.h.b16 %v411
      %v1223 = vunpack.c.l.b16 %v412
      %v1224 = vunpack.c.h.b16 %v412
      %v1225 = vunpack.c.l.b16 %v413
      %v1226 = vunpack.c.h.b16 %v413
      %v1227 = vunpack.c.l.b16 %v414
      %v1228 = vunpack.c.h.b16 %v414
      %v1229 = vunpack.c.l.b16 %v415
      %v1230 = vunpack.c.h.b16 %v415
      %v1231 = vunpack.c.l.b16 %v416
      %v1232 = vunpack.c.h.b16 %v416
      %v1233 = vunpack.c.l.b16 %v417
      %v1234 = vunpack.c.h.b16 %v417
      %v1235 = vunpack.c.l.b16 %v418
      %v1236 = vunpack.c.h.b16 %v418
      %v1237 = vunpack.c.l.b16 %v419
      %v1238 = vunpack.c.h.b16 %v419
      %v1239 = vunpack.c.l.b16 %v420
      %v1240 = vunpack.c.h.b16 %v420
      %v1241 = vunpack.c.l.b16 %v421
      %v1242 = vunpack.c.h.b16 %v421
      %v1243 = vunpack.c.l.b16 %v422
      %v1244 = vunpack.c.h.b16 %v422
      %v1245 = vunpack.c.l.b16 %v423
      %v1246 = vunpack.c.h.b16 %v423
      %v1247 = vunpack.c.l.b16 %v424
      %v1248 = vunpack.c.h.b16 %v424
      %v1249 = vunpack.c.l.b16 %v425
      %v1250 = vunpack.c.h.b16 %v425
      %v1251 = vunpack.c.l.b16 %v426
      %v1252 = vunpack.c.h.b16 %v426
      %v1253 = vunpack.c.l.b16 %v427
      %v1254 = vunpack.c.h.b16 %v427
      %v1255 = vunpack.c.l.b16 %v428
      %v1256 = vunpack.c.h.b16 %v428
      %v1257 = vunpack.c.l.b16 %v429
      %v1258 = vunpack.c.h.b16 %v429
      %v1259 = vunpack.c.l.b16 %v430
      %v1260 = vunpack.c.h.b16 %v430
      %v1261 = vunpack.c.l.b16 %v431
      %v1262 = vunpack.c.h.b16 %v431
      %v1263 = vunpack.c.l.b16 %v432
      %v1264 = vunpack.c.h.b16 %v432
      %v1265 = vunpack.c.l.b16 %v433
      %v1266 = vunpack.c.h.b16 %v433
      %v1267 = vunpack.c.l.b16 %v434
      %v1268 = vunpack.c.h.b16 %v434
      %v1269 = vunpack.c.l.b16 %v435
      %v1270 = vunpack.c.h.b16 %v435
      %v1271 = vunpack.c.l.b16 %v436
      %v1272 = vunpack.c.h.b16 %v436
      %v1273 = vunpack.c.l.b16 %v437
      %v1274 = vunpack.c.h.b16 %v437
      %v1275 = vunpack.c.l.b16 %v438
      %v1276 = vunpack.c.h.b16 %v438
      %v1277 = vunpack.c.l.b16 %v439
      %v1278 = vunpack.c.h.b16 %v439
      %v1279 = vunpack.c.l.b16 %v440
      %v1280 = vunpack.c.h.b16 %v440
      %v1281 = vunpack.c.l.b16 %v441
      %v1282 = vunpack.c.h.b16 %v441
      %v1283 = vunpack.c.l.b16 %v442
      %v1284 = vunpack.c.h.b16 %v442
      %v1285 = vunpack.c.l.b16 %v443
      %v1286 = vunpack.c.h.b16 %v443
      %v1287 = vunpack.c.l.b16 %v444
      %v1288 = vunpack.c.h.b16 %v444
      %v1289 = vunpack.c.l.b16 %v445
      %v1290 = vunpack.c.h.b16 %v445
      %v1291 = vunpack.c.l.b16 %v446
      %v1292 = vunpack.c.h.b16 %v446
      %v1293 = vunpack.c.l.b16 %v447
      %v1294 = vunpack.c.h.b16 %v447
      %v1295 = vunpack.c.l.b16 %v448
      %v1296 = vunpack.c.h.b16 %v448
      %v1297 = vunpack.c.l.b16 %v449
      %v1298 = vunpack.c.h.b16 %v449
      %v1299 = vunpack.c.l.b16 %v450
      %v1300 = vunpack.c.h.b16 %v450
      %v1301 = vunpack.c.l.b16 %v451
      %v1302 = vunpack.c.h.b16 %v451
      %v1303 = vunpack.c.l.b16 %v452
      %v1304 = vunpack.c.h.b16 %v452
      %v1305 = vunpack.c.l.b16 %v453
      %v1306 = vunpack.c.h.b16 %v453
      %v1307 = vunpack.c.l.b16 %v454
      %v1308 = vunpack.c.h.b16 %v454
      %v1309 = vunpack.c.l.b16 %v455
      %v1310 = vunpack.c.h.b16 %v455
      %v1311 = vunpack.c.l.b16 %v456
      %v1312 = vunpack.c.h.b16 %v456
      %v1313 = vunpack.c.l.b16 %v457
      %v1314 = vunpack.c.h.b16 %v457
      %v1315 = vunpack.c.l.b16 %v458
      %v1316 = vunpack.c.h.b16 %v458
      %v1317 = vunpack.c.l.b16 %v459
      %v1318 = vunpack.c.h.b16 %v459
      %v1319 = vunpack.c.l.b16 %v460
      %v1320 = vunpack.c.h.b16 %v460
      %v1321 = vunpack.c.l.b16 %v461
      %v1322 = vunpack.c.h.b16 %v461
      %v1323 = vunpack.c.l.b16 %v462
      %v1324 = vunpack.c.h.b16 %v462
      %v1325 = vunpack.c.l.b16 %v463
      %v1326 = vunpack.c.h.b16 %v463
      %v1327 = vunpack.c.l.b16 %v464
      %v1328 = vunpack.c.h.b16 %v464
      %v1329 = vunpack.c.l.b16 %v465
      %v1330 = vunpack.c.h.b16 %v465
      %v1331 = vunpack.c.l.b16 %v466
      %v1332 = vunpack.c.h.b16 %v466
      %v1333 = vunpack.c.l.b16 %v467
      %v1334 = vunpack.c.h.b16 %v467
      %v1335 = vunpack.c.l.b16 %v468
      %v1336 = vunpack.c.h.b16 %v468
      %v1337 = vunpack.c.l.b16 %v469
      %v1338 = vunpack.c.h.b16 %v469
      %v1339 = vunpack.c.l.b16 %v470
      %v1340 = vunpack.c.h.b16 %v470
      %v1341 = vunpack.c.l.b16 %v471
      %v1342 = vunpack.c.h.b16 %v471
      %v1343 = vunpack.c.l.b16 %v472
      %v1344 = vunpack.c.h.b16 %v472
      %v1345 = vunpack.c.l.b16 %v473
      %v1346 = vunpack.c.h.b16 %v473
      %v1347 = vunpack.c.l.b16 %v474
      %v1348 = vunpack.c.h.b16 %v474
      %v1349 = vunpack.c.l.b16 %v475
      %v1350 = vunpack.c.h.b16 %v475
      %v1351 = vunpack.c.l.b16 %v476
      %v1352 = vunpack.c.h.b16 %v476
      %v1353 = vunpack.c.l.b16 %v477
      %v1354 = vunpack.c.h.b16 %v477
      %v1355 = vunpack.c.l.b16 %v478
      %v1356 = vunpack.c.h.b16 %v478
      %v1357 = vunpack.c.l.b16 %v479
      %v1358 = vunpack.c.h.b16 %v479
      %v1359 = vunpack.c.l.b16 %v480
      %v1360 = vunpack.c.h.b16 %v480
      %v1361 = vunpack.c.l.b16 %v481
      %v1362 = vunpack.c.h.b16 %v481
      %v1363 = vunpack.c.l.b16 %v482
      %v1364 = vunpack.c.h.b16 %v482
      %v1365 = vunpack.c.l.b16 %v483
      %v1366 = vunpack.c.h.b16 %v483
      %v1367 = vunpack.c.l.b16 %v484
      %v1368 = vunpack.c.h.b16 %v484
      %v1369 = vunpack.c.l.b16 %v485
      %v1370 = vunpack.c.h.b16 %v485
      %v1371 = vunpack.c.l.b16 %v486
      %v1372 = vunpack.c.h.b16 %v486
      %v1373 = vunpack.c.l.b16 %v487
      %v1374 = vunpack.c.h.b16 %v487
      %v1375 = vunpack.c.l.b16 %v488
      %v1376 = vunpack.c.h.b16 %v488
      %v1377 = vunpack.c.l.b16 %v489
      %v1378 = vunpack.c.h.b16 %v489
      %v1379 = vunpack.c.l.b16 %v490
      %v1380 = vunpack.c.h.b16 %v490
      %v1381 = vunpack.c.l.b16 %v491
      %v1382 = vunpack.c.h.b16 %v491
      %v1383 = vunpack.c.l.b16 %v492
      %v1384 = vunpack.c.h.b16 %v492
      %v1385 = vunpack.c.l.b16 %v493
      %v1386 = vunpack.c.h.b16 %v493
      %v1387 = vunpack.c.l.b16 %v494
      %v1388 = vunpack.c.h.b16 %v494
      %v1389 = vunpack.c.l.b16 %v495
      %v1390 = vunpack.c.h.b16 %v495
      %v1391 = vunpack.c.l.b16 %v496
      %v1392 = vunpack.c.h.b16 %v496
      %v1393 = vpack.c.b16 %v1077, %v1073
      %v1394 = vpack.c.b16 %v1078, %v1074
      %v1395 = vpack.c.b16 %v1079, %v1075
      %v1396 = vpack.c.b16 %v1080, %v1076
      %v1397 = vpack.c.b16 %v1085, %v1081
      %v1398 = vpack.c.b16 %v1086, %v1082
      %v1399 = vpack.c.b16 %v1087, %v1083
      %v1400 = vpack.c.b16 %v1088, %v1084
      %v1401 = vpack.c.b16 %v1093, %v1089
      %v1402 = vpack.c.b16 %v1094, %v1090
      %v1403 = vpack.c.b16 %v1095, %v1091
      %v1404 = vpack.c.b16 %v1096, %v1092
      %v1405 = vpack.c.b16 %v1101, %v1097
      %v1406 = vpack.c.b16 %v1102, %v1098
      %v1407 = vpack.c.b16 %v1103, %v1099
      %v1408 = vpack.c.b16 %v1104, %v1100
      %v1409 = vpack.c.b16 %v1109, %v1105
      %v1410 = vpack.c.b16 %v1110, %v1106
      %v1411 = vpack.c.b16 %v1111, %v1107
      %v1412 = vpack.c.b16 %v1112, %v1108
      %v1413 = vpack.c.b16 %v1117, %v1113
      %v1414 = vpack.c.b16 %v1118, %v1114
      %v1415 = vpack.c.b16 %v1119, %v1115
      %v1416 = vpack.c.b16 %v1120, %v1116
      %v1417 = vpack.c.b16 %v1125, %v1121
      %v1418 = vpack.c.b16 %v1126, %v1122
      %v1419 = vpack.c.b16 %v1127, %v1123
      %v1420 = vpack.c.b16 %v1128, %v1124
      %v1421 = vpack.c.b16 %v1133, %v1129
      %v1422 = vpack.c.b16 %v1134, %v1130
      %v1423 = vpack.c.b16 %v1135, %v1131
      %v1424 = vpack.c.b16 %v1136, %v1132
      %v1425 = vpack.c.b16 %v1141, %v1137
      %v1426 = vpack.c.b16 %v1142, %v1138
      %v1427 = vpack.c.b16 %v1143, %v1139
      %v1428 = vpack.c.b16 %v1144, %v1140
      %v1429 = vpack.c.b16 %v1149, %v1145
      %v1430 = vpack.c.b16 %v1150, %v1146
      %v1431 = vpack.c.b16 %v1151, %v1147
      %v1432 = vpack.c.b16 %v1152, %v1148
      %v1433 = vpack.c.b16 %v1157, %v1153
      %v1434 = vpack.c.b16 %v1158, %v1154
      %v1435 = vpack.c.b16 %v1159, %v1155
      %v1436 = vpack.c.b16 %v1160, %v1156
      %v1437 = vpack.c.b16 %v1165, %v1161
      %v1438 = vpack.c.b16 %v1166, %v1162
      %v1439 = vpack.c.b16 %v1167, %v1163
      %v1440 = vpack.c.b16 %v1168, %v1164
      %v1441 = vpack.c.b16 %v1173, %v1169
      %v1442 = vpack.c.b16 %v1174, %v1170
      %v1443 = vpack.c.b16 %v1175, %v1171
      %v1444 = vpack.c.b16 %v1176, %v1172
      %v1445 = vpack.c.b16 %v1181, %v1177
      %v1446 = vpack.c.b16 %v1182, %v1178
      %v1447 = vpack.c.b16 %v1183, %v1179
      %v1448 = vpack.c.b16 %v1184, %v1180
      %v1449 = vpack.c.b16 %v1189, %v1185
      %v1450 = vpack.c.b16 %v1190, %v1186
      %v1451 = vpack.c.b16 %v1191, %v1187
      %v1452 = vpack.c.b16 %v1192, %v1188
      %v1453 = vpack.c.b16 %v1197, %v1193
      %v1454 = vpack.c.b16 %v1198, %v1194
      %v1455 = vpack.c.b16 %v1199, %v1195
      %v1456 = vpack.c.b16 %v1200, %v1196
      %v1457 = vpack.c.b16 %v1205, %v1201
      %v1458 = vpack.c.b16 %v1206, %v1202
      %v1459 = vpack.c.b16 %v1207, %v1203
      %v1460 = vpack.c.b16 %v1208, %v1204
      %v1461 = vpack.c.b16 %v1213, %v1209
      %v1462 = vpack.c.b16 %v1214, %v1210
      %v1463 = vpack.c.b16 %v1215, %v1211
      %v1464 = vpack.c.b16 %v1216, %v1212
      %v1465 = vpack.c.b16 %v1221, %v1217
      %v1466 = vpack.c.b16 %v1222, %v1218
      %v1467 = vpack.c.b16 %v1223, %v1219
      %v1468 = vpack.c.b16 %v1224, %v1220
      %v1469 = vpack.c.b16 %v1229, %v1225
      %v1470 = vpack.c.b16 %v1230, %v1226
      %v1471 = vpack.c.b16 %v1231, %v1227
      %v1472 = vpack.c.b16 %v1232, %v1228
      %v1473 = vpack.c.b16 %v1237, %v1233
      %v1474 = vpack.c.b16 %v1238, %v1234
      %v1475 = vpack.c.b16 %v1239, %v1235
      %v1476 = vpack.c.b16 %v1240, %v1236
      %v1477 = vpack.c.b16 %v1245, %v1241
      %v1478 = vpack.c.b16 %v1246, %v1242
      %v1479 = vpack.c.b16 %v1247, %v1243
      %v1480 = vpack.c.b16 %v1248, %v1244
      %v1481 = vpack.c.b16 %v1253, %v1249
      %v1482 = vpack.c.b16 %v1254, %v1250
      %v1483 = vpack.c.b16 %v1255, %v1251
      %v1484 = vpack.c.b16 %v1256, %v1252
      %v1485 = vpack.c.b16 %v1261, %v1257
      %v1486 = vpack.c.b16 %v1262, %v1258
      %v1487 = vpack.c.b16 %v1263, %v1259
      %v1488 = vpack.c.b16 %v1264, %v1260
      %v1489 = vpack.c.b16 %v1269, %v1265
      %v1490 = vpack.c.b16 %v1270, %v1266
      %v1491 = vpack.c.b16 %v1271, %v1267
      %v1492 = vpack.c.b16 %v1272, %v1268
      %v1493 = vpack.c.b16 %v1277, %v1273
      %v1494 = vpack.c.b16 %v1278, %v1274
      %v1495 = vpack.c.b16 %v1279, %v1275
      %v1496 = vpack.c.b16 %v1280, %v1276
      %v1497 = vpack.c.b16 %v1285, %v1281
      %v1498 = vpack.c.b16 %v1286, %v1282
      %v1499 = vpack.c.b16 %v1287, %v1283
      %v1500 = vpack.c.b16 %v1288, %v1284
      %v1501 = vpack.c.b16 %v1293, %v1289
      %v1502 = vpack.c.b16 %v1294, %v1290
      %v1503 = vpack.c.b16 %v1295, %v1291
      %v1504 = vpack.c.b16 %v1296, %v1292
      %v1505 = vpack.c.b16 %v1301, %v1297
      %v1506 = vpack.c.b16 %v1302, %v1298
      %v1507 = vpack.c.b16 %v1303, %v1299
      %v1508 = vpack.c.b16 %v1304, %v1300
      %v1509 = vpack.c.b16 %v1309, %v1305
      %v1510 = vpack.c.b16 %v1310, %v1306
      %v1511 = vpack.c.b16 %v1311, %v1307
      %v1512 = vpack.c.b16 %v1312, %v1308
      %v1513 = vpack.c.b16 %v1317, %v1313
      %v1514 = vpack.c.b16 %v1318, %v1314
      %v1515 = vpack.c.b16 %v1319, %v1315
      %v1516 = vpack.c.b16 %v1320, %v1316
      %v1517 = vpack.c.b16 %v1325, %v1321
      %v1518 = vpack.c.b16 %v1326, %v1322
      %v1519 = vpack.c.b16 %v1327, %v1323
      %v1520 = vpack.c.b16 %v1328, %v1324
      %v1521 = vpack.c.b16 %v1333, %v1329
      %v1522 = vpack.c.b16 %v1334, %v1330
      %v1523 = vpack.c.b16 %v1335, %v1331
      %v1524 = vpack.c.b16 %v1336, %v1332
      %v1525 = vpack.c.b16 %v1341, %v1337
      %v1526 = vpack.c.b16 %v1342, %v1338
      %v1527 = vpack.c.b16 %v1343, %v1339
      %v1528 = vpack.c.b16 %v1344, %v1340
      %v1529 = vpack.c.b16 %v1349, %v1345
      %v1530 = vpack.c.b16 %v1350, %v1346
      %v1531 = vpack.c.b16 %v1351, %v1347
      %v1532 = vpack.c.b16 %v1352, %v1348
      %v1533 = vpack.c.b16 %v1357, %v1353
      %v1534 = vpack.c.b16 %v1358, %v1354
      %v1535 = vpack.c.b16 %v1359, %v1355
      %v1536 = vpack.c.b16 %v1360, %v1356
      %v1537 = vpack.c.b16 %v1365, %v1361
      %v1538 = vpack.c.b16 %v1366, %v1362
      %v1539 = vpack.c.b16 %v1367, %v1363
      %v1540 = vpack.c.b16 %v1368, %v1364
      %v1541 = vpack.c.b16 %v1373, %v1369
      %v1542 = vpack.c.b16 %v1374, %v1370
      %v1543 = vpack.c.b16 %v1375, %v1371
      %v1544 = vpack.c.b16 %v1376, %v1372
      %v1545 = vpack.c.b16 %v1381, %v1377
      %v1546 = vpack.c.b16 %v1382, %v1378
      %v1547 = vpack.c.b16 %v1383, %v1379
      %v1548 = vpack.c.b16 %v1384, %v1380
      %v1549 = vpack.c.b16 %v1389, %v1385
      %v1550 = vpack.c.b16 %v1390, %v1386
      %v1551 = vpack.c.b16 %v1391, %v1387
      %v1552 = vpack.c.b16 %v1392, %v1388
      %1713 = vmatprep.subr.bf16.mxu0 %v1394
      %1714 = vmatpush1.bf16.msra.mxu0 %v1393
      %1715 = vmatprep.subr.bf16.mxu0 %v1398
      %1716 = vmatpush1.bf16.msra.mxu0 %v1397
      %1717 = vmatprep.subr.bf16.mxu0 %v1402
      %1718 = vmatpush1.bf16.msra.mxu0 %v1401
      %1719 = vmatprep.subr.bf16.mxu0 %v1406
      %1720 = vmatpush1.bf16.msra.mxu0 %v1405
      %1721 = vmatprep.subr.bf16.mxu0 %v1410
      %1722 = vmatpush1.bf16.msra.mxu0 %v1409
      %1723 = vmatprep.subr.bf16.mxu0 %v1414
      %1724 = vmatpush1.bf16.msra.mxu0 %v1413
      %1725 = vmatprep.subr.bf16.mxu0 %v1418
      %1726 = vmatpush1.bf16.msra.mxu0 %v1417
      %1727 = vmatprep.subr.bf16.mxu0 %v1422
      %1728 = vmatpush1.bf16.msra.mxu0 %v1421
      %1729 = vmatprep.subr.bf16.mxu0 %v1426
      %1730 = vmatpush1.bf16.msra.mxu0 %v1425
      %1731 = vmatprep.subr.bf16.mxu0 %v1430
      %1732 = vmatpush1.bf16.msra.mxu0 %v1429
      %1733 = vmatprep.subr.bf16.mxu0 %v1434
      %1734 = vmatpush1.bf16.msra.mxu0 %v1433
      %1735 = vmatprep.subr.bf16.mxu0 %v1438
      %1736 = vmatpush1.bf16.msra.mxu0 %v1437
      %1737 = vmatprep.subr.bf16.mxu0 %v1442
      %1738 = vmatpush1.bf16.msra.mxu0 %v1441
      %1739 = vmatprep.subr.bf16.mxu0 %v1446
      %1740 = vmatpush1.bf16.msra.mxu0 %v1445
      %1741 = vmatprep.subr.bf16.mxu0 %v1450
      %1742 = vmatpush1.bf16.msra.mxu0 %v1449
      %1743 = vmatprep.subr.bf16.mxu0 %v1454
      %1744 = vmatpush1.bf16.msra.mxu0 %v1453
      %1745 = vmatprep.mubr.bf16.mxu0 %v754
      %1746 = vmatmul.mubr.bf16.gmra.mrb[0].mxu0 %v753
      %v1747 = vpop.f32.mrb[0].mxu0
      %v1748 = vadd.f32 0.0, %v1747
      %v1749 = vpop.f32.mrb[0].mxu0
      %v1750 = vadd.f32 0.0, %v1749
      %v1751 = vpop.f32.mrb[0].mxu0
      %v1752 = vadd.f32 0.0, %v1751
      %v1753 = vpop.f32.mrb[0].mxu0
      %v1754 = vadd.f32 0.0, %v1753
      %1755 = vmatprep.mubr.bf16.mxu0 %v759
      %1756 = vmatmul.mubr.bf16.gmra.mrb[0].mxu0 %v758
      %v1757 = vpop.f32.mrb[0].mxu0
      %v1758 = vadd.f32 0.0, %v1757
      %v1759 = vpop.f32.mrb[0].mxu0
      %v1760 = vadd.f32 0.0, %v1759
      %v1761 = vpop.f32.mrb[0].mxu0
      %v1762 = vadd.f32 0.0, %v1761
      %v1763 = vpop.f32.mrb[0].mxu0
      %v1764 = vadd.f32 0.0, %v1763
      %1765 = vmatprep.mubr.bf16.mxu0 %v764
      %1766 = vmatmul.mubr.bf16.gmra.mrb[0].mxu0 %v763
      %v1767 = vpop.f32.mrb[0].mxu0
      %v1768 = vadd.f32 0.0, %v1767
      %v1769 = vpop.f32.mrb[0].mxu0
      %v1770 = vadd.f32 0.0, %v1769
      %v1771 = vpop.f32.mrb[0].mxu0
      %v1772 = vadd.f32 0.0, %v1771
      %v1773 = vpop.f32.mrb[0].mxu0
      %v1774 = vadd.f32 0.0, %v1773
      %1775 = vmatprep.mubr.bf16.mxu0 %v769
      %1776 = vmatmul.mubr.bf16.gmra.mrb[0].mxu0 %v768
      %v1777 = vpop.f32.mrb[0].mxu0
      %v1778 = vadd.f32 0.0, %v1777
      %v1779 = vpop.f32.mrb[0].mxu0
      %v1780 = vadd.f32 0.0, %v1779
      %v1781 = vpop.f32.mrb[0].mxu0
      %v1782 = vadd.f32 0.0, %v1781
      %v1783 = vpop.f32.mrb[0].mxu0
      %v1784 = vadd.f32 0.0, %v1783
      %1785 = vmatprep.mubr.bf16.mxu0 %v774
      %1786 = vmatmul.mubr.bf16.gmra.mrb[0].mxu0 %v773
      %v1787 = vpop.f32.mrb[0].mxu0
      %v1788 = vadd.f32 0.0, %v1787
      %v1789 = vpop.f32.mrb[0].mxu0
      %v1790 = vadd.f32 0.0, %v1789
      %v1791 = vpop.f32.mrb[0].mxu0
      %v1792 = vadd.f32 0.0, %v1791
      %v1793 = vpop.f32.mrb[0].mxu0
      %v1794 = vadd.f32 0.0, %v1793
      %1795 = vmatprep.mubr.bf16.mxu0 %v779
      %1796 = vmatmul.mubr.bf16.gmra.mrb[0].mxu0 %v778
      %v1797 = vpop.f32.mrb[0].mxu0
      %v1798 = vadd.f32 0.0, %v1797
      %v1799 = vpop.f32.mrb[0].mxu0
      %v1800 = vadd.f32 0.0, %v1799
      %v1801 = vpop.f32.mrb[0].mxu0
      %v1802 = vadd.f32 0.0, %v1801
      %v1803 = vpop.f32.mrb[0].mxu0
      %v1804 = vadd.f32 0.0, %v1803
      %1805 = vmatprep.mubr.bf16.mxu0 %v784
      %1806 = vmatmul.mubr.bf16.gmra.mrb[0].mxu0 %v783
      %v1807 = vpop.f32.mrb[0].mxu0
      %v1808 = vadd.f32 0.0, %v1807
      %v1809 = vpop.f32.mrb[0].mxu0
      %v1810 = vadd.f32 0.0, %v1809
      %v1811 = vpop.f32.mrb[0].mxu0
      %v1812 = vadd.f32 0.0, %v1811
      %v1813 = vpop.f32.mrb[0].mxu0
      %v1814 = vadd.f32 0.0, %v1813
      %1815 = vmatprep.mubr.bf16.mxu0 %v789
      %1816 = vmatmul.mubr.bf16.gmra.mrb[0].mxu0 %v788
      %v1817 = vpop.f32.mrb[0].mxu0
      %v1818 = vadd.f32 0.0, %v1817
      %v1819 = vpop.f32.mrb[0].mxu0
      %v1820 = vadd.f32 0.0, %v1819
      %v1821 = vpop.f32.mrb[0].mxu0
      %v1822 = vadd.f32 0.0, %v1821
      %v1823 = vpop.f32.mrb[0].mxu0
      %v1824 = vadd.f32 0.0, %v1823
      %1825 = vmatprep.mubr.bf16.mxu0 %v794
      %1826 = vmatmul.mubr.bf16.gmra.mrb[0].mxu0 %v793
      %v1827 = vpop.f32.mrb[0].mxu0
      %v1828 = vadd.f32 0.0, %v1827
      %v1829 = vpop.f32.mrb[0].mxu0
      %v1830 = vadd.f32 0.0, %v1829
      %v1831 = vpop.f32.mrb[0].mxu0
      %v1832 = vadd.f32 0.0, %v1831
      %v1833 = vpop.f32.mrb[0].mxu0
      %v1834 = vadd.f32 0.0, %v1833
      %1835 = vmatprep.mubr.bf16.mxu0 %v799
      %1836 = vmatmul.mubr.bf16.gmra.mrb[0].mxu0 %v798
      %v1837 = vpop.f32.mrb[0].mxu0
      %v1838 = vadd.f32 0.0, %v1837
      %v1839 = vpop.f32.mrb[0].mxu0
      %v1840 = vadd.f32 0.0, %v1839
      %v1841 = vpop.f32.mrb[0].mxu0
      %v1842 = vadd.f32 0.0, %v1841
      %v1843 = vpop.f32.mrb[0].mxu0
      %v1844 = vadd.f32 0.0, %v1843
      %1845 = vmatprep.mubr.bf16.mxu0 %v804
      %1846 = vmatmul.mubr.bf16.gmra.mrb[0].mxu0 %v803
      %v1847 = vpop.f32.mrb[0].mxu0
      %v1848 = vadd.f32 0.0, %v1847
      %v1849 = vpop.f32.mrb[0].mxu0
      %v1850 = vadd.f32 0.0, %v1849
      %v1851 = vpop.f32.mrb[0].mxu0
      %v1852 = vadd.f32 0.0, %v1851
      %v1853 = vpop.f32.mrb[0].mxu0
      %v1854 = vadd.f32 0.0, %v1853
      %1855 = vmatprep.mubr.bf16.mxu0 %v809
      %1856 = vmatmul.mubr.bf16.gmra.mrb[0].mxu0 %v808
      %v1857 = vpop.f32.mrb[0].mxu0
      %v1858 = vadd.f32 0.0, %v1857
      %v1859 = vpop.f32.mrb[0].mxu0
      %v1860 = vadd.f32 0.0, %v1859
      %v1861 = vpop.f32.mrb[0].mxu0
      %v1862 = vadd.f32 0.0, %v1861
      %v1863 = vpop.f32.mrb[0].mxu0
      %v1864 = vadd.f32 0.0, %v1863
      %1865 = vmatprep.mubr.bf16.mxu0 %v814
      %1866 = vmatmul.mubr.bf16.gmra.mrb[0].mxu0 %v813
      %v1867 = vpop.f32.mrb[0].mxu0
      %v1868 = vadd.f32 0.0, %v1867
      %v1869 = vpop.f32.mrb[0].mxu0
      %v1870 = vadd.f32 0.0, %v1869
      %v1871 = vpop.f32.mrb[0].mxu0
      %v1872 = vadd.f32 0.0, %v1871
      %v1873 = vpop.f32.mrb[0].mxu0
      %v1874 = vadd.f32 0.0, %v1873
      %1875 = vmatprep.mubr.bf16.mxu0 %v819
      %1876 = vmatmul.mubr.bf16.gmra.mrb[0].mxu0 %v818
      %v1877 = vpop.f32.mrb[0].mxu0
      %v1878 = vadd.f32 0.0, %v1877
      %v1879 = vpop.f32.mrb[0].mxu0
      %v1880 = vadd.f32 0.0, %v1879
      %v1881 = vpop.f32.mrb[0].mxu0
      %v1882 = vadd.f32 0.0, %v1881
      %v1883 = vpop.f32.mrb[0].mxu0
      %v1884 = vadd.f32 0.0, %v1883
      %1885 = vmatprep.mubr.bf16.mxu0 %v824
      %1886 = vmatmul.mubr.bf16.gmra.mrb[0].mxu0 %v823
      %v1887 = vpop.f32.mrb[0].mxu0
      %v1888 = vadd.f32 0.0, %v1887
      %v1889 = vpop.f32.mrb[0].mxu0
      %v1890 = vadd.f32 0.0, %v1889
      %v1891 = vpop.f32.mrb[0].mxu0
      %v1892 = vadd.f32 0.0, %v1891
      %v1893 = vpop.f32.mrb[0].mxu0
      %v1894 = vadd.f32 0.0, %v1893
      %1895 = vmatprep.mubr.bf16.mxu0 %v829
      %1896 = vmatmul.mubr.bf16.gmra.mrb[0].mxu0 %v828
      %v1897 = vpop.f32.mrb[0].mxu0
      %v1898 = vadd.f32 0.0, %v1897
      %v1899 = vpop.f32.mrb[0].mxu0
      %v1900 = vadd.f32 0.0, %v1899
      %v1901 = vpop.f32.mrb[0].mxu0
      %v1902 = vadd.f32 0.0, %v1901
      %v1903 = vpop.f32.mrb[0].mxu0
      %v1904 = vadd.f32 0.0, %v1903
      %1905 = vdwg.mxu0
      %1906 = vmatprep.subr.bf16.mxu0 %v1458
      %1907 = vmatpush1.bf16.msra.mxu0 %v1457
      %1908 = vmatprep.subr.bf16.mxu0 %v1462
      %1909 = vmatpush1.bf16.msra.mxu0 %v1461
      %1910 = vmatprep.subr.bf16.mxu0 %v1466
      %1911 = vmatpush1.bf16.msra.mxu0 %v1465
      %1912 = vmatprep.subr.bf16.mxu0 %v1470
      %1913 = vmatpush1.bf16.msra.mxu0 %v1469
      %1914 = vmatprep.subr.bf16.mxu0 %v1474
      %1915 = vmatpush1.bf16.msra.mxu0 %v1473
      %1916 = vmatprep.subr.bf16.mxu0 %v1478
      %1917 = vmatpush1.bf16.msra.mxu0 %v1477
      %1918 = vmatprep.subr.bf16.mxu0 %v1482
      %1919 = vmatpush1.bf16.msra.mxu0 %v1481
      %1920 = vmatprep.subr.bf16.mxu0 %v1486
      %1921 = vmatpush1.bf16.msra.mxu0 %v1485
      %1922 = vmatprep.subr.bf16.mxu0 %v1490
      %1923 = vmatpush1.bf16.msra.mxu0 %v1489
      %1924 = vmatprep.subr.bf16.mxu0 %v1494
      %1925 = vmatpush1.bf16.msra.mxu0 %v1493
      %1926 = vmatprep.subr.bf16.mxu0 %v1498
      %1927 = vmatpush1.bf16.msra.mxu0 %v1497
      %1928 = vmatprep.subr.bf16.mxu0 %v1502
      %1929 = vmatpush1.bf16.msra.mxu0 %v1501
      %1930 = vmatprep.subr.bf16.mxu0 %v1506
      %1931 = vmatpush1.bf16.msra.mxu0 %v1505
      %1932 = vmatprep.subr.bf16.mxu0 %v1510
      %1933 = vmatpush1.bf16.msra.mxu0 %v1509
      %1934 = vmatprep.subr.bf16.mxu0 %v1514
      %1935 = vmatpush1.bf16.msra.mxu0 %v1513
      %1936 = vmatprep.subr.bf16.mxu0 %v1518
      %1937 = vmatpush1.bf16.msra.mxu0 %v1517
      %1938 = vmatprep.mubr.bf16.mxu0 %v756
      %1939 = vmatmul.mubr.bf16.gmra.mrb[0].mxu0 %v755
      %v1940 = vpop.f32.mrb[0].mxu0
      %v1941 = vadd.f32 %v1748, %v1940
      %v1942 = vpop.f32.mrb[0].mxu0
      %v1943 = vadd.f32 %v1750, %v1942
      %v1944 = vpop.f32.mrb[0].mxu0
      %v1945 = vadd.f32 %v1752, %v1944
      %v1946 = vpop.f32.mrb[0].mxu0
      %v1947 = vadd.f32 %v1754, %v1946
      %1948 = vmatprep.mubr.bf16.mxu0 %v761
      %1949 = vmatmul.mubr.bf16.gmra.mrb[0].mxu0 %v760
      %v1950 = vpop.f32.mrb[0].mxu0
      %v1951 = vadd.f32 %v1758, %v1950
      %v1952 = vpop.f32.mrb[0].mxu0
      %v1953 = vadd.f32 %v1760, %v1952
      %v1954 = vpop.f32.mrb[0].mxu0
      %v1955 = vadd.f32 %v1762, %v1954
      %v1956 = vpop.f32.mrb[0].mxu0
      %v1957 = vadd.f32 %v1764, %v1956
      %1958 = vmatprep.mubr.bf16.mxu0 %v766
      %1959 = vmatmul.mubr.bf16.gmra.mrb[0].mxu0 %v765
      %v1960 = vpop.f32.mrb[0].mxu0
      %v1961 = vadd.f32 %v1768, %v1960
      %v1962 = vpop.f32.mrb[0].mxu0
      %v1963 = vadd.f32 %v1770, %v1962
      %v1964 = vpop.f32.mrb[0].mxu0
      %v1965 = vadd.f32 %v1772, %v1964
      %v1966 = vpop.f32.mrb[0].mxu0
      %v1967 = vadd.f32 %v1774, %v1966
      %1968 = vmatprep.mubr.bf16.mxu0 %v771
      %1969 = vmatmul.mubr.bf16.gmra.mrb[0].mxu0 %v770
      %v1970 = vpop.f32.mrb[0].mxu0
      %v1971 = vadd.f32 %v1778, %v1970
      %v1972 = vpop.f32.mrb[0].mxu0
      %v1973 = vadd.f32 %v1780, %v1972
      %v1974 = vpop.f32.mrb[0].mxu0
      %v1975 = vadd.f32 %v1782, %v1974
      %v1976 = vpop.f32.mrb[0].mxu0
      %v1977 = vadd.f32 %v1784, %v1976
      %1978 = vmatprep.mubr.bf16.mxu0 %v776
      %1979 = vmatmul.mubr.bf16.gmra.mrb[0].mxu0 %v775
      %v1980 = vpop.f32.mrb[0].mxu0
      %v1981 = vadd.f32 %v1788, %v1980
      %v1982 = vpop.f32.mrb[0].mxu0
      %v1983 = vadd.f32 %v1790, %v1982
      %v1984 = vpop.f32.mrb[0].mxu0
      %v1985 = vadd.f32 %v1792, %v1984
      %v1986 = vpop.f32.mrb[0].mxu0
      %v1987 = vadd.f32 %v1794, %v1986
      %1988 = vmatprep.mubr.bf16.mxu0 %v781
      %1989 = vmatmul.mubr.bf16.gmra.mrb[0].mxu0 %v780
      %v1990 = vpop.f32.mrb[0].mxu0
      %v1991 = vadd.f32 %v1798, %v1990
      %v1992 = vpop.f32.mrb[0].mxu0
      %v1993 = vadd.f32 %v1800, %v1992
      %v1994 = vpop.f32.mrb[0].mxu0
      %v1995 = vadd.f32 %v1802, %v1994
      %v1996 = vpop.f32.mrb[0].mxu0
      %v1997 = vadd.f32 %v1804, %v1996
      %1998 = vmatprep.mubr.bf16.mxu0 %v786
      %1999 = vmatmul.mubr.bf16.gmra.mrb[0].mxu0 %v785
      %v2000 = vpop.f32.mrb[0].mxu0
      %v2001 = vadd.f32 %v1808, %v2000
      %v2002 = vpop.f32.mrb[0].mxu0
      %v2003 = vadd.f32 %v1810, %v2002
      %v2004 = vpop.f32.mrb[0].mxu0
      %v2005 = vadd.f32 %v1812, %v2004
      %v2006 = vpop.f32.mrb[0].mxu0
      %v2007 = vadd.f32 %v1814, %v2006
      %2008 = vmatprep.mubr.bf16.mxu0 %v791
      %2009 = vmatmul.mubr.bf16.gmra.mrb[0].mxu0 %v790
      %v2010 = vpop.f32.mrb[0].mxu0
      %v2011 = vadd.f32 %v1818, %v2010
      %v2012 = vpop.f32.mrb[0].mxu0
      %v2013 = vadd.f32 %v1820, %v2012
      %v2014 = vpop.f32.mrb[0].mxu0
      %v2015 = vadd.f32 %v1822, %v2014
      %v2016 = vpop.f32.mrb[0].mxu0
      %v2017 = vadd.f32 %v1824, %v2016
      %2018 = vmatprep.mubr.bf16.mxu0 %v796
      %2019 = vmatmul.mubr.bf16.gmra.mrb[0].mxu0 %v795
      %v2020 = vpop.f32.mrb[0].mxu0
      %v2021 = vadd.f32 %v1828, %v2020
      %v2022 = vpop.f32.mrb[0].mxu0
      %v2023 = vadd.f32 %v1830, %v2022
      %v2024 = vpop.f32.mrb[0].mxu0
      %v2025 = vadd.f32 %v1832, %v2024
      %v2026 = vpop.f32.mrb[0].mxu0
      %v2027 = vadd.f32 %v1834, %v2026
      %2028 = vmatprep.mubr.bf16.mxu0 %v801
      %2029 = vmatmul.mubr.bf16.gmra.mrb[0].mxu0 %v800
      %v2030 = vpop.f32.mrb[0].mxu0
      %v2031 = vadd.f32 %v1838, %v2030
      %v2032 = vpop.f32.mrb[0].mxu0
      %v2033 = vadd.f32 %v1840, %v2032
      %v2034 = vpop.f32.mrb[0].mxu0
      %v2035 = vadd.f32 %v1842, %v2034
      %v2036 = vpop.f32.mrb[0].mxu0
      %v2037 = vadd.f32 %v1844, %v2036
      %2038 = vmatprep.mubr.bf16.mxu0 %v806
      %2039 = vmatmul.mubr.bf16.gmra.mrb[0].mxu0 %v805
      %v2040 = vpop.f32.mrb[0].mxu0
      %v2041 = vadd.f32 %v1848, %v2040
      %v2042 = vpop.f32.mrb[0].mxu0
      %v2043 = vadd.f32 %v1850, %v2042
      %v2044 = vpop.f32.mrb[0].mxu0
      %v2045 = vadd.f32 %v1852, %v2044
      %v2046 = vpop.f32.mrb[0].mxu0
      %v2047 = vadd.f32 %v1854, %v2046
      %2048 = vmatprep.mubr.bf16.mxu0 %v811
      %2049 = vmatmul.mubr.bf16.gmra.mrb[0].mxu0 %v810
      %v2050 = vpop.f32.mrb[0].mxu0
      %v2051 = vadd.f32 %v1858, %v2050
      %v2052 = vpop.f32.mrb[0].mxu0
      %v2053 = vadd.f32 %v1860, %v2052
      %v2054 = vpop.f32.mrb[0].mxu0
      %v2055 = vadd.f32 %v1862, %v2054
      %v2056 = vpop.f32.mrb[0].mxu0
      %v2057 = vadd.f32 %v1864, %v2056
      %2058 = vmatprep.mubr.bf16.mxu0 %v816
      %2059 = vmatmul.mubr.bf16.gmra.mrb[0].mxu0 %v815
      %v2060 = vpop.f32.mrb[0].mxu0
      %v2061 = vadd.f32 %v1868, %v2060
      %v2062 = vpop.f32.mrb[0].mxu0
      %v2063 = vadd.f32 %v1870, %v2062
      %v2064 = vpop.f32.mrb[0].mxu0
      %v2065 = vadd.f32 %v1872, %v2064
      %v2066 = vpop.f32.mrb[0].mxu0
      %v2067 = vadd.f32 %v1874, %v2066
      %2068 = vmatprep.mubr.bf16.mxu0 %v821
      %2069 = vmatmul.mubr.bf16.gmra.mrb[0].mxu0 %v820
      %v2070 = vpop.f32.mrb[0].mxu0
      %v2071 = vadd.f32 %v1878, %v2070
      %v2072 = vpop.f32.mrb[0].mxu0
      %v2073 = vadd.f32 %v1880, %v2072
      %v2074 = vpop.f32.mrb[0].mxu0
      %v2075 = vadd.f32 %v1882, %v2074
      %v2076 = vpop.f32.mrb[0].mxu0
      %v2077 = vadd.f32 %v1884, %v2076
      %2078 = vmatprep.mubr.bf16.mxu0 %v826
      %2079 = vmatmul.mubr.bf16.gmra.mrb[0].mxu0 %v825
      %v2080 = vpop.f32.mrb[0].mxu0
      %v2081 = vadd.f32 %v1888, %v2080
      %v2082 = vpop.f32.mrb[0].mxu0
      %v2083 = vadd.f32 %v1890, %v2082
      %v2084 = vpop.f32.mrb[0].mxu0
      %v2085 = vadd.f32 %v1892, %v2084
      %v2086 = vpop.f32.mrb[0].mxu0
      %v2087 = vadd.f32 %v1894, %v2086
      %2088 = vmatprep.mubr.bf16.mxu0 %v831
      %2089 = vmatmul.mubr.bf16.gmra.mrb[0].mxu0 %v830
      %v2090 = vpop.f32.mrb[0].mxu0
      %v2091 = vadd.f32 %v1898, %v2090
      %v2092 = vpop.f32.mrb[0].mxu0
      %v2093 = vadd.f32 %v1900, %v2092
      %v2094 = vpop.f32.mrb[0].mxu0
      %v2095 = vadd.f32 %v1902, %v2094
      %v2096 = vpop.f32.mrb[0].mxu0
      %v2097 = vadd.f32 %v1904, %v2096
      %2098 = vdwg.mxu0
      %2099 = vmatprep.subr.bf16.mxu0 %v1522
      %2100 = vmatpush1.bf16.msra.mxu0 %v1521
      %2101 = vmatprep.subr.bf16.mxu0 %v1526
      %2102 = vmatpush1.bf16.msra.mxu0 %v1525
      %2103 = vmatprep.subr.bf16.mxu0 %v1530
      %2104 = vmatpush1.bf16.msra.mxu0 %v1529
      %2105 = vmatprep.subr.bf16.mxu0 %v1534
      %2106 = vmatpush1.bf16.msra.mxu0 %v1533
      %2107 = vmatprep.subr.bf16.mxu0 %v1538
      %2108 = vmatpush1.bf16.msra.mxu0 %v1537
      %2109 = vmatprep.subr.bf16.mxu0 %v1542
      %2110 = vmatpush1.bf16.msra.mxu0 %v1541
      %2111 = vmatprep.subr.bf16.mxu0 %v1546
      %2112 = vmatpush1.bf16.msra.mxu0 %v1545
      %2113 = vmatprep.subr.bf16.mxu0 %v1550
      %2114 = vmatpush1.bf16.msra.mxu0 %v1549
      %2115 = vmatprep.subr.bf16.mxu0 0
      %2116 = vmatpush1.bf16.msra.mxu0 0
      %2117 = vmatprep.subr.bf16.mxu0 0
      %2118 = vmatpush1.bf16.msra.mxu0 0
      %2119 = vmatprep.subr.bf16.mxu0 0
      %2120 = vmatpush1.bf16.msra.mxu0 0
      %2121 = vmatprep.subr.bf16.mxu0 0
      %2122 = vmatpush1.bf16.msra.mxu0 0
      %2123 = vmatprep.subr.bf16.mxu0 0
      %2124 = vmatpush1.bf16.msra.mxu0 0
      %2125 = vmatprep.subr.bf16.mxu0 0
      %2126 = vmatpush1.bf16.msra.mxu0 0
      %2127 = vmatprep.subr.bf16.mxu0 0
      %2128 = vmatpush1.bf16.msra.mxu0 0
      %2129 = vmatprep.subr.bf16.mxu0 0
      %2130 = vmatpush1.bf16.msra.mxu0 0
      %2131 = vmatprep.mubr.bf16.mxu0 0
      %2132 = vmatmul.mubr.bf16.gmra.mrb[0].mxu0 %v757
      %v2133 = vpop.f32.mrb[0].mxu0
      %v2134 = vadd.f32 %v1941, %v2133
      %v2135 = vpop.f32.mrb[0].mxu0
      %v2136 = vadd.f32 %v1943, %v2135
      %v2137 = vpop.f32.mrb[0].mxu0
      %v2138 = vadd.f32 %v1945, %v2137
      %v2139 = vpop.f32.mrb[0].mxu0
      %v2140 = vadd.f32 %v1947, %v2139
      %2141 = vmatprep.mubr.bf16.mxu0 0
      %2142 = vmatmul.mubr.bf16.gmra.mrb[0].mxu0 %v762
      %v2143 = vpop.f32.mrb[0].mxu0
      %v2144 = vadd.f32 %v1951, %v2143
      %v2145 = vpop.f32.mrb[0].mxu0
      %v2146 = vadd.f32 %v1953, %v2145
      %v2147 = vpop.f32.mrb[0].mxu0
      %v2148 = vadd.f32 %v1955, %v2147
      %v2149 = vpop.f32.mrb[0].mxu0
      %v2150 = vadd.f32 %v1957, %v2149
      %2151 = vmatprep.mubr.bf16.mxu0 0
      %2152 = vmatmul.mubr.bf16.gmra.mrb[0].mxu0 %v767
      %v2153 = vpop.f32.mrb[0].mxu0
      %v2154 = vadd.f32 %v1961, %v2153
      %v2155 = vpop.f32.mrb[0].mxu0
      %v2156 = vadd.f32 %v1963, %v2155
      %v2157 = vpop.f32.mrb[0].mxu0
      %v2158 = vadd.f32 %v1965, %v2157
      %v2159 = vpop.f32.mrb[0].mxu0
      %v2160 = vadd.f32 %v1967, %v2159
      %2161 = vmatprep.mubr.bf16.mxu0 0
      %2162 = vmatmul.mubr.bf16.gmra.mrb[0].mxu0 %v772
      %v2163 = vpop.f32.mrb[0].mxu0
      %v2164 = vadd.f32 %v1971, %v2163
      %v2165 = vpop.f32.mrb[0].mxu0
      %v2166 = vadd.f32 %v1973, %v2165
      %v2167 = vpop.f32.mrb[0].mxu0
      %v2168 = vadd.f32 %v1975, %v2167
      %v2169 = vpop.f32.mrb[0].mxu0
      %v2170 = vadd.f32 %v1977, %v2169
      %2171 = vmatprep.mubr.bf16.mxu0 0
      %2172 = vmatmul.mubr.bf16.gmra.mrb[0].mxu0 %v777
      %v2173 = vpop.f32.mrb[0].mxu0
      %v2174 = vadd.f32 %v1981, %v2173
      %v2175 = vpop.f32.mrb[0].mxu0
      %v2176 = vadd.f32 %v1983, %v2175
      %v2177 = vpop.f32.mrb[0].mxu0
      %v2178 = vadd.f32 %v1985, %v2177
      %v2179 = vpop.f32.mrb[0].mxu0
      %v2180 = vadd.f32 %v1987, %v2179
      %2181 = vmatprep.mubr.bf16.mxu0 0
      %2182 = vmatmul.mubr.bf16.gmra.mrb[0].mxu0 %v782
      %v2183 = vpop.f32.mrb[0].mxu0
      %v2184 = vadd.f32 %v1991, %v2183
      %v2185 = vpop.f32.mrb[0].mxu0
      %v2186 = vadd.f32 %v1993, %v2185
      %v2187 = vpop.f32.mrb[0].mxu0
      %v2188 = vadd.f32 %v1995, %v2187
      %v2189 = vpop.f32.mrb[0].mxu0
      %v2190 = vadd.f32 %v1997, %v2189
      %2191 = vmatprep.mubr.bf16.mxu0 0
      %2192 = vmatmul.mubr.bf16.gmra.mrb[0].mxu0 %v787
      %v2193 = vpop.f32.mrb[0].mxu0
      %v2194 = vadd.f32 %v2001, %v2193
      %v2195 = vpop.f32.mrb[0].mxu0
      %v2196 = vadd.f32 %v2003, %v2195
      %v2197 = vpop.f32.mrb[0].mxu0
      %v2198 = vadd.f32 %v2005, %v2197
      %v2199 = vpop.f32.mrb[0].mxu0
      %v2200 = vadd.f32 %v2007, %v2199
      %2201 = vmatprep.mubr.bf16.mxu0 0
      %2202 = vmatmul.mubr.bf16.gmra.mrb[0].mxu0 %v792
      %v2203 = vpop.f32.mrb[0].mxu0
      %v2204 = vadd.f32 %v2011, %v2203
      %v2205 = vpop.f32.mrb[0].mxu0
      %v2206 = vadd.f32 %v2013, %v2205
      %v2207 = vpop.f32.mrb[0].mxu0
      %v2208 = vadd.f32 %v2015, %v2207
      %v2209 = vpop.f32.mrb[0].mxu0
      %v2210 = vadd.f32 %v2017, %v2209
      %2211 = vmatprep.mubr.bf16.mxu0 0
      %2212 = vmatmul.mubr.bf16.gmra.mrb[0].mxu0 %v797
      %v2213 = vpop.f32.mrb[0].mxu0
      %v2214 = vadd.f32 %v2021, %v2213
      %v2215 = vpop.f32.mrb[0].mxu0
      %v2216 = vadd.f32 %v2023, %v2215
      %v2217 = vpop.f32.mrb[0].mxu0
      %v2218 = vadd.f32 %v2025, %v2217
      %v2219 = vpop.f32.mrb[0].mxu0
      %v2220 = vadd.f32 %v2027, %v2219
      %2221 = vmatprep.mubr.bf16.mxu0 0
      %2222 = vmatmul.mubr.bf16.gmra.mrb[0].mxu0 %v802
      %v2223 = vpop.f32.mrb[0].mxu0
      %v2224 = vadd.f32 %v2031, %v2223
      %v2225 = vpop.f32.mrb[0].mxu0
      %v2226 = vadd.f32 %v2033, %v2225
      %v2227 = vpop.f32.mrb[0].mxu0
      %v2228 = vadd.f32 %v2035, %v2227
      %v2229 = vpop.f32.mrb[0].mxu0
      %v2230 = vadd.f32 %v2037, %v2229
      %2231 = vmatprep.mubr.bf16.mxu0 0
      %2232 = vmatmul.mubr.bf16.gmra.mrb[0].mxu0 %v807
      %v2233 = vpop.f32.mrb[0].mxu0
      %v2234 = vadd.f32 %v2041, %v2233
      %v2235 = vpop.f32.mrb[0].mxu0
      %v2236 = vadd.f32 %v2043, %v2235
      %v2237 = vpop.f32.mrb[0].mxu0
      %v2238 = vadd.f32 %v2045, %v2237
      %v2239 = vpop.f32.mrb[0].mxu0
      %v2240 = vadd.f32 %v2047, %v2239
      %2241 = vmatprep.mubr.bf16.mxu0 0
      %2242 = vmatmul.mubr.bf16.gmra.mrb[0].mxu0 %v812
      %v2243 = vpop.f32.mrb[0].mxu0
      %v2244 = vadd.f32 %v2051, %v2243
      %v2245 = vpop.f32.mrb[0].mxu0
      %v2246 = vadd.f32 %v2053, %v2245
      %v2247 = vpop.f32.mrb[0].mxu0
      %v2248 = vadd.f32 %v2055, %v2247
      %v2249 = vpop.f32.mrb[0].mxu0
      %v2250 = vadd.f32 %v2057, %v2249
      %2251 = vmatprep.mubr.bf16.mxu0 0
      %2252 = vmatmul.mubr.bf16.gmra.mrb[0].mxu0 %v817
      %v2253 = vpop.f32.mrb[0].mxu0
      %v2254 = vadd.f32 %v2061, %v2253
      %v2255 = vpop.f32.mrb[0].mxu0
      %v2256 = vadd.f32 %v2063, %v2255
      %v2257 = vpop.f32.mrb[0].mxu0
      %v2258 = vadd.f32 %v2065, %v2257
      %v2259 = vpop.f32.mrb[0].mxu0
      %v2260 = vadd.f32 %v2067, %v2259
      %2261 = vmatprep.mubr.bf16.mxu0 0
      %2262 = vmatmul.mubr.bf16.gmra.mrb[0].mxu0 %v822
      %v2263 = vpop.f32.mrb[0].mxu0
      %v2264 = vadd.f32 %v2071, %v2263
      %v2265 = vpop.f32.mrb[0].mxu0
      %v2266 = vadd.f32 %v2073, %v2265
      %v2267 = vpop.f32.mrb[0].mxu0
      %v2268 = vadd.f32 %v2075, %v2267
      %v2269 = vpop.f32.mrb[0].mxu0
      %v2270 = vadd.f32 %v2077, %v2269
      %2271 = vmatprep.mubr.bf16.mxu0 0
      %2272 = vmatmul.mubr.bf16.gmra.mrb[0].mxu0 %v827
      %v2273 = vpop.f32.mrb[0].mxu0
      %v2274 = vadd.f32 %v2081, %v2273
      %v2275 = vpop.f32.mrb[0].mxu0
      %v2276 = vadd.f32 %v2083, %v2275
      %v2277 = vpop.f32.mrb[0].mxu0
      %v2278 = vadd.f32 %v2085, %v2277
      %v2279 = vpop.f32.mrb[0].mxu0
      %v2280 = vadd.f32 %v2087, %v2279
      %2281 = vmatprep.mubr.bf16.mxu0 0
      %2282 = vmatmul.mubr.bf16.gmra.mrb[0].mxu0 %v832
      %v2283 = vpop.f32.mrb[0].mxu0
      %v2284 = vadd.f32 %v2091, %v2283
      %v2285 = vpop.f32.mrb[0].mxu0
      %v2286 = vadd.f32 %v2093, %v2285
      %v2287 = vpop.f32.mrb[0].mxu0
      %v2288 = vadd.f32 %v2095, %v2287
      %v2289 = vpop.f32.mrb[0].mxu0
      %v2290 = vadd.f32 %v2097, %v2289
      %2291 = vdwg.mxu0
      %2292 = vmatprep.subr.bf16.mxu0 %v1396
      %2293 = vmatpush1.bf16.msra.mxu0 %v1395
      %2294 = vmatprep.subr.bf16.mxu0 %v1400
      %2295 = vmatpush1.bf16.msra.mxu0 %v1399
      %2296 = vmatprep.subr.bf16.mxu0 %v1404
      %2297 = vmatpush1.bf16.msra.mxu0 %v1403
      %2298 = vmatprep.subr.bf16.mxu0 %v1408
      %2299 = vmatpush1.bf16.msra.mxu0 %v1407
      %2300 = vmatprep.subr.bf16.mxu0 %v1412
      %2301 = vmatpush1.bf16.msra.mxu0 %v1411
      %2302 = vmatprep.subr.bf16.mxu0 %v1416
      %2303 = vmatpush1.bf16.msra.mxu0 %v1415
      %2304 = vmatprep.subr.bf16.mxu0 %v1420
      %2305 = vmatpush1.bf16.msra.mxu0 %v1419
      %2306 = vmatprep.subr.bf16.mxu0 %v1424
      %2307 = vmatpush1.bf16.msra.mxu0 %v1423
      %2308 = vmatprep.subr.bf16.mxu0 %v1428
      %2309 = vmatpush1.bf16.msra.mxu0 %v1427
      %2310 = vmatprep.subr.bf16.mxu0 %v1432
      %2311 = vmatpush1.bf16.msra.mxu0 %v1431
      %2312 = vmatprep.subr.bf16.mxu0 %v1436
      %2313 = vmatpush1.bf16.msra.mxu0 %v1435
      %2314 = vmatprep.subr.bf16.mxu0 %v1440
      %2315 = vmatpush1.bf16.msra.mxu0 %v1439
      %2316 = vmatprep.subr.bf16.mxu0 %v1444
      %2317 = vmatpush1.bf16.msra.mxu0 %v1443
      %2318 = vmatprep.subr.bf16.mxu0 %v1448
      %2319 = vmatpush1.bf16.msra.mxu0 %v1447
      %2320 = vmatprep.subr.bf16.mxu0 %v1452
      %2321 = vmatpush1.bf16.msra.mxu0 %v1451
      %2322 = vmatprep.subr.bf16.mxu0 %v1456
      %2323 = vmatpush1.bf16.msra.mxu0 %v1455
      %2324 = vmatprep.mubr.bf16.mxu0 %v754
      %2325 = vmatmul.mubr.bf16.gmra.mrb[0].mxu0 %v753
      %v2326 = vpop.f32.mrb[0].mxu0
      %v2327 = vadd.f32 0.0, %v2326
      %v2328 = vpop.f32.mrb[0].mxu0
      %v2329 = vadd.f32 0.0, %v2328
      %v2330 = vpop.f32.mrb[0].mxu0
      %v2331 = vadd.f32 0.0, %v2330
      %v2332 = vpop.f32.mrb[0].mxu0
      %v2333 = vadd.f32 0.0, %v2332
      %2334 = vmatprep.mubr.bf16.mxu0 %v759
      %2335 = vmatmul.mubr.bf16.gmra.mrb[0].mxu0 %v758
      %v2336 = vpop.f32.mrb[0].mxu0
      %v2337 = vadd.f32 0.0, %v2336
      %v2338 = vpop.f32.mrb[0].mxu0
      %v2339 = vadd.f32 0.0, %v2338
      %v2340 = vpop.f32.mrb[0].mxu0
      %v2341 = vadd.f32 0.0, %v2340
      %v2342 = vpop.f32.mrb[0].mxu0
      %v2343 = vadd.f32 0.0, %v2342
      %2344 = vmatprep.mubr.bf16.mxu0 %v764
      %2345 = vmatmul.mubr.bf16.gmra.mrb[0].mxu0 %v763
      %v2346 = vpop.f32.mrb[0].mxu0
      %v2347 = vadd.f32 0.0, %v2346
      %v2348 = vpop.f32.mrb[0].mxu0
      %v2349 = vadd.f32 0.0, %v2348
      %v2350 = vpop.f32.mrb[0].mxu0
      %v2351 = vadd.f32 0.0, %v2350
      %v2352 = vpop.f32.mrb[0].mxu0
      %v2353 = vadd.f32 0.0, %v2352
      %2354 = vmatprep.mubr.bf16.mxu0 %v769
      %2355 = vmatmul.mubr.bf16.gmra.mrb[0].mxu0 %v768
      %v2356 = vpop.f32.mrb[0].mxu0
      %v2357 = vadd.f32 0.0, %v2356
      %v2358 = vpop.f32.mrb[0].mxu0
      %v2359 = vadd.f32 0.0, %v2358
      %v2360 = vpop.f32.mrb[0].mxu0
      %v2361 = vadd.f32 0.0, %v2360
      %v2362 = vpop.f32.mrb[0].mxu0
      %v2363 = vadd.f32 0.0, %v2362
      %2364 = vmatprep.mubr.bf16.mxu0 %v774
      %2365 = vmatmul.mubr.bf16.gmra.mrb[0].mxu0 %v773
      %v2366 = vpop.f32.mrb[0].mxu0
      %v2367 = vadd.f32 0.0, %v2366
      %v2368 = vpop.f32.mrb[0].mxu0
      %v2369 = vadd.f32 0.0, %v2368
      %v2370 = vpop.f32.mrb[0].mxu0
      %v2371 = vadd.f32 0.0, %v2370
      %v2372 = vpop.f32.mrb[0].mxu0
      %v2373 = vadd.f32 0.0, %v2372
      %2374 = vmatprep.mubr.bf16.mxu0 %v779
      %2375 = vmatmul.mubr.bf16.gmra.mrb[0].mxu0 %v778
      %v2376 = vpop.f32.mrb[0].mxu0
      %v2377 = vadd.f32 0.0, %v2376
      %v2378 = vpop.f32.mrb[0].mxu0
      %v2379 = vadd.f32 0.0, %v2378
      %v2380 = vpop.f32.mrb[0].mxu0
      %v2381 = vadd.f32 0.0, %v2380
      %v2382 = vpop.f32.mrb[0].mxu0
      %v2383 = vadd.f32 0.0, %v2382
      %2384 = vmatprep.mubr.bf16.mxu0 %v784
      %2385 = vmatmul.mubr.bf16.gmra.mrb[0].mxu0 %v783
      %v2386 = vpop.f32.mrb[0].mxu0
      %v2387 = vadd.f32 0.0, %v2386
      %v2388 = vpop.f32.mrb[0].mxu0
      %v2389 = vadd.f32 0.0, %v2388
      %v2390 = vpop.f32.mrb[0].mxu0
      %v2391 = vadd.f32 0.0, %v2390
      %v2392 = vpop.f32.mrb[0].mxu0
      %v2393 = vadd.f32 0.0, %v2392
      %2394 = vmatprep.mubr.bf16.mxu0 %v789
      %2395 = vmatmul.mubr.bf16.gmra.mrb[0].mxu0 %v788
      %v2396 = vpop.f32.mrb[0].mxu0
      %v2397 = vadd.f32 0.0, %v2396
      %v2398 = vpop.f32.mrb[0].mxu0
      %v2399 = vadd.f32 0.0, %v2398
      %v2400 = vpop.f32.mrb[0].mxu0
      %v2401 = vadd.f32 0.0, %v2400
      %v2402 = vpop.f32.mrb[0].mxu0
      %v2403 = vadd.f32 0.0, %v2402
      %2404 = vmatprep.mubr.bf16.mxu0 %v794
      %2405 = vmatmul.mubr.bf16.gmra.mrb[0].mxu0 %v793
      %v2406 = vpop.f32.mrb[0].mxu0
      %v2407 = vadd.f32 0.0, %v2406
      %v2408 = vpop.f32.mrb[0].mxu0
      %v2409 = vadd.f32 0.0, %v2408
      %v2410 = vpop.f32.mrb[0].mxu0
      %v2411 = vadd.f32 0.0, %v2410
      %v2412 = vpop.f32.mrb[0].mxu0
      %v2413 = vadd.f32 0.0, %v2412
      %2414 = vmatprep.mubr.bf16.mxu0 %v799
      %2415 = vmatmul.mubr.bf16.gmra.mrb[0].mxu0 %v798
      %v2416 = vpop.f32.mrb[0].mxu0
      %v2417 = vadd.f32 0.0, %v2416
      %v2418 = vpop.f32.mrb[0].mxu0
      %v2419 = vadd.f32 0.0, %v2418
      %v2420 = vpop.f32.mrb[0].mxu0
      %v2421 = vadd.f32 0.0, %v2420
      %v2422 = vpop.f32.mrb[0].mxu0
      %v2423 = vadd.f32 0.0, %v2422
      %2424 = vmatprep.mubr.bf16.mxu0 %v804
      %2425 = vmatmul.mubr.bf16.gmra.mrb[0].mxu0 %v803
      %v2426 = vpop.f32.mrb[0].mxu0
      %v2427 = vadd.f32 0.0, %v2426
      %v2428 = vpop.f32.mrb[0].mxu0
      %v2429 = vadd.f32 0.0, %v2428
      %v2430 = vpop.f32.mrb[0].mxu0
      %v2431 = vadd.f32 0.0, %v2430
      %v2432 = vpop.f32.mrb[0].mxu0
      %v2433 = vadd.f32 0.0, %v2432
      %2434 = vmatprep.mubr.bf16.mxu0 %v809
      %2435 = vmatmul.mubr.bf16.gmra.mrb[0].mxu0 %v808
      %v2436 = vpop.f32.mrb[0].mxu0
      %v2437 = vadd.f32 0.0, %v2436
      %v2438 = vpop.f32.mrb[0].mxu0
      %v2439 = vadd.f32 0.0, %v2438
      %v2440 = vpop.f32.mrb[0].mxu0
      %v2441 = vadd.f32 0.0, %v2440
      %v2442 = vpop.f32.mrb[0].mxu0
      %v2443 = vadd.f32 0.0, %v2442
      %2444 = vmatprep.mubr.bf16.mxu0 %v814
      %2445 = vmatmul.mubr.bf16.gmra.mrb[0].mxu0 %v813
      %v2446 = vpop.f32.mrb[0].mxu0
      %v2447 = vadd.f32 0.0, %v2446
      %v2448 = vpop.f32.mrb[0].mxu0
      %v2449 = vadd.f32 0.0, %v2448
      %v2450 = vpop.f32.mrb[0].mxu0
      %v2451 = vadd.f32 0.0, %v2450
      %v2452 = vpop.f32.mrb[0].mxu0
      %v2453 = vadd.f32 0.0, %v2452
      %2454 = vmatprep.mubr.bf16.mxu0 %v819
      %2455 = vmatmul.mubr.bf16.gmra.mrb[0].mxu0 %v818
      %v2456 = vpop.f32.mrb[0].mxu0
      %v2457 = vadd.f32 0.0, %v2456
      %v2458 = vpop.f32.mrb[0].mxu0
      %v2459 = vadd.f32 0.0, %v2458
      %v2460 = vpop.f32.mrb[0].mxu0
      %v2461 = vadd.f32 0.0, %v2460
      %v2462 = vpop.f32.mrb[0].mxu0
      %v2463 = vadd.f32 0.0, %v2462
      %2464 = vmatprep.mubr.bf16.mxu0 %v824
      %2465 = vmatmul.mubr.bf16.gmra.mrb[0].mxu0 %v823
      %v2466 = vpop.f32.mrb[0].mxu0
      %v2467 = vadd.f32 0.0, %v2466
      %v2468 = vpop.f32.mrb[0].mxu0
      %v2469 = vadd.f32 0.0, %v2468
      %v2470 = vpop.f32.mrb[0].mxu0
      %v2471 = vadd.f32 0.0, %v2470
      %v2472 = vpop.f32.mrb[0].mxu0
      %v2473 = vadd.f32 0.0, %v2472
      %2474 = vmatprep.mubr.bf16.mxu0 %v829
      %2475 = vmatmul.mubr.bf16.gmra.mrb[0].mxu0 %v828
      %v2476 = vpop.f32.mrb[0].mxu0
      %v2477 = vadd.f32 0.0, %v2476
      %v2478 = vpop.f32.mrb[0].mxu0
      %v2479 = vadd.f32 0.0, %v2478
      %v2480 = vpop.f32.mrb[0].mxu0
      %v2481 = vadd.f32 0.0, %v2480
      %v2482 = vpop.f32.mrb[0].mxu0
      %v2483 = vadd.f32 0.0, %v2482
      %2484 = vdwg.mxu0
      %2485 = vmatprep.subr.bf16.mxu0 %v1460
      %2486 = vmatpush1.bf16.msra.mxu0 %v1459
      %2487 = vmatprep.subr.bf16.mxu0 %v1464
      %2488 = vmatpush1.bf16.msra.mxu0 %v1463
      %2489 = vmatprep.subr.bf16.mxu0 %v1468
      %2490 = vmatpush1.bf16.msra.mxu0 %v1467
      %2491 = vmatprep.subr.bf16.mxu0 %v1472
      %2492 = vmatpush1.bf16.msra.mxu0 %v1471
      %2493 = vmatprep.subr.bf16.mxu0 %v1476
      %2494 = vmatpush1.bf16.msra.mxu0 %v1475
      %2495 = vmatprep.subr.bf16.mxu0 %v1480
      %2496 = vmatpush1.bf16.msra.mxu0 %v1479
      %2497 = vmatprep.subr.bf16.mxu0 %v1484
      %2498 = vmatpush1.bf16.msra.mxu0 %v1483
      %2499 = vmatprep.subr.bf16.mxu0 %v1488
      %2500 = vmatpush1.bf16.msra.mxu0 %v1487
      %2501 = vmatprep.subr.bf16.mxu0 %v1492
      %2502 = vmatpush1.bf16.msra.mxu0 %v1491
      %2503 = vmatprep.subr.bf16.mxu0 %v1496
      %2504 = vmatpush1.bf16.msra.mxu0 %v1495
      %2505 = vmatprep.subr.bf16.mxu0 %v1500
      %2506 = vmatpush1.bf16.msra.mxu0 %v1499
      %2507 = vmatprep.subr.bf16.mxu0 %v1504
      %2508 = vmatpush1.bf16.msra.mxu0 %v1503
      %2509 = vmatprep.subr.bf16.mxu0 %v1508
      %2510 = vmatpush1.bf16.msra.mxu0 %v1507
      %2511 = vmatprep.subr.bf16.mxu0 %v1512
      %2512 = vmatpush1.bf16.msra.mxu0 %v1511
      %2513 = vmatprep.subr.bf16.mxu0 %v1516
      %2514 = vmatpush1.bf16.msra.mxu0 %v1515
      %2515 = vmatprep.subr.bf16.mxu0 %v1520
      %2516 = vmatpush1.bf16.msra.mxu0 %v1519
      %2517 = vmatprep.mubr.bf16.mxu0 %v756
      %2518 = vmatmul.mubr.bf16.gmra.mrb[0].mxu0 %v755
      %v2519 = vpop.f32.mrb[0].mxu0
      %v2520 = vadd.f32 %v2327, %v2519
      %v2521 = vpop.f32.mrb[0].mxu0
      %v2522 = vadd.f32 %v2329, %v2521
      %v2523 = vpop.f32.mrb[0].mxu0
      %v2524 = vadd.f32 %v2331, %v2523
      %v2525 = vpop.f32.mrb[0].mxu0
      %v2526 = vadd.f32 %v2333, %v2525
      %2527 = vmatprep.mubr.bf16.mxu0 %v761
      %2528 = vmatmul.mubr.bf16.gmra.mrb[0].mxu0 %v760
      %v2529 = vpop.f32.mrb[0].mxu0
      %v2530 = vadd.f32 %v2337, %v2529
      %v2531 = vpop.f32.mrb[0].mxu0
      %v2532 = vadd.f32 %v2339, %v2531
      %v2533 = vpop.f32.mrb[0].mxu0
      %v2534 = vadd.f32 %v2341, %v2533
      %v2535 = vpop.f32.mrb[0].mxu0
      %v2536 = vadd.f32 %v2343, %v2535
      %2537 = vmatprep.mubr.bf16.mxu0 %v766
      %2538 = vmatmul.mubr.bf16.gmra.mrb[0].mxu0 %v765
      %v2539 = vpop.f32.mrb[0].mxu0
      %v2540 = vadd.f32 %v2347, %v2539
      %v2541 = vpop.f32.mrb[0].mxu0
      %v2542 = vadd.f32 %v2349, %v2541
      %v2543 = vpop.f32.mrb[0].mxu0
      %v2544 = vadd.f32 %v2351, %v2543
      %v2545 = vpop.f32.mrb[0].mxu0
      %v2546 = vadd.f32 %v2353, %v2545
      %2547 = vmatprep.mubr.bf16.mxu0 %v771
      %2548 = vmatmul.mubr.bf16.gmra.mrb[0].mxu0 %v770
      %v2549 = vpop.f32.mrb[0].mxu0
      %v2550 = vadd.f32 %v2357, %v2549
      %v2551 = vpop.f32.mrb[0].mxu0
      %v2552 = vadd.f32 %v2359, %v2551
      %v2553 = vpop.f32.mrb[0].mxu0
      %v2554 = vadd.f32 %v2361, %v2553
      %v2555 = vpop.f32.mrb[0].mxu0
      %v2556 = vadd.f32 %v2363, %v2555
      %2557 = vmatprep.mubr.bf16.mxu0 %v776
      %2558 = vmatmul.mubr.bf16.gmra.mrb[0].mxu0 %v775
      %v2559 = vpop.f32.mrb[0].mxu0
      %v2560 = vadd.f32 %v2367, %v2559
      %v2561 = vpop.f32.mrb[0].mxu0
      %v2562 = vadd.f32 %v2369, %v2561
      %v2563 = vpop.f32.mrb[0].mxu0
      %v2564 = vadd.f32 %v2371, %v2563
      %v2565 = vpop.f32.mrb[0].mxu0
      %v2566 = vadd.f32 %v2373, %v2565
      %2567 = vmatprep.mubr.bf16.mxu0 %v781
      %2568 = vmatmul.mubr.bf16.gmra.mrb[0].mxu0 %v780
      %v2569 = vpop.f32.mrb[0].mxu0
      %v2570 = vadd.f32 %v2377, %v2569
      %v2571 = vpop.f32.mrb[0].mxu0
      %v2572 = vadd.f32 %v2379, %v2571
      %v2573 = vpop.f32.mrb[0].mxu0
      %v2574 = vadd.f32 %v2381, %v2573
      %v2575 = vpop.f32.mrb[0].mxu0
      %v2576 = vadd.f32 %v2383, %v2575
      %2577 = vmatprep.mubr.bf16.mxu0 %v786
      %2578 = vmatmul.mubr.bf16.gmra.mrb[0].mxu0 %v785
      %v2579 = vpop.f32.mrb[0].mxu0
      %v2580 = vadd.f32 %v2387, %v2579
      %v2581 = vpop.f32.mrb[0].mxu0
      %v2582 = vadd.f32 %v2389, %v2581
      %v2583 = vpop.f32.mrb[0].mxu0
      %v2584 = vadd.f32 %v2391, %v2583
      %v2585 = vpop.f32.mrb[0].mxu0
      %v2586 = vadd.f32 %v2393, %v2585
      %2587 = vmatprep.mubr.bf16.mxu0 %v791
      %2588 = vmatmul.mubr.bf16.gmra.mrb[0].mxu0 %v790
      %v2589 = vpop.f32.mrb[0].mxu0
      %v2590 = vadd.f32 %v2397, %v2589
      %v2591 = vpop.f32.mrb[0].mxu0
      %v2592 = vadd.f32 %v2399, %v2591
      %v2593 = vpop.f32.mrb[0].mxu0
      %v2594 = vadd.f32 %v2401, %v2593
      %v2595 = vpop.f32.mrb[0].mxu0
      %v2596 = vadd.f32 %v2403, %v2595
      %2597 = vmatprep.mubr.bf16.mxu0 %v796
      %2598 = vmatmul.mubr.bf16.gmra.mrb[0].mxu0 %v795
      %v2599 = vpop.f32.mrb[0].mxu0
      %v2600 = vadd.f32 %v2407, %v2599
      %v2601 = vpop.f32.mrb[0].mxu0
      %v2602 = vadd.f32 %v2409, %v2601
      %v2603 = vpop.f32.mrb[0].mxu0
      %v2604 = vadd.f32 %v2411, %v2603
      %v2605 = vpop.f32.mrb[0].mxu0
      %v2606 = vadd.f32 %v2413, %v2605
      %2607 = vmatprep.mubr.bf16.mxu0 %v801
      %2608 = vmatmul.mubr.bf16.gmra.mrb[0].mxu0 %v800
      %v2609 = vpop.f32.mrb[0].mxu0
      %v2610 = vadd.f32 %v2417, %v2609
      %v2611 = vpop.f32.mrb[0].mxu0
      %v2612 = vadd.f32 %v2419, %v2611
      %v2613 = vpop.f32.mrb[0].mxu0
      %v2614 = vadd.f32 %v2421, %v2613
      %v2615 = vpop.f32.mrb[0].mxu0
      %v2616 = vadd.f32 %v2423, %v2615
      %2617 = vmatprep.mubr.bf16.mxu0 %v806
      %2618 = vmatmul.mubr.bf16.gmra.mrb[0].mxu0 %v805
      %v2619 = vpop.f32.mrb[0].mxu0
      %v2620 = vadd.f32 %v2427, %v2619
      %v2621 = vpop.f32.mrb[0].mxu0
      %v2622 = vadd.f32 %v2429, %v2621
      %v2623 = vpop.f32.mrb[0].mxu0
      %v2624 = vadd.f32 %v2431, %v2623
      %v2625 = vpop.f32.mrb[0].mxu0
      %v2626 = vadd.f32 %v2433, %v2625
      %2627 = vmatprep.mubr.bf16.mxu0 %v811
      %2628 = vmatmul.mubr.bf16.gmra.mrb[0].mxu0 %v810
      %v2629 = vpop.f32.mrb[0].mxu0
      %v2630 = vadd.f32 %v2437, %v2629
      %v2631 = vpop.f32.mrb[0].mxu0
      %v2632 = vadd.f32 %v2439, %v2631
      %v2633 = vpop.f32.mrb[0].mxu0
      %v2634 = vadd.f32 %v2441, %v2633
      %v2635 = vpop.f32.mrb[0].mxu0
      %v2636 = vadd.f32 %v2443, %v2635
      %2637 = vmatprep.mubr.bf16.mxu0 %v816
      %2638 = vmatmul.mubr.bf16.gmra.mrb[0].mxu0 %v815
      %v2639 = vpop.f32.mrb[0].mxu0
      %v2640 = vadd.f32 %v2447, %v2639
      %v2641 = vpop.f32.mrb[0].mxu0
      %v2642 = vadd.f32 %v2449, %v2641
      %v2643 = vpop.f32.mrb[0].mxu0
      %v2644 = vadd.f32 %v2451, %v2643
      %v2645 = vpop.f32.mrb[0].mxu0
      %v2646 = vadd.f32 %v2453, %v2645
      %2647 = vmatprep.mubr.bf16.mxu0 %v821
      %2648 = vmatmul.mubr.bf16.gmra.mrb[0].mxu0 %v820
      %v2649 = vpop.f32.mrb[0].mxu0
      %v2650 = vadd.f32 %v2457, %v2649
      %v2651 = vpop.f32.mrb[0].mxu0
      %v2652 = vadd.f32 %v2459, %v2651
      %v2653 = vpop.f32.mrb[0].mxu0
      %v2654 = vadd.f32 %v2461, %v2653
      %v2655 = vpop.f32.mrb[0].mxu0
      %v2656 = vadd.f32 %v2463, %v2655
      %2657 = vmatprep.mubr.bf16.mxu0 %v826
      %2658 = vmatmul.mubr.bf16.gmra.mrb[0].mxu0 %v825
      %v2659 = vpop.f32.mrb[0].mxu0
      %v2660 = vadd.f32 %v2467, %v2659
      %v2661 = vpop.f32.mrb[0].mxu0
      %v2662 = vadd.f32 %v2469, %v2661
      %v2663 = vpop.f32.mrb[0].mxu0
      %v2664 = vadd.f32 %v2471, %v2663
      %v2665 = vpop.f32.mrb[0].mxu0
      %v2666 = vadd.f32 %v2473, %v2665
      %2667 = vmatprep.mubr.bf16.mxu0 %v831
      %2668 = vmatmul.mubr.bf16.gmra.mrb[0].mxu0 %v830
      %v2669 = vpop.f32.mrb[0].mxu0
      %v2670 = vadd.f32 %v2477, %v2669
      %v2671 = vpop.f32.mrb[0].mxu0
      %v2672 = vadd.f32 %v2479, %v2671
      %v2673 = vpop.f32.mrb[0].mxu0
      %v2674 = vadd.f32 %v2481, %v2673
      %v2675 = vpop.f32.mrb[0].mxu0
      %v2676 = vadd.f32 %v2483, %v2675
      %2677 = vdwg.mxu0
      %2678 = vmatprep.subr.bf16.mxu0 %v1524
      %2679 = vmatpush1.bf16.msra.mxu0 %v1523
      %2680 = vmatprep.subr.bf16.mxu0 %v1528
      %2681 = vmatpush1.bf16.msra.mxu0 %v1527
      %2682 = vmatprep.subr.bf16.mxu0 %v1532
      %2683 = vmatpush1.bf16.msra.mxu0 %v1531
      %2684 = vmatprep.subr.bf16.mxu0 %v1536
      %2685 = vmatpush1.bf16.msra.mxu0 %v1535
      %2686 = vmatprep.subr.bf16.mxu0 %v1540
      %2687 = vmatpush1.bf16.msra.mxu0 %v1539
      %2688 = vmatprep.subr.bf16.mxu0 %v1544
      %2689 = vmatpush1.bf16.msra.mxu0 %v1543
      %2690 = vmatprep.subr.bf16.mxu0 %v1548
      %2691 = vmatpush1.bf16.msra.mxu0 %v1547
      %2692 = vmatprep.subr.bf16.mxu0 %v1552
      %2693 = vmatpush1.bf16.msra.mxu0 %v1551
      %2694 = vmatprep.subr.bf16.mxu0 0
      %2695 = vmatpush1.bf16.msra.mxu0 0
      %2696 = vmatprep.subr.bf16.mxu0 0
      %2697 = vmatpush1.bf16.msra.mxu0 0
      %2698 = vmatprep.subr.bf16.mxu0 0
      %2699 = vmatpush1.bf16.msra.mxu0 0
      %2700 = vmatprep.subr.bf16.mxu0 0
      %2701 = vmatpush1.bf16.msra.mxu0 0
      %2702 = vmatprep.subr.bf16.mxu0 0
      %2703 = vmatpush1.bf16.msra.mxu0 0
      %2704 = vmatprep.subr.bf16.mxu0 0
      %2705 = vmatpush1.bf16.msra.mxu0 0
      %2706 = vmatprep.subr.bf16.mxu0 0
      %2707 = vmatpush1.bf16.msra.mxu0 0
      %2708 = vmatprep.subr.bf16.mxu0 0
      %2709 = vmatpush1.bf16.msra.mxu0 0
      %2710 = vmatprep.mubr.bf16.mxu0 0
      %2711 = vmatmul.mubr.bf16.gmra.mrb[0].mxu0 %v757
      %v2712 = vpop.f32.mrb[0].mxu0
      %v2713 = vadd.f32 %v2520, %v2712
      %v2714 = vpop.f32.mrb[0].mxu0
      %v2715 = vadd.f32 %v2522, %v2714
      %v2716 = vpop.f32.mrb[0].mxu0
      %v2717 = vadd.f32 %v2524, %v2716
      %v2718 = vpop.f32.mrb[0].mxu0
      %v2719 = vadd.f32 %v2526, %v2718
      %2720 = vmatprep.mubr.bf16.mxu0 0
      %2721 = vmatmul.mubr.bf16.gmra.mrb[0].mxu0 %v762
      %v2722 = vpop.f32.mrb[0].mxu0
      %v2723 = vadd.f32 %v2530, %v2722
      %v2724 = vpop.f32.mrb[0].mxu0
      %v2725 = vadd.f32 %v2532, %v2724
      %v2726 = vpop.f32.mrb[0].mxu0
      %v2727 = vadd.f32 %v2534, %v2726
      %v2728 = vpop.f32.mrb[0].mxu0
      %v2729 = vadd.f32 %v2536, %v2728
      %2730 = vmatprep.mubr.bf16.mxu0 0
      %2731 = vmatmul.mubr.bf16.gmra.mrb[0].mxu0 %v767
      %v2732 = vpop.f32.mrb[0].mxu0
      %v2733 = vadd.f32 %v2540, %v2732
      %v2734 = vpop.f32.mrb[0].mxu0
      %v2735 = vadd.f32 %v2542, %v2734
      %v2736 = vpop.f32.mrb[0].mxu0
      %v2737 = vadd.f32 %v2544, %v2736
      %v2738 = vpop.f32.mrb[0].mxu0
      %v2739 = vadd.f32 %v2546, %v2738
      %2740 = vmatprep.mubr.bf16.mxu0 0
      %2741 = vmatmul.mubr.bf16.gmra.mrb[0].mxu0 %v772
      %v2742 = vpop.f32.mrb[0].mxu0
      %v2743 = vadd.f32 %v2550, %v2742
      %v2744 = vpop.f32.mrb[0].mxu0
      %v2745 = vadd.f32 %v2552, %v2744
      %v2746 = vpop.f32.mrb[0].mxu0
      %v2747 = vadd.f32 %v2554, %v2746
      %v2748 = vpop.f32.mrb[0].mxu0
      %v2749 = vadd.f32 %v2556, %v2748
      %2750 = vmatprep.mubr.bf16.mxu0 0
      %2751 = vmatmul.mubr.bf16.gmra.mrb[0].mxu0 %v777
      %v2752 = vpop.f32.mrb[0].mxu0
      %v2753 = vadd.f32 %v2560, %v2752
      %v2754 = vpop.f32.mrb[0].mxu0
      %v2755 = vadd.f32 %v2562, %v2754
      %v2756 = vpop.f32.mrb[0].mxu0
      %v2757 = vadd.f32 %v2564, %v2756
      %v2758 = vpop.f32.mrb[0].mxu0
      %v2759 = vadd.f32 %v2566, %v2758
      %2760 = vmatprep.mubr.bf16.mxu0 0
      %2761 = vmatmul.mubr.bf16.gmra.mrb[0].mxu0 %v782
      %v2762 = vpop.f32.mrb[0].mxu0
      %v2763 = vadd.f32 %v2570, %v2762
      %v2764 = vpop.f32.mrb[0].mxu0
      %v2765 = vadd.f32 %v2572, %v2764
      %v2766 = vpop.f32.mrb[0].mxu0
      %v2767 = vadd.f32 %v2574, %v2766
      %v2768 = vpop.f32.mrb[0].mxu0
      %v2769 = vadd.f32 %v2576, %v2768
      %2770 = vmatprep.mubr.bf16.mxu0 0
      %2771 = vmatmul.mubr.bf16.gmra.mrb[0].mxu0 %v787
      %v2772 = vpop.f32.mrb[0].mxu0
      %v2773 = vadd.f32 %v2580, %v2772
      %v2774 = vpop.f32.mrb[0].mxu0
      %v2775 = vadd.f32 %v2582, %v2774
      %v2776 = vpop.f32.mrb[0].mxu0
      %v2777 = vadd.f32 %v2584, %v2776
      %v2778 = vpop.f32.mrb[0].mxu0
      %v2779 = vadd.f32 %v2586, %v2778
      %2780 = vmatprep.mubr.bf16.mxu0 0
      %2781 = vmatmul.mubr.bf16.gmra.mrb[0].mxu0 %v792
      %v2782 = vpop.f32.mrb[0].mxu0
      %v2783 = vadd.f32 %v2590, %v2782
      %v2784 = vpop.f32.mrb[0].mxu0
      %v2785 = vadd.f32 %v2592, %v2784
      %v2786 = vpop.f32.mrb[0].mxu0
      %v2787 = vadd.f32 %v2594, %v2786
      %v2788 = vpop.f32.mrb[0].mxu0
      %v2789 = vadd.f32 %v2596, %v2788
      %2790 = vmatprep.mubr.bf16.mxu0 0
      %2791 = vmatmul.mubr.bf16.gmra.mrb[0].mxu0 %v797
      %v2792 = vpop.f32.mrb[0].mxu0
      %v2793 = vadd.f32 %v2600, %v2792
      %v2794 = vpop.f32.mrb[0].mxu0
      %v2795 = vadd.f32 %v2602, %v2794
      %v2796 = vpop.f32.mrb[0].mxu0
      %v2797 = vadd.f32 %v2604, %v2796
      %v2798 = vpop.f32.mrb[0].mxu0
      %v2799 = vadd.f32 %v2606, %v2798
      %2800 = vmatprep.mubr.bf16.mxu0 0
      %2801 = vmatmul.mubr.bf16.gmra.mrb[0].mxu0 %v802
      %v2802 = vpop.f32.mrb[0].mxu0
      %v2803 = vadd.f32 %v2610, %v2802
      %v2804 = vpop.f32.mrb[0].mxu0
      %v2805 = vadd.f32 %v2612, %v2804
      %v2806 = vpop.f32.mrb[0].mxu0
      %v2807 = vadd.f32 %v2614, %v2806
      %v2808 = vpop.f32.mrb[0].mxu0
      %v2809 = vadd.f32 %v2616, %v2808
      %2810 = vmatprep.mubr.bf16.mxu0 0
      %2811 = vmatmul.mubr.bf16.gmra.mrb[0].mxu0 %v807
      %v2812 = vpop.f32.mrb[0].mxu0
      %v2813 = vadd.f32 %v2620, %v2812
      %v2814 = vpop.f32.mrb[0].mxu0
      %v2815 = vadd.f32 %v2622, %v2814
      %v2816 = vpop.f32.mrb[0].mxu0
      %v2817 = vadd.f32 %v2624, %v2816
      %v2818 = vpop.f32.mrb[0].mxu0
      %v2819 = vadd.f32 %v2626, %v2818
      %2820 = vmatprep.mubr.bf16.mxu0 0
      %2821 = vmatmul.mubr.bf16.gmra.mrb[0].mxu0 %v812
      %v2822 = vpop.f32.mrb[0].mxu0
      %v2823 = vadd.f32 %v2630, %v2822
      %v2824 = vpop.f32.mrb[0].mxu0
      %v2825 = vadd.f32 %v2632, %v2824
      %v2826 = vpop.f32.mrb[0].mxu0
      %v2827 = vadd.f32 %v2634, %v2826
      %v2828 = vpop.f32.mrb[0].mxu0
      %v2829 = vadd.f32 %v2636, %v2828
      %2830 = vmatprep.mubr.bf16.mxu0 0
      %2831 = vmatmul.mubr.bf16.gmra.mrb[0].mxu0 %v817
      %v2832 = vpop.f32.mrb[0].mxu0
      %v2833 = vadd.f32 %v2640, %v2832
      %v2834 = vpop.f32.mrb[0].mxu0
      %v2835 = vadd.f32 %v2642, %v2834
      %v2836 = vpop.f32.mrb[0].mxu0
      %v2837 = vadd.f32 %v2644, %v2836
      %v2838 = vpop.f32.mrb[0].mxu0
      %v2839 = vadd.f32 %v2646, %v2838
      %2840 = vmatprep.mubr.bf16.mxu0 0
      %2841 = vmatmul.mubr.bf16.gmra.mrb[0].mxu0 %v822
      %v2842 = vpop.f32.mrb[0].mxu0
      %v2843 = vadd.f32 %v2650, %v2842
      %v2844 = vpop.f32.mrb[0].mxu0
      %v2845 = vadd.f32 %v2652, %v2844
      %v2846 = vpop.f32.mrb[0].mxu0
      %v2847 = vadd.f32 %v2654, %v2846
      %v2848 = vpop.f32.mrb[0].mxu0
      %v2849 = vadd.f32 %v2656, %v2848
      %2850 = vmatprep.mubr.bf16.mxu0 0
      %2851 = vmatmul.mubr.bf16.gmra.mrb[0].mxu0 %v827
      %v2852 = vpop.f32.mrb[0].mxu0
      %v2853 = vadd.f32 %v2660, %v2852
      %v2854 = vpop.f32.mrb[0].mxu0
      %v2855 = vadd.f32 %v2662, %v2854
      %v2856 = vpop.f32.mrb[0].mxu0
      %v2857 = vadd.f32 %v2664, %v2856
      %v2858 = vpop.f32.mrb[0].mxu0
      %v2859 = vadd.f32 %v2666, %v2858
      %2860 = vmatprep.mubr.bf16.mxu0 0
      %2861 = vmatmul.mubr.bf16.gmra.mrb[0].mxu0 %v832
      %v2862 = vpop.f32.mrb[0].mxu0
      %v2863 = vadd.f32 %v2670, %v2862
      %v2864 = vpop.f32.mrb[0].mxu0
      %v2865 = vadd.f32 %v2672, %v2864
      %v2866 = vpop.f32.mrb[0].mxu0
      %v2867 = vadd.f32 %v2674, %v2866
      %v2868 = vpop.f32.mrb[0].mxu0
      %v2869 = vadd.f32 %v2676, %v2868
      %2870 = vdwg.mxu0
      %v2871 = vxor.u32 %v2134, 2147483648
      %v2872 = vxor.u32 %v2138, 2147483648
      %v2873 = vxor.u32 %v2144, 2147483648
      %v2874 = vxor.u32 %v2148, 2147483648
      %v2875 = vxor.u32 %v2154, 2147483648
      %v2876 = vxor.u32 %v2158, 2147483648
      %v2877 = vxor.u32 %v2164, 2147483648
      %v2878 = vxor.u32 %v2168, 2147483648
      %v2879 = vxor.u32 %v2174, 2147483648
      %v2880 = vxor.u32 %v2178, 2147483648
      %v2881 = vxor.u32 %v2184, 2147483648
      %v2882 = vxor.u32 %v2188, 2147483648
      %v2883 = vxor.u32 %v2194, 2147483648
      %v2884 = vxor.u32 %v2198, 2147483648
      %v2885 = vxor.u32 %v2204, 2147483648
      %v2886 = vxor.u32 %v2208, 2147483648
      %v2887 = vxor.u32 %v2214, 2147483648
      %v2888 = vxor.u32 %v2218, 2147483648
      %v2889 = vxor.u32 %v2224, 2147483648
      %v2890 = vxor.u32 %v2228, 2147483648
      %v2891 = vxor.u32 %v2234, 2147483648
      %v2892 = vxor.u32 %v2238, 2147483648
      %v2893 = vxor.u32 %v2244, 2147483648
      %v2894 = vxor.u32 %v2248, 2147483648
      %v2895 = vxor.u32 %v2254, 2147483648
      %v2896 = vxor.u32 %v2258, 2147483648
      %v2897 = vxor.u32 %v2264, 2147483648
      %v2898 = vxor.u32 %v2268, 2147483648
      %v2899 = vxor.u32 %v2274, 2147483648
      %v2900 = vxor.u32 %v2278, 2147483648
      %v2901 = vxor.u32 %v2284, 2147483648
      %v2902 = vxor.u32 %v2288, 2147483648
      %v2903 = vmul.f32 %v2871, 1.442695
      %v2904 = vpow.pop %v2903
      %v2905 = vmul.f32 %v2872, 1.442695
      %v2906 = vpow.pop %v2905
      %v2907 = vmul.f32 %v2873, 1.442695
      %v2908 = vpow.pop %v2907
      %v2909 = vmul.f32 %v2874, 1.442695
      %v2910 = vpow.pop %v2909
      %v2911 = vmul.f32 %v2875, 1.442695
      %v2912 = vpow.pop %v2911
      %v2913 = vmul.f32 %v2876, 1.442695
      %v2914 = vpow.pop %v2913
      %v2915 = vmul.f32 %v2877, 1.442695
      %v2916 = vpow.pop %v2915
      %v2917 = vmul.f32 %v2878, 1.442695
      %v2918 = vpow.pop %v2917
      %v2919 = vmul.f32 %v2879, 1.442695
      %v2920 = vpow.pop %v2919
      %v2921 = vmul.f32 %v2880, 1.442695
      %v2922 = vpow.pop %v2921
      %v2923 = vmul.f32 %v2881, 1.442695
      %v2924 = vpow.pop %v2923
      %v2925 = vmul.f32 %v2882, 1.442695
      %v2926 = vpow.pop %v2925
      %v2927 = vmul.f32 %v2883, 1.442695
      %v2928 = vpow.pop %v2927
      %v2929 = vmul.f32 %v2884, 1.442695
      %v2930 = vpow.pop %v2929
      %v2931 = vmul.f32 %v2885, 1.442695
      %v2932 = vpow.pop %v2931
      %v2933 = vmul.f32 %v2886, 1.442695
      %v2934 = vpow.pop %v2933
      %v2935 = vmul.f32 %v2887, 1.442695
      %v2936 = vpow.pop %v2935
      %v2937 = vmul.f32 %v2888, 1.442695
      %v2938 = vpow.pop %v2937
      %v2939 = vmul.f32 %v2889, 1.442695
      %v2940 = vpow.pop %v2939
      %v2941 = vmul.f32 %v2890, 1.442695
      %v2942 = vpow.pop %v2941
      %v2943 = vmul.f32 %v2891, 1.442695
      %v2944 = vpow.pop %v2943
      %v2945 = vmul.f32 %v2892, 1.442695
      %v2946 = vpow.pop %v2945
      %v2947 = vmul.f32 %v2893, 1.442695
      %v2948 = vpow.pop %v2947
      %v2949 = vmul.f32 %v2894, 1.442695
      %v2950 = vpow.pop %v2949
      %v2951 = vmul.f32 %v2895, 1.442695
      %v2952 = vpow.pop %v2951
      %v2953 = vmul.f32 %v2896, 1.442695
      %v2954 = vpow.pop %v2953
      %v2955 = vmul.f32 %v2897, 1.442695
      %v2956 = vpow.pop %v2955
      %v2957 = vmul.f32 %v2898, 1.442695
      %v2958 = vpow.pop %v2957
      %v2959 = vmul.f32 %v2899, 1.442695
      %v2960 = vpow.pop %v2959
      %v2961 = vmul.f32 %v2900, 1.442695
      %v2962 = vpow.pop %v2961
      %v2963 = vmul.f32 %v2901, 1.442695
      %v2964 = vpow.pop %v2963
      %v2965 = vmul.f32 %v2902, 1.442695
      %v2966 = vpow.pop %v2965
      %v2967 = vadd.f32 %v2904, 1.0
      %v2968 = vadd.f32 %v2906, 1.0
      %v2969 = vadd.f32 %v2908, 1.0
      %v2970 = vadd.f32 %v2910, 1.0
      %v2971 = vadd.f32 %v2912, 1.0
      %v2972 = vadd.f32 %v2914, 1.0
      %v2973 = vadd.f32 %v2916, 1.0
      %v2974 = vadd.f32 %v2918, 1.0
      %v2975 = vadd.f32 %v2920, 1.0
      %v2976 = vadd.f32 %v2922, 1.0
      %v2977 = vadd.f32 %v2924, 1.0
      %v2978 = vadd.f32 %v2926, 1.0
      %v2979 = vadd.f32 %v2928, 1.0
      %v2980 = vadd.f32 %v2930, 1.0
      %v2981 = vadd.f32 %v2932, 1.0
      %v2982 = vadd.f32 %v2934, 1.0
      %v2983 = vadd.f32 %v2936, 1.0
      %v2984 = vadd.f32 %v2938, 1.0
      %v2985 = vadd.f32 %v2940, 1.0
      %v2986 = vadd.f32 %v2942, 1.0
      %v2987 = vadd.f32 %v2944, 1.0
      %v2988 = vadd.f32 %v2946, 1.0
      %v2989 = vadd.f32 %v2948, 1.0
      %v2990 = vadd.f32 %v2950, 1.0
      %v2991 = vadd.f32 %v2952, 1.0
      %v2992 = vadd.f32 %v2954, 1.0
      %v2993 = vadd.f32 %v2956, 1.0
      %v2994 = vadd.f32 %v2958, 1.0
      %v2995 = vadd.f32 %v2960, 1.0
      %v2996 = vadd.f32 %v2962, 1.0
      %v2997 = vadd.f32 %v2964, 1.0
      %v2998 = vadd.f32 %v2966, 1.0
      %v2999 = vrcp.pop %v2967
      %v3000 = vmul.f32 1.0, %v2999
      %v3001 = vrcp.pop %v2968
      %v3002 = vmul.f32 1.0, %v3001
      %v3003 = vrcp.pop %v2969
      %v3004 = vmul.f32 1.0, %v3003
      %v3005 = vrcp.pop %v2970
      %v3006 = vmul.f32 1.0, %v3005
      %v3007 = vrcp.pop %v2971
      %v3008 = vmul.f32 1.0, %v3007
      %v3009 = vrcp.pop %v2972
      %v3010 = vmul.f32 1.0, %v3009
      %v3011 = vrcp.pop %v2973
      %v3012 = vmul.f32 1.0, %v3011
      %v3013 = vrcp.pop %v2974
      %v3014 = vmul.f32 1.0, %v3013
      %v3015 = vrcp.pop %v2975
      %v3016 = vmul.f32 1.0, %v3015
      %v3017 = vrcp.pop %v2976
      %v3018 = vmul.f32 1.0, %v3017
      %v3019 = vrcp.pop %v2977
      %v3020 = vmul.f32 1.0, %v3019
      %v3021 = vrcp.pop %v2978
      %v3022 = vmul.f32 1.0, %v3021
      %v3023 = vrcp.pop %v2979
      %v3024 = vmul.f32 1.0, %v3023
      %v3025 = vrcp.pop %v2980
      %v3026 = vmul.f32 1.0, %v3025
      %v3027 = vrcp.pop %v2981
      %v3028 = vmul.f32 1.0, %v3027
      %v3029 = vrcp.pop %v2982
      %v3030 = vmul.f32 1.0, %v3029
      %v3031 = vrcp.pop %v2983
      %v3032 = vmul.f32 1.0, %v3031
      %v3033 = vrcp.pop %v2984
      %v3034 = vmul.f32 1.0, %v3033
      %v3035 = vrcp.pop %v2985
      %v3036 = vmul.f32 1.0, %v3035
      %v3037 = vrcp.pop %v2986
      %v3038 = vmul.f32 1.0, %v3037
      %v3039 = vrcp.pop %v2987
      %v3040 = vmul.f32 1.0, %v3039
      %v3041 = vrcp.pop %v2988
      %v3042 = vmul.f32 1.0, %v3041
      %v3043 = vrcp.pop %v2989
      %v3044 = vmul.f32 1.0, %v3043
      %v3045 = vrcp.pop %v2990
      %v3046 = vmul.f32 1.0, %v3045
      %v3047 = vrcp.pop %v2991
      %v3048 = vmul.f32 1.0, %v3047
      %v3049 = vrcp.pop %v2992
      %v3050 = vmul.f32 1.0, %v3049
      %v3051 = vrcp.pop %v2993
      %v3052 = vmul.f32 1.0, %v3051
      %v3053 = vrcp.pop %v2994
      %v3054 = vmul.f32 1.0, %v3053
      %v3055 = vrcp.pop %v2995
      %v3056 = vmul.f32 1.0, %v3055
      %v3057 = vrcp.pop %v2996
      %v3058 = vmul.f32 1.0, %v3057
      %v3059 = vrcp.pop %v2997
      %v3060 = vmul.f32 1.0, %v3059
      %v3061 = vrcp.pop %v2998
      %v3062 = vmul.f32 1.0, %v3061
      %v3063 = vxor.u32 %v2136, 2147483648
      %v3064 = vxor.u32 %v2140, 2147483648
      %v3065 = vxor.u32 %v2146, 2147483648
      %v3066 = vxor.u32 %v2150, 2147483648
      %v3067 = vxor.u32 %v2156, 2147483648
      %v3068 = vxor.u32 %v2160, 2147483648
      %v3069 = vxor.u32 %v2166, 2147483648
      %v3070 = vxor.u32 %v2170, 2147483648
      %v3071 = vxor.u32 %v2176, 2147483648
      %v3072 = vxor.u32 %v2180, 2147483648
      %v3073 = vxor.u32 %v2186, 2147483648
      %v3074 = vxor.u32 %v2190, 2147483648
      %v3075 = vxor.u32 %v2196, 2147483648
      %v3076 = vxor.u32 %v2200, 2147483648
      %v3077 = vxor.u32 %v2206, 2147483648
      %v3078 = vxor.u32 %v2210, 2147483648
      %v3079 = vxor.u32 %v2216, 2147483648
      %v3080 = vxor.u32 %v2220, 2147483648
      %v3081 = vxor.u32 %v2226, 2147483648
      %v3082 = vxor.u32 %v2230, 2147483648
      %v3083 = vxor.u32 %v2236, 2147483648
      %v3084 = vxor.u32 %v2240, 2147483648
      %v3085 = vxor.u32 %v2246, 2147483648
      %v3086 = vxor.u32 %v2250, 2147483648
      %v3087 = vxor.u32 %v2256, 2147483648
      %v3088 = vxor.u32 %v2260, 2147483648
      %v3089 = vxor.u32 %v2266, 2147483648
      %v3090 = vxor.u32 %v2270, 2147483648
      %v3091 = vxor.u32 %v2276, 2147483648
      %v3092 = vxor.u32 %v2280, 2147483648
      %v3093 = vxor.u32 %v2286, 2147483648
      %v3094 = vxor.u32 %v2290, 2147483648
      %v3095 = vmul.f32 %v3063, 1.442695
      %v3096 = vpow.pop %v3095
      %v3097 = vmul.f32 %v3064, 1.442695
      %v3098 = vpow.pop %v3097
      %v3099 = vmul.f32 %v3065, 1.442695
      %v3100 = vpow.pop %v3099
      %v3101 = vmul.f32 %v3066, 1.442695
      %v3102 = vpow.pop %v3101
      %v3103 = vmul.f32 %v3067, 1.442695
      %v3104 = vpow.pop %v3103
      %v3105 = vmul.f32 %v3068, 1.442695
      %v3106 = vpow.pop %v3105
      %v3107 = vmul.f32 %v3069, 1.442695
      %v3108 = vpow.pop %v3107
      %v3109 = vmul.f32 %v3070, 1.442695
      %v3110 = vpow.pop %v3109
      %v3111 = vmul.f32 %v3071, 1.442695
      %v3112 = vpow.pop %v3111
      %v3113 = vmul.f32 %v3072, 1.442695
      %v3114 = vpow.pop %v3113
      %v3115 = vmul.f32 %v3073, 1.442695
      %v3116 = vpow.pop %v3115
      %v3117 = vmul.f32 %v3074, 1.442695
      %v3118 = vpow.pop %v3117
      %v3119 = vmul.f32 %v3075, 1.442695
      %v3120 = vpow.pop %v3119
      %v3121 = vmul.f32 %v3076, 1.442695
      %v3122 = vpow.pop %v3121
      %v3123 = vmul.f32 %v3077, 1.442695
      %v3124 = vpow.pop %v3123
      %v3125 = vmul.f32 %v3078, 1.442695
      %v3126 = vpow.pop %v3125
      %v3127 = vmul.f32 %v3079, 1.442695
      %v3128 = vpow.pop %v3127
      %v3129 = vmul.f32 %v3080, 1.442695
      %v3130 = vpow.pop %v3129
      %v3131 = vmul.f32 %v3081, 1.442695
      %v3132 = vpow.pop %v3131
      %v3133 = vmul.f32 %v3082, 1.442695
      %v3134 = vpow.pop %v3133
      %v3135 = vmul.f32 %v3083, 1.442695
      %v3136 = vpow.pop %v3135
      %v3137 = vmul.f32 %v3084, 1.442695
      %v3138 = vpow.pop %v3137
      %v3139 = vmul.f32 %v3085, 1.442695
      %v3140 = vpow.pop %v3139
      %v3141 = vmul.f32 %v3086, 1.442695
      %v3142 = vpow.pop %v3141
      %v3143 = vmul.f32 %v3087, 1.442695
      %v3144 = vpow.pop %v3143
      %v3145 = vmul.f32 %v3088, 1.442695
      %v3146 = vpow.pop %v3145
      %v3147 = vmul.f32 %v3089, 1.442695
      %v3148 = vpow.pop %v3147
      %v3149 = vmul.f32 %v3090, 1.442695
      %v3150 = vpow.pop %v3149
      %v3151 = vmul.f32 %v3091, 1.442695
      %v3152 = vpow.pop %v3151
      %v3153 = vmul.f32 %v3092, 1.442695
      %v3154 = vpow.pop %v3153
      %v3155 = vmul.f32 %v3093, 1.442695
      %v3156 = vpow.pop %v3155
      %v3157 = vmul.f32 %v3094, 1.442695
      %v3158 = vpow.pop %v3157
      %v3159 = vadd.f32 %v3096, 1.0
      %v3160 = vadd.f32 %v3098, 1.0
      %v3161 = vadd.f32 %v3100, 1.0
      %v3162 = vadd.f32 %v3102, 1.0
      %v3163 = vadd.f32 %v3104, 1.0
      %v3164 = vadd.f32 %v3106, 1.0
      %v3165 = vadd.f32 %v3108, 1.0
      %v3166 = vadd.f32 %v3110, 1.0
      %v3167 = vadd.f32 %v3112, 1.0
      %v3168 = vadd.f32 %v3114, 1.0
      %v3169 = vadd.f32 %v3116, 1.0
      %v3170 = vadd.f32 %v3118, 1.0
      %v3171 = vadd.f32 %v3120, 1.0
      %v3172 = vadd.f32 %v3122, 1.0
      %v3173 = vadd.f32 %v3124, 1.0
      %v3174 = vadd.f32 %v3126, 1.0
      %v3175 = vadd.f32 %v3128, 1.0
      %v3176 = vadd.f32 %v3130, 1.0
      %v3177 = vadd.f32 %v3132, 1.0
      %v3178 = vadd.f32 %v3134, 1.0
      %v3179 = vadd.f32 %v3136, 1.0
      %v3180 = vadd.f32 %v3138, 1.0
      %v3181 = vadd.f32 %v3140, 1.0
      %v3182 = vadd.f32 %v3142, 1.0
      %v3183 = vadd.f32 %v3144, 1.0
      %v3184 = vadd.f32 %v3146, 1.0
      %v3185 = vadd.f32 %v3148, 1.0
      %v3186 = vadd.f32 %v3150, 1.0
      %v3187 = vadd.f32 %v3152, 1.0
      %v3188 = vadd.f32 %v3154, 1.0
      %v3189 = vadd.f32 %v3156, 1.0
      %v3190 = vadd.f32 %v3158, 1.0
      %v3191 = vrcp.pop %v3159
      %v3192 = vmul.f32 1.0, %v3191
      %v3193 = vrcp.pop %v3160
      %v3194 = vmul.f32 1.0, %v3193
      %v3195 = vrcp.pop %v3161
      %v3196 = vmul.f32 1.0, %v3195
      %v3197 = vrcp.pop %v3162
      %v3198 = vmul.f32 1.0, %v3197
      %v3199 = vrcp.pop %v3163
      %v3200 = vmul.f32 1.0, %v3199
      %v3201 = vrcp.pop %v3164
      %v3202 = vmul.f32 1.0, %v3201
      %v3203 = vrcp.pop %v3165
      %v3204 = vmul.f32 1.0, %v3203
      %v3205 = vrcp.pop %v3166
      %v3206 = vmul.f32 1.0, %v3205
      %v3207 = vrcp.pop %v3167
      %v3208 = vmul.f32 1.0, %v3207
      %v3209 = vrcp.pop %v3168
      %v3210 = vmul.f32 1.0, %v3209
      %v3211 = vrcp.pop %v3169
      %v3212 = vmul.f32 1.0, %v3211
      %v3213 = vrcp.pop %v3170
      %v3214 = vmul.f32 1.0, %v3213
      %v3215 = vrcp.pop %v3171
      %v3216 = vmul.f32 1.0, %v3215
      %v3217 = vrcp.pop %v3172
      %v3218 = vmul.f32 1.0, %v3217
      %v3219 = vrcp.pop %v3173
      %v3220 = vmul.f32 1.0, %v3219
      %v3221 = vrcp.pop %v3174
      %v3222 = vmul.f32 1.0, %v3221
      %v3223 = vrcp.pop %v3175
      %v3224 = vmul.f32 1.0, %v3223
      %v3225 = vrcp.pop %v3176
      %v3226 = vmul.f32 1.0, %v3225
      %v3227 = vrcp.pop %v3177
      %v3228 = vmul.f32 1.0, %v3227
      %v3229 = vrcp.pop %v3178
      %v3230 = vmul.f32 1.0, %v3229
      %v3231 = vrcp.pop %v3179
      %v3232 = vmul.f32 1.0, %v3231
      %v3233 = vrcp.pop %v3180
      %v3234 = vmul.f32 1.0, %v3233
      %v3235 = vrcp.pop %v3181
      %v3236 = vmul.f32 1.0, %v3235
      %v3237 = vrcp.pop %v3182
      %v3238 = vmul.f32 1.0, %v3237
      %v3239 = vrcp.pop %v3183
      %v3240 = vmul.f32 1.0, %v3239
      %v3241 = vrcp.pop %v3184
      %v3242 = vmul.f32 1.0, %v3241
      %v3243 = vrcp.pop %v3185
      %v3244 = vmul.f32 1.0, %v3243
      %v3245 = vrcp.pop %v3186
      %v3246 = vmul.f32 1.0, %v3245
      %v3247 = vrcp.pop %v3187
      %v3248 = vmul.f32 1.0, %v3247
      %v3249 = vrcp.pop %v3188
      %v3250 = vmul.f32 1.0, %v3249
      %v3251 = vrcp.pop %v3189
      %v3252 = vmul.f32 1.0, %v3251
      %v3253 = vrcp.pop %v3190
      %v3254 = vmul.f32 1.0, %v3253
      %v3255 = vxor.u32 %v2715, 2147483648
      %v3256 = vxor.u32 %v2719, 2147483648
      %v3257 = vxor.u32 %v2725, 2147483648
      %v3258 = vxor.u32 %v2729, 2147483648
      %v3259 = vxor.u32 %v2735, 2147483648
      %v3260 = vxor.u32 %v2739, 2147483648
      %v3261 = vxor.u32 %v2745, 2147483648
      %v3262 = vxor.u32 %v2749, 2147483648
      %v3263 = vxor.u32 %v2755, 2147483648
      %v3264 = vxor.u32 %v2759, 2147483648
      %v3265 = vxor.u32 %v2765, 2147483648
      %v3266 = vxor.u32 %v2769, 2147483648
      %v3267 = vxor.u32 %v2775, 2147483648
      %v3268 = vxor.u32 %v2779, 2147483648
      %v3269 = vxor.u32 %v2785, 2147483648
      %v3270 = vxor.u32 %v2789, 2147483648
      %v3271 = vxor.u32 %v2795, 2147483648
      %v3272 = vxor.u32 %v2799, 2147483648
      %v3273 = vxor.u32 %v2805, 2147483648
      %v3274 = vxor.u32 %v2809, 2147483648
      %v3275 = vxor.u32 %v2815, 2147483648
      %v3276 = vxor.u32 %v2819, 2147483648
      %v3277 = vxor.u32 %v2825, 2147483648
      %v3278 = vxor.u32 %v2829, 2147483648
      %v3279 = vxor.u32 %v2835, 2147483648
      %v3280 = vxor.u32 %v2839, 2147483648
      %v3281 = vxor.u32 %v2845, 2147483648
      %v3282 = vxor.u32 %v2849, 2147483648
      %v3283 = vxor.u32 %v2855, 2147483648
      %v3284 = vxor.u32 %v2859, 2147483648
      %v3285 = vxor.u32 %v2865, 2147483648
      %v3286 = vxor.u32 %v2869, 2147483648
      %v3287 = vmul.f32 %v3255, 1.442695
      %v3288 = vpow.pop %v3287
      %v3289 = vmul.f32 %v3256, 1.442695
      %v3290 = vpow.pop %v3289
      %v3291 = vmul.f32 %v3257, 1.442695
      %v3292 = vpow.pop %v3291
      %v3293 = vmul.f32 %v3258, 1.442695
      %v3294 = vpow.pop %v3293
      %v3295 = vmul.f32 %v3259, 1.442695
      %v3296 = vpow.pop %v3295
      %v3297 = vmul.f32 %v3260, 1.442695
      %v3298 = vpow.pop %v3297
      %v3299 = vmul.f32 %v3261, 1.442695
      %v3300 = vpow.pop %v3299
      %v3301 = vmul.f32 %v3262, 1.442695
      %v3302 = vpow.pop %v3301
      %v3303 = vmul.f32 %v3263, 1.442695
      %v3304 = vpow.pop %v3303
      %v3305 = vmul.f32 %v3264, 1.442695
      %v3306 = vpow.pop %v3305
      %v3307 = vmul.f32 %v3265, 1.442695
      %v3308 = vpow.pop %v3307
      %v3309 = vmul.f32 %v3266, 1.442695
      %v3310 = vpow.pop %v3309
      %v3311 = vmul.f32 %v3267, 1.442695
      %v3312 = vpow.pop %v3311
      %v3313 = vmul.f32 %v3268, 1.442695
      %v3314 = vpow.pop %v3313
      %v3315 = vmul.f32 %v3269, 1.442695
      %v3316 = vpow.pop %v3315
      %v3317 = vmul.f32 %v3270, 1.442695
      %v3318 = vpow.pop %v3317
      %v3319 = vmul.f32 %v3271, 1.442695
      %v3320 = vpow.pop %v3319
      %v3321 = vmul.f32 %v3272, 1.442695
      %v3322 = vpow.pop %v3321
      %v3323 = vmul.f32 %v3273, 1.442695
      %v3324 = vpow.pop %v3323
      %v3325 = vmul.f32 %v3274, 1.442695
      %v3326 = vpow.pop %v3325
      %v3327 = vmul.f32 %v3275, 1.442695
      %v3328 = vpow.pop %v3327
      %v3329 = vmul.f32 %v3276, 1.442695
      %v3330 = vpow.pop %v3329
      %v3331 = vmul.f32 %v3277, 1.442695
      %v3332 = vpow.pop %v3331
      %v3333 = vmul.f32 %v3278, 1.442695
      %v3334 = vpow.pop %v3333
      %v3335 = vmul.f32 %v3279, 1.442695
      %v3336 = vpow.pop %v3335
      %v3337 = vmul.f32 %v3280, 1.442695
      %v3338 = vpow.pop %v3337
      %v3339 = vmul.f32 %v3281, 1.442695
      %v3340 = vpow.pop %v3339
      %v3341 = vmul.f32 %v3282, 1.442695
      %v3342 = vpow.pop %v3341
      %v3343 = vmul.f32 %v3283, 1.442695
      %v3344 = vpow.pop %v3343
      %v3345 = vmul.f32 %v3284, 1.442695
      %v3346 = vpow.pop %v3345
      %v3347 = vmul.f32 %v3285, 1.442695
      %v3348 = vpow.pop %v3347
      %v3349 = vmul.f32 %v3286, 1.442695
      %v3350 = vpow.pop %v3349
      %v3351 = vadd.f32 %v3288, 1.0
      %v3352 = vadd.f32 %v3290, 1.0
      %v3353 = vadd.f32 %v3292, 1.0
      %v3354 = vadd.f32 %v3294, 1.0
      %v3355 = vadd.f32 %v3296, 1.0
      %v3356 = vadd.f32 %v3298, 1.0
      %v3357 = vadd.f32 %v3300, 1.0
      %v3358 = vadd.f32 %v3302, 1.0
      %v3359 = vadd.f32 %v3304, 1.0
      %v3360 = vadd.f32 %v3306, 1.0
      %v3361 = vadd.f32 %v3308, 1.0
      %v3362 = vadd.f32 %v3310, 1.0
      %v3363 = vadd.f32 %v3312, 1.0
      %v3364 = vadd.f32 %v3314, 1.0
      %v3365 = vadd.f32 %v3316, 1.0
      %v3366 = vadd.f32 %v3318, 1.0
      %v3367 = vadd.f32 %v3320, 1.0
      %v3368 = vadd.f32 %v3322, 1.0
      %v3369 = vadd.f32 %v3324, 1.0
      %v3370 = vadd.f32 %v3326, 1.0
      %v3371 = vadd.f32 %v3328, 1.0
      %v3372 = vadd.f32 %v3330, 1.0
      %v3373 = vadd.f32 %v3332, 1.0
      %v3374 = vadd.f32 %v3334, 1.0
      %v3375 = vadd.f32 %v3336, 1.0
      %v3376 = vadd.f32 %v3338, 1.0
      %v3377 = vadd.f32 %v3340, 1.0
      %v3378 = vadd.f32 %v3342, 1.0
      %v3379 = vadd.f32 %v3344, 1.0
      %v3380 = vadd.f32 %v3346, 1.0
      %v3381 = vadd.f32 %v3348, 1.0
      %v3382 = vadd.f32 %v3350, 1.0
      %v3383 = vrcp.pop %v3351
      %v3384 = vmul.f32 1.0, %v3383
      %v3385 = vrcp.pop %v3352
      %v3386 = vmul.f32 1.0, %v3385
      %v3387 = vrcp.pop %v3353
      %v3388 = vmul.f32 1.0, %v3387
      %v3389 = vrcp.pop %v3354
      %v3390 = vmul.f32 1.0, %v3389
      %v3391 = vrcp.pop %v3355
      %v3392 = vmul.f32 1.0, %v3391
      %v3393 = vrcp.pop %v3356
      %v3394 = vmul.f32 1.0, %v3393
      %v3395 = vrcp.pop %v3357
      %v3396 = vmul.f32 1.0, %v3395
      %v3397 = vrcp.pop %v3358
      %v3398 = vmul.f32 1.0, %v3397
      %v3399 = vrcp.pop %v3359
      %v3400 = vmul.f32 1.0, %v3399
      %v3401 = vrcp.pop %v3360
      %v3402 = vmul.f32 1.0, %v3401
      %v3403 = vrcp.pop %v3361
      %v3404 = vmul.f32 1.0, %v3403
      %v3405 = vrcp.pop %v3362
      %v3406 = vmul.f32 1.0, %v3405
      %v3407 = vrcp.pop %v3363
      %v3408 = vmul.f32 1.0, %v3407
      %v3409 = vrcp.pop %v3364
      %v3410 = vmul.f32 1.0, %v3409
      %v3411 = vrcp.pop %v3365
      %v3412 = vmul.f32 1.0, %v3411
      %v3413 = vrcp.pop %v3366
      %v3414 = vmul.f32 1.0, %v3413
      %v3415 = vrcp.pop %v3367
      %v3416 = vmul.f32 1.0, %v3415
      %v3417 = vrcp.pop %v3368
      %v3418 = vmul.f32 1.0, %v3417
      %v3419 = vrcp.pop %v3369
      %v3420 = vmul.f32 1.0, %v3419
      %v3421 = vrcp.pop %v3370
      %v3422 = vmul.f32 1.0, %v3421
      %v3423 = vrcp.pop %v3371
      %v3424 = vmul.f32 1.0, %v3423
      %v3425 = vrcp.pop %v3372
      %v3426 = vmul.f32 1.0, %v3425
      %v3427 = vrcp.pop %v3373
      %v3428 = vmul.f32 1.0, %v3427
      %v3429 = vrcp.pop %v3374
      %v3430 = vmul.f32 1.0, %v3429
      %v3431 = vrcp.pop %v3375
      %v3432 = vmul.f32 1.0, %v3431
      %v3433 = vrcp.pop %v3376
      %v3434 = vmul.f32 1.0, %v3433
      %v3435 = vrcp.pop %v3377
      %v3436 = vmul.f32 1.0, %v3435
      %v3437 = vrcp.pop %v3378
      %v3438 = vmul.f32 1.0, %v3437
      %v3439 = vrcp.pop %v3379
      %v3440 = vmul.f32 1.0, %v3439
      %v3441 = vrcp.pop %v3380
      %v3442 = vmul.f32 1.0, %v3441
      %v3443 = vrcp.pop %v3381
      %v3444 = vmul.f32 1.0, %v3443
      %v3445 = vrcp.pop %v3382
      %v3446 = vmul.f32 1.0, %v3445
      %v3447 = vld [vmem:[%s226] sm:$0xff]
      %v3448 = vld [vmem:[%s226 + $0x8] sm:$0xff]
      %v3449 = vld [vmem:[%s226 + $0x10] sm:$0xff]
      %v3450 = vld [vmem:[%s226 + $0x18] sm:$0xff]
      %v3451 = vld [vmem:[%s226 + $0x20] sm:$0xff]
      %v3452 = vld [vmem:[%s226 + $0x28] sm:$0xff]
      %v3453 = vld [vmem:[%s226 + $0x30] sm:$0xff]
      %v3454 = vld [vmem:[%s226 + $0x38] sm:$0xff]
      %v3455 = vld [vmem:[%s226 + $0x40] sm:$0xff]
      %v3456 = vld [vmem:[%s226 + $0x48] sm:$0xff]
      %v3457 = vld [vmem:[%s226 + $0x50] sm:$0xff]
      %v3458 = vld [vmem:[%s226 + $0x58] sm:$0xff]
      %v3459 = vld [vmem:[%s226 + $0x60] sm:$0xff]
      %v3460 = vld [vmem:[%s226 + $0x68] sm:$0xff]
      %v3461 = vld [vmem:[%s226 + $0x70] sm:$0xff]
      %v3462 = vld [vmem:[%s226 + $0x78] sm:$0xff]
      %v3463 = vld [vmem:[%s226 + $0x80] sm:$0xff]
      %v3464 = vld [vmem:[%s226 + $0x88] sm:$0xff]
      %v3465 = vld [vmem:[%s226 + $0x90] sm:$0xff]
      %v3466 = vld [vmem:[%s226 + $0x98] sm:$0xff]
      %v3467 = vld [vmem:[%s226 + $0xa0] sm:$0xff]
      %v3468 = vld [vmem:[%s226 + $0xa8] sm:$0xff]
      %v3469 = vld [vmem:[%s226 + $0xb0] sm:$0xff]
      %v3470 = vld [vmem:[%s226 + $0xb8] sm:$0xff]
      %v3471 = vld [vmem:[%s226 + $0xc0] sm:$0xff]
      %v3472 = vld [vmem:[%s226 + $0xc8] sm:$0xff]
      %v3473 = vld [vmem:[%s226 + $0xd0] sm:$0xff]
      %v3474 = vld [vmem:[%s226 + $0xd8] sm:$0xff]
      %v3475 = vld [vmem:[%s226 + $0xe0] sm:$0xff]
      %v3476 = vld [vmem:[%s226 + $0xe8] sm:$0xff]
      %v3477 = vld [vmem:[%s226 + $0xf0] sm:$0xff]
      %v3478 = vld [vmem:[%s226 + $0xf8] sm:$0xff]
      %v3479 = vmul.f32 %v3192, %v3447
      %v3480 = vmul.f32 %v3194, %v3448
      %v3481 = vmul.f32 %v3196, %v3449
      %v3482 = vmul.f32 %v3198, %v3450
      %v3483 = vmul.f32 %v3200, %v3451
      %v3484 = vmul.f32 %v3202, %v3452
      %v3485 = vmul.f32 %v3204, %v3453
      %v3486 = vmul.f32 %v3206, %v3454
      %v3487 = vmul.f32 %v3208, %v3455
      %v3488 = vmul.f32 %v3210, %v3456
      %v3489 = vmul.f32 %v3212, %v3457
      %v3490 = vmul.f32 %v3214, %v3458
      %v3491 = vmul.f32 %v3216, %v3459
      %v3492 = vmul.f32 %v3218, %v3460
      %v3493 = vmul.f32 %v3220, %v3461
      %v3494 = vmul.f32 %v3222, %v3462
      %v3495 = vmul.f32 %v3224, %v3463
      %v3496 = vmul.f32 %v3226, %v3464
      %v3497 = vmul.f32 %v3228, %v3465
      %v3498 = vmul.f32 %v3230, %v3466
      %v3499 = vmul.f32 %v3232, %v3467
      %v3500 = vmul.f32 %v3234, %v3468
      %v3501 = vmul.f32 %v3236, %v3469
      %v3502 = vmul.f32 %v3238, %v3470
      %v3503 = vmul.f32 %v3240, %v3471
      %v3504 = vmul.f32 %v3242, %v3472
      %v3505 = vmul.f32 %v3244, %v3473
      %v3506 = vmul.f32 %v3246, %v3474
      %v3507 = vmul.f32 %v3248, %v3475
      %v3508 = vmul.f32 %v3250, %v3476
      %v3509 = vmul.f32 %v3252, %v3477
      %v3510 = vmul.f32 %v3254, %v3478
      %v3511 = vmul.f32 %v3000, %v2713
      %v3512 = vmul.f32 %v3002, %v2717
      %v3513 = vmul.f32 %v3004, %v2723
      %v3514 = vmul.f32 %v3006, %v2727
      %v3515 = vmul.f32 %v3008, %v2733
      %v3516 = vmul.f32 %v3010, %v2737
      %v3517 = vmul.f32 %v3012, %v2743
      %v3518 = vmul.f32 %v3014, %v2747
      %v3519 = vmul.f32 %v3016, %v2753
      %v3520 = vmul.f32 %v3018, %v2757
      %v3521 = vmul.f32 %v3020, %v2763
      %v3522 = vmul.f32 %v3022, %v2767
      %v3523 = vmul.f32 %v3024, %v2773
      %v3524 = vmul.f32 %v3026, %v2777
      %v3525 = vmul.f32 %v3028, %v2783
      %v3526 = vmul.f32 %v3030, %v2787
      %v3527 = vmul.f32 %v3032, %v2793
      %v3528 = vmul.f32 %v3034, %v2797
      %v3529 = vmul.f32 %v3036, %v2803
      %v3530 = vmul.f32 %v3038, %v2807
      %v3531 = vmul.f32 %v3040, %v2813
      %v3532 = vmul.f32 %v3042, %v2817
      %v3533 = vmul.f32 %v3044, %v2823
      %v3534 = vmul.f32 %v3046, %v2827
      %v3535 = vmul.f32 %v3048, %v2833
      %v3536 = vmul.f32 %v3050, %v2837
      %v3537 = vmul.f32 %v3052, %v2843
      %v3538 = vmul.f32 %v3054, %v2847
      %v3539 = vmul.f32 %v3056, %v2853
      %v3540 = vmul.f32 %v3058, %v2857
      %v3541 = vmul.f32 %v3060, %v2863
      %v3542 = vmul.f32 %v3062, %v2867
      %v3543 = vadd.f32 %v3479, %v3511
      %v3544 = vadd.f32 %v3480, %v3512
      %v3545 = vadd.f32 %v3481, %v3513
      %v3546 = vadd.f32 %v3482, %v3514
      %v3547 = vadd.f32 %v3483, %v3515
      %v3548 = vadd.f32 %v3484, %v3516
      %v3549 = vadd.f32 %v3485, %v3517
      %v3550 = vadd.f32 %v3486, %v3518
      %v3551 = vadd.f32 %v3487, %v3519
      %v3552 = vadd.f32 %v3488, %v3520
      %v3553 = vadd.f32 %v3489, %v3521
      %v3554 = vadd.f32 %v3490, %v3522
      %v3555 = vadd.f32 %v3491, %v3523
      %v3556 = vadd.f32 %v3492, %v3524
      %v3557 = vadd.f32 %v3493, %v3525
      %v3558 = vadd.f32 %v3494, %v3526
      %v3559 = vadd.f32 %v3495, %v3527
      %v3560 = vadd.f32 %v3496, %v3528
      %v3561 = vadd.f32 %v3497, %v3529
      %v3562 = vadd.f32 %v3498, %v3530
      %v3563 = vadd.f32 %v3499, %v3531
      %v3564 = vadd.f32 %v3500, %v3532
      %v3565 = vadd.f32 %v3501, %v3533
      %v3566 = vadd.f32 %v3502, %v3534
      %v3567 = vadd.f32 %v3503, %v3535
      %v3568 = vadd.f32 %v3504, %v3536
      %v3569 = vadd.f32 %v3505, %v3537
      %v3570 = vadd.f32 %v3506, %v3538
      %v3571 = vadd.f32 %v3507, %v3539
      %v3572 = vadd.f32 %v3508, %v3540
      %v3573 = vadd.f32 %v3509, %v3541
      %v3574 = vadd.f32 %v3510, %v3542
      %v3575 = vtanh.pop %v3543
      %v3576 = vtanh.pop %v3544
      %v3577 = vtanh.pop %v3545
      %v3578 = vtanh.pop %v3546
      %v3579 = vtanh.pop %v3547
      %v3580 = vtanh.pop %v3548
      %v3581 = vtanh.pop %v3549
      %v3582 = vtanh.pop %v3550
      %v3583 = vtanh.pop %v3551
      %v3584 = vtanh.pop %v3552
      %v3585 = vtanh.pop %v3553
      %v3586 = vtanh.pop %v3554
      %v3587 = vtanh.pop %v3555
      %v3588 = vtanh.pop %v3556
      %v3589 = vtanh.pop %v3557
      %v3590 = vtanh.pop %v3558
      %v3591 = vtanh.pop %v3559
      %v3592 = vtanh.pop %v3560
      %v3593 = vtanh.pop %v3561
      %v3594 = vtanh.pop %v3562
      %v3595 = vtanh.pop %v3563
      %v3596 = vtanh.pop %v3564
      %v3597 = vtanh.pop %v3565
      %v3598 = vtanh.pop %v3566
      %v3599 = vtanh.pop %v3567
      %v3600 = vtanh.pop %v3568
      %v3601 = vtanh.pop %v3569
      %v3602 = vtanh.pop %v3570
      %v3603 = vtanh.pop %v3571
      %v3604 = vtanh.pop %v3572
      %v3605 = vtanh.pop %v3573
      %v3606 = vtanh.pop %v3574
      %v3607 = vmul.f32 %v3384, %v3575
      %v3608 = vmul.f32 %v3386, %v3576
      %v3609 = vmul.f32 %v3388, %v3577
      %v3610 = vmul.f32 %v3390, %v3578
      %v3611 = vmul.f32 %v3392, %v3579
      %v3612 = vmul.f32 %v3394, %v3580
      %v3613 = vmul.f32 %v3396, %v3581
      %v3614 = vmul.f32 %v3398, %v3582
      %v3615 = vmul.f32 %v3400, %v3583
      %v3616 = vmul.f32 %v3402, %v3584
      %v3617 = vmul.f32 %v3404, %v3585
      %v3618 = vmul.f32 %v3406, %v3586
      %v3619 = vmul.f32 %v3408, %v3587
      %v3620 = vmul.f32 %v3410, %v3588
      %v3621 = vmul.f32 %v3412, %v3589
      %v3622 = vmul.f32 %v3414, %v3590
      %v3623 = vmul.f32 %v3416, %v3591
      %v3624 = vmul.f32 %v3418, %v3592
      %v3625 = vmul.f32 %v3420, %v3593
      %v3626 = vmul.f32 %v3422, %v3594
      %v3627 = vmul.f32 %v3424, %v3595
      %v3628 = vmul.f32 %v3426, %v3596
      %v3629 = vmul.f32 %v3428, %v3597
      %v3630 = vmul.f32 %v3430, %v3598
      %v3631 = vmul.f32 %v3432, %v3599
      %v3632 = vmul.f32 %v3434, %v3600
      %v3633 = vmul.f32 %v3436, %v3601
      %v3634 = vmul.f32 %v3438, %v3602
      %v3635 = vmul.f32 %v3440, %v3603
      %v3636 = vmul.f32 %v3442, %v3604
      %v3637 = vmul.f32 %v3444, %v3605
      %v3638 = vmul.f32 %v3446, %v3606
      %3639 = vst [vmem:[%s232] sm:$0xff] %v3607
      %3640 = vst [vmem:[%s232 + $0x8] sm:$0xff] %v3608
      %3641 = vst [vmem:[%s232 + $0x10] sm:$0xff] %v3609
      %3642 = vst [vmem:[%s232 + $0x18] sm:$0xff] %v3610
      %3643 = vst [vmem:[%s232 + $0x20] sm:$0xff] %v3611
      %3644 = vst [vmem:[%s232 + $0x28] sm:$0xff] %v3612
      %3645 = vst [vmem:[%s232 + $0x30] sm:$0xff] %v3613
      %3646 = vst [vmem:[%s232 + $0x38] sm:$0xff] %v3614
      %3647 = vst [vmem:[%s232 + $0x40] sm:$0xff] %v3615
      %3648 = vst [vmem:[%s232 + $0x48] sm:$0xff] %v3616
      %3649 = vst [vmem:[%s232 + $0x50] sm:$0xff] %v3617
      %3650 = vst [vmem:[%s232 + $0x58] sm:$0xff] %v3618
      %3651 = vst [vmem:[%s232 + $0x60] sm:$0xff] %v3619
      %3652 = vst [vmem:[%s232 + $0x68] sm:$0xff] %v3620
      %3653 = vst [vmem:[%s232 + $0x70] sm:$0xff] %v3621
      %3654 = vst [vmem:[%s232 + $0x78] sm:$0xff] %v3622
      %3655 = vst [vmem:[%s232 + $0x80] sm:$0xff] %v3623
      %3656 = vst [vmem:[%s232 + $0x88] sm:$0xff] %v3624
      %3657 = vst [vmem:[%s232 + $0x90] sm:$0xff] %v3625
      %3658 = vst [vmem:[%s232 + $0x98] sm:$0xff] %v3626
      %3659 = vst [vmem:[%s232 + $0xa0] sm:$0xff] %v3627
      %3660 = vst [vmem:[%s232 + $0xa8] sm:$0xff] %v3628
      %3661 = vst [vmem:[%s232 + $0xb0] sm:$0xff] %v3629
      %3662 = vst [vmem:[%s232 + $0xb8] sm:$0xff] %v3630
      %3663 = vst [vmem:[%s232 + $0xc0] sm:$0xff] %v3631
      %3664 = vst [vmem:[%s232 + $0xc8] sm:$0xff] %v3632
      %3665 = vst [vmem:[%s232 + $0xd0] sm:$0xff] %v3633
      %3666 = vst [vmem:[%s232 + $0xd8] sm:$0xff] %v3634
      %3667 = vst [vmem:[%s232 + $0xe0] sm:$0xff] %v3635
      %3668 = vst [vmem:[%s232 + $0xe8] sm:$0xff] %v3636
      %3669 = vst [vmem:[%s232 + $0xf0] sm:$0xff] %v3637
      %3670 = vst [vmem:[%s232 + $0xf8] sm:$0xff] %v3638
      %3671 = vst [vmem:[%s238] sm:$0xff] %v3543
      %3672 = vst [vmem:[%s238 + $0x8] sm:$0xff] %v3544
      %3673 = vst [vmem:[%s238 + $0x10] sm:$0xff] %v3545
      %3674 = vst [vmem:[%s238 + $0x18] sm:$0xff] %v3546
      %3675 = vst [vmem:[%s238 + $0x20] sm:$0xff] %v3547
      %3676 = vst [vmem:[%s238 + $0x28] sm:$0xff] %v3548
      %3677 = vst [vmem:[%s238 + $0x30] sm:$0xff] %v3549
      %3678 = vst [vmem:[%s238 + $0x38] sm:$0xff] %v3550
      %3679 = vst [vmem:[%s238 + $0x40] sm:$0xff] %v3551
      %3680 = vst [vmem:[%s238 + $0x48] sm:$0xff] %v3552
      %3681 = vst [vmem:[%s238 + $0x50] sm:$0xff] %v3553
      %3682 = vst [vmem:[%s238 + $0x58] sm:$0xff] %v3554
      %3683 = vst [vmem:[%s238 + $0x60] sm:$0xff] %v3555
      %3684 = vst [vmem:[%s238 + $0x68] sm:$0xff] %v3556
      %3685 = vst [vmem:[%s238 + $0x70] sm:$0xff] %v3557
      %3686 = vst [vmem:[%s238 + $0x78] sm:$0xff] %v3558
      %3687 = vst [vmem:[%s238 + $0x80] sm:$0xff] %v3559
      %3688 = vst [vmem:[%s238 + $0x88] sm:$0xff] %v3560
      %3689 = vst [vmem:[%s238 + $0x90] sm:$0xff] %v3561
      %3690 = vst [vmem:[%s238 + $0x98] sm:$0xff] %v3562
      %3691 = vst [vmem:[%s238 + $0xa0] sm:$0xff] %v3563
      %3692 = vst [vmem:[%s238 + $0xa8] sm:$0xff] %v3564
      %3693 = vst [vmem:[%s238 + $0xb0] sm:$0xff] %v3565
      %3694 = vst [vmem:[%s238 + $0xb8] sm:$0xff] %v3566
      %3695 = vst [vmem:[%s238 + $0xc0] sm:$0xff] %v3567
      %3696 = vst [vmem:[%s238 + $0xc8] sm:$0xff] %v3568
      %3697 = vst [vmem:[%s238 + $0xd0] sm:$0xff] %v3569
      %3698 = vst [vmem:[%s238 + $0xd8] sm:$0xff] %v3570
      %3699 = vst [vmem:[%s238 + $0xe0] sm:$0xff] %v3571
      %3700 = vst [vmem:[%s238 + $0xe8] sm:$0xff] %v3572
      %3701 = vst [vmem:[%s238 + $0xf0] sm:$0xff] %v3573
      %3702 = vst [vmem:[%s238 + $0xf8] sm:$0xff] %v3574
      %s3703 = smul.u32 32, %s16
      %p3704 = scmp.lt.s32.totalorder %s3703, 63
      %s3705 = scalar_select %p3704, %s3703, 63
      %s3706 = smul.addr %s3705, 8
      %s3707 = scalar_lea.vmem %s3, %s3706
      %s3708 = smul.u32 32, %s16
      %p3709 = scmp.lt.s32.totalorder %s3708, 63
      %s3710 = scalar_select %p3709, %s3708, 63
      %s3711 = smul.addr %s3710, 8
      %s3712 = scalar_lea.vmem %s4, %s3711
      // Predicated region
      $region33: #{closed_call.21} parent=31 // pred_check
        %p3713 = pneg %p107
      $region34: #{closed_call.21} parent=31 // pred_check_branch
        %3715 = sbr.rel (%p3713) target = $region36
      $region35: #{closed_call.21} parent=31 // pred_region
        %s3716 = smul.u32 32, %s16
      $region36: #{closed_call.21} parent=31 // pred_fallthru
        _
      // Predicated region
      $region37: #{closed_call.21} parent=31 // pred_check
        %p3717 = pneg %p133
      $region38: #{closed_call.21} parent=31 // pred_check_branch
        %3719 = sbr.rel (%p3717) target = $region40
      $region39: #{closed_call.21} parent=31 // pred_region
        %s3720 = smul.u32 32, %s16
      $region40: #{closed_call.21} parent=31 // pred_fallthru
        _
    $region32: #{closed_call.21} parent=5 // pred_fallthru
      _
    %p3721 = scmp.le.s32.totalorder 2, %s11
    // Predicated region
    $region41: #{closed_call.21} parent=5 // pred_check
      %p3722 = pneg %p3721
    $region42: #{closed_call.21} parent=5 // pred_check_branch
      %3724 = sbr.rel (%p3722) target = $region44
    $region43: #{closed_call.21} parent=5 // pred_region
      %s3725 = ssub.s32 %s11, 2
      // Predicated region
      $region45: #{closed_call.21} parent=43 // pred_check
        %p3726 = pneg %p113
      $region46: #{closed_call.21} parent=43 // pred_check_branch
        %3728 = sbr.rel (%p3726) target = $region48
      $region47: #{closed_call.21} parent=43 // pred_region
        %s3729 = smul.u32 32, %s17
        %p3730 = scmp.lt.s32.totalorder %s3729, 63
        %s3731 = scalar_select %p3730, %s3729, 63
        %s3732 = smul.addr %s3731, 8
        %s3733 = scalar_lea.vmem %s3, %s3732
      $region48: #{closed_call.21} parent=43 // pred_fallthru
        _
      // Predicated region
      $region49: #{closed_call.21} parent=43 // pred_check
        %p3734 = pneg %p139
      $region50: #{closed_call.21} parent=43 // pred_check_branch
        %3736 = sbr.rel (%p3734) target = $region52
      $region51: #{closed_call.21} parent=43 // pred_region
        %s3737 = smul.u32 32, %s17
        %p3738 = scmp.lt.s32.totalorder %s3737, 63
        %s3739 = scalar_select %p3738, %s3737, 63
        %s3740 = smul.addr %s3739, 8
        %s3741 = scalar_lea.vmem %s4, %s3740
      $region52: #{closed_call.21} parent=43 // pred_fallthru
        _
    $region44: #{closed_call.21} parent=5 // pred_fallthru
      _
  $region6: #{closed_call.21} parent=0 // loop_footer
    %s15 = sadd.s32 1, %s11
  $region7: #{closed_call.21} parent=0 // loop_footer_branch
    %10 = sbr.rel target = $region3
  $region8: #{closed_call.21} parent=0 // loop_exit
    _

</llo_original>
